<compile_context>
chip_gen: v7x
topology: tpu7x:2x2x1
jax: 0.10.0
libtpu: 0.0.40
codegen_flags: <defaults>
</compile_context>

<pallas_src>
import math

import jax
import jax.numpy as jnp
from jax.experimental import pallas as pl
from jax.experimental.pallas import tpu as pltpu

NUM_HEADS = 6
HIDDEN = 768
HEAD_DIM = HIDDEN // NUM_HEADS  # 128

# Plain Python floats: jnp scalars at module scope would be captured as jaxpr
# constants, which pallas_call rejects.
_NEG_INF = -1e18
_SCALE = 1.0 / math.sqrt(HEAD_DIM)


def _attn_body(hs_ref, kv_ref, mask_ref,
               wq_ref, bq_ref, wk_ref, bk_ref, wv_ref, bv_ref,
               out_ref, k_cache, v_cache):
    qi = pl.program_id(1)

    # ---- K/V projections: once per batch element, cached in VMEM scratch ----
    @pl.when(qi == 0)
    def _project_kv():
        y = kv_ref[0].astype(jnp.bfloat16)                         # (Sk, HIDDEN)
        k_all = (jnp.dot(y, wk_ref[...], preferred_element_type=jnp.float32)
                 + bk_ref[...]).astype(jnp.bfloat16)               # (Sk, HIDDEN)
        v_all = (jnp.dot(y, wv_ref[...], preferred_element_type=jnp.float32)
                 + bv_ref[...]).astype(jnp.bfloat16)
        for h in range(NUM_HEADS):                                  # static unroll, 128-lane slices
            sl = slice(h * HEAD_DIM, (h + 1) * HEAD_DIM)
            k_cache[h] = k_all[:, sl]
            v_cache[h] = v_all[:, sl]

    # ---- Q projection for this query tile (fused across heads: one 768-wide matmul)
    x = hs_ref[0].astype(jnp.bfloat16)                              # (tq, HIDDEN)
    q_all = (jnp.dot(x, wq_ref[...], preferred_element_type=jnp.float32)
             + bq_ref[...]).astype(jnp.bfloat16)                    # (tq, HIDDEN)
    q3 = jnp.stack([q_all[:, h * HEAD_DIM:(h + 1) * HEAD_DIM]
                    for h in range(NUM_HEADS)], axis=0)             # (H, tq, D)

    k3 = k_cache[...]                                               # (H, Sk, D) bf16
    v3 = v_cache[...]                                               # (H, Sk, D) bf16

    # ---- Attention, batched over heads (single MXU stream) ----
    scores = jnp.einsum("hqd,hkd->hqk", q3, k3,
                        preferred_element_type=jnp.float32) * _SCALE    # (H, tq, Sk) f32

    if mask_ref is not None:
        m = mask_ref[0] > 0                                         # (tq, Sk); broadcast over heads
        scores = jnp.where(m[None, :, :], _NEG_INF, scores)

    # Numerically-stable softmax along the key axis (f32), EUP reciprocal.
    scores = scores - jnp.max(scores, axis=-1, keepdims=True)
    p = jnp.exp(scores)
    inv = pl.reciprocal(jnp.sum(p, axis=-1, keepdims=True), approx=True)
    p = (p * inv).astype(jnp.bfloat16)
    # TODO(synk): dropout on attention probs omitted (identity / eval mode).

    ctx = jnp.einsum("hqk,hkd->hqd", p, v3,
                     preferred_element_type=jnp.float32)            # (H, tq, D) f32

    # Write directly in the [tq, HIDDEN] interleaved-head layout (lane-dense slab).
    for h in range(NUM_HEADS):
        out_ref[0, :, h * HEAD_DIM:(h + 1) * HEAD_DIM] = ctx[h].astype(out_ref.dtype)


def _attn_kernel_masked(hs_ref, kv_ref, mask_ref, wq_ref, bq_ref, wk_ref, bk_ref,
                        wv_ref, bv_ref, out_ref, k_cache, v_cache):
    _attn_body(hs_ref, kv_ref, mask_ref, wq_ref, bq_ref, wk_ref, bk_ref,
               wv_ref, bv_ref, out_ref, k_cache, v_cache)


def _attn_kernel_nomask(hs_ref, kv_ref, wq_ref, bq_ref, wk_ref, bk_ref,
                        wv_ref, bv_ref, out_ref, k_cache, v_cache):
    _attn_body(hs_ref, kv_ref, None, wq_ref, bq_ref, wk_ref, bk_ref,
               wv_ref, bv_ref, out_ref, k_cache, v_cache)


def prepare_params(params, compute_dtype=jnp.bfloat16):
    """One-time prep: transpose PyTorch [out,in] weights to [in,out] and cast to
    the MXU compute dtype; biases stay f32 (added to the f32 accumulator)."""
    return {
        "wq": params["wq"].T.astype(compute_dtype),
        "wk": params["wk"].T.astype(compute_dtype),
        "wv": params["wv"].T.astype(compute_dtype),
        "bq": params["bq"].reshape(1, HIDDEN).astype(jnp.float32),
        "bk": params["bk"].reshape(1, HIDDEN).astype(jnp.float32),
        "bv": params["bv"].reshape(1, HIDDEN).astype(jnp.float32),
    }


def _pick_query_tile(sq, max_tile):
    """Largest multiple-of-8 query tile <= max_tile dividing Sq (full Sq if small)."""
    if sq <= max_tile:
        return sq
    t = max_tile - (max_tile % 8)
    while t >= 8:
        if sq % t == 0:
            return t
        t -= 8
    # TODO(synk): no multiple-of-8 divisor <= max_tile; falls back to full Sq.
    # A pad-and-slice path would bound VMEM for awkward large Sq.
    return sq


def bert_self_attention(hidden_states, key_values, prepared, attention_mask=None,
                        *, out_dtype=jnp.bfloat16, max_q_tile=256):
    B, Sq, _ = hidden_states.shape
    _, Sk, _ = key_values.shape
    # K/V cache + kv block + (H, tq, Sk) scores scale with Sk; cap until KV tiling lands.
    assert Sk <= 4096, "Sk tiling not implemented; reduce key length"

    tq = _pick_query_tile(Sq, max_q_tile)
    grid = (B, Sq // tq)

    # Grid-constant weight/bias blocks: DMA'd once; single-buffer to save VMEM.
    weight_spec = pl.BlockSpec((HIDDEN, HIDDEN), lambda b, qi: (0, 0),
                               pipeline_mode=pl.Buffered(1))
    bias_spec = pl.BlockSpec((1, HIDDEN), lambda b, qi: (0, 0),
                             pipeline_mode=pl.Buffered(1))

    in_specs = [
        pl.BlockSpec((1, tq, HIDDEN), lambda b, qi: (b, qi, 0)),    # queries (per tile)
        pl.BlockSpec((1, Sk, HIDDEN), lambda b, qi: (b, 0, 0)),     # key/values (per batch)
    ]
    # Activations stay in their native dtype (cast to bf16 in-kernel): no extra
    # wrapper-side astype -> no extra HBM round trip on the activation tensors.
    inputs = [hidden_states, key_values]

    if attention_mask is not None:
        # Only `mask > 0` is used; pass the mask in its native (narrow) dtype.
        in_specs.append(pl.BlockSpec((1, tq, Sk), lambda b, qi: (b, qi, 0)))
        inputs.append(attention_mask)
        kernel = _attn_kernel_masked
    else:
        kernel = _attn_kernel_nomask    # specialized: no mask DMA, no where()

    in_specs += [weight_spec, bias_spec, weight_spec, bias_spec, weight_spec, bias_spec]
    inputs += [prepared["wq"], prepared["bq"],
               prepared["wk"], prepared["bk"],
               prepared["wv"], prepared["bv"]]

    return pl.pallas_call(
        kernel,
        out_shape=jax.ShapeDtypeStruct((B, Sq, HIDDEN), out_dtype),
        grid_spec=pltpu.PrefetchScalarGridSpec(
            num_scalar_prefetch=0,
            grid=grid,
            in_specs=in_specs,
            out_specs=pl.BlockSpec((1, tq, HIDDEN), lambda b, qi: (b, qi, 0)),
            scratch_shapes=[
                pltpu.VMEM((NUM_HEADS, Sk, HEAD_DIM), jnp.bfloat16),   # cached K heads
                pltpu.VMEM((NUM_HEADS, Sk, HEAD_DIM), jnp.bfloat16),   # cached V heads
            ],
        ),
        compiler_params=pltpu.CompilerParams(
            # b "parallel" (v7x megacore splits over batch); qi must be "arbitrary"
            # because the VMEM K/V cache carries state across query tiles.
            dimension_semantics=("parallel", "arbitrary"),
            # Leave headroom under v7x's 64 MiB physical per-core VMEM.
            vmem_limit_bytes=48 * 1024 * 1024),
    )(*inputs)


def _reference(hidden_states, key_values, params, attention_mask=None):
    B, Sq, _ = hidden_states.shape
    _, Sk, _ = key_values.shape

    def proj(x, w, b):
        return x @ w.T + b

    def split_heads(x, S):
        return x.reshape(B, S, NUM_HEADS, HEAD_DIM).transpose(0, 2, 1, 3)

    q = split_heads(proj(hidden_states, params["wq"], params["bq"]), Sq)
    k = split_heads(proj(key_values, params["wk"], params["bk"]), Sk)
    v = split_heads(proj(key_values, params["wv"], params["bv"]), Sk)

    scores = jnp.einsum("bhqd,bhkd->bhqk", q, k) / math.sqrt(HEAD_DIM)
    if attention_mask is not None:
        mask = attention_mask[:, None, :, :]
        scores = jnp.where(mask > 0, -1e18, scores)
    probs = jax.nn.softmax(scores, axis=-1)
    ctx = jnp.einsum("bhqk,bhkd->bhqd", probs, v)
    return ctx.transpose(0, 2, 1, 3).reshape(B, Sq, HIDDEN)


def _init_params(key):
    ks = jax.random.split(key, 6)
    scale = 0.02
    return {
        "wq": scale * jax.random.normal(ks[0], (HIDDEN, HIDDEN), jnp.float32),
        "bq": scale * jax.random.normal(ks[1], (HIDDEN,), jnp.float32),
        "wk": scale * jax.random.normal(ks[2], (HIDDEN, HIDDEN), jnp.float32),
        "bk": scale * jax.random.normal(ks[3], (HIDDEN,), jnp.float32),
        "wv": scale * jax.random.normal(ks[4], (HIDDEN, HIDDEN), jnp.float32),
        "bv": scale * jax.random.normal(ks[5], (HIDDEN,), jnp.float32),
    }


if __name__ == "__main__":
    key = jax.random.PRNGKey(0)
    k_p, k_h, k_kv, k_m = jax.random.split(key, 4)

    B, Sq, Sk = 2, 16, 8
    params = _init_params(k_p)
    prepared = prepare_params(params)          # one-time transpose + bf16 cast

    hidden_states = jax.random.normal(k_h, (B, Sq, HIDDEN), jnp.float32)
    key_values = jax.random.normal(k_kv, (B, Sk, HIDDEN), jnp.float32)
    # attention_mask semantics: entries > 0 are masked out (masked_fill(mask > 0, -1e18)).
    # Provided as bf16: only its sign matters and the narrow dtype halves mask DMA/VMEM.
    attention_mask = (jax.random.uniform(k_m, (B, Sq, Sk)) > 0.8).astype(jnp.bfloat16)

    # max_q_tile=8 -> two query tiles per batch element: exercises the qi>0 path
    # that reuses the VMEM-cached K/V projections.
    out = bert_self_attention(hidden_states, key_values, prepared, attention_mask,
                              max_q_tile=8)
    out = jax.block_until_ready(out)

    ref = _reference(hidden_states, key_values, params, attention_mask)
    assert out.shape == (B, Sq, HIDDEN)
    # bf16 matmuls + bf16 output vs f32 reference -> loosened tolerance.
    assert jnp.allclose(out.astype(jnp.float32), ref, rtol=3e-2, atol=3e-2), \
        "mismatch vs pure-JAX reference (masked path)"

    # Also exercise the specialized mask=None path (single query tile).
    out2 = jax.block_until_ready(
        bert_self_attention(hidden_states, key_values, prepared, None))
    ref2 = _reference(hidden_states, key_values, params, None)
    assert jnp.allclose(out2.astype(jnp.float32), ref2, rtol=3e-2, atol=3e-2), \
        "mismatch vs pure-JAX reference (no-mask path)"

    print("KERNEL_OK")
</pallas_src>

<mosaic_0001>
module attributes {stable_mosaic.version = 11 : i64} {
  func.func @_attn_kernel_masked(%arg0: i32, %arg1: i32, %arg2: memref<1x8x768xf32, #tpu.memory_space<vmem>>, %arg3: memref<1x8x768xf32, #tpu.memory_space<vmem>>, %arg4: memref<1x8x8xbf16, #tpu.memory_space<vmem>>, %arg5: memref<768x768xbf16, #tpu.memory_space<vmem>>, %arg6: memref<1x768xf32, #tpu.memory_space<vmem>>, %arg7: memref<768x768xbf16, #tpu.memory_space<vmem>>, %arg8: memref<1x768xf32, #tpu.memory_space<vmem>>, %arg9: memref<768x768xbf16, #tpu.memory_space<vmem>>, %arg10: memref<1x768xf32, #tpu.memory_space<vmem>>, %arg11: memref<1x8x768xbf16, #tpu.memory_space<vmem>>, %arg12: memref<6x8x128xbf16, #tpu.memory_space<vmem>>, %arg13: memref<6x8x128xbf16, #tpu.memory_space<vmem>>) attributes {dimension_semantics = [#tpu.dimension_semantics<parallel>, #tpu.dimension_semantics<arbitrary>], iteration_bounds = array<i64: 2, 2>, scalar_prefetch = 0 : i64, scratch_operands = 2 : i64, tpu.core_type = #tpu.core_type<tc>, window_params = [{transform_indices = @transform_0, window_bounds = array<i64: 1, 8, 768>}, {transform_indices = @transform_1, window_bounds = array<i64: 1, 8, 768>}, {transform_indices = @transform_2, window_bounds = array<i64: 1, 8, 8>}, {pipeline_mode = #tpu.pipeline_mode<synchronous>, transform_indices = @transform_3, window_bounds = array<i64: 768, 768>}, {pipeline_mode = #tpu.pipeline_mode<synchronous>, transform_indices = @transform_4, window_bounds = array<i64: 1, 768>}, {pipeline_mode = #tpu.pipeline_mode<synchronous>, transform_indices = @transform_5, window_bounds = array<i64: 768, 768>}, {pipeline_mode = #tpu.pipeline_mode<synchronous>, transform_indices = @transform_6, window_bounds = array<i64: 1, 768>}, {pipeline_mode = #tpu.pipeline_mode<synchronous>, transform_indices = @transform_7, window_bounds = array<i64: 768, 768>}, {pipeline_mode = #tpu.pipeline_mode<synchronous>, transform_indices = @transform_8, window_bounds = array<i64: 1, 768>}, {transform_indices = @transform_9, window_bounds = array<i64: 1, 8, 768>}]} {
    %c0_i32 = arith.constant 0 : i32
    %0 = arith.cmpi eq, %arg1, %c0_i32 : i32
    %1 = arith.extui %0 : i1 to i32
    %c0_i32_0 = arith.constant 0 : i32
    %2 = arith.cmpi ne, %1, %c0_i32_0 : i32
    scf.if %2 {
      %c0_36 = arith.constant 0 : index
      %c0_37 = arith.constant 0 : index
      %c0_38 = arith.constant 0 : index
      %87 = vector.load %arg3[%c0_36, %c0_37, %c0_38] : memref<1x8x768xf32, #tpu.memory_space<vmem>>, vector<1x8x768xf32>
      %88 = vector.shape_cast %87 : vector<1x8x768xf32> to vector<8x768xf32>
      %89 = arith.truncf %88 : vector<8x768xf32> to vector<8x768xbf16>
      %c0_39 = arith.constant 0 : index
      %c0_40 = arith.constant 0 : index
      %90 = vector.load %arg7[%c0_39, %c0_40] : memref<768x768xbf16, #tpu.memory_space<vmem>>, vector<768x768xbf16>
      %cst_41 = arith.constant dense<0.000000e+00> : vector<8x768xf32>
      %91 = tpu.matmul %89, %90, %cst_41 {dimension_numbers = #tpu.dot_dimension_numbers<[1], [0], [0], [1], [0, 0, 1, 1], [], []>} : vector<8x768xbf16>, vector<768x768xbf16>, vector<8x768xf32> -> vector<8x768xf32>
      %c0_42 = arith.constant 0 : index
      %c0_43 = arith.constant 0 : index
      %92 = vector.load %arg8[%c0_42, %c0_43] : memref<1x768xf32, #tpu.memory_space<vmem>>, vector<1x768xf32>
      %93 = vector.broadcast %92 : vector<1x768xf32> to vector<8x768xf32>
      %94 = arith.addf %91, %93 : vector<8x768xf32>
      %95 = arith.truncf %94 : vector<8x768xf32> to vector<8x768xbf16>
      %c0_44 = arith.constant 0 : index
      %c0_45 = arith.constant 0 : index
      %96 = vector.load %arg9[%c0_44, %c0_45] : memref<768x768xbf16, #tpu.memory_space<vmem>>, vector<768x768xbf16>
      %cst_46 = arith.constant dense<0.000000e+00> : vector<8x768xf32>
      %97 = tpu.matmul %89, %96, %cst_46 {dimension_numbers = #tpu.dot_dimension_numbers<[1], [0], [0], [1], [0, 0, 1, 1], [], []>} : vector<8x768xbf16>, vector<768x768xbf16>, vector<8x768xf32> -> vector<8x768xf32>
      %c0_47 = arith.constant 0 : index
      %c0_48 = arith.constant 0 : index
      %98 = vector.load %arg10[%c0_47, %c0_48] : memref<1x768xf32, #tpu.memory_space<vmem>>, vector<1x768xf32>
      %99 = vector.broadcast %98 : vector<1x768xf32> to vector<8x768xf32>
      %100 = arith.addf %97, %99 : vector<8x768xf32>
      %101 = arith.truncf %100 : vector<8x768xf32> to vector<8x768xbf16>
      %102 = vector.extract_strided_slice %95 {offsets = [0, 0], sizes = [8, 128], strides = [1, 1]} : vector<8x768xbf16> to vector<8x128xbf16>
      %c0_49 = arith.constant 0 : index
      %c0_50 = arith.constant 0 : index
      %c0_51 = arith.constant 0 : index
      %103 = vector.load %arg12[%c0_49, %c0_50, %c0_51] : memref<6x8x128xbf16, #tpu.memory_space<vmem>>, vector<1x8x128xbf16>
      %104 = vector.shape_cast %103 : vector<1x8x128xbf16> to vector<8x128xbf16>
      %105 = vector.shape_cast %102 : vector<8x128xbf16> to vector<1x8x128xbf16>
      tpu.vector_store %arg12[%c0_49, %c0_50, %c0_51], %105 {strides = array<i32>} : memref<6x8x128xbf16, #tpu.memory_space<vmem>>, vector<1x8x128xbf16>,
      %106 = vector.extract_strided_slice %101 {offsets = [0, 0], sizes = [8, 128], strides = [1, 1]} : vector<8x768xbf16> to vector<8x128xbf16>
      %c0_52 = arith.constant 0 : index
      %c0_53 = arith.constant 0 : index
      %c0_54 = arith.constant 0 : index
      %107 = vector.load %arg13[%c0_52, %c0_53, %c0_54] : memref<6x8x128xbf16, #tpu.memory_space<vmem>>, vector<1x8x128xbf16>
      %108 = vector.shape_cast %107 : vector<1x8x128xbf16> to vector<8x128xbf16>
      %109 = vector.shape_cast %106 : vector<8x128xbf16> to vector<1x8x128xbf16>
      tpu.vector_store %arg13[%c0_52, %c0_53, %c0_54], %109 {strides = array<i32>} : memref<6x8x128xbf16, #tpu.memory_space<vmem>>, vector<1x8x128xbf16>,
      %110 = vector.extract_strided_slice %95 {offsets = [0, 128], sizes = [8, 128], strides = [1, 1]} : vector<8x768xbf16> to vector<8x128xbf16>
      %c1 = arith.constant 1 : index
      %c0_55 = arith.constant 0 : index
      %c0_56 = arith.constant 0 : index
      %111 = vector.load %arg12[%c1, %c0_55, %c0_56] : memref<6x8x128xbf16, #tpu.memory_space<vmem>>, vector<1x8x128xbf16>
      %112 = vector.shape_cast %111 : vector<1x8x128xbf16> to vector<8x128xbf16>
      %113 = vector.shape_cast %110 : vector<8x128xbf16> to vector<1x8x128xbf16>
      tpu.vector_store %arg12[%c1, %c0_55, %c0_56], %113 {strides = array<i32>} : memref<6x8x128xbf16, #tpu.memory_space<vmem>>, vector<1x8x128xbf16>,
      %114 = vector.extract_strided_slice %101 {offsets = [0, 128], sizes = [8, 128], strides = [1, 1]} : vector<8x768xbf16> to vector<8x128xbf16>
      %c1_57 = arith.constant 1 : index
      %c0_58 = arith.constant 0 : index
      %c0_59 = arith.constant 0 : index
      %115 = vector.load %arg13[%c1_57, %c0_58, %c0_59] : memref<6x8x128xbf16, #tpu.memory_space<vmem>>, vector<1x8x128xbf16>
      %116 = vector.shape_cast %115 : vector<1x8x128xbf16> to vector<8x128xbf16>
      %117 = vector.shape_cast %114 : vector<8x128xbf16> to vector<1x8x128xbf16>
      tpu.vector_store %arg13[%c1_57, %c0_58, %c0_59], %117 {strides = array<i32>} : memref<6x8x128xbf16, #tpu.memory_space<vmem>>, vector<1x8x128xbf16>,
      %118 = vector.extract_strided_slice %95 {offsets = [0, 256], sizes = [8, 128], strides = [1, 1]} : vector<8x768xbf16> to vector<8x128xbf16>
      %c2 = arith.constant 2 : index
      %c0_60 = arith.constant 0 : index
      %c0_61 = arith.constant 0 : index
      %119 = vector.load %arg12[%c2, %c0_60, %c0_61] : memref<6x8x128xbf16, #tpu.memory_space<vmem>>, vector<1x8x128xbf16>
      %120 = vector.shape_cast %119 : vector<1x8x128xbf16> to vector<8x128xbf16>
      %121 = vector.shape_cast %118 : vector<8x128xbf16> to vector<1x8x128xbf16>
      tpu.vector_store %arg12[%c2, %c0_60, %c0_61], %121 {strides = array<i32>} : memref<6x8x128xbf16, #tpu.memory_space<vmem>>, vector<1x8x128xbf16>,
      %122 = vector.extract_strided_slice %101 {offsets = [0, 256], sizes = [8, 128], strides = [1, 1]} : vector<8x768xbf16> to vector<8x128xbf16>
      %c2_62 = arith.constant 2 : index
      %c0_63 = arith.constant 0 : index
      %c0_64 = arith.constant 0 : index
      %123 = vector.load %arg13[%c2_62, %c0_63, %c0_64] : memref<6x8x128xbf16, #tpu.memory_space<vmem>>, vector<1x8x128xbf16>
      %124 = vector.shape_cast %123 : vector<1x8x128xbf16> to vector<8x128xbf16>
      %125 = vector.shape_cast %122 : vector<8x128xbf16> to vector<1x8x128xbf16>
      tpu.vector_store %arg13[%c2_62, %c0_63, %c0_64], %125 {strides = array<i32>} : memref<6x8x128xbf16, #tpu.memory_space<vmem>>, vector<1x8x128xbf16>,
      %126 = vector.extract_strided_slice %95 {offsets = [0, 384], sizes = [8, 128], strides = [1, 1]} : vector<8x768xbf16> to vector<8x128xbf16>
      %c3 = arith.constant 3 : index
      %c0_65 = arith.constant 0 : index
      %c0_66 = arith.constant 0 : index
      %127 = vector.load %arg12[%c3, %c0_65, %c0_66] : memref<6x8x128xbf16, #tpu.memory_space<vmem>>, vector<1x8x128xbf16>
      %128 = vector.shape_cast %127 : vector<1x8x128xbf16> to vector<8x128xbf16>
      %129 = vector.shape_cast %126 : vector<8x128xbf16> to vector<1x8x128xbf16>
      tpu.vector_store %arg12[%c3, %c0_65, %c0_66], %129 {strides = array<i32>} : memref<6x8x128xbf16, #tpu.memory_space<vmem>>, vector<1x8x128xbf16>,
      %130 = vector.extract_strided_slice %101 {offsets = [0, 384], sizes = [8, 128], strides = [1, 1]} : vector<8x768xbf16> to vector<8x128xbf16>
      %c3_67 = arith.constant 3 : index
      %c0_68 = arith.constant 0 : index
      %c0_69 = arith.constant 0 : index
      %131 = vector.load %arg13[%c3_67, %c0_68, %c0_69] : memref<6x8x128xbf16, #tpu.memory_space<vmem>>, vector<1x8x128xbf16>
      %132 = vector.shape_cast %131 : vector<1x8x128xbf16> to vector<8x128xbf16>
      %133 = vector.shape_cast %130 : vector<8x128xbf16> to vector<1x8x128xbf16>
      tpu.vector_store %arg13[%c3_67, %c0_68, %c0_69], %133 {strides = array<i32>} : memref<6x8x128xbf16, #tpu.memory_space<vmem>>, vector<1x8x128xbf16>,
      %134 = vector.extract_strided_slice %95 {offsets = [0, 512], sizes = [8, 128], strides = [1, 1]} : vector<8x768xbf16> to vector<8x128xbf16>
      %c4 = arith.constant 4 : index
      %c0_70 = arith.constant 0 : index
      %c0_71 = arith.constant 0 : index
      %135 = vector.load %arg12[%c4, %c0_70, %c0_71] : memref<6x8x128xbf16, #tpu.memory_space<vmem>>, vector<1x8x128xbf16>
      %136 = vector.shape_cast %135 : vector<1x8x128xbf16> to vector<8x128xbf16>
      %137 = vector.shape_cast %134 : vector<8x128xbf16> to vector<1x8x128xbf16>
      tpu.vector_store %arg12[%c4, %c0_70, %c0_71], %137 {strides = array<i32>} : memref<6x8x128xbf16, #tpu.memory_space<vmem>>, vector<1x8x128xbf16>,
      %138 = vector.extract_strided_slice %101 {offsets = [0, 512], sizes = [8, 128], strides = [1, 1]} : vector<8x768xbf16> to vector<8x128xbf16>
      %c4_72 = arith.constant 4 : index
      %c0_73 = arith.constant 0 : index
      %c0_74 = arith.constant 0 : index
      %139 = vector.load %arg13[%c4_72, %c0_73, %c0_74] : memref<6x8x128xbf16, #tpu.memory_space<vmem>>, vector<1x8x128xbf16>
      %140 = vector.shape_cast %139 : vector<1x8x128xbf16> to vector<8x128xbf16>
      %141 = vector.shape_cast %138 : vector<8x128xbf16> to vector<1x8x128xbf16>
      tpu.vector_store %arg13[%c4_72, %c0_73, %c0_74], %141 {strides = array<i32>} : memref<6x8x128xbf16, #tpu.memory_space<vmem>>, vector<1x8x128xbf16>,
      %142 = vector.extract_strided_slice %95 {offsets = [0, 640], sizes = [8, 128], strides = [1, 1]} : vector<8x768xbf16> to vector<8x128xbf16>
      %c5 = arith.constant 5 : index
      %c0_75 = arith.constant 0 : index
      %c0_76 = arith.constant 0 : index
      %143 = vector.load %arg12[%c5, %c0_75, %c0_76] : memref<6x8x128xbf16, #tpu.memory_space<vmem>>, vector<1x8x128xbf16>
      %144 = vector.shape_cast %143 : vector<1x8x128xbf16> to vector<8x128xbf16>
      %145 = vector.shape_cast %142 : vector<8x128xbf16> to vector<1x8x128xbf16>
      tpu.vector_store %arg12[%c5, %c0_75, %c0_76], %145 {strides = array<i32>} : memref<6x8x128xbf16, #tpu.memory_space<vmem>>, vector<1x8x128xbf16>,
      %146 = vector.extract_strided_slice %101 {offsets = [0, 640], sizes = [8, 128], strides = [1, 1]} : vector<8x768xbf16> to vector<8x128xbf16>
      %c5_77 = arith.constant 5 : index
      %c0_78 = arith.constant 0 : index
      %c0_79 = arith.constant 0 : index
      %147 = vector.load %arg13[%c5_77, %c0_78, %c0_79] : memref<6x8x128xbf16, #tpu.memory_space<vmem>>, vector<1x8x128xbf16>
      %148 = vector.shape_cast %147 : vector<1x8x128xbf16> to vector<8x128xbf16>
      %149 = vector.shape_cast %146 : vector<8x128xbf16> to vector<1x8x128xbf16>
      tpu.vector_store %arg13[%c5_77, %c0_78, %c0_79], %149 {strides = array<i32>} : memref<6x8x128xbf16, #tpu.memory_space<vmem>>, vector<1x8x128xbf16>,
    } else {
    }
    %c0 = arith.constant 0 : index
    %c0_1 = arith.constant 0 : index
    %c0_2 = arith.constant 0 : index
    %3 = vector.load %arg2[%c0, %c0_1, %c0_2] : memref<1x8x768xf32, #tpu.memory_space<vmem>>, vector<1x8x768xf32>
    %4 = vector.shape_cast %3 : vector<1x8x768xf32> to vector<8x768xf32>
    %5 = arith.truncf %4 : vector<8x768xf32> to vector<8x768xbf16>
    %c0_3 = arith.constant 0 : index
    %c0_4 = arith.constant 0 : index
    %6 = vector.load %arg5[%c0_3, %c0_4] : memref<768x768xbf16, #tpu.memory_space<vmem>>, vector<768x768xbf16>
    %cst = arith.constant dense<0.000000e+00> : vector<8x768xf32>
    %7 = tpu.matmul %5, %6, %cst {dimension_numbers = #tpu.dot_dimension_numbers<[1], [0], [0], [1], [0, 0, 1, 1], [], []>} : vector<8x768xbf16>, vector<768x768xbf16>, vector<8x768xf32> -> vector<8x768xf32>
    %c0_5 = arith.constant 0 : index
    %c0_6 = arith.constant 0 : index
    %8 = vector.load %arg6[%c0_5, %c0_6] : memref<1x768xf32, #tpu.memory_space<vmem>>, vector<1x768xf32>
    %9 = vector.broadcast %8 : vector<1x768xf32> to vector<8x768xf32>
    %10 = arith.addf %7, %9 : vector<8x768xf32>
    %11 = arith.truncf %10 : vector<8x768xf32> to vector<8x768xbf16>
    %12 = vector.extract_strided_slice %11 {offsets = [0, 0], sizes = [8, 128], strides = [1, 1]} : vector<8x768xbf16> to vector<8x128xbf16>
    %13 = vector.extract_strided_slice %11 {offsets = [0, 128], sizes = [8, 128], strides = [1, 1]} : vector<8x768xbf16> to vector<8x128xbf16>
    %14 = vector.extract_strided_slice %11 {offsets = [0, 256], sizes = [8, 128], strides = [1, 1]} : vector<8x768xbf16> to vector<8x128xbf16>
    %15 = vector.extract_strided_slice %11 {offsets = [0, 384], sizes = [8, 128], strides = [1, 1]} : vector<8x768xbf16> to vector<8x128xbf16>
    %16 = vector.extract_strided_slice %11 {offsets = [0, 512], sizes = [8, 128], strides = [1, 1]} : vector<8x768xbf16> to vector<8x128xbf16>
    %17 = vector.extract_strided_slice %11 {offsets = [0, 640], sizes = [8, 128], strides = [1, 1]} : vector<8x768xbf16> to vector<8x128xbf16>
    %18 = vector.shape_cast %12 : vector<8x128xbf16> to vector<1x8x128xbf16>
    %19 = vector.shape_cast %13 : vector<8x128xbf16> to vector<1x8x128xbf16>
    %20 = vector.shape_cast %14 : vector<8x128xbf16> to vector<1x8x128xbf16>
    %21 = vector.shape_cast %15 : vector<8x128xbf16> to vector<1x8x128xbf16>
    %22 = vector.shape_cast %16 : vector<8x128xbf16> to vector<1x8x128xbf16>
    %23 = vector.shape_cast %17 : vector<8x128xbf16> to vector<1x8x128xbf16>
    %24 = tpu.concatenate %18, %19, %20, %21, %22, %23 in 0 : vector<1x8x128xbf16>, vector<1x8x128xbf16>, vector<1x8x128xbf16>, vector<1x8x128xbf16>, vector<1x8x128xbf16>, vector<1x8x128xbf16> -> vector<6x8x128xbf16>
    %c0_7 = arith.constant 0 : index
    %c0_8 = arith.constant 0 : index
    %c0_9 = arith.constant 0 : index
    %25 = vector.load %arg12[%c0_7, %c0_8, %c0_9] : memref<6x8x128xbf16, #tpu.memory_space<vmem>>, vector<6x8x128xbf16>
    %c0_10 = arith.constant 0 : index
    %c0_11 = arith.constant 0 : index
    %c0_12 = arith.constant 0 : index
    %26 = vector.load %arg13[%c0_10, %c0_11, %c0_12] : memref<6x8x128xbf16, #tpu.memory_space<vmem>>, vector<6x8x128xbf16>
    "tpu.trace_start"() <{level = 10 : i32, message = "hqd,hkd->hqk"}> : () -> ()
    %cst_13 = arith.constant dense<0.000000e+00> : vector<6x8x8xf32>
    %27 = tpu.matmul %24, %25, %cst_13 {dimension_numbers = #tpu.dot_dimension_numbers<[2], [2], [1], [1], [0, 0, 0, 1, 1, 1], [0], [0]>} : vector<6x8x128xbf16>, vector<6x8x128xbf16>, vector<6x8x8xf32> -> vector<6x8x8xf32>
    "tpu.trace_stop"() : () -> ()
    %cst_14 = arith.constant 0.0883883461 : f32
    %28 = vector.broadcast %cst_14 : f32 to vector<6x8x8xf32>
    %29 = arith.mulf %27, %28 : vector<6x8x8xf32>
    %c0_15 = arith.constant 0 : index
    %c0_16 = arith.constant 0 : index
    %c0_17 = arith.constant 0 : index
    %30 = vector.load %arg4[%c0_15, %c0_16, %c0_17] : memref<1x8x8xbf16, #tpu.memory_space<vmem>>, vector<1x8x8xbf16>
    %31 = vector.shape_cast %30 : vector<1x8x8xbf16> to vector<8x8xbf16>
    %cst_18 = arith.constant 0.000000e+00 : bf16
    %32 = vector.broadcast %cst_18 : bf16 to vector<8x8xbf16>
    %33 = arith.cmpf ogt, %31, %32 : vector<8x8xbf16>
    %34 = vector.shape_cast %33 : vector<8x8xi1> to vector<1x8x8xi1>
    %cst_19 = arith.constant -9.99999984E+17 : f32
    %35 = vector.shape_cast %34 : vector<1x8x8xi1> to vector<1x8x8xi1>
    %36 = vector.broadcast %35 : vector<1x8x8xi1> to vector<6x8x8xi1>
    %37 = vector.broadcast %cst_19 : f32 to vector<6x8x8xf32>
    %38 = arith.select %36, %37, %29 : vector<6x8x8xi1>, vector<6x8x8xf32>
    %cst_20 = arith.constant dense<0xFF800000> : vector<6x8xf32>
    %39 = vector.multi_reduction <maximumf>, %38, %cst_20 [2] : vector<6x8x8xf32> to vector<6x8xf32>
    %40 = vector.shape_cast %39 : vector<6x8xf32> to vector<6x8x1xf32>
    %41 = vector.broadcast %40 : vector<6x8x1xf32> to vector<6x8x8xf32>
    %42 = arith.subf %38, %41 : vector<6x8x8xf32>
    %43 = math.exp %42 : vector<6x8x8xf32>
    %cst_21 = arith.constant dense<0.000000e+00> : vector<6x8xf32>
    %44 = vector.multi_reduction <add>, %43, %cst_21 [2] : vector<6x8x8xf32> to vector<6x8xf32>
    %45 = vector.shape_cast %44 : vector<6x8xf32> to vector<6x8x1xf32>
    %46 = tpu.reciprocal %45 {approx = true} : vector<6x8x1xf32> -> vector<6x8x1xf32>
    %47 = vector.broadcast %46 : vector<6x8x1xf32> to vector<6x8x8xf32>
    %48 = arith.mulf %43, %47 : vector<6x8x8xf32>
    %49 = arith.truncf %48 : vector<6x8x8xf32> to vector<6x8x8xbf16>
    "tpu.trace_start"() <{level = 10 : i32, message = "hqk,hkd->hqd"}> : () -> ()
    %cst_22 = arith.constant dense<0.000000e+00> : vector<6x8x128xf32>
    %50 = tpu.matmul %49, %26, %cst_22 {dimension_numbers = #tpu.dot_dimension_numbers<[2], [1], [1], [2], [0, 0, 0, 1, 1, 2], [0], [0]>} : vector<6x8x8xbf16>, vector<6x8x128xbf16>, vector<6x8x128xf32> -> vector<6x8x128xf32>
    "tpu.trace_stop"() : () -> ()
    %51 = vector.extract_strided_slice %50 {offsets = [0, 0, 0], sizes = [1, 8, 128], strides = [1, 1, 1]} : vector<6x8x128xf32> to vector<1x8x128xf32>
    %52 = vector.shape_cast %51 : vector<1x8x128xf32> to vector<8x128xf32>
    %53 = arith.truncf %52 : vector<8x128xf32> to vector<8x128xbf16>
    %c0_23 = arith.constant 0 : index
    %c0_24 = arith.constant 0 : index
    %c0_25 = arith.constant 0 : index
    %54 = vector.load %arg11[%c0_23, %c0_24, %c0_25] : memref<1x8x768xbf16, #tpu.memory_space<vmem>>, vector<1x8x128xbf16>
    %55 = vector.shape_cast %54 : vector<1x8x128xbf16> to vector<8x128xbf16>
    %56 = vector.shape_cast %53 : vector<8x128xbf16> to vector<1x8x128xbf16>
    tpu.vector_store %arg11[%c0_23, %c0_24, %c0_25], %56 {strides = array<i32>} : memref<1x8x768xbf16, #tpu.memory_space<vmem>>, vector<1x8x128xbf16>,
    %57 = vector.extract_strided_slice %50 {offsets = [1, 0, 0], sizes = [1, 8, 128], strides = [1, 1, 1]} : vector<6x8x128xf32> to vector<1x8x128xf32>
    %58 = vector.shape_cast %57 : vector<1x8x128xf32> to vector<8x128xf32>
    %59 = arith.truncf %58 : vector<8x128xf32> to vector<8x128xbf16>
    %c0_26 = arith.constant 0 : index
    %c0_27 = arith.constant 0 : index
    %c128 = arith.constant 128 : index
    %60 = vector.load %arg11[%c0_26, %c0_27, %c128] : memref<1x8x768xbf16, #tpu.memory_space<vmem>>, vector<1x8x128xbf16>
    %61 = vector.shape_cast %60 : vector<1x8x128xbf16> to vector<8x128xbf16>
    %62 = vector.shape_cast %59 : vector<8x128xbf16> to vector<1x8x128xbf16>
    tpu.vector_store %arg11[%c0_26, %c0_27, %c128], %62 {strides = array<i32>} : memref<1x8x768xbf16, #tpu.memory_space<vmem>>, vector<1x8x128xbf16>,
    %63 = vector.extract_strided_slice %50 {offsets = [2, 0, 0], sizes = [1, 8, 128], strides = [1, 1, 1]} : vector<6x8x128xf32> to vector<1x8x128xf32>
    %64 = vector.shape_cast %63 : vector<1x8x128xf32> to vector<8x128xf32>
    %65 = arith.truncf %64 : vector<8x128xf32> to vector<8x128xbf16>
    %c0_28 = arith.constant 0 : index
    %c0_29 = arith.constant 0 : index
    %c256 = arith.constant 256 : index
    %66 = vector.load %arg11[%c0_28, %c0_29, %c256] : memref<1x8x768xbf16, #tpu.memory_space<vmem>>, vector<1x8x128xbf16>
    %67 = vector.shape_cast %66 : vector<1x8x128xbf16> to vector<8x128xbf16>
    %68 = vector.shape_cast %65 : vector<8x128xbf16> to vector<1x8x128xbf16>
    tpu.vector_store %arg11[%c0_28, %c0_29, %c256], %68 {strides = array<i32>} : memref<1x8x768xbf16, #tpu.memory_space<vmem>>, vector<1x8x128xbf16>,
    %69 = vector.extract_strided_slice %50 {offsets = [3, 0, 0], sizes = [1, 8, 128], strides = [1, 1, 1]} : vector<6x8x128xf32> to vector<1x8x128xf32>
    %70 = vector.shape_cast %69 : vector<1x8x128xf32> to vector<8x128xf32>
    %71 = arith.truncf %70 : vector<8x128xf32> to vector<8x128xbf16>
    %c0_30 = arith.constant 0 : index
    %c0_31 = arith.constant 0 : index
    %c384 = arith.constant 384 : index
    %72 = vector.load %arg11[%c0_30, %c0_31, %c384] : memref<1x8x768xbf16, #tpu.memory_space<vmem>>, vector<1x8x128xbf16>
    %73 = vector.shape_cast %72 : vector<1x8x128xbf16> to vector<8x128xbf16>
    %74 = vector.shape_cast %71 : vector<8x128xbf16> to vector<1x8x128xbf16>
    tpu.vector_store %arg11[%c0_30, %c0_31, %c384], %74 {strides = array<i32>} : memref<1x8x768xbf16, #tpu.memory_space<vmem>>, vector<1x8x128xbf16>,
    %75 = vector.extract_strided_slice %50 {offsets = [4, 0, 0], sizes = [1, 8, 128], strides = [1, 1, 1]} : vector<6x8x128xf32> to vector<1x8x128xf32>
    %76 = vector.shape_cast %75 : vector<1x8x128xf32> to vector<8x128xf32>
    %77 = arith.truncf %76 : vector<8x128xf32> to vector<8x128xbf16>
    %c0_32 = arith.constant 0 : index
    %c0_33 = arith.constant 0 : index
    %c512 = arith.constant 512 : index
    %78 = vector.load %arg11[%c0_32, %c0_33, %c512] : memref<1x8x768xbf16, #tpu.memory_space<vmem>>, vector<1x8x128xbf16>
    %79 = vector.shape_cast %78 : vector<1x8x128xbf16> to vector<8x128xbf16>
    %80 = vector.shape_cast %77 : vector<8x128xbf16> to vector<1x8x128xbf16>
    tpu.vector_store %arg11[%c0_32, %c0_33, %c512], %80 {strides = array<i32>} : memref<1x8x768xbf16, #tpu.memory_space<vmem>>, vector<1x8x128xbf16>,
    %81 = vector.extract_strided_slice %50 {offsets = [5, 0, 0], sizes = [1, 8, 128], strides = [1, 1, 1]} : vector<6x8x128xf32> to vector<1x8x128xf32>
    %82 = vector.shape_cast %81 : vector<1x8x128xf32> to vector<8x128xf32>
    %83 = arith.truncf %82 : vector<8x128xf32> to vector<8x128xbf16>
    %c0_34 = arith.constant 0 : index
    %c0_35 = arith.constant 0 : index
    %c640 = arith.constant 640 : index
    %84 = vector.load %arg11[%c0_34, %c0_35, %c640] : memref<1x8x768xbf16, #tpu.memory_space<vmem>>, vector<1x8x128xbf16>
    %85 = vector.shape_cast %84 : vector<1x8x128xbf16> to vector<8x128xbf16>
    %86 = vector.shape_cast %83 : vector<8x128xbf16> to vector<1x8x128xbf16>
    tpu.vector_store %arg11[%c0_34, %c0_35, %c640], %86 {strides = array<i32>} : memref<1x8x768xbf16, #tpu.memory_space<vmem>>, vector<1x8x128xbf16>,
    return
  }
  func.func @transform_0(%arg0: i32, %arg1: i32) -> (i32, i32, i32) {
    %c0_i32 = arith.constant 0 : i32
    %c0_i32_0 = arith.constant 0 : i32
    return %arg0, %arg1, %c0_i32 : i32, i32, i32
  }
  func.func @transform_1(%arg0: i32, %arg1: i32) -> (i32, i32, i32) {
    %c0_i32 = arith.constant 0 : i32
    %c0_i32_0 = arith.constant 0 : i32
    %c0_i32_1 = arith.constant 0 : i32
    return %arg0, %c0_i32, %c0_i32_0 : i32, i32, i32
  }
  func.func @transform_2(%arg0: i32, %arg1: i32) -> (i32, i32, i32) {
    %c0_i32 = arith.constant 0 : i32
    %c0_i32_0 = arith.constant 0 : i32
    return %arg0, %arg1, %c0_i32 : i32, i32, i32
  }
  func.func @transform_3(%arg0: i32, %arg1: i32) -> (i32, i32) {
    %c0_i32 = arith.constant 0 : i32
    %c0_i32_0 = arith.constant 0 : i32
    %c0_i32_1 = arith.constant 0 : i32
    return %c0_i32, %c0_i32_0 : i32, i32
  }
  func.func @transform_4(%arg0: i32, %arg1: i32) -> (i32, i32) {
    %c0_i32 = arith.constant 0 : i32
    %c0_i32_0 = arith.constant 0 : i32
    %c0_i32_1 = arith.constant 0 : i32
    return %c0_i32, %c0_i32_0 : i32, i32
  }
  func.func @transform_5(%arg0: i32, %arg1: i32) -> (i32, i32) {
    %c0_i32 = arith.constant 0 : i32
    %c0_i32_0 = arith.constant 0 : i32
    %c0_i32_1 = arith.constant 0 : i32
    return %c0_i32, %c0_i32_0 : i32, i32
  }
  func.func @transform_6(%arg0: i32, %arg1: i32) -> (i32, i32) {
    %c0_i32 = arith.constant 0 : i32
    %c0_i32_0 = arith.constant 0 : i32
    %c0_i32_1 = arith.constant 0 : i32
    return %c0_i32, %c0_i32_0 : i32, i32
  }
  func.func @transform_7(%arg0: i32, %arg1: i32) -> (i32, i32) {
    %c0_i32 = arith.constant 0 : i32
    %c0_i32_0 = arith.constant 0 : i32
    %c0_i32_1 = arith.constant 0 : i32
    return %c0_i32, %c0_i32_0 : i32, i32
  }
  func.func @transform_8(%arg0: i32, %arg1: i32) -> (i32, i32) {
    %c0_i32 = arith.constant 0 : i32
    %c0_i32_0 = arith.constant 0 : i32
    %c0_i32_1 = arith.constant 0 : i32
    return %c0_i32, %c0_i32_0 : i32, i32
  }
  func.func @transform_9(%arg0: i32, %arg1: i32) -> (i32, i32, i32) {
    %c0_i32 = arith.constant 0 : i32
    %c0_i32_0 = arith.constant 0 : i32
    return %arg0, %arg1, %c0_i32 : i32, i32, i32
  }
}

</mosaic_0001>

<llo_original>
// kernel: tpu_custom_call.1
$region0: #{tpu_custom_call.1}
  #allocation0 [shape = 'u32[]', space=smem, size = 0x4, offset = 0x4, fixed_abs, tag = 'smem constant byte address 0x4 - core index']
  #allocation1 [shape = 'u32[144,128]{1,0:T(1,128)}', space=vmem, size = 0x12000, scoped, tag = 'internal scratch']
  #allocation2 [shape = 'bf16[6,8,128]{2,1,0:T(8,128)(2,1)}', space=vmem, size = 0x3000, scoped, tag = 'scratch operand']
  #allocation3 [shape = 'bf16[6,8,128]{2,1,0:T(8,128)(2,1)}', space=vmem, size = 0x3000, scoped, tag = 'scratch operand']
  %s0 = inlined_call_operand.hbm [shape: f32[2,16,768], index: 0, kind: input, shape index: {}]
  %s1 = inlined_call_operand.hbm [shape: f32[2,8,768], index: 1, kind: input, shape index: {}]
  %s2 = inlined_call_operand.vmem [shape: bf16[2,16,8], index: 2, kind: input, shape index: {}]
  %s3 = inlined_call_operand.hbm [shape: bf16[768,768], index: 3, kind: input, shape index: {}]
  %s4 = inlined_call_operand.hbm [shape: f32[1,768], index: 4, kind: input, shape index: {}]
  %s5 = inlined_call_operand.hbm [shape: bf16[768,768], index: 5, kind: input, shape index: {}]
  %s6 = inlined_call_operand.hbm [shape: f32[1,768], index: 6, kind: input, shape index: {}]
  %s7 = inlined_call_operand.hbm [shape: bf16[768,768], index: 7, kind: input, shape index: {}]
  %s8 = inlined_call_operand.hbm [shape: f32[1,768], index: 8, kind: input, shape index: {}]
  %s9 = inlined_call_operand.hbm [shape: bf16[2,16,768], index: 9, kind: output, shape index: {}]
  %s10 = sld [smem:[#allocation0]]
  $region105: #{tpu_custom_call.1} parent=0
    _
  %s12 = ssub.s32 1, %s10
  %s13 = scalar_select 0, %s12, %s10
  $region1: #{tpu_custom_call.1} parent=0
    #allocation4 [shape = 'u8[49152]{0}', space=vmem, size = 0xc000, scoped, tag = 'input window, operand 0']
    #allocation5 [shape = 's32[2]{0}', space=sflag, size = 0x8, scoped, tag = 'scoped memory for tpu_custom_call.1']
    #allocation6 [shape = 's32[2]{0}', space=sflag, size = 0x8, scoped, tag = 'scoped memory for tpu_custom_call.1']
    #allocation7 [shape = 'u8[49152]{0}', space=vmem, size = 0xc000, scoped, tag = 'input window, operand 1']
    #allocation8 [shape = 's32[2]{0}', space=sflag, size = 0x8, scoped, tag = 'scoped memory for tpu_custom_call.1']
    #allocation9 [shape = 'u8[1179648]{0}', space=vmem, size = 0x120000, scoped, tag = 'input window, operand 3, single buffered']
    #allocation10 [shape = 'u8[3072]{0}', space=vmem, size = 0xc00, scoped, tag = 'input window, operand 4, single buffered']
    #allocation11 [shape = 's32[1]{0}', space=sflag, size = 0x4, scoped, tag = 'scoped memory for tpu_custom_call.1']
    #allocation12 [shape = 'u8[1179648]{0}', space=vmem, size = 0x120000, scoped, tag = 'input window, operand 5, single buffered']
    #allocation13 [shape = 'u8[3072]{0}', space=vmem, size = 0xc00, scoped, tag = 'input window, operand 6, single buffered']
    #allocation14 [shape = 's32[1]{0}', space=sflag, size = 0x4, scoped, tag = 'scoped memory for tpu_custom_call.1']
    #allocation15 [shape = 'u8[1179648]{0}', space=vmem, size = 0x120000, scoped, tag = 'input window, operand 7, single buffered']
    #allocation16 [shape = 'u8[3072]{0}', space=vmem, size = 0xc00, scoped, tag = 'input window, operand 8, single buffered']
    #allocation17 [shape = 's32[1]{0}', space=sflag, size = 0x4, scoped, tag = 'scoped memory for tpu_custom_call.1']
    #allocation18 [shape = 'u8[24576]{0}', space=vmem, size = 0x6000, scoped, tag = 'output window, operand 0']
    %14 = vsyncpa [#allocation5], 0
    %s15 = scalar_lea.sflag [#allocation5], 1
    %16 = vsyncpa %s15, 0
    %17 = vsyncpa [#allocation8], 0
    %s18 = scalar_lea.sflag [#allocation8], 1
    %19 = vsyncpa %s18, 0
    %20 = vsyncpa [#allocation11], 0
    %21 = vsyncpa [#allocation14], 0
    %22 = vsyncpa [#allocation17], 0
    %23 = vsyncpa [#allocation6], 0
    %s24 = scalar_lea.sflag [#allocation6], 1
    %25 = vsyncpa %s24, 0
    loop: start=0, step=1, limit=6
    $region2: #{tpu_custom_call.1} parent=1 // loop_pre_header
      _
    $region3: #{tpu_custom_call.1} parent=1 // loop_header
      %s27 = sphi 0, %s31
      %p28 = scmp.ge.s32.totalorder %s27, 6
      %s34 = sphi 0, %s46
      %s35 = sphi 0, %s42
      %s36 = sphi 0, %s34
      %s37 = sphi 0, %s35
      %s38 = sphi 0, %s36
      %s39 = sphi 0, %s37
      %s51 = sphi 0, %s53
      %s54 = sphi 0, %s51
      %s55 = sphi 0, %s54
      %s71 = sphi 0, %s55
      %s77 = sphi 0, %s79
      %s80 = sphi 0, %s77
      %s81 = sphi 0, %s80
      %s97 = sphi 0, %s81
      %s105 = sphi 0, %s107
      %s108 = sphi 0, %s105
      %s109 = sphi 0, %s108
      %s125 = sphi 0, %s109
      %s129 = sphi 0, %s129
      %s131 = sphi 0, %s129
      %s132 = sphi 0, %s131
      %s146 = sphi 0, %s132
      %s150 = sphi 0, %s150
      %s152 = sphi 0, %s150
      %s153 = sphi 0, %s152
      %s167 = sphi 0, %s153
      %s171 = sphi 0, %s171
      %s173 = sphi 0, %s171
      %s174 = sphi 0, %s173
      %s188 = sphi 0, %s174
      %s192 = sphi 0, %s192
      %s194 = sphi 0, %s192
      %s195 = sphi 0, %s194
      %s209 = sphi 0, %s195
      %s213 = sphi 0, %s213
      %s215 = sphi 0, %s213
      %s216 = sphi 0, %s215
      %s230 = sphi 0, %s216
      %s234 = sphi 0, %s234
      %s236 = sphi 0, %s234
      %s237 = sphi 0, %s236
      %s251 = sphi 0, %s237
      %s259 = sphi 0, %s261
      %s262 = sphi 0, %s259
      %s263 = sphi 0, %s262
      %s279 = sphi 0, %s263
    $region4: #{tpu_custom_call.1} parent=1 // loop_header_branch
      %30 = sbr.rel (%p28) target = $region8
    $region5: #{tpu_custom_call.1} parent=1 // loop_body
      %s32 = ssub.s32 %s27, 1
      %s33 = ssub.s32 %s27, 2
      %s40 = sadd.s32 1, %s35
      %p41 = scmp.ge.s32.totalorder %s40, 2
      %s42 = scalar_select %p41, 0, %s40
      %s43 = sadd.s32 1, %s34
      %s44 = scalar_select %p41, %s43, %s34
      %p45 = scmp.ge.s32.totalorder %s44, 2
      %s46 = scalar_select %p45, 0, %s44
      %s47 = ssub.s32 %s34, %s46
      %s48 = ssub.s32 %s35, %s42
      %s49 = sor.u32 %s47, %s48
      %p50 = scmp.eq.s32.totalorder %s49, 0
      %s52 = sadd.s32 %s51, 1
      %s53 = scalar_select %p50, %s51, %s52
      %p56 = pneg %p50
      %p57 = scmp.eq.s32.totalorder %s27, 3
      %p58 = por %p56, %p57
      %p59 = scmp.ne.s32.totalorder %s51, %s54
      %p60 = scmp.eq.s32.totalorder %s27, 0
      %p61 = por %p59, %p60
      %p62 = scmp.ne.s32.totalorder %s51, %s54
      %p63 = scmp.eq.s32.totalorder %s32, 3
      %p64 = por %p62, %p63
      %p65 = scmp.ne.s32.totalorder %s54, %s55
      %p66 = scmp.eq.s32.totalorder %s32, 0
      %p67 = por %p65, %p66
      %p68 = scmp.ne.s32.totalorder %s54, %s55
      %p69 = scmp.eq.s32.totalorder %s33, 3
      %p70 = por %p68, %p69
      %p72 = scmp.ne.s32.totalorder %s55, %s71
      %p73 = scmp.eq.s32.totalorder %s33, 0
      %p74 = por %p72, %p73
      %s75 = ssub.s32 %s34, %s46
      %p76 = scmp.eq.s32.totalorder %s75, 0
      %s78 = sadd.s32 %s77, 1
      %s79 = scalar_select %p76, %s77, %s78
      %p82 = pneg %p76
      %p83 = scmp.eq.s32.totalorder %s27, 3
      %p84 = por %p82, %p83
      %p85 = scmp.ne.s32.totalorder %s77, %s80
      %p86 = scmp.eq.s32.totalorder %s27, 0
      %p87 = por %p85, %p86
      %p88 = scmp.ne.s32.totalorder %s77, %s80
      %p89 = scmp.eq.s32.totalorder %s32, 3
      %p90 = por %p88, %p89
      %p91 = scmp.ne.s32.totalorder %s80, %s81
      %p92 = scmp.eq.s32.totalorder %s32, 0
      %p93 = por %p91, %p92
      %p94 = scmp.ne.s32.totalorder %s80, %s81
      %p95 = scmp.eq.s32.totalorder %s33, 3
      %p96 = por %p94, %p95
      %p98 = scmp.ne.s32.totalorder %s81, %s97
      %p99 = scmp.eq.s32.totalorder %s33, 0
      %p100 = por %p98, %p99
      %s101 = ssub.s32 %s34, %s46
      %s102 = ssub.s32 %s35, %s42
      %s103 = sor.u32 %s101, %s102
      %p104 = scmp.eq.s32.totalorder %s103, 0
      %s106 = sadd.s32 %s105, 1
      %s107 = scalar_select %p104, %s105, %s106
      %p110 = pneg %p104
      %p111 = scmp.eq.s32.totalorder %s27, 3
      %p112 = por %p110, %p111
      %p113 = scmp.ne.s32.totalorder %s105, %s108
      %p114 = scmp.eq.s32.totalorder %s27, 0
      %p115 = por %p113, %p114
      %p116 = scmp.ne.s32.totalorder %s105, %s108
      %p117 = scmp.eq.s32.totalorder %s32, 3
      %p118 = por %p116, %p117
      %p119 = scmp.ne.s32.totalorder %s108, %s109
      %p120 = scmp.eq.s32.totalorder %s32, 0
      %p121 = por %p119, %p120
      %p122 = scmp.ne.s32.totalorder %s108, %s109
      %p123 = scmp.eq.s32.totalorder %s33, 3
      %p124 = por %p122, %p123
      %p126 = scmp.ne.s32.totalorder %s109, %s125
      %p127 = scmp.eq.s32.totalorder %s33, 0
      %p128 = por %p126, %p127
      %s130 = sadd.s32 %s129, 1
      %p133 = scmp.eq.s32.totalorder %s27, 3
      %p134 = scmp.ne.s32.totalorder %s129, %s131
      %p135 = scmp.eq.s32.totalorder %s27, 0
      %p136 = por %p134, %p135
      %p137 = scmp.ne.s32.totalorder %s129, %s131
      %p138 = scmp.eq.s32.totalorder %s32, 3
      %p139 = por %p137, %p138
      %p140 = scmp.ne.s32.totalorder %s131, %s132
      %p141 = scmp.eq.s32.totalorder %s32, 0
      %p142 = por %p140, %p141
      %p143 = scmp.ne.s32.totalorder %s131, %s132
      %p144 = scmp.eq.s32.totalorder %s33, 3
      %p145 = por %p143, %p144
      %p147 = scmp.ne.s32.totalorder %s132, %s146
      %p148 = scmp.eq.s32.totalorder %s33, 0
      %p149 = por %p147, %p148
      %s151 = sadd.s32 %s150, 1
      %p154 = scmp.eq.s32.totalorder %s27, 3
      %p155 = scmp.ne.s32.totalorder %s150, %s152
      %p156 = scmp.eq.s32.totalorder %s27, 0
      %p157 = por %p155, %p156
      %p158 = scmp.ne.s32.totalorder %s150, %s152
      %p159 = scmp.eq.s32.totalorder %s32, 3
      %p160 = por %p158, %p159
      %p161 = scmp.ne.s32.totalorder %s152, %s153
      %p162 = scmp.eq.s32.totalorder %s32, 0
      %p163 = por %p161, %p162
      %p164 = scmp.ne.s32.totalorder %s152, %s153
      %p165 = scmp.eq.s32.totalorder %s33, 3
      %p166 = por %p164, %p165
      %p168 = scmp.ne.s32.totalorder %s153, %s167
      %p169 = scmp.eq.s32.totalorder %s33, 0
      %p170 = por %p168, %p169
      %s172 = sadd.s32 %s171, 1
      %p175 = scmp.eq.s32.totalorder %s27, 3
      %p176 = scmp.ne.s32.totalorder %s171, %s173
      %p177 = scmp.eq.s32.totalorder %s27, 0
      %p178 = por %p176, %p177
      %p179 = scmp.ne.s32.totalorder %s171, %s173
      %p180 = scmp.eq.s32.totalorder %s32, 3
      %p181 = por %p179, %p180
      %p182 = scmp.ne.s32.totalorder %s173, %s174
      %p183 = scmp.eq.s32.totalorder %s32, 0
      %p184 = por %p182, %p183
      %p185 = scmp.ne.s32.totalorder %s173, %s174
      %p186 = scmp.eq.s32.totalorder %s33, 3
      %p187 = por %p185, %p186
      %p189 = scmp.ne.s32.totalorder %s174, %s188
      %p190 = scmp.eq.s32.totalorder %s33, 0
      %p191 = por %p189, %p190
      %s193 = sadd.s32 %s192, 1
      %p196 = scmp.eq.s32.totalorder %s27, 3
      %p197 = scmp.ne.s32.totalorder %s192, %s194
      %p198 = scmp.eq.s32.totalorder %s27, 0
      %p199 = por %p197, %p198
      %p200 = scmp.ne.s32.totalorder %s192, %s194
      %p201 = scmp.eq.s32.totalorder %s32, 3
      %p202 = por %p200, %p201
      %p203 = scmp.ne.s32.totalorder %s194, %s195
      %p204 = scmp.eq.s32.totalorder %s32, 0
      %p205 = por %p203, %p204
      %p206 = scmp.ne.s32.totalorder %s194, %s195
      %p207 = scmp.eq.s32.totalorder %s33, 3
      %p208 = por %p206, %p207
      %p210 = scmp.ne.s32.totalorder %s195, %s209
      %p211 = scmp.eq.s32.totalorder %s33, 0
      %p212 = por %p210, %p211
      %s214 = sadd.s32 %s213, 1
      %p217 = scmp.eq.s32.totalorder %s27, 3
      %p218 = scmp.ne.s32.totalorder %s213, %s215
      %p219 = scmp.eq.s32.totalorder %s27, 0
      %p220 = por %p218, %p219
      %p221 = scmp.ne.s32.totalorder %s213, %s215
      %p222 = scmp.eq.s32.totalorder %s32, 3
      %p223 = por %p221, %p222
      %p224 = scmp.ne.s32.totalorder %s215, %s216
      %p225 = scmp.eq.s32.totalorder %s32, 0
      %p226 = por %p224, %p225
      %p227 = scmp.ne.s32.totalorder %s215, %s216
      %p228 = scmp.eq.s32.totalorder %s33, 3
      %p229 = por %p227, %p228
      %p231 = scmp.ne.s32.totalorder %s216, %s230
      %p232 = scmp.eq.s32.totalorder %s33, 0
      %p233 = por %p231, %p232
      %s235 = sadd.s32 %s234, 1
      %p238 = scmp.eq.s32.totalorder %s27, 3
      %p239 = scmp.ne.s32.totalorder %s234, %s236
      %p240 = scmp.eq.s32.totalorder %s27, 0
      %p241 = por %p239, %p240
      %p242 = scmp.ne.s32.totalorder %s234, %s236
      %p243 = scmp.eq.s32.totalorder %s32, 3
      %p244 = por %p242, %p243
      %p245 = scmp.ne.s32.totalorder %s236, %s237
      %p246 = scmp.eq.s32.totalorder %s32, 0
      %p247 = por %p245, %p246
      %p248 = scmp.ne.s32.totalorder %s236, %s237
      %p249 = scmp.eq.s32.totalorder %s33, 3
      %p250 = por %p248, %p249
      %p252 = scmp.ne.s32.totalorder %s237, %s251
      %p253 = scmp.eq.s32.totalorder %s33, 0
      %p254 = por %p252, %p253
      %s255 = ssub.s32 %s34, %s46
      %s256 = ssub.s32 %s35, %s42
      %s257 = sor.u32 %s255, %s256
      %p258 = scmp.eq.s32.totalorder %s257, 0
      %s260 = sadd.s32 %s259, 1
      %s261 = scalar_select %p258, %s259, %s260
      %p264 = pneg %p258
      %p265 = scmp.eq.s32.totalorder %s27, 3
      %p266 = por %p264, %p265
      %p267 = scmp.ne.s32.totalorder %s259, %s262
      %p268 = scmp.eq.s32.totalorder %s27, 0
      %p269 = por %p267, %p268
      %p270 = scmp.ne.s32.totalorder %s259, %s262
      %p271 = scmp.eq.s32.totalorder %s32, 3
      %p272 = por %p270, %p271
      %p273 = scmp.ne.s32.totalorder %s262, %s263
      %p274 = scmp.eq.s32.totalorder %s32, 0
      %p275 = por %p273, %p274
      %p276 = scmp.ne.s32.totalorder %s262, %s263
      %p277 = scmp.eq.s32.totalorder %s33, 3
      %p278 = por %p276, %p277
      %p280 = scmp.ne.s32.totalorder %s263, %s279
      %p281 = scmp.eq.s32.totalorder %s33, 0
      %p282 = por %p280, %p281
      %p283 = scmp.le.s32.totalorder 1, %s27
      %p284 = scmp.lt.s32.totalorder %s27, 5
      %p285 = pnand %p283, %p284
      %p286 = pneg %p285
      // Predicated region
      $region9: #{tpu_custom_call.1} parent=5 // pred_check
        _
      $region10: #{tpu_custom_call.1} parent=5 // pred_check_branch
        %288 = sbr.rel (%p285) target = $region12
      $region11: #{tpu_custom_call.1} parent=5 // pred_region
        %s289 = ssub.s32 %s27, 1
        // Predicated region
        $region13: #{tpu_custom_call.1} parent=11 // pred_check
          %p290 = pneg %p142
        $region14: #{tpu_custom_call.1} parent=11 // pred_check_branch
          %292 = sbr.rel (%p290) target = $region16
        $region15: #{tpu_custom_call.1} parent=11 // pred_region
          %s294 = ssub.s32 36864, 36864
          %295 = vsyncadd [#allocation8], %s294
          %s296 = sshll.u32 [#allocation9], 4
          %s297 = int_to_ptr.vmem [resolvable:$true] %s296
          %302 = dma.hbm_to_vmem [thread:$0]  %s3, 36864, %s297, [#allocation8], 384, 384, 24
        $region16: #{tpu_custom_call.1} parent=11 // pred_fallthru
          _
        // Predicated region
        $region17: #{tpu_custom_call.1} parent=11 // pred_check
          %p303 = pneg %p163
        $region18: #{tpu_custom_call.1} parent=11 // pred_check_branch
          %305 = sbr.rel (%p303) target = $region20
        $region19: #{tpu_custom_call.1} parent=11 // pred_region
          %s307 = ssub.s32 96, 96
          %308 = vsyncadd [#allocation11], %s307
          %s310 = sshll.u32 [#allocation10], 4
          %s311 = int_to_ptr.vmem [resolvable:$true] %s310
          %313 = dma.hbm_to_vmem [thread:$0]  %s4, 96, %s311, [#allocation11]
        $region20: #{tpu_custom_call.1} parent=11 // pred_fallthru
          _
        // Predicated region
        $region21: #{tpu_custom_call.1} parent=11 // pred_check
          %p314 = pneg %p184
        $region22: #{tpu_custom_call.1} parent=11 // pred_check_branch
          %316 = sbr.rel (%p314) target = $region24
        $region23: #{tpu_custom_call.1} parent=11 // pred_region
          %s318 = ssub.s32 36864, 36864
          %319 = vsyncadd [#allocation11], %s318
          %s320 = sshll.u32 [#allocation12], 4
          %s321 = int_to_ptr.vmem [resolvable:$true] %s320
          %326 = dma.hbm_to_vmem [thread:$0]  %s5, 36864, %s321, [#allocation11], 384, 384, 24
        $region24: #{tpu_custom_call.1} parent=11 // pred_fallthru
          _
        // Predicated region
        $region25: #{tpu_custom_call.1} parent=11 // pred_check
          %p327 = pneg %p205
        $region26: #{tpu_custom_call.1} parent=11 // pred_check_branch
          %329 = sbr.rel (%p327) target = $region28
        $region27: #{tpu_custom_call.1} parent=11 // pred_region
          %s331 = ssub.s32 96, 96
          %332 = vsyncadd [#allocation14], %s331
          %s334 = sshll.u32 [#allocation13], 4
          %s335 = int_to_ptr.vmem [resolvable:$true] %s334
          %337 = dma.hbm_to_vmem [thread:$0]  %s6, 96, %s335, [#allocation14]
        $region28: #{tpu_custom_call.1} parent=11 // pred_fallthru
          _
        // Predicated region
        $region29: #{tpu_custom_call.1} parent=11 // pred_check
          %p338 = pneg %p226
        $region30: #{tpu_custom_call.1} parent=11 // pred_check_branch
          %340 = sbr.rel (%p338) target = $region32
        $region31: #{tpu_custom_call.1} parent=11 // pred_region
          %s342 = ssub.s32 36864, 36864
          %343 = vsyncadd [#allocation14], %s342
          %s344 = sshll.u32 [#allocation15], 4
          %s345 = int_to_ptr.vmem [resolvable:$true] %s344
          %350 = dma.hbm_to_vmem [thread:$0]  %s7, 36864, %s345, [#allocation14], 384, 384, 24
        $region32: #{tpu_custom_call.1} parent=11 // pred_fallthru
          _
        // Predicated region
        $region33: #{tpu_custom_call.1} parent=11 // pred_check
          %p351 = pneg %p247
        $region34: #{tpu_custom_call.1} parent=11 // pred_check_branch
          %353 = sbr.rel (%p351) target = $region36
        $region35: #{tpu_custom_call.1} parent=11 // pred_region
          %s355 = ssub.s32 96, 96
          %356 = vsyncadd [#allocation17], %s355
          %s358 = sshll.u32 [#allocation16], 4
          %s359 = int_to_ptr.vmem [resolvable:$true] %s358
          %361 = dma.hbm_to_vmem [thread:$0]  %s8, 96, %s359, [#allocation17]
        $region36: #{tpu_custom_call.1} parent=11 // pred_fallthru
          _
      $region12: #{tpu_custom_call.1} parent=5 // pred_fallthru
        _
      %p362 = scmp.lt.s32.totalorder %s27, 4
      // Predicated region
      $region37: #{tpu_custom_call.1} parent=5 // pred_check
        %p363 = pneg %p362
      $region38: #{tpu_custom_call.1} parent=5 // pred_check_branch
        %365 = sbr.rel (%p363) target = $region40
      $region39: #{tpu_custom_call.1} parent=5 // pred_region
        // Predicated region
        $region41: #{tpu_custom_call.1} parent=39 // pred_check
          %p366 = pneg %p61
        $region42: #{tpu_custom_call.1} parent=39 // pred_check_branch
          %368 = sbr.rel (%p366) target = $region44
        $region43: #{tpu_custom_call.1} parent=39 // pred_region
          %s369 = sand.u32 %s51, 1
          %s370 = scalar_lea.sflag [#allocation5], %s369
          %s371 = sand.u32 %s51, 1
          %s372 = smul.addr %s371, 48
          %s373 = scalar_lea.vmem [#allocation4], %s372
          %s375 = ssub.s32 768, 768
          %376 = vsyncadd %s370, %s375
          %s377 = smul.addr %s35, 6
          %s378 = smul.addr %s34, 12
          %s379 = sadd.s32 %s377, %s378
          %s380 = smul.addr %s379, 128
          %s381 = scalar_lea.hbm %s0, %s380
          %s383 = sshll.u32 %s373, 4
          %s384 = int_to_ptr.vmem [resolvable:$true] %s383
          %386 = dma.hbm_to_vmem [thread:$0]  %s381, 768, %s384, %s370
        $region44: #{tpu_custom_call.1} parent=39 // pred_fallthru
          _
        // Predicated region
        $region45: #{tpu_custom_call.1} parent=39 // pred_check
          %p387 = pneg %p87
        $region46: #{tpu_custom_call.1} parent=39 // pred_check_branch
          %389 = sbr.rel (%p387) target = $region48
        $region47: #{tpu_custom_call.1} parent=39 // pred_region
          %s390 = sand.u32 %s27, 1
          %s391 = scalar_lea.sflag [#allocation8], %s390
          %s392 = sand.u32 %s77, 1
          %s393 = smul.addr %s392, 48
          %s394 = scalar_lea.vmem [#allocation7], %s393
          %s396 = ssub.s32 768, 768
          %397 = vsyncadd %s391, %s396
          %s398 = smul.addr %s34, 6
          %s399 = smul.addr %s398, 128
          %s400 = scalar_lea.hbm %s1, %s399
          %s402 = sshll.u32 %s394, 4
          %s403 = int_to_ptr.vmem [resolvable:$true] %s402
          %405 = dma.hbm_to_vmem [thread:$0]  %s400, 768, %s403, %s391
        $region48: #{tpu_custom_call.1} parent=39 // pred_fallthru
          _
        // Predicated region
        $region49: #{tpu_custom_call.1} parent=39 // pred_check
          %p406 = pneg %p115
        $region50: #{tpu_custom_call.1} parent=39 // pred_check_branch
          %408 = sbr.rel (%p406) target = $region52
        $region51: #{tpu_custom_call.1} parent=39 // pred_region
          %p409 = scmp.lt.s32.totalorder %s34, 1
          %s410 = scalar_select %p409, %s34, 1
          %p411 = scmp.lt.s32.totalorder %s35, 1
          %s412 = scalar_select %p411, %s35, 1
          %s413 = smul.addr %s410, 2
          %s414 = sadd.s32 %s412, %s413
          %s415 = smul.addr %s414, 4
          %s416 = scalar_lea.vmem %s2, %s415
        $region52: #{tpu_custom_call.1} parent=39 // pred_fallthru
          _
      $region40: #{tpu_custom_call.1} parent=5 // pred_fallthru
        _
      %p417 = scmp.le.s32.totalorder 1, %s27
      %p418 = scmp.lt.s32.totalorder %s27, 5
      %p419 = pnand %p417, %p418
      %p420 = pneg %p419
      // Predicated region
      $region53: #{tpu_custom_call.1} parent=5 // pred_check
        _
      $region54: #{tpu_custom_call.1} parent=5 // pred_check_branch
        %422 = sbr.rel (%p419) target = $region56
      $region55: #{tpu_custom_call.1} parent=5 // pred_region
        %s423 = ssub.s32 %s27, 1
        %s424 = sand.u32 %s54, 1
        %s425 = scalar_lea.sflag [#allocation5], %s424
        %s426 = sand.u32 %s54, 1
        %s427 = smul.addr %s426, 48
        %s428 = scalar_lea.vmem [#allocation4], %s427
        // Predicated region
        $region57: #{tpu_custom_call.1} parent=55 // pred_check
          %p429 = pneg %p67
        $region58: #{tpu_custom_call.1} parent=55 // pred_check_branch
          %431 = sbr.rel (%p429) target = $region60
        $region59: #{tpu_custom_call.1} parent=55 // pred_region
          %432 = dma.done %s425, 768
        $region60: #{tpu_custom_call.1} parent=55 // pred_fallthru
          _
        %s433 = sand.u32 %s32, 1
        %s434 = scalar_lea.sflag [#allocation8], %s433
        %s435 = sand.u32 %s80, 1
        %s436 = smul.addr %s435, 48
        %s437 = scalar_lea.vmem [#allocation7], %s436
        // Predicated region
        $region61: #{tpu_custom_call.1} parent=55 // pred_check
          %p438 = pneg %p93
        $region62: #{tpu_custom_call.1} parent=55 // pred_check_branch
          %440 = sbr.rel (%p438) target = $region64
        $region63: #{tpu_custom_call.1} parent=55 // pred_region
          %441 = dma.done %s434, 768
        $region64: #{tpu_custom_call.1} parent=55 // pred_fallthru
          _
        // Predicated region
        $region65: #{tpu_custom_call.1} parent=55 // pred_check
          %p442 = pneg %p142
        $region66: #{tpu_custom_call.1} parent=55 // pred_check_branch
          %444 = sbr.rel (%p442) target = $region68
        $region67: #{tpu_custom_call.1} parent=55 // pred_region
          %445 = dma.done [#allocation8], 36864
        $region68: #{tpu_custom_call.1} parent=55 // pred_fallthru
          _
        // Predicated region
        $region69: #{tpu_custom_call.1} parent=55 // pred_check
          %p446 = pneg %p163
        $region70: #{tpu_custom_call.1} parent=55 // pred_check_branch
          %448 = sbr.rel (%p446) target = $region72
        $region71: #{tpu_custom_call.1} parent=55 // pred_region
          %449 = dma.done [#allocation11], 96
        $region72: #{tpu_custom_call.1} parent=55 // pred_fallthru
          _
        // Predicated region
        $region73: #{tpu_custom_call.1} parent=55 // pred_check
          %p450 = pneg %p184
        $region74: #{tpu_custom_call.1} parent=55 // pred_check_branch
          %452 = sbr.rel (%p450) target = $region76
        $region75: #{tpu_custom_call.1} parent=55 // pred_region
          %453 = dma.done [#allocation11], 36864
        $region76: #{tpu_custom_call.1} parent=55 // pred_fallthru
          _
        // Predicated region
        $region77: #{tpu_custom_call.1} parent=55 // pred_check
          %p454 = pneg %p205
        $region78: #{tpu_custom_call.1} parent=55 // pred_check_branch
          %456 = sbr.rel (%p454) target = $region80
        $region79: #{tpu_custom_call.1} parent=55 // pred_region
          %457 = dma.done [#allocation14], 96
        $region80: #{tpu_custom_call.1} parent=55 // pred_fallthru
          _
        // Predicated region
        $region81: #{tpu_custom_call.1} parent=55 // pred_check
          %p458 = pneg %p226
        $region82: #{tpu_custom_call.1} parent=55 // pred_check_branch
          %460 = sbr.rel (%p458) target = $region84
        $region83: #{tpu_custom_call.1} parent=55 // pred_region
          %461 = dma.done [#allocation14], 36864
        $region84: #{tpu_custom_call.1} parent=55 // pred_fallthru
          _
        // Predicated region
        $region85: #{tpu_custom_call.1} parent=55 // pred_check
          %p462 = pneg %p247
        $region86: #{tpu_custom_call.1} parent=55 // pred_check_branch
          %464 = sbr.rel (%p462) target = $region88
        $region87: #{tpu_custom_call.1} parent=55 // pred_region
          %465 = dma.done [#allocation17], 96
        $region88: #{tpu_custom_call.1} parent=55 // pred_fallthru
          _
        %s466 = sand.u32 %s54, 1
        %s467 = scalar_lea.sflag [#allocation5], %s466
        %s468 = sand.u32 %s54, 1
        %s469 = smul.addr %s468, 48
        %s470 = scalar_lea.vmem [#allocation4], %s469
        %p471 = pneg %p67
        %p472 = pneg %p64
        %s473 = sand.u32 %s32, 1
        %s474 = scalar_lea.sflag [#allocation8], %s473
        %s475 = sand.u32 %s80, 1
        %s476 = smul.addr %s475, 48
        %s477 = scalar_lea.vmem [#allocation7], %s476
        %p478 = pneg %p93
        %p479 = pneg %p90
        %p480 = scmp.lt.s32.totalorder %s36, 1
        %s481 = scalar_select %p480, %s36, 1
        %p482 = scmp.lt.s32.totalorder %s37, 1
        %s483 = scalar_select %p482, %s37, 1
        %s484 = smul.addr %s481, 2
        %s485 = sadd.s32 %s483, %s484
        %s486 = smul.addr %s485, 4
        %s487 = scalar_lea.vmem %s2, %s486
        %p488 = pneg %p121
        %p489 = pneg %p118
        %p490 = pneg %p142
        %p491 = pneg %p139
        %p492 = pneg %p163
        %p493 = pneg %p160
        %p494 = pneg %p184
        %p495 = pneg %p181
        %p496 = pneg %p205
        %p497 = pneg %p202
        %p498 = pneg %p226
        %p499 = pneg %p223
        %p500 = pneg %p247
        %p501 = pneg %p244
        %p502 = pneg %p275
        %p503 = pneg %p272
        %s504 = sand.u32 %s262, 1
        %s505 = scalar_lea.sflag [#allocation6], %s504
        %s506 = sand.u32 %s262, 1
        %s507 = smul.addr %s506, 24
        %s508 = scalar_lea.vmem [#allocation18], %s507
        %p509 = scmp.lt.s32.totalorder %s36, 1
        %s510 = scalar_select %p509, %s36, 1
        %p511 = scmp.lt.s32.totalorder %s37, 1
        %s512 = scalar_select %p511, %s37, 1
        %s513 = smul.addr %s510, 2
        %s514 = sadd.s32 %s512, %s513
        %s515 = smul.addr %s514, 4
        %s516 = scalar_lea.vmem %s2, %s515
        %p520 = scmp.eq.s32.totalorder %s37, 0
        // Predicated region
        $region89: #{tpu_custom_call.1} parent=55 // pred_check
          %p521 = pneg %p520
        $region90: #{tpu_custom_call.1} parent=55 // pred_check_branch
          %523 = sbr.rel (%p521) target = $region92
        $region91: #{tpu_custom_call.1} parent=55 // pred_region
          %v524 = vld [vmem:[%s437] sm:$0xff]
          %v525 = vld [vmem:[%s437 + $0x8] sm:$0xff]
          %v526 = vld [vmem:[%s437 + $0x10] sm:$0xff]
          %v527 = vld [vmem:[%s437 + $0x18] sm:$0xff]
          %v528 = vld [vmem:[%s437 + $0x20] sm:$0xff]
          %v529 = vld [vmem:[%s437 + $0x28] sm:$0xff]
          %v530 = vpack.c.bf16 %v524, %v524
          %v531 = vpack.c.bf16 %v525, %v525
          %v532 = vpack.c.bf16 %v526, %v526
          %v533 = vpack.c.bf16 %v527, %v527
          %v534 = vpack.c.bf16 %v528, %v528
          %v535 = vpack.c.bf16 %v529, %v529
          %v536 = vld [vmem:[#allocation12] sm:$0xff]
          %v537 = vld [vmem:[#allocation12 + $0x8] sm:$0xff]
          %v538 = vld [vmem:[#allocation12 + $0x10] sm:$0xff]
          %v539 = vld [vmem:[#allocation12 + $0x18] sm:$0xff]
          %v540 = vld [vmem:[#allocation12 + $0x20] sm:$0xff]
          %v541 = vld [vmem:[#allocation12 + $0x28] sm:$0xff]
          %v542 = vld [vmem:[#allocation12 + $0x30] sm:$0xff]
          %v543 = vld [vmem:[#allocation12 + $0x38] sm:$0xff]
          %v544 = vld [vmem:[#allocation12 + $0x40] sm:$0xff]
          %v545 = vld [vmem:[#allocation12 + $0x48] sm:$0xff]
          %v546 = vld [vmem:[#allocation12 + $0x50] sm:$0xff]
          %v547 = vld [vmem:[#allocation12 + $0x58] sm:$0xff]
          %v548 = vld [vmem:[#allocation12 + $0x60] sm:$0xff]
          %v549 = vld [vmem:[#allocation12 + $0x68] sm:$0xff]
          %v550 = vld [vmem:[#allocation12 + $0x70] sm:$0xff]
          %v551 = vld [vmem:[#allocation12 + $0x78] sm:$0xff]
          %v552 = vld [vmem:[#allocation12 + $0x80] sm:$0xff]
          %v553 = vld [vmem:[#allocation12 + $0x88] sm:$0xff]
          %v554 = vld [vmem:[#allocation12 + $0x90] sm:$0xff]
          %v555 = vld [vmem:[#allocation12 + $0x98] sm:$0xff]
          %v556 = vld [vmem:[#allocation12 + $0xa0] sm:$0xff]
          %v557 = vld [vmem:[#allocation12 + $0xa8] sm:$0xff]
          %v558 = vld [vmem:[#allocation12 + $0xb0] sm:$0xff]
          %v559 = vld [vmem:[#allocation12 + $0xb8] sm:$0xff]
          %v560 = vld [vmem:[#allocation12 + $0xc0] sm:$0xff]
          %v561 = vld [vmem:[#allocation12 + $0xc8] sm:$0xff]
          %v562 = vld [vmem:[#allocation12 + $0xd0] sm:$0xff]
          %v563 = vld [vmem:[#allocation12 + $0xd8] sm:$0xff]
          %v564 = vld [vmem:[#allocation12 + $0xe0] sm:$0xff]
          %v565 = vld [vmem:[#allocation12 + $0xe8] sm:$0xff]
          %v566 = vld [vmem:[#allocation12 + $0xf0] sm:$0xff]
          %v567 = vld [vmem:[#allocation12 + $0xf8] sm:$0xff]
          %v568 = vld [vmem:[#allocation12 + $0x100] sm:$0xff]
          %v569 = vld [vmem:[#allocation12 + $0x108] sm:$0xff]
          %v570 = vld [vmem:[#allocation12 + $0x110] sm:$0xff]
          %v571 = vld [vmem:[#allocation12 + $0x118] sm:$0xff]
          %v572 = vld [vmem:[#allocation12 + $0x120] sm:$0xff]
          %v573 = vld [vmem:[#allocation12 + $0x128] sm:$0xff]
          %v574 = vld [vmem:[#allocation12 + $0x130] sm:$0xff]
          %v575 = vld [vmem:[#allocation12 + $0x138] sm:$0xff]
          %v576 = vld [vmem:[#allocation12 + $0x140] sm:$0xff]
          %v577 = vld [vmem:[#allocation12 + $0x148] sm:$0xff]
          %v578 = vld [vmem:[#allocation12 + $0x150] sm:$0xff]
          %v579 = vld [vmem:[#allocation12 + $0x158] sm:$0xff]
          %v580 = vld [vmem:[#allocation12 + $0x160] sm:$0xff]
          %v581 = vld [vmem:[#allocation12 + $0x168] sm:$0xff]
          %v582 = vld [vmem:[#allocation12 + $0x170] sm:$0xff]
          %v583 = vld [vmem:[#allocation12 + $0x178] sm:$0xff]
          %v584 = vld [vmem:[#allocation12 + $0x180] sm:$0xff]
          %v585 = vld [vmem:[#allocation12 + $0x188] sm:$0xff]
          %v586 = vld [vmem:[#allocation12 + $0x190] sm:$0xff]
          %v587 = vld [vmem:[#allocation12 + $0x198] sm:$0xff]
          %v588 = vld [vmem:[#allocation12 + $0x1a0] sm:$0xff]
          %v589 = vld [vmem:[#allocation12 + $0x1a8] sm:$0xff]
          %v590 = vld [vmem:[#allocation12 + $0x1b0] sm:$0xff]
          %v591 = vld [vmem:[#allocation12 + $0x1b8] sm:$0xff]
          %v592 = vld [vmem:[#allocation12 + $0x1c0] sm:$0xff]
          %v593 = vld [vmem:[#allocation12 + $0x1c8] sm:$0xff]
          %v594 = vld [vmem:[#allocation12 + $0x1d0] sm:$0xff]
          %v595 = vld [vmem:[#allocation12 + $0x1d8] sm:$0xff]
          %v596 = vld [vmem:[#allocation12 + $0x1e0] sm:$0xff]
          %v597 = vld [vmem:[#allocation12 + $0x1e8] sm:$0xff]
          %v598 = vld [vmem:[#allocation12 + $0x1f0] sm:$0xff]
          %v599 = vld [vmem:[#allocation12 + $0x1f8] sm:$0xff]
          %v600 = vld [vmem:[#allocation12 + $0x200] sm:$0xff]
          %v601 = vld [vmem:[#allocation12 + $0x208] sm:$0xff]
          %v602 = vld [vmem:[#allocation12 + $0x210] sm:$0xff]
          %v603 = vld [vmem:[#allocation12 + $0x218] sm:$0xff]
          %v604 = vld [vmem:[#allocation12 + $0x220] sm:$0xff]
          %v605 = vld [vmem:[#allocation12 + $0x228] sm:$0xff]
          %v606 = vld [vmem:[#allocation12 + $0x230] sm:$0xff]
          %v607 = vld [vmem:[#allocation12 + $0x238] sm:$0xff]
          %v608 = vld [vmem:[#allocation12 + $0x240] sm:$0xff]
          %v609 = vld [vmem:[#allocation12 + $0x248] sm:$0xff]
          %v610 = vld [vmem:[#allocation12 + $0x250] sm:$0xff]
          %v611 = vld [vmem:[#allocation12 + $0x258] sm:$0xff]
          %v612 = vld [vmem:[#allocation12 + $0x260] sm:$0xff]
          %v613 = vld [vmem:[#allocation12 + $0x268] sm:$0xff]
          %v614 = vld [vmem:[#allocation12 + $0x270] sm:$0xff]
          %v615 = vld [vmem:[#allocation12 + $0x278] sm:$0xff]
          %v616 = vld [vmem:[#allocation12 + $0x280] sm:$0xff]
          %v617 = vld [vmem:[#allocation12 + $0x288] sm:$0xff]
          %v618 = vld [vmem:[#allocation12 + $0x290] sm:$0xff]
          %v619 = vld [vmem:[#allocation12 + $0x298] sm:$0xff]
          %v620 = vld [vmem:[#allocation12 + $0x2a0] sm:$0xff]
          %v621 = vld [vmem:[#allocation12 + $0x2a8] sm:$0xff]
          %v622 = vld [vmem:[#allocation12 + $0x2b0] sm:$0xff]
          %v623 = vld [vmem:[#allocation12 + $0x2b8] sm:$0xff]
          %v624 = vld [vmem:[#allocation12 + $0x2c0] sm:$0xff]
          %v625 = vld [vmem:[#allocation12 + $0x2c8] sm:$0xff]
          %v626 = vld [vmem:[#allocation12 + $0x2d0] sm:$0xff]
          %v627 = vld [vmem:[#allocation12 + $0x2d8] sm:$0xff]
          %v628 = vld [vmem:[#allocation12 + $0x2e0] sm:$0xff]
          %v629 = vld [vmem:[#allocation12 + $0x2e8] sm:$0xff]
          %v630 = vld [vmem:[#allocation12 + $0x2f0] sm:$0xff]
          %v631 = vld [vmem:[#allocation12 + $0x2f8] sm:$0xff]
          %v632 = vld [vmem:[#allocation12 + $0x300] sm:$0xff]
          %v633 = vld [vmem:[#allocation12 + $0x308] sm:$0xff]
          %v634 = vld [vmem:[#allocation12 + $0x310] sm:$0xff]
          %v635 = vld [vmem:[#allocation12 + $0x318] sm:$0xff]
          %v636 = vld [vmem:[#allocation12 + $0x320] sm:$0xff]
          %v637 = vld [vmem:[#allocation12 + $0x328] sm:$0xff]
          %v638 = vld [vmem:[#allocation12 + $0x330] sm:$0xff]
          %v639 = vld [vmem:[#allocation12 + $0x338] sm:$0xff]
          %v640 = vld [vmem:[#allocation12 + $0x340] sm:$0xff]
          %v641 = vld [vmem:[#allocation12 + $0x348] sm:$0xff]
          %v642 = vld [vmem:[#allocation12 + $0x350] sm:$0xff]
          %v643 = vld [vmem:[#allocation12 + $0x358] sm:$0xff]
          %v644 = vld [vmem:[#allocation12 + $0x360] sm:$0xff]
          %v645 = vld [vmem:[#allocation12 + $0x368] sm:$0xff]
          %v646 = vld [vmem:[#allocation12 + $0x370] sm:$0xff]
          %v647 = vld [vmem:[#allocation12 + $0x378] sm:$0xff]
          %v648 = vld [vmem:[#allocation12 + $0x380] sm:$0xff]
          %v649 = vld [vmem:[#allocation12 + $0x388] sm:$0xff]
          %v650 = vld [vmem:[#allocation12 + $0x390] sm:$0xff]
          %v651 = vld [vmem:[#allocation12 + $0x398] sm:$0xff]
          %v652 = vld [vmem:[#allocation12 + $0x3a0] sm:$0xff]
          %v653 = vld [vmem:[#allocation12 + $0x3a8] sm:$0xff]
          %v654 = vld [vmem:[#allocation12 + $0x3b0] sm:$0xff]
          %v655 = vld [vmem:[#allocation12 + $0x3b8] sm:$0xff]
          %v656 = vld [vmem:[#allocation12 + $0x3c0] sm:$0xff]
          %v657 = vld [vmem:[#allocation12 + $0x3c8] sm:$0xff]
          %v658 = vld [vmem:[#allocation12 + $0x3d0] sm:$0xff]
          %v659 = vld [vmem:[#allocation12 + $0x3d8] sm:$0xff]
          %v660 = vld [vmem:[#allocation12 + $0x3e0] sm:$0xff]
          %v661 = vld [vmem:[#allocation12 + $0x3e8] sm:$0xff]
          %v662 = vld [vmem:[#allocation12 + $0x3f0] sm:$0xff]
          %v663 = vld [vmem:[#allocation12 + $0x3f8] sm:$0xff]
          %v664 = vld [vmem:[#allocation12 + $0x400] sm:$0xff]
          %v665 = vld [vmem:[#allocation12 + $0x408] sm:$0xff]
          %v666 = vld [vmem:[#allocation12 + $0x410] sm:$0xff]
          %v667 = vld [vmem:[#allocation12 + $0x418] sm:$0xff]
          %v668 = vld [vmem:[#allocation12 + $0x420] sm:$0xff]
          %v669 = vld [vmem:[#allocation12 + $0x428] sm:$0xff]
          %v670 = vld [vmem:[#allocation12 + $0x430] sm:$0xff]
          %v671 = vld [vmem:[#allocation12 + $0x438] sm:$0xff]
          %v672 = vld [vmem:[#allocation12 + $0x440] sm:$0xff]
          %v673 = vld [vmem:[#allocation12 + $0x448] sm:$0xff]
          %v674 = vld [vmem:[#allocation12 + $0x450] sm:$0xff]
          %v675 = vld [vmem:[#allocation12 + $0x458] sm:$0xff]
          %v676 = vld [vmem:[#allocation12 + $0x460] sm:$0xff]
          %v677 = vld [vmem:[#allocation12 + $0x468] sm:$0xff]
          %v678 = vld [vmem:[#allocation12 + $0x470] sm:$0xff]
          %v679 = vld [vmem:[#allocation12 + $0x478] sm:$0xff]
          %v680 = vld [vmem:[#allocation12 + $0x480] sm:$0xff]
          %v681 = vld [vmem:[#allocation12 + $0x488] sm:$0xff]
          %v682 = vld [vmem:[#allocation12 + $0x490] sm:$0xff]
          %v683 = vld [vmem:[#allocation12 + $0x498] sm:$0xff]
          %v684 = vld [vmem:[#allocation12 + $0x4a0] sm:$0xff]
          %v685 = vld [vmem:[#allocation12 + $0x4a8] sm:$0xff]
          %v686 = vld [vmem:[#allocation12 + $0x4b0] sm:$0xff]
          %v687 = vld [vmem:[#allocation12 + $0x4b8] sm:$0xff]
          %v688 = vld [vmem:[#allocation12 + $0x4c0] sm:$0xff]
          %v689 = vld [vmem:[#allocation12 + $0x4c8] sm:$0xff]
          %v690 = vld [vmem:[#allocation12 + $0x4d0] sm:$0xff]
          %v691 = vld [vmem:[#allocation12 + $0x4d8] sm:$0xff]
          %v692 = vld [vmem:[#allocation12 + $0x4e0] sm:$0xff]
          %v693 = vld [vmem:[#allocation12 + $0x4e8] sm:$0xff]
          %v694 = vld [vmem:[#allocation12 + $0x4f0] sm:$0xff]
          %v695 = vld [vmem:[#allocation12 + $0x4f8] sm:$0xff]
          %v696 = vld [vmem:[#allocation12 + $0x500] sm:$0xff]
          %v697 = vld [vmem:[#allocation12 + $0x508] sm:$0xff]
          %v698 = vld [vmem:[#allocation12 + $0x510] sm:$0xff]
          %v699 = vld [vmem:[#allocation12 + $0x518] sm:$0xff]
          %v700 = vld [vmem:[#allocation12 + $0x520] sm:$0xff]
          %v701 = vld [vmem:[#allocation12 + $0x528] sm:$0xff]
          %v702 = vld [vmem:[#allocation12 + $0x530] sm:$0xff]
          %v703 = vld [vmem:[#allocation12 + $0x538] sm:$0xff]
          %v704 = vld [vmem:[#allocation12 + $0x540] sm:$0xff]
          %v705 = vld [vmem:[#allocation12 + $0x548] sm:$0xff]
          %v706 = vld [vmem:[#allocation12 + $0x550] sm:$0xff]
          %v707 = vld [vmem:[#allocation12 + $0x558] sm:$0xff]
          %v708 = vld [vmem:[#allocation12 + $0x560] sm:$0xff]
          %v709 = vld [vmem:[#allocation12 + $0x568] sm:$0xff]
          %v710 = vld [vmem:[#allocation12 + $0x570] sm:$0xff]
          %v711 = vld [vmem:[#allocation12 + $0x578] sm:$0xff]
          %v712 = vld [vmem:[#allocation12 + $0x580] sm:$0xff]
          %v713 = vld [vmem:[#allocation12 + $0x588] sm:$0xff]
          %v714 = vld [vmem:[#allocation12 + $0x590] sm:$0xff]
          %v715 = vld [vmem:[#allocation12 + $0x598] sm:$0xff]
          %v716 = vld [vmem:[#allocation12 + $0x5a0] sm:$0xff]
          %v717 = vld [vmem:[#allocation12 + $0x5a8] sm:$0xff]
          %v718 = vld [vmem:[#allocation12 + $0x5b0] sm:$0xff]
          %v719 = vld [vmem:[#allocation12 + $0x5b8] sm:$0xff]
          %v720 = vld [vmem:[#allocation12 + $0x5c0] sm:$0xff]
          %v721 = vld [vmem:[#allocation12 + $0x5c8] sm:$0xff]
          %v722 = vld [vmem:[#allocation12 + $0x5d0] sm:$0xff]
          %v723 = vld [vmem:[#allocation12 + $0x5d8] sm:$0xff]
          %v724 = vld [vmem:[#allocation12 + $0x5e0] sm:$0xff]
          %v725 = vld [vmem:[#allocation12 + $0x5e8] sm:$0xff]
          %v726 = vld [vmem:[#allocation12 + $0x5f0] sm:$0xff]
          %v727 = vld [vmem:[#allocation12 + $0x5f8] sm:$0xff]
          %v728 = vld [vmem:[#allocation12 + $0x600] sm:$0xff]
          %v729 = vld [vmem:[#allocation12 + $0x608] sm:$0xff]
          %v730 = vld [vmem:[#allocation12 + $0x610] sm:$0xff]
          %v731 = vld [vmem:[#allocation12 + $0x618] sm:$0xff]
          %v732 = vld [vmem:[#allocation12 + $0x620] sm:$0xff]
          %v733 = vld [vmem:[#allocation12 + $0x628] sm:$0xff]
          %v734 = vld [vmem:[#allocation12 + $0x630] sm:$0xff]
          %v735 = vld [vmem:[#allocation12 + $0x638] sm:$0xff]
          %v736 = vld [vmem:[#allocation12 + $0x640] sm:$0xff]
          %v737 = vld [vmem:[#allocation12 + $0x648] sm:$0xff]
          %v738 = vld [vmem:[#allocation12 + $0x650] sm:$0xff]
          %v739 = vld [vmem:[#allocation12 + $0x658] sm:$0xff]
          %v740 = vld [vmem:[#allocation12 + $0x660] sm:$0xff]
          %v741 = vld [vmem:[#allocation12 + $0x668] sm:$0xff]
          %v742 = vld [vmem:[#allocation12 + $0x670] sm:$0xff]
          %v743 = vld [vmem:[#allocation12 + $0x678] sm:$0xff]
          %v744 = vld [vmem:[#allocation12 + $0x680] sm:$0xff]
          %v745 = vld [vmem:[#allocation12 + $0x688] sm:$0xff]
          %v746 = vld [vmem:[#allocation12 + $0x690] sm:$0xff]
          %v747 = vld [vmem:[#allocation12 + $0x698] sm:$0xff]
          %v748 = vld [vmem:[#allocation12 + $0x6a0] sm:$0xff]
          %v749 = vld [vmem:[#allocation12 + $0x6a8] sm:$0xff]
          %v750 = vld [vmem:[#allocation12 + $0x6b0] sm:$0xff]
          %v751 = vld [vmem:[#allocation12 + $0x6b8] sm:$0xff]
          %v752 = vld [vmem:[#allocation12 + $0x6c0] sm:$0xff]
          %v753 = vld [vmem:[#allocation12 + $0x6c8] sm:$0xff]
          %v754 = vld [vmem:[#allocation12 + $0x6d0] sm:$0xff]
          %v755 = vld [vmem:[#allocation12 + $0x6d8] sm:$0xff]
          %v756 = vld [vmem:[#allocation12 + $0x6e0] sm:$0xff]
          %v757 = vld [vmem:[#allocation12 + $0x6e8] sm:$0xff]
          %v758 = vld [vmem:[#allocation12 + $0x6f0] sm:$0xff]
          %v759 = vld [vmem:[#allocation12 + $0x6f8] sm:$0xff]
          %v760 = vld [vmem:[#allocation12 + $0x700] sm:$0xff]
          %v761 = vld [vmem:[#allocation12 + $0x708] sm:$0xff]
          %v762 = vld [vmem:[#allocation12 + $0x710] sm:$0xff]
          %v763 = vld [vmem:[#allocation12 + $0x718] sm:$0xff]
          %v764 = vld [vmem:[#allocation12 + $0x720] sm:$0xff]
          %v765 = vld [vmem:[#allocation12 + $0x728] sm:$0xff]
          %v766 = vld [vmem:[#allocation12 + $0x730] sm:$0xff]
          %v767 = vld [vmem:[#allocation12 + $0x738] sm:$0xff]
          %v768 = vld [vmem:[#allocation12 + $0x740] sm:$0xff]
          %v769 = vld [vmem:[#allocation12 + $0x748] sm:$0xff]
          %v770 = vld [vmem:[#allocation12 + $0x750] sm:$0xff]
          %v771 = vld [vmem:[#allocation12 + $0x758] sm:$0xff]
          %v772 = vld [vmem:[#allocation12 + $0x760] sm:$0xff]
          %v773 = vld [vmem:[#allocation12 + $0x768] sm:$0xff]
          %v774 = vld [vmem:[#allocation12 + $0x770] sm:$0xff]
          %v775 = vld [vmem:[#allocation12 + $0x778] sm:$0xff]
          %v776 = vld [vmem:[#allocation12 + $0x780] sm:$0xff]
          %v777 = vld [vmem:[#allocation12 + $0x788] sm:$0xff]
          %v778 = vld [vmem:[#allocation12 + $0x790] sm:$0xff]
          %v779 = vld [vmem:[#allocation12 + $0x798] sm:$0xff]
          %v780 = vld [vmem:[#allocation12 + $0x7a0] sm:$0xff]
          %v781 = vld [vmem:[#allocation12 + $0x7a8] sm:$0xff]
          %v782 = vld [vmem:[#allocation12 + $0x7b0] sm:$0xff]
          %v783 = vld [vmem:[#allocation12 + $0x7b8] sm:$0xff]
          %v784 = vld [vmem:[#allocation12 + $0x7c0] sm:$0xff]
          %v785 = vld [vmem:[#allocation12 + $0x7c8] sm:$0xff]
          %v786 = vld [vmem:[#allocation12 + $0x7d0] sm:$0xff]
          %v787 = vld [vmem:[#allocation12 + $0x7d8] sm:$0xff]
          %v788 = vld [vmem:[#allocation12 + $0x7e0] sm:$0xff]
          %v789 = vld [vmem:[#allocation12 + $0x7e8] sm:$0xff]
          %v790 = vld [vmem:[#allocation12 + $0x7f0] sm:$0xff]
          %v791 = vld [vmem:[#allocation12 + $0x7f8] sm:$0xff]
          %v792 = vld [vmem:[#allocation12 + $0x800] sm:$0xff]
          %v793 = vld [vmem:[#allocation12 + $0x808] sm:$0xff]
          %v794 = vld [vmem:[#allocation12 + $0x810] sm:$0xff]
          %v795 = vld [vmem:[#allocation12 + $0x818] sm:$0xff]
          %v796 = vld [vmem:[#allocation12 + $0x820] sm:$0xff]
          %v797 = vld [vmem:[#allocation12 + $0x828] sm:$0xff]
          %v798 = vld [vmem:[#allocation12 + $0x830] sm:$0xff]
          %v799 = vld [vmem:[#allocation12 + $0x838] sm:$0xff]
          %v800 = vld [vmem:[#allocation12 + $0x840] sm:$0xff]
          %v801 = vld [vmem:[#allocation12 + $0x848] sm:$0xff]
          %v802 = vld [vmem:[#allocation12 + $0x850] sm:$0xff]
          %v803 = vld [vmem:[#allocation12 + $0x858] sm:$0xff]
          %v804 = vld [vmem:[#allocation12 + $0x860] sm:$0xff]
          %v805 = vld [vmem:[#allocation12 + $0x868] sm:$0xff]
          %v806 = vld [vmem:[#allocation12 + $0x870] sm:$0xff]
          %v807 = vld [vmem:[#allocation12 + $0x878] sm:$0xff]
          %v808 = vld [vmem:[#allocation12 + $0x880] sm:$0xff]
          %v809 = vld [vmem:[#allocation12 + $0x888] sm:$0xff]
          %v810 = vld [vmem:[#allocation12 + $0x890] sm:$0xff]
          %v811 = vld [vmem:[#allocation12 + $0x898] sm:$0xff]
          %v812 = vld [vmem:[#allocation12 + $0x8a0] sm:$0xff]
          %v813 = vld [vmem:[#allocation12 + $0x8a8] sm:$0xff]
          %v814 = vld [vmem:[#allocation12 + $0x8b0] sm:$0xff]
          %v815 = vld [vmem:[#allocation12 + $0x8b8] sm:$0xff]
          %v816 = vld [vmem:[#allocation12 + $0x8c0] sm:$0xff]
          %v817 = vld [vmem:[#allocation12 + $0x8c8] sm:$0xff]
          %v818 = vld [vmem:[#allocation12 + $0x8d0] sm:$0xff]
          %v819 = vld [vmem:[#allocation12 + $0x8d8] sm:$0xff]
          %v820 = vld [vmem:[#allocation12 + $0x8e0] sm:$0xff]
          %v821 = vld [vmem:[#allocation12 + $0x8e8] sm:$0xff]
          %v822 = vld [vmem:[#allocation12 + $0x8f0] sm:$0xff]
          %v823 = vld [vmem:[#allocation12 + $0x8f8] sm:$0xff]
          %v824 = vld [vmem:[#allocation13] sm:$0x3f]
          %v826 = vlaneseq
          %v827 = vshrl.u32 %v826, 7
          %v828 = vsub.s32 0, %v827
          %v829 = vrot.slane %v824, %v828
          %v830 = vlaneseq
          %v831 = vshrl.u32 %v830, 7
          %v832 = vsub.s32 1, %v831
          %v833 = vrot.slane %v824, %v832
          %v834 = vlaneseq
          %v835 = vshrl.u32 %v834, 7
          %v836 = vsub.s32 2, %v835
          %v837 = vrot.slane %v824, %v836
          %v838 = vlaneseq
          %v839 = vshrl.u32 %v838, 7
          %v840 = vsub.s32 3, %v839
          %v841 = vrot.slane %v824, %v840
          %v842 = vlaneseq
          %v843 = vshrl.u32 %v842, 7
          %v844 = vsub.s32 4, %v843
          %v845 = vrot.slane %v824, %v844
          %v846 = vlaneseq
          %v847 = vshrl.u32 %v846, 7
          %v848 = vsub.s32 5, %v847
          %v849 = vrot.slane %v824, %v848
          %v1144 = vunpack.c.l.b16 %v536
          %v1145 = vunpack.c.h.b16 %v536
          %v1146 = vunpack.c.l.b16 %v537
          %v1147 = vunpack.c.h.b16 %v537
          %v1148 = vunpack.c.l.b16 %v538
          %v1149 = vunpack.c.h.b16 %v538
          %v1150 = vunpack.c.l.b16 %v539
          %v1151 = vunpack.c.h.b16 %v539
          %v1152 = vunpack.c.l.b16 %v540
          %v1153 = vunpack.c.h.b16 %v540
          %v1154 = vunpack.c.l.b16 %v541
          %v1155 = vunpack.c.h.b16 %v541
          %v1156 = vunpack.c.l.b16 %v542
          %v1157 = vunpack.c.h.b16 %v542
          %v1158 = vunpack.c.l.b16 %v543
          %v1159 = vunpack.c.h.b16 %v543
          %v1160 = vunpack.c.l.b16 %v544
          %v1161 = vunpack.c.h.b16 %v544
          %v1162 = vunpack.c.l.b16 %v545
          %v1163 = vunpack.c.h.b16 %v545
          %v1164 = vunpack.c.l.b16 %v546
          %v1165 = vunpack.c.h.b16 %v546
          %v1166 = vunpack.c.l.b16 %v547
          %v1167 = vunpack.c.h.b16 %v547
          %v1168 = vunpack.c.l.b16 %v548
          %v1169 = vunpack.c.h.b16 %v548
          %v1170 = vunpack.c.l.b16 %v549
          %v1171 = vunpack.c.h.b16 %v549
          %v1172 = vunpack.c.l.b16 %v550
          %v1173 = vunpack.c.h.b16 %v550
          %v1174 = vunpack.c.l.b16 %v551
          %v1175 = vunpack.c.h.b16 %v551
          %v1176 = vunpack.c.l.b16 %v552
          %v1177 = vunpack.c.h.b16 %v552
          %v1178 = vunpack.c.l.b16 %v553
          %v1179 = vunpack.c.h.b16 %v553
          %v1180 = vunpack.c.l.b16 %v554
          %v1181 = vunpack.c.h.b16 %v554
          %v1182 = vunpack.c.l.b16 %v555
          %v1183 = vunpack.c.h.b16 %v555
          %v1184 = vunpack.c.l.b16 %v556
          %v1185 = vunpack.c.h.b16 %v556
          %v1186 = vunpack.c.l.b16 %v557
          %v1187 = vunpack.c.h.b16 %v557
          %v1188 = vunpack.c.l.b16 %v558
          %v1189 = vunpack.c.h.b16 %v558
          %v1190 = vunpack.c.l.b16 %v559
          %v1191 = vunpack.c.h.b16 %v559
          %v1192 = vunpack.c.l.b16 %v560
          %v1193 = vunpack.c.h.b16 %v560
          %v1194 = vunpack.c.l.b16 %v561
          %v1195 = vunpack.c.h.b16 %v561
          %v1196 = vunpack.c.l.b16 %v562
          %v1197 = vunpack.c.h.b16 %v562
          %v1198 = vunpack.c.l.b16 %v563
          %v1199 = vunpack.c.h.b16 %v563
          %v1200 = vunpack.c.l.b16 %v564
          %v1201 = vunpack.c.h.b16 %v564
          %v1202 = vunpack.c.l.b16 %v565
          %v1203 = vunpack.c.h.b16 %v565
          %v1204 = vunpack.c.l.b16 %v566
          %v1205 = vunpack.c.h.b16 %v566
          %v1206 = vunpack.c.l.b16 %v567
          %v1207 = vunpack.c.h.b16 %v567
          %v1208 = vunpack.c.l.b16 %v568
          %v1209 = vunpack.c.h.b16 %v568
          %v1210 = vunpack.c.l.b16 %v569
          %v1211 = vunpack.c.h.b16 %v569
          %v1212 = vunpack.c.l.b16 %v570
          %v1213 = vunpack.c.h.b16 %v570
          %v1214 = vunpack.c.l.b16 %v571
          %v1215 = vunpack.c.h.b16 %v571
          %v1216 = vunpack.c.l.b16 %v572
          %v1217 = vunpack.c.h.b16 %v572
          %v1218 = vunpack.c.l.b16 %v573
          %v1219 = vunpack.c.h.b16 %v573
          %v1220 = vunpack.c.l.b16 %v574
          %v1221 = vunpack.c.h.b16 %v574
          %v1222 = vunpack.c.l.b16 %v575
          %v1223 = vunpack.c.h.b16 %v575
          %v1224 = vunpack.c.l.b16 %v576
          %v1225 = vunpack.c.h.b16 %v576
          %v1226 = vunpack.c.l.b16 %v577
          %v1227 = vunpack.c.h.b16 %v577
          %v1228 = vunpack.c.l.b16 %v578
          %v1229 = vunpack.c.h.b16 %v578
          %v1230 = vunpack.c.l.b16 %v579
          %v1231 = vunpack.c.h.b16 %v579
          %v1232 = vunpack.c.l.b16 %v580
          %v1233 = vunpack.c.h.b16 %v580
          %v1234 = vunpack.c.l.b16 %v581
          %v1235 = vunpack.c.h.b16 %v581
          %v1236 = vunpack.c.l.b16 %v582
          %v1237 = vunpack.c.h.b16 %v582
          %v1238 = vunpack.c.l.b16 %v583
          %v1239 = vunpack.c.h.b16 %v583
          %v1240 = vunpack.c.l.b16 %v584
          %v1241 = vunpack.c.h.b16 %v584
          %v1242 = vunpack.c.l.b16 %v585
          %v1243 = vunpack.c.h.b16 %v585
          %v1244 = vunpack.c.l.b16 %v586
          %v1245 = vunpack.c.h.b16 %v586
          %v1246 = vunpack.c.l.b16 %v587
          %v1247 = vunpack.c.h.b16 %v587
          %v1248 = vunpack.c.l.b16 %v588
          %v1249 = vunpack.c.h.b16 %v588
          %v1250 = vunpack.c.l.b16 %v589
          %v1251 = vunpack.c.h.b16 %v589
          %v1252 = vunpack.c.l.b16 %v590
          %v1253 = vunpack.c.h.b16 %v590
          %v1254 = vunpack.c.l.b16 %v591
          %v1255 = vunpack.c.h.b16 %v591
          %v1256 = vunpack.c.l.b16 %v592
          %v1257 = vunpack.c.h.b16 %v592
          %v1258 = vunpack.c.l.b16 %v593
          %v1259 = vunpack.c.h.b16 %v593
          %v1260 = vunpack.c.l.b16 %v594
          %v1261 = vunpack.c.h.b16 %v594
          %v1262 = vunpack.c.l.b16 %v595
          %v1263 = vunpack.c.h.b16 %v595
          %v1264 = vunpack.c.l.b16 %v596
          %v1265 = vunpack.c.h.b16 %v596
          %v1266 = vunpack.c.l.b16 %v597
          %v1267 = vunpack.c.h.b16 %v597
          %v1268 = vunpack.c.l.b16 %v598
          %v1269 = vunpack.c.h.b16 %v598
          %v1270 = vunpack.c.l.b16 %v599
          %v1271 = vunpack.c.h.b16 %v599
          %v1272 = vunpack.c.l.b16 %v600
          %v1273 = vunpack.c.h.b16 %v600
          %v1274 = vunpack.c.l.b16 %v601
          %v1275 = vunpack.c.h.b16 %v601
          %v1276 = vunpack.c.l.b16 %v602
          %v1277 = vunpack.c.h.b16 %v602
          %v1278 = vunpack.c.l.b16 %v603
          %v1279 = vunpack.c.h.b16 %v603
          %v1280 = vunpack.c.l.b16 %v604
          %v1281 = vunpack.c.h.b16 %v604
          %v1282 = vunpack.c.l.b16 %v605
          %v1283 = vunpack.c.h.b16 %v605
          %v1284 = vunpack.c.l.b16 %v606
          %v1285 = vunpack.c.h.b16 %v606
          %v1286 = vunpack.c.l.b16 %v607
          %v1287 = vunpack.c.h.b16 %v607
          %v1288 = vunpack.c.l.b16 %v608
          %v1289 = vunpack.c.h.b16 %v608
          %v1290 = vunpack.c.l.b16 %v609
          %v1291 = vunpack.c.h.b16 %v609
          %v1292 = vunpack.c.l.b16 %v610
          %v1293 = vunpack.c.h.b16 %v610
          %v1294 = vunpack.c.l.b16 %v611
          %v1295 = vunpack.c.h.b16 %v611
          %v1296 = vunpack.c.l.b16 %v612
          %v1297 = vunpack.c.h.b16 %v612
          %v1298 = vunpack.c.l.b16 %v613
          %v1299 = vunpack.c.h.b16 %v613
          %v1300 = vunpack.c.l.b16 %v614
          %v1301 = vunpack.c.h.b16 %v614
          %v1302 = vunpack.c.l.b16 %v615
          %v1303 = vunpack.c.h.b16 %v615
          %v1304 = vunpack.c.l.b16 %v616
          %v1305 = vunpack.c.h.b16 %v616
          %v1306 = vunpack.c.l.b16 %v617
          %v1307 = vunpack.c.h.b16 %v617
          %v1308 = vunpack.c.l.b16 %v618
          %v1309 = vunpack.c.h.b16 %v618
          %v1310 = vunpack.c.l.b16 %v619
          %v1311 = vunpack.c.h.b16 %v619
          %v1312 = vunpack.c.l.b16 %v620
          %v1313 = vunpack.c.h.b16 %v620
          %v1314 = vunpack.c.l.b16 %v621
          %v1315 = vunpack.c.h.b16 %v621
          %v1316 = vunpack.c.l.b16 %v622
          %v1317 = vunpack.c.h.b16 %v622
          %v1318 = vunpack.c.l.b16 %v623
          %v1319 = vunpack.c.h.b16 %v623
          %v1320 = vunpack.c.l.b16 %v624
          %v1321 = vunpack.c.h.b16 %v624
          %v1322 = vunpack.c.l.b16 %v625
          %v1323 = vunpack.c.h.b16 %v625
          %v1324 = vunpack.c.l.b16 %v626
          %v1325 = vunpack.c.h.b16 %v626
          %v1326 = vunpack.c.l.b16 %v627
          %v1327 = vunpack.c.h.b16 %v627
          %v1328 = vunpack.c.l.b16 %v628
          %v1329 = vunpack.c.h.b16 %v628
          %v1330 = vunpack.c.l.b16 %v629
          %v1331 = vunpack.c.h.b16 %v629
          %v1332 = vunpack.c.l.b16 %v630
          %v1333 = vunpack.c.h.b16 %v630
          %v1334 = vunpack.c.l.b16 %v631
          %v1335 = vunpack.c.h.b16 %v631
          %v1336 = vunpack.c.l.b16 %v632
          %v1337 = vunpack.c.h.b16 %v632
          %v1338 = vunpack.c.l.b16 %v633
          %v1339 = vunpack.c.h.b16 %v633
          %v1340 = vunpack.c.l.b16 %v634
          %v1341 = vunpack.c.h.b16 %v634
          %v1342 = vunpack.c.l.b16 %v635
          %v1343 = vunpack.c.h.b16 %v635
          %v1344 = vunpack.c.l.b16 %v636
          %v1345 = vunpack.c.h.b16 %v636
          %v1346 = vunpack.c.l.b16 %v637
          %v1347 = vunpack.c.h.b16 %v637
          %v1348 = vunpack.c.l.b16 %v638
          %v1349 = vunpack.c.h.b16 %v638
          %v1350 = vunpack.c.l.b16 %v639
          %v1351 = vunpack.c.h.b16 %v639
          %v1352 = vunpack.c.l.b16 %v640
          %v1353 = vunpack.c.h.b16 %v640
          %v1354 = vunpack.c.l.b16 %v641
          %v1355 = vunpack.c.h.b16 %v641
          %v1356 = vunpack.c.l.b16 %v642
          %v1357 = vunpack.c.h.b16 %v642
          %v1358 = vunpack.c.l.b16 %v643
          %v1359 = vunpack.c.h.b16 %v643
          %v1360 = vunpack.c.l.b16 %v644
          %v1361 = vunpack.c.h.b16 %v644
          %v1362 = vunpack.c.l.b16 %v645
          %v1363 = vunpack.c.h.b16 %v645
          %v1364 = vunpack.c.l.b16 %v646
          %v1365 = vunpack.c.h.b16 %v646
          %v1366 = vunpack.c.l.b16 %v647
          %v1367 = vunpack.c.h.b16 %v647
          %v1368 = vunpack.c.l.b16 %v648
          %v1369 = vunpack.c.h.b16 %v648
          %v1370 = vunpack.c.l.b16 %v649
          %v1371 = vunpack.c.h.b16 %v649
          %v1372 = vunpack.c.l.b16 %v650
          %v1373 = vunpack.c.h.b16 %v650
          %v1374 = vunpack.c.l.b16 %v651
          %v1375 = vunpack.c.h.b16 %v651
          %v1376 = vunpack.c.l.b16 %v652
          %v1377 = vunpack.c.h.b16 %v652
          %v1378 = vunpack.c.l.b16 %v653
          %v1379 = vunpack.c.h.b16 %v653
          %v1380 = vunpack.c.l.b16 %v654
          %v1381 = vunpack.c.h.b16 %v654
          %v1382 = vunpack.c.l.b16 %v655
          %v1383 = vunpack.c.h.b16 %v655
          %v1384 = vunpack.c.l.b16 %v656
          %v1385 = vunpack.c.h.b16 %v656
          %v1386 = vunpack.c.l.b16 %v657
          %v1387 = vunpack.c.h.b16 %v657
          %v1388 = vunpack.c.l.b16 %v658
          %v1389 = vunpack.c.h.b16 %v658
          %v1390 = vunpack.c.l.b16 %v659
          %v1391 = vunpack.c.h.b16 %v659
          %v1392 = vunpack.c.l.b16 %v660
          %v1393 = vunpack.c.h.b16 %v660
          %v1394 = vunpack.c.l.b16 %v661
          %v1395 = vunpack.c.h.b16 %v661
          %v1396 = vunpack.c.l.b16 %v662
          %v1397 = vunpack.c.h.b16 %v662
          %v1398 = vunpack.c.l.b16 %v663
          %v1399 = vunpack.c.h.b16 %v663
          %v1400 = vunpack.c.l.b16 %v664
          %v1401 = vunpack.c.h.b16 %v664
          %v1402 = vunpack.c.l.b16 %v665
          %v1403 = vunpack.c.h.b16 %v665
          %v1404 = vunpack.c.l.b16 %v666
          %v1405 = vunpack.c.h.b16 %v666
          %v1406 = vunpack.c.l.b16 %v667
          %v1407 = vunpack.c.h.b16 %v667
          %v1408 = vunpack.c.l.b16 %v668
          %v1409 = vunpack.c.h.b16 %v668
          %v1410 = vunpack.c.l.b16 %v669
          %v1411 = vunpack.c.h.b16 %v669
          %v1412 = vunpack.c.l.b16 %v670
          %v1413 = vunpack.c.h.b16 %v670
          %v1414 = vunpack.c.l.b16 %v671
          %v1415 = vunpack.c.h.b16 %v671
          %v1416 = vunpack.c.l.b16 %v672
          %v1417 = vunpack.c.h.b16 %v672
          %v1418 = vunpack.c.l.b16 %v673
          %v1419 = vunpack.c.h.b16 %v673
          %v1420 = vunpack.c.l.b16 %v674
          %v1421 = vunpack.c.h.b16 %v674
          %v1422 = vunpack.c.l.b16 %v675
          %v1423 = vunpack.c.h.b16 %v675
          %v1424 = vunpack.c.l.b16 %v676
          %v1425 = vunpack.c.h.b16 %v676
          %v1426 = vunpack.c.l.b16 %v677
          %v1427 = vunpack.c.h.b16 %v677
          %v1428 = vunpack.c.l.b16 %v678
          %v1429 = vunpack.c.h.b16 %v678
          %v1430 = vunpack.c.l.b16 %v679
          %v1431 = vunpack.c.h.b16 %v679
          %v1432 = vunpack.c.l.b16 %v680
          %v1433 = vunpack.c.h.b16 %v680
          %v1434 = vunpack.c.l.b16 %v681
          %v1435 = vunpack.c.h.b16 %v681
          %v1436 = vunpack.c.l.b16 %v682
          %v1437 = vunpack.c.h.b16 %v682
          %v1438 = vunpack.c.l.b16 %v683
          %v1439 = vunpack.c.h.b16 %v683
          %v1440 = vunpack.c.l.b16 %v684
          %v1441 = vunpack.c.h.b16 %v684
          %v1442 = vunpack.c.l.b16 %v685
          %v1443 = vunpack.c.h.b16 %v685
          %v1444 = vunpack.c.l.b16 %v686
          %v1445 = vunpack.c.h.b16 %v686
          %v1446 = vunpack.c.l.b16 %v687
          %v1447 = vunpack.c.h.b16 %v687
          %v1448 = vunpack.c.l.b16 %v688
          %v1449 = vunpack.c.h.b16 %v688
          %v1450 = vunpack.c.l.b16 %v689
          %v1451 = vunpack.c.h.b16 %v689
          %v1452 = vunpack.c.l.b16 %v690
          %v1453 = vunpack.c.h.b16 %v690
          %v1454 = vunpack.c.l.b16 %v691
          %v1455 = vunpack.c.h.b16 %v691
          %v1456 = vunpack.c.l.b16 %v692
          %v1457 = vunpack.c.h.b16 %v692
          %v1458 = vunpack.c.l.b16 %v693
          %v1459 = vunpack.c.h.b16 %v693
          %v1460 = vunpack.c.l.b16 %v694
          %v1461 = vunpack.c.h.b16 %v694
          %v1462 = vunpack.c.l.b16 %v695
          %v1463 = vunpack.c.h.b16 %v695
          %v1464 = vunpack.c.l.b16 %v696
          %v1465 = vunpack.c.h.b16 %v696
          %v1466 = vunpack.c.l.b16 %v697
          %v1467 = vunpack.c.h.b16 %v697
          %v1468 = vunpack.c.l.b16 %v698
          %v1469 = vunpack.c.h.b16 %v698
          %v1470 = vunpack.c.l.b16 %v699
          %v1471 = vunpack.c.h.b16 %v699
          %v1472 = vunpack.c.l.b16 %v700
          %v1473 = vunpack.c.h.b16 %v700
          %v1474 = vunpack.c.l.b16 %v701
          %v1475 = vunpack.c.h.b16 %v701
          %v1476 = vunpack.c.l.b16 %v702
          %v1477 = vunpack.c.h.b16 %v702
          %v1478 = vunpack.c.l.b16 %v703
          %v1479 = vunpack.c.h.b16 %v703
          %v1480 = vunpack.c.l.b16 %v704
          %v1481 = vunpack.c.h.b16 %v704
          %v1482 = vunpack.c.l.b16 %v705
          %v1483 = vunpack.c.h.b16 %v705
          %v1484 = vunpack.c.l.b16 %v706
          %v1485 = vunpack.c.h.b16 %v706
          %v1486 = vunpack.c.l.b16 %v707
          %v1487 = vunpack.c.h.b16 %v707
          %v1488 = vunpack.c.l.b16 %v708
          %v1489 = vunpack.c.h.b16 %v708
          %v1490 = vunpack.c.l.b16 %v709
          %v1491 = vunpack.c.h.b16 %v709
          %v1492 = vunpack.c.l.b16 %v710
          %v1493 = vunpack.c.h.b16 %v710
          %v1494 = vunpack.c.l.b16 %v711
          %v1495 = vunpack.c.h.b16 %v711
          %v1496 = vunpack.c.l.b16 %v712
          %v1497 = vunpack.c.h.b16 %v712
          %v1498 = vunpack.c.l.b16 %v713
          %v1499 = vunpack.c.h.b16 %v713
          %v1500 = vunpack.c.l.b16 %v714
          %v1501 = vunpack.c.h.b16 %v714
          %v1502 = vunpack.c.l.b16 %v715
          %v1503 = vunpack.c.h.b16 %v715
          %v1504 = vunpack.c.l.b16 %v716
          %v1505 = vunpack.c.h.b16 %v716
          %v1506 = vunpack.c.l.b16 %v717
          %v1507 = vunpack.c.h.b16 %v717
          %v1508 = vunpack.c.l.b16 %v718
          %v1509 = vunpack.c.h.b16 %v718
          %v1510 = vunpack.c.l.b16 %v719
          %v1511 = vunpack.c.h.b16 %v719
          %v1512 = vunpack.c.l.b16 %v720
          %v1513 = vunpack.c.h.b16 %v720
          %v1514 = vunpack.c.l.b16 %v721
          %v1515 = vunpack.c.h.b16 %v721
          %v1516 = vunpack.c.l.b16 %v722
          %v1517 = vunpack.c.h.b16 %v722
          %v1518 = vunpack.c.l.b16 %v723
          %v1519 = vunpack.c.h.b16 %v723
          %v1520 = vunpack.c.l.b16 %v724
          %v1521 = vunpack.c.h.b16 %v724
          %v1522 = vunpack.c.l.b16 %v725
          %v1523 = vunpack.c.h.b16 %v725
          %v1524 = vunpack.c.l.b16 %v726
          %v1525 = vunpack.c.h.b16 %v726
          %v1526 = vunpack.c.l.b16 %v727
          %v1527 = vunpack.c.h.b16 %v727
          %v1528 = vunpack.c.l.b16 %v728
          %v1529 = vunpack.c.h.b16 %v728
          %v1530 = vunpack.c.l.b16 %v729
          %v1531 = vunpack.c.h.b16 %v729
          %v1532 = vunpack.c.l.b16 %v730
          %v1533 = vunpack.c.h.b16 %v730
          %v1534 = vunpack.c.l.b16 %v731
          %v1535 = vunpack.c.h.b16 %v731
          %v1536 = vunpack.c.l.b16 %v732
          %v1537 = vunpack.c.h.b16 %v732
          %v1538 = vunpack.c.l.b16 %v733
          %v1539 = vunpack.c.h.b16 %v733
          %v1540 = vunpack.c.l.b16 %v734
          %v1541 = vunpack.c.h.b16 %v734
          %v1542 = vunpack.c.l.b16 %v735
          %v1543 = vunpack.c.h.b16 %v735
          %v1544 = vunpack.c.l.b16 %v736
          %v1545 = vunpack.c.h.b16 %v736
          %v1546 = vunpack.c.l.b16 %v737
          %v1547 = vunpack.c.h.b16 %v737
          %v1548 = vunpack.c.l.b16 %v738
          %v1549 = vunpack.c.h.b16 %v738
          %v1550 = vunpack.c.l.b16 %v739
          %v1551 = vunpack.c.h.b16 %v739
          %v1552 = vunpack.c.l.b16 %v740
          %v1553 = vunpack.c.h.b16 %v740
          %v1554 = vunpack.c.l.b16 %v741
          %v1555 = vunpack.c.h.b16 %v741
          %v1556 = vunpack.c.l.b16 %v742
          %v1557 = vunpack.c.h.b16 %v742
          %v1558 = vunpack.c.l.b16 %v743
          %v1559 = vunpack.c.h.b16 %v743
          %v1560 = vunpack.c.l.b16 %v744
          %v1561 = vunpack.c.h.b16 %v744
          %v1562 = vunpack.c.l.b16 %v745
          %v1563 = vunpack.c.h.b16 %v745
          %v1564 = vunpack.c.l.b16 %v746
          %v1565 = vunpack.c.h.b16 %v746
          %v1566 = vunpack.c.l.b16 %v747
          %v1567 = vunpack.c.h.b16 %v747
          %v1568 = vunpack.c.l.b16 %v748
          %v1569 = vunpack.c.h.b16 %v748
          %v1570 = vunpack.c.l.b16 %v749
          %v1571 = vunpack.c.h.b16 %v749
          %v1572 = vunpack.c.l.b16 %v750
          %v1573 = vunpack.c.h.b16 %v750
          %v1574 = vunpack.c.l.b16 %v751
          %v1575 = vunpack.c.h.b16 %v751
          %v1576 = vunpack.c.l.b16 %v752
          %v1577 = vunpack.c.h.b16 %v752
          %v1578 = vunpack.c.l.b16 %v753
          %v1579 = vunpack.c.h.b16 %v753
          %v1580 = vunpack.c.l.b16 %v754
          %v1581 = vunpack.c.h.b16 %v754
          %v1582 = vunpack.c.l.b16 %v755
          %v1583 = vunpack.c.h.b16 %v755
          %v1584 = vunpack.c.l.b16 %v756
          %v1585 = vunpack.c.h.b16 %v756
          %v1586 = vunpack.c.l.b16 %v757
          %v1587 = vunpack.c.h.b16 %v757
          %v1588 = vunpack.c.l.b16 %v758
          %v1589 = vunpack.c.h.b16 %v758
          %v1590 = vunpack.c.l.b16 %v759
          %v1591 = vunpack.c.h.b16 %v759
          %v1592 = vunpack.c.l.b16 %v760
          %v1593 = vunpack.c.h.b16 %v760
          %v1594 = vunpack.c.l.b16 %v761
          %v1595 = vunpack.c.h.b16 %v761
          %v1596 = vunpack.c.l.b16 %v762
          %v1597 = vunpack.c.h.b16 %v762
          %v1598 = vunpack.c.l.b16 %v763
          %v1599 = vunpack.c.h.b16 %v763
          %v1600 = vunpack.c.l.b16 %v764
          %v1601 = vunpack.c.h.b16 %v764
          %v1602 = vunpack.c.l.b16 %v765
          %v1603 = vunpack.c.h.b16 %v765
          %v1604 = vunpack.c.l.b16 %v766
          %v1605 = vunpack.c.h.b16 %v766
          %v1606 = vunpack.c.l.b16 %v767
          %v1607 = vunpack.c.h.b16 %v767
          %v1608 = vunpack.c.l.b16 %v768
          %v1609 = vunpack.c.h.b16 %v768
          %v1610 = vunpack.c.l.b16 %v769
          %v1611 = vunpack.c.h.b16 %v769
          %v1612 = vunpack.c.l.b16 %v770
          %v1613 = vunpack.c.h.b16 %v770
          %v1614 = vunpack.c.l.b16 %v771
          %v1615 = vunpack.c.h.b16 %v771
          %v1616 = vunpack.c.l.b16 %v772
          %v1617 = vunpack.c.h.b16 %v772
          %v1618 = vunpack.c.l.b16 %v773
          %v1619 = vunpack.c.h.b16 %v773
          %v1620 = vunpack.c.l.b16 %v774
          %v1621 = vunpack.c.h.b16 %v774
          %v1622 = vunpack.c.l.b16 %v775
          %v1623 = vunpack.c.h.b16 %v775
          %v1624 = vunpack.c.l.b16 %v776
          %v1625 = vunpack.c.h.b16 %v776
          %v1626 = vunpack.c.l.b16 %v777
          %v1627 = vunpack.c.h.b16 %v777
          %v1628 = vunpack.c.l.b16 %v778
          %v1629 = vunpack.c.h.b16 %v778
          %v1630 = vunpack.c.l.b16 %v779
          %v1631 = vunpack.c.h.b16 %v779
          %v1632 = vunpack.c.l.b16 %v780
          %v1633 = vunpack.c.h.b16 %v780
          %v1634 = vunpack.c.l.b16 %v781
          %v1635 = vunpack.c.h.b16 %v781
          %v1636 = vunpack.c.l.b16 %v782
          %v1637 = vunpack.c.h.b16 %v782
          %v1638 = vunpack.c.l.b16 %v783
          %v1639 = vunpack.c.h.b16 %v783
          %v1640 = vunpack.c.l.b16 %v784
          %v1641 = vunpack.c.h.b16 %v784
          %v1642 = vunpack.c.l.b16 %v785
          %v1643 = vunpack.c.h.b16 %v785
          %v1644 = vunpack.c.l.b16 %v786
          %v1645 = vunpack.c.h.b16 %v786
          %v1646 = vunpack.c.l.b16 %v787
          %v1647 = vunpack.c.h.b16 %v787
          %v1648 = vunpack.c.l.b16 %v788
          %v1649 = vunpack.c.h.b16 %v788
          %v1650 = vunpack.c.l.b16 %v789
          %v1651 = vunpack.c.h.b16 %v789
          %v1652 = vunpack.c.l.b16 %v790
          %v1653 = vunpack.c.h.b16 %v790
          %v1654 = vunpack.c.l.b16 %v791
          %v1655 = vunpack.c.h.b16 %v791
          %v1656 = vunpack.c.l.b16 %v792
          %v1657 = vunpack.c.h.b16 %v792
          %v1658 = vunpack.c.l.b16 %v793
          %v1659 = vunpack.c.h.b16 %v793
          %v1660 = vunpack.c.l.b16 %v794
          %v1661 = vunpack.c.h.b16 %v794
          %v1662 = vunpack.c.l.b16 %v795
          %v1663 = vunpack.c.h.b16 %v795
          %v1664 = vunpack.c.l.b16 %v796
          %v1665 = vunpack.c.h.b16 %v796
          %v1666 = vunpack.c.l.b16 %v797
          %v1667 = vunpack.c.h.b16 %v797
          %v1668 = vunpack.c.l.b16 %v798
          %v1669 = vunpack.c.h.b16 %v798
          %v1670 = vunpack.c.l.b16 %v799
          %v1671 = vunpack.c.h.b16 %v799
          %v1672 = vunpack.c.l.b16 %v800
          %v1673 = vunpack.c.h.b16 %v800
          %v1674 = vunpack.c.l.b16 %v801
          %v1675 = vunpack.c.h.b16 %v801
          %v1676 = vunpack.c.l.b16 %v802
          %v1677 = vunpack.c.h.b16 %v802
          %v1678 = vunpack.c.l.b16 %v803
          %v1679 = vunpack.c.h.b16 %v803
          %v1680 = vunpack.c.l.b16 %v804
          %v1681 = vunpack.c.h.b16 %v804
          %v1682 = vunpack.c.l.b16 %v805
          %v1683 = vunpack.c.h.b16 %v805
          %v1684 = vunpack.c.l.b16 %v806
          %v1685 = vunpack.c.h.b16 %v806
          %v1686 = vunpack.c.l.b16 %v807
          %v1687 = vunpack.c.h.b16 %v807
          %v1688 = vunpack.c.l.b16 %v808
          %v1689 = vunpack.c.h.b16 %v808
          %v1690 = vunpack.c.l.b16 %v809
          %v1691 = vunpack.c.h.b16 %v809
          %v1692 = vunpack.c.l.b16 %v810
          %v1693 = vunpack.c.h.b16 %v810
          %v1694 = vunpack.c.l.b16 %v811
          %v1695 = vunpack.c.h.b16 %v811
          %v1696 = vunpack.c.l.b16 %v812
          %v1697 = vunpack.c.h.b16 %v812
          %v1698 = vunpack.c.l.b16 %v813
          %v1699 = vunpack.c.h.b16 %v813
          %v1700 = vunpack.c.l.b16 %v814
          %v1701 = vunpack.c.h.b16 %v814
          %v1702 = vunpack.c.l.b16 %v815
          %v1703 = vunpack.c.h.b16 %v815
          %v1704 = vunpack.c.l.b16 %v816
          %v1705 = vunpack.c.h.b16 %v816
          %v1706 = vunpack.c.l.b16 %v817
          %v1707 = vunpack.c.h.b16 %v817
          %v1708 = vunpack.c.l.b16 %v818
          %v1709 = vunpack.c.h.b16 %v818
          %v1710 = vunpack.c.l.b16 %v819
          %v1711 = vunpack.c.h.b16 %v819
          %v1712 = vunpack.c.l.b16 %v820
          %v1713 = vunpack.c.h.b16 %v820
          %v1714 = vunpack.c.l.b16 %v821
          %v1715 = vunpack.c.h.b16 %v821
          %v1716 = vunpack.c.l.b16 %v822
          %v1717 = vunpack.c.h.b16 %v822
          %v1718 = vunpack.c.l.b16 %v823
          %v1719 = vunpack.c.h.b16 %v823
          %v1720 = vpack.c.b16 %v1150, %v1144
          %v1721 = vpack.c.b16 %v1151, %v1145
          %v1722 = vpack.c.b16 %v1152, %v1146
          %v1723 = vpack.c.b16 %v1153, %v1147
          %v1724 = vpack.c.b16 %v1154, %v1148
          %v1725 = vpack.c.b16 %v1155, %v1149
          %v1726 = vpack.c.b16 %v1162, %v1156
          %v1727 = vpack.c.b16 %v1163, %v1157
          %v1728 = vpack.c.b16 %v1164, %v1158
          %v1729 = vpack.c.b16 %v1165, %v1159
          %v1730 = vpack.c.b16 %v1166, %v1160
          %v1731 = vpack.c.b16 %v1167, %v1161
          %v1732 = vpack.c.b16 %v1174, %v1168
          %v1733 = vpack.c.b16 %v1175, %v1169
          %v1734 = vpack.c.b16 %v1176, %v1170
          %v1735 = vpack.c.b16 %v1177, %v1171
          %v1736 = vpack.c.b16 %v1178, %v1172
          %v1737 = vpack.c.b16 %v1179, %v1173
          %v1738 = vpack.c.b16 %v1186, %v1180
          %v1739 = vpack.c.b16 %v1187, %v1181
          %v1740 = vpack.c.b16 %v1188, %v1182
          %v1741 = vpack.c.b16 %v1189, %v1183
          %v1742 = vpack.c.b16 %v1190, %v1184
          %v1743 = vpack.c.b16 %v1191, %v1185
          %v1744 = vpack.c.b16 %v1198, %v1192
          %v1745 = vpack.c.b16 %v1199, %v1193
          %v1746 = vpack.c.b16 %v1200, %v1194
          %v1747 = vpack.c.b16 %v1201, %v1195
          %v1748 = vpack.c.b16 %v1202, %v1196
          %v1749 = vpack.c.b16 %v1203, %v1197
          %v1750 = vpack.c.b16 %v1210, %v1204
          %v1751 = vpack.c.b16 %v1211, %v1205
          %v1752 = vpack.c.b16 %v1212, %v1206
          %v1753 = vpack.c.b16 %v1213, %v1207
          %v1754 = vpack.c.b16 %v1214, %v1208
          %v1755 = vpack.c.b16 %v1215, %v1209
          %v1756 = vpack.c.b16 %v1222, %v1216
          %v1757 = vpack.c.b16 %v1223, %v1217
          %v1758 = vpack.c.b16 %v1224, %v1218
          %v1759 = vpack.c.b16 %v1225, %v1219
          %v1760 = vpack.c.b16 %v1226, %v1220
          %v1761 = vpack.c.b16 %v1227, %v1221
          %v1762 = vpack.c.b16 %v1234, %v1228
          %v1763 = vpack.c.b16 %v1235, %v1229
          %v1764 = vpack.c.b16 %v1236, %v1230
          %v1765 = vpack.c.b16 %v1237, %v1231
          %v1766 = vpack.c.b16 %v1238, %v1232
          %v1767 = vpack.c.b16 %v1239, %v1233
          %v1768 = vpack.c.b16 %v1246, %v1240
          %v1769 = vpack.c.b16 %v1247, %v1241
          %v1770 = vpack.c.b16 %v1248, %v1242
          %v1771 = vpack.c.b16 %v1249, %v1243
          %v1772 = vpack.c.b16 %v1250, %v1244
          %v1773 = vpack.c.b16 %v1251, %v1245
          %v1774 = vpack.c.b16 %v1258, %v1252
          %v1775 = vpack.c.b16 %v1259, %v1253
          %v1776 = vpack.c.b16 %v1260, %v1254
          %v1777 = vpack.c.b16 %v1261, %v1255
          %v1778 = vpack.c.b16 %v1262, %v1256
          %v1779 = vpack.c.b16 %v1263, %v1257
          %v1780 = vpack.c.b16 %v1270, %v1264
          %v1781 = vpack.c.b16 %v1271, %v1265
          %v1782 = vpack.c.b16 %v1272, %v1266
          %v1783 = vpack.c.b16 %v1273, %v1267
          %v1784 = vpack.c.b16 %v1274, %v1268
          %v1785 = vpack.c.b16 %v1275, %v1269
          %v1786 = vpack.c.b16 %v1282, %v1276
          %v1787 = vpack.c.b16 %v1283, %v1277
          %v1788 = vpack.c.b16 %v1284, %v1278
          %v1789 = vpack.c.b16 %v1285, %v1279
          %v1790 = vpack.c.b16 %v1286, %v1280
          %v1791 = vpack.c.b16 %v1287, %v1281
          %v1792 = vpack.c.b16 %v1294, %v1288
          %v1793 = vpack.c.b16 %v1295, %v1289
          %v1794 = vpack.c.b16 %v1296, %v1290
          %v1795 = vpack.c.b16 %v1297, %v1291
          %v1796 = vpack.c.b16 %v1298, %v1292
          %v1797 = vpack.c.b16 %v1299, %v1293
          %v1798 = vpack.c.b16 %v1306, %v1300
          %v1799 = vpack.c.b16 %v1307, %v1301
          %v1800 = vpack.c.b16 %v1308, %v1302
          %v1801 = vpack.c.b16 %v1309, %v1303
          %v1802 = vpack.c.b16 %v1310, %v1304
          %v1803 = vpack.c.b16 %v1311, %v1305
          %v1804 = vpack.c.b16 %v1318, %v1312
          %v1805 = vpack.c.b16 %v1319, %v1313
          %v1806 = vpack.c.b16 %v1320, %v1314
          %v1807 = vpack.c.b16 %v1321, %v1315
          %v1808 = vpack.c.b16 %v1322, %v1316
          %v1809 = vpack.c.b16 %v1323, %v1317
          %v1810 = vpack.c.b16 %v1330, %v1324
          %v1811 = vpack.c.b16 %v1331, %v1325
          %v1812 = vpack.c.b16 %v1332, %v1326
          %v1813 = vpack.c.b16 %v1333, %v1327
          %v1814 = vpack.c.b16 %v1334, %v1328
          %v1815 = vpack.c.b16 %v1335, %v1329
          %v1816 = vpack.c.b16 %v1342, %v1336
          %v1817 = vpack.c.b16 %v1343, %v1337
          %v1818 = vpack.c.b16 %v1344, %v1338
          %v1819 = vpack.c.b16 %v1345, %v1339
          %v1820 = vpack.c.b16 %v1346, %v1340
          %v1821 = vpack.c.b16 %v1347, %v1341
          %v1822 = vpack.c.b16 %v1354, %v1348
          %v1823 = vpack.c.b16 %v1355, %v1349
          %v1824 = vpack.c.b16 %v1356, %v1350
          %v1825 = vpack.c.b16 %v1357, %v1351
          %v1826 = vpack.c.b16 %v1358, %v1352
          %v1827 = vpack.c.b16 %v1359, %v1353
          %v1828 = vpack.c.b16 %v1366, %v1360
          %v1829 = vpack.c.b16 %v1367, %v1361
          %v1830 = vpack.c.b16 %v1368, %v1362
          %v1831 = vpack.c.b16 %v1369, %v1363
          %v1832 = vpack.c.b16 %v1370, %v1364
          %v1833 = vpack.c.b16 %v1371, %v1365
          %v1834 = vpack.c.b16 %v1378, %v1372
          %v1835 = vpack.c.b16 %v1379, %v1373
          %v1836 = vpack.c.b16 %v1380, %v1374
          %v1837 = vpack.c.b16 %v1381, %v1375
          %v1838 = vpack.c.b16 %v1382, %v1376
          %v1839 = vpack.c.b16 %v1383, %v1377
          %v1840 = vpack.c.b16 %v1390, %v1384
          %v1841 = vpack.c.b16 %v1391, %v1385
          %v1842 = vpack.c.b16 %v1392, %v1386
          %v1843 = vpack.c.b16 %v1393, %v1387
          %v1844 = vpack.c.b16 %v1394, %v1388
          %v1845 = vpack.c.b16 %v1395, %v1389
          %v1846 = vpack.c.b16 %v1402, %v1396
          %v1847 = vpack.c.b16 %v1403, %v1397
          %v1848 = vpack.c.b16 %v1404, %v1398
          %v1849 = vpack.c.b16 %v1405, %v1399
          %v1850 = vpack.c.b16 %v1406, %v1400
          %v1851 = vpack.c.b16 %v1407, %v1401
          %v1852 = vpack.c.b16 %v1414, %v1408
          %v1853 = vpack.c.b16 %v1415, %v1409
          %v1854 = vpack.c.b16 %v1416, %v1410
          %v1855 = vpack.c.b16 %v1417, %v1411
          %v1856 = vpack.c.b16 %v1418, %v1412
          %v1857 = vpack.c.b16 %v1419, %v1413
          %v1858 = vpack.c.b16 %v1426, %v1420
          %v1859 = vpack.c.b16 %v1427, %v1421
          %v1860 = vpack.c.b16 %v1428, %v1422
          %v1861 = vpack.c.b16 %v1429, %v1423
          %v1862 = vpack.c.b16 %v1430, %v1424
          %v1863 = vpack.c.b16 %v1431, %v1425
          %v1864 = vpack.c.b16 %v1438, %v1432
          %v1865 = vpack.c.b16 %v1439, %v1433
          %v1866 = vpack.c.b16 %v1440, %v1434
          %v1867 = vpack.c.b16 %v1441, %v1435
          %v1868 = vpack.c.b16 %v1442, %v1436
          %v1869 = vpack.c.b16 %v1443, %v1437
          %v1870 = vpack.c.b16 %v1450, %v1444
          %v1871 = vpack.c.b16 %v1451, %v1445
          %v1872 = vpack.c.b16 %v1452, %v1446
          %v1873 = vpack.c.b16 %v1453, %v1447
          %v1874 = vpack.c.b16 %v1454, %v1448
          %v1875 = vpack.c.b16 %v1455, %v1449
          %v1876 = vpack.c.b16 %v1462, %v1456
          %v1877 = vpack.c.b16 %v1463, %v1457
          %v1878 = vpack.c.b16 %v1464, %v1458
          %v1879 = vpack.c.b16 %v1465, %v1459
          %v1880 = vpack.c.b16 %v1466, %v1460
          %v1881 = vpack.c.b16 %v1467, %v1461
          %v1882 = vpack.c.b16 %v1474, %v1468
          %v1883 = vpack.c.b16 %v1475, %v1469
          %v1884 = vpack.c.b16 %v1476, %v1470
          %v1885 = vpack.c.b16 %v1477, %v1471
          %v1886 = vpack.c.b16 %v1478, %v1472
          %v1887 = vpack.c.b16 %v1479, %v1473
          %v1888 = vpack.c.b16 %v1486, %v1480
          %v1889 = vpack.c.b16 %v1487, %v1481
          %v1890 = vpack.c.b16 %v1488, %v1482
          %v1891 = vpack.c.b16 %v1489, %v1483
          %v1892 = vpack.c.b16 %v1490, %v1484
          %v1893 = vpack.c.b16 %v1491, %v1485
          %v1894 = vpack.c.b16 %v1498, %v1492
          %v1895 = vpack.c.b16 %v1499, %v1493
          %v1896 = vpack.c.b16 %v1500, %v1494
          %v1897 = vpack.c.b16 %v1501, %v1495
          %v1898 = vpack.c.b16 %v1502, %v1496
          %v1899 = vpack.c.b16 %v1503, %v1497
          %v1900 = vpack.c.b16 %v1510, %v1504
          %v1901 = vpack.c.b16 %v1511, %v1505
          %v1902 = vpack.c.b16 %v1512, %v1506
          %v1903 = vpack.c.b16 %v1513, %v1507
          %v1904 = vpack.c.b16 %v1514, %v1508
          %v1905 = vpack.c.b16 %v1515, %v1509
          %v1906 = vpack.c.b16 %v1522, %v1516
          %v1907 = vpack.c.b16 %v1523, %v1517
          %v1908 = vpack.c.b16 %v1524, %v1518
          %v1909 = vpack.c.b16 %v1525, %v1519
          %v1910 = vpack.c.b16 %v1526, %v1520
          %v1911 = vpack.c.b16 %v1527, %v1521
          %v1912 = vpack.c.b16 %v1534, %v1528
          %v1913 = vpack.c.b16 %v1535, %v1529
          %v1914 = vpack.c.b16 %v1536, %v1530
          %v1915 = vpack.c.b16 %v1537, %v1531
          %v1916 = vpack.c.b16 %v1538, %v1532
          %v1917 = vpack.c.b16 %v1539, %v1533
          %v1918 = vpack.c.b16 %v1546, %v1540
          %v1919 = vpack.c.b16 %v1547, %v1541
          %v1920 = vpack.c.b16 %v1548, %v1542
          %v1921 = vpack.c.b16 %v1549, %v1543
          %v1922 = vpack.c.b16 %v1550, %v1544
          %v1923 = vpack.c.b16 %v1551, %v1545
          %v1924 = vpack.c.b16 %v1558, %v1552
          %v1925 = vpack.c.b16 %v1559, %v1553
          %v1926 = vpack.c.b16 %v1560, %v1554
          %v1927 = vpack.c.b16 %v1561, %v1555
          %v1928 = vpack.c.b16 %v1562, %v1556
          %v1929 = vpack.c.b16 %v1563, %v1557
          %v1930 = vpack.c.b16 %v1570, %v1564
          %v1931 = vpack.c.b16 %v1571, %v1565
          %v1932 = vpack.c.b16 %v1572, %v1566
          %v1933 = vpack.c.b16 %v1573, %v1567
          %v1934 = vpack.c.b16 %v1574, %v1568
          %v1935 = vpack.c.b16 %v1575, %v1569
          %v1936 = vpack.c.b16 %v1582, %v1576
          %v1937 = vpack.c.b16 %v1583, %v1577
          %v1938 = vpack.c.b16 %v1584, %v1578
          %v1939 = vpack.c.b16 %v1585, %v1579
          %v1940 = vpack.c.b16 %v1586, %v1580
          %v1941 = vpack.c.b16 %v1587, %v1581
          %v1942 = vpack.c.b16 %v1594, %v1588
          %v1943 = vpack.c.b16 %v1595, %v1589
          %v1944 = vpack.c.b16 %v1596, %v1590
          %v1945 = vpack.c.b16 %v1597, %v1591
          %v1946 = vpack.c.b16 %v1598, %v1592
          %v1947 = vpack.c.b16 %v1599, %v1593
          %v1948 = vpack.c.b16 %v1606, %v1600
          %v1949 = vpack.c.b16 %v1607, %v1601
          %v1950 = vpack.c.b16 %v1608, %v1602
          %v1951 = vpack.c.b16 %v1609, %v1603
          %v1952 = vpack.c.b16 %v1610, %v1604
          %v1953 = vpack.c.b16 %v1611, %v1605
          %v1954 = vpack.c.b16 %v1618, %v1612
          %v1955 = vpack.c.b16 %v1619, %v1613
          %v1956 = vpack.c.b16 %v1620, %v1614
          %v1957 = vpack.c.b16 %v1621, %v1615
          %v1958 = vpack.c.b16 %v1622, %v1616
          %v1959 = vpack.c.b16 %v1623, %v1617
          %v1960 = vpack.c.b16 %v1630, %v1624
          %v1961 = vpack.c.b16 %v1631, %v1625
          %v1962 = vpack.c.b16 %v1632, %v1626
          %v1963 = vpack.c.b16 %v1633, %v1627
          %v1964 = vpack.c.b16 %v1634, %v1628
          %v1965 = vpack.c.b16 %v1635, %v1629
          %v1966 = vpack.c.b16 %v1642, %v1636
          %v1967 = vpack.c.b16 %v1643, %v1637
          %v1968 = vpack.c.b16 %v1644, %v1638
          %v1969 = vpack.c.b16 %v1645, %v1639
          %v1970 = vpack.c.b16 %v1646, %v1640
          %v1971 = vpack.c.b16 %v1647, %v1641
          %v1972 = vpack.c.b16 %v1654, %v1648
          %v1973 = vpack.c.b16 %v1655, %v1649
          %v1974 = vpack.c.b16 %v1656, %v1650
          %v1975 = vpack.c.b16 %v1657, %v1651
          %v1976 = vpack.c.b16 %v1658, %v1652
          %v1977 = vpack.c.b16 %v1659, %v1653
          %v1978 = vpack.c.b16 %v1666, %v1660
          %v1979 = vpack.c.b16 %v1667, %v1661
          %v1980 = vpack.c.b16 %v1668, %v1662
          %v1981 = vpack.c.b16 %v1669, %v1663
          %v1982 = vpack.c.b16 %v1670, %v1664
          %v1983 = vpack.c.b16 %v1671, %v1665
          %v1984 = vpack.c.b16 %v1678, %v1672
          %v1985 = vpack.c.b16 %v1679, %v1673
          %v1986 = vpack.c.b16 %v1680, %v1674
          %v1987 = vpack.c.b16 %v1681, %v1675
          %v1988 = vpack.c.b16 %v1682, %v1676
          %v1989 = vpack.c.b16 %v1683, %v1677
          %v1990 = vpack.c.b16 %v1690, %v1684
          %v1991 = vpack.c.b16 %v1691, %v1685
          %v1992 = vpack.c.b16 %v1692, %v1686
          %v1993 = vpack.c.b16 %v1693, %v1687
          %v1994 = vpack.c.b16 %v1694, %v1688
          %v1995 = vpack.c.b16 %v1695, %v1689
          %v1996 = vpack.c.b16 %v1702, %v1696
          %v1997 = vpack.c.b16 %v1703, %v1697
          %v1998 = vpack.c.b16 %v1704, %v1698
          %v1999 = vpack.c.b16 %v1705, %v1699
          %v2000 = vpack.c.b16 %v1706, %v1700
          %v2001 = vpack.c.b16 %v1707, %v1701
          %v2002 = vpack.c.b16 %v1714, %v1708
          %v2003 = vpack.c.b16 %v1715, %v1709
          %v2004 = vpack.c.b16 %v1716, %v1710
          %v2005 = vpack.c.b16 %v1717, %v1711
          %v2006 = vpack.c.b16 %v1718, %v1712
          %v2007 = vpack.c.b16 %v1719, %v1713
          %2296 = vmatprep.subr.bf16.mxu0 %v1721
          %2297 = vmatpush1.bf16.msra.mxu0 %v1720
          %2298 = vmatprep.subr.bf16.mxu0 %v1727
          %2299 = vmatpush1.bf16.msra.mxu0 %v1726
          %2300 = vmatprep.subr.bf16.mxu0 %v1733
          %2301 = vmatpush1.bf16.msra.mxu0 %v1732
          %2302 = vmatprep.subr.bf16.mxu0 %v1739
          %2303 = vmatpush1.bf16.msra.mxu0 %v1738
          %2304 = vmatprep.subr.bf16.mxu0 %v1745
          %2305 = vmatpush1.bf16.msra.mxu0 %v1744
          %2306 = vmatprep.subr.bf16.mxu0 %v1751
          %2307 = vmatpush1.bf16.msra.mxu0 %v1750
          %2308 = vmatprep.subr.bf16.mxu0 %v1757
          %2309 = vmatpush1.bf16.msra.mxu0 %v1756
          %2310 = vmatprep.subr.bf16.mxu0 %v1763
          %2311 = vmatpush1.bf16.msra.mxu0 %v1762
          %2312 = vmatprep.subr.bf16.mxu0 %v1769
          %2313 = vmatpush1.bf16.msra.mxu0 %v1768
          %2314 = vmatprep.subr.bf16.mxu0 %v1775
          %2315 = vmatpush1.bf16.msra.mxu0 %v1774
          %2316 = vmatprep.subr.bf16.mxu0 %v1781
          %2317 = vmatpush1.bf16.msra.mxu0 %v1780
          %2318 = vmatprep.subr.bf16.mxu0 %v1787
          %2319 = vmatpush1.bf16.msra.mxu0 %v1786
          %2320 = vmatprep.subr.bf16.mxu0 %v1793
          %2321 = vmatpush1.bf16.msra.mxu0 %v1792
          %2322 = vmatprep.subr.bf16.mxu0 %v1799
          %2323 = vmatpush1.bf16.msra.mxu0 %v1798
          %2324 = vmatprep.subr.bf16.mxu0 %v1805
          %2325 = vmatpush1.bf16.msra.mxu0 %v1804
          %2326 = vmatprep.subr.bf16.mxu0 %v1811
          %2327 = vmatpush1.bf16.msra.mxu0 %v1810
          %2328 = vmatprep.mubr.bf16.mxu0 %v531
          %2329 = vmatmul.mubr.bf16.gmra.mrb[0].mxu0 %v530
          %v2330 = vpop.f32.mrb[0].mxu0
          %v2331 = vadd.f32 %v829, %v2330
          %v2332 = vpop.f32.mrb[0].mxu0
          %v2333 = vadd.f32 %v833, %v2332
          %v2334 = vpop.f32.mrb[0].mxu0
          %v2335 = vpop.f32.mrb[0].mxu0
          %2336 = vdwg.mxu0
          %2337 = vmatprep.subr.bf16.mxu0 %v1817
          %2338 = vmatpush1.bf16.msra.mxu0 %v1816
          %2339 = vmatprep.subr.bf16.mxu0 %v1823
          %2340 = vmatpush1.bf16.msra.mxu0 %v1822
          %2341 = vmatprep.subr.bf16.mxu0 %v1829
          %2342 = vmatpush1.bf16.msra.mxu0 %v1828
          %2343 = vmatprep.subr.bf16.mxu0 %v1835
          %2344 = vmatpush1.bf16.msra.mxu0 %v1834
          %2345 = vmatprep.subr.bf16.mxu0 %v1841
          %2346 = vmatpush1.bf16.msra.mxu0 %v1840
          %2347 = vmatprep.subr.bf16.mxu0 %v1847
          %2348 = vmatpush1.bf16.msra.mxu0 %v1846
          %2349 = vmatprep.subr.bf16.mxu0 %v1853
          %2350 = vmatpush1.bf16.msra.mxu0 %v1852
          %2351 = vmatprep.subr.bf16.mxu0 %v1859
          %2352 = vmatpush1.bf16.msra.mxu0 %v1858
          %2353 = vmatprep.subr.bf16.mxu0 %v1865
          %2354 = vmatpush1.bf16.msra.mxu0 %v1864
          %2355 = vmatprep.subr.bf16.mxu0 %v1871
          %2356 = vmatpush1.bf16.msra.mxu0 %v1870
          %2357 = vmatprep.subr.bf16.mxu0 %v1877
          %2358 = vmatpush1.bf16.msra.mxu0 %v1876
          %2359 = vmatprep.subr.bf16.mxu0 %v1883
          %2360 = vmatpush1.bf16.msra.mxu0 %v1882
          %2361 = vmatprep.subr.bf16.mxu0 %v1889
          %2362 = vmatpush1.bf16.msra.mxu0 %v1888
          %2363 = vmatprep.subr.bf16.mxu0 %v1895
          %2364 = vmatpush1.bf16.msra.mxu0 %v1894
          %2365 = vmatprep.subr.bf16.mxu0 %v1901
          %2366 = vmatpush1.bf16.msra.mxu0 %v1900
          %2367 = vmatprep.subr.bf16.mxu0 %v1907
          %2368 = vmatpush1.bf16.msra.mxu0 %v1906
          %2369 = vmatprep.mubr.bf16.mxu0 %v533
          %2370 = vmatmul.mubr.bf16.gmra.mrb[0].mxu0 %v532
          %v2371 = vpop.f32.mrb[0].mxu0
          %v2372 = vadd.f32 %v2331, %v2371
          %v2373 = vpop.f32.mrb[0].mxu0
          %v2374 = vadd.f32 %v2333, %v2373
          %v2375 = vpop.f32.mrb[0].mxu0
          %v2376 = vpop.f32.mrb[0].mxu0
          %2377 = vdwg.mxu0
          %2378 = vmatprep.subr.bf16.mxu0 %v1913
          %2379 = vmatpush1.bf16.msra.mxu0 %v1912
          %2380 = vmatprep.subr.bf16.mxu0 %v1919
          %2381 = vmatpush1.bf16.msra.mxu0 %v1918
          %2382 = vmatprep.subr.bf16.mxu0 %v1925
          %2383 = vmatpush1.bf16.msra.mxu0 %v1924
          %2384 = vmatprep.subr.bf16.mxu0 %v1931
          %2385 = vmatpush1.bf16.msra.mxu0 %v1930
          %2386 = vmatprep.subr.bf16.mxu0 %v1937
          %2387 = vmatpush1.bf16.msra.mxu0 %v1936
          %2388 = vmatprep.subr.bf16.mxu0 %v1943
          %2389 = vmatpush1.bf16.msra.mxu0 %v1942
          %2390 = vmatprep.subr.bf16.mxu0 %v1949
          %2391 = vmatpush1.bf16.msra.mxu0 %v1948
          %2392 = vmatprep.subr.bf16.mxu0 %v1955
          %2393 = vmatpush1.bf16.msra.mxu0 %v1954
          %2394 = vmatprep.subr.bf16.mxu0 %v1961
          %2395 = vmatpush1.bf16.msra.mxu0 %v1960
          %2396 = vmatprep.subr.bf16.mxu0 %v1967
          %2397 = vmatpush1.bf16.msra.mxu0 %v1966
          %2398 = vmatprep.subr.bf16.mxu0 %v1973
          %2399 = vmatpush1.bf16.msra.mxu0 %v1972
          %2400 = vmatprep.subr.bf16.mxu0 %v1979
          %2401 = vmatpush1.bf16.msra.mxu0 %v1978
          %2402 = vmatprep.subr.bf16.mxu0 %v1985
          %2403 = vmatpush1.bf16.msra.mxu0 %v1984
          %2404 = vmatprep.subr.bf16.mxu0 %v1991
          %2405 = vmatpush1.bf16.msra.mxu0 %v1990
          %2406 = vmatprep.subr.bf16.mxu0 %v1997
          %2407 = vmatpush1.bf16.msra.mxu0 %v1996
          %2408 = vmatprep.subr.bf16.mxu0 %v2003
          %2409 = vmatpush1.bf16.msra.mxu0 %v2002
          %2410 = vmatprep.mubr.bf16.mxu0 %v535
          %2411 = vmatmul.mubr.bf16.gmra.mrb[0].mxu0 %v534
          %v2412 = vpop.f32.mrb[0].mxu0
          %v2413 = vadd.f32 %v2372, %v2412
          %v2414 = vpop.f32.mrb[0].mxu0
          %v2415 = vadd.f32 %v2374, %v2414
          %v2416 = vpop.f32.mrb[0].mxu0
          %v2417 = vpop.f32.mrb[0].mxu0
          %2418 = vdwg.mxu0
          %2419 = vmatprep.subr.bf16.mxu0 %v1723
          %2420 = vmatpush1.bf16.msra.mxu0 %v1722
          %2421 = vmatprep.subr.bf16.mxu0 %v1729
          %2422 = vmatpush1.bf16.msra.mxu0 %v1728
          %2423 = vmatprep.subr.bf16.mxu0 %v1735
          %2424 = vmatpush1.bf16.msra.mxu0 %v1734
          %2425 = vmatprep.subr.bf16.mxu0 %v1741
          %2426 = vmatpush1.bf16.msra.mxu0 %v1740
          %2427 = vmatprep.subr.bf16.mxu0 %v1747
          %2428 = vmatpush1.bf16.msra.mxu0 %v1746
          %2429 = vmatprep.subr.bf16.mxu0 %v1753
          %2430 = vmatpush1.bf16.msra.mxu0 %v1752
          %2431 = vmatprep.subr.bf16.mxu0 %v1759
          %2432 = vmatpush1.bf16.msra.mxu0 %v1758
          %2433 = vmatprep.subr.bf16.mxu0 %v1765
          %2434 = vmatpush1.bf16.msra.mxu0 %v1764
          %2435 = vmatprep.subr.bf16.mxu0 %v1771
          %2436 = vmatpush1.bf16.msra.mxu0 %v1770
          %2437 = vmatprep.subr.bf16.mxu0 %v1777
          %2438 = vmatpush1.bf16.msra.mxu0 %v1776
          %2439 = vmatprep.subr.bf16.mxu0 %v1783
          %2440 = vmatpush1.bf16.msra.mxu0 %v1782
          %2441 = vmatprep.subr.bf16.mxu0 %v1789
          %2442 = vmatpush1.bf16.msra.mxu0 %v1788
          %2443 = vmatprep.subr.bf16.mxu0 %v1795
          %2444 = vmatpush1.bf16.msra.mxu0 %v1794
          %2445 = vmatprep.subr.bf16.mxu0 %v1801
          %2446 = vmatpush1.bf16.msra.mxu0 %v1800
          %2447 = vmatprep.subr.bf16.mxu0 %v1807
          %2448 = vmatpush1.bf16.msra.mxu0 %v1806
          %2449 = vmatprep.subr.bf16.mxu0 %v1813
          %2450 = vmatpush1.bf16.msra.mxu0 %v1812
          %2451 = vmatprep.mubr.bf16.mxu0 %v531
          %2452 = vmatmul.mubr.bf16.gmra.mrb[0].mxu0 %v530
          %v2453 = vpop.f32.mrb[0].mxu0
          %v2454 = vadd.f32 %v837, %v2453
          %v2455 = vpop.f32.mrb[0].mxu0
          %v2456 = vadd.f32 %v841, %v2455
          %v2457 = vpop.f32.mrb[0].mxu0
          %v2458 = vpop.f32.mrb[0].mxu0
          %2459 = vdwg.mxu0
          %2460 = vmatprep.subr.bf16.mxu0 %v1819
          %2461 = vmatpush1.bf16.msra.mxu0 %v1818
          %2462 = vmatprep.subr.bf16.mxu0 %v1825
          %2463 = vmatpush1.bf16.msra.mxu0 %v1824
          %2464 = vmatprep.subr.bf16.mxu0 %v1831
          %2465 = vmatpush1.bf16.msra.mxu0 %v1830
          %2466 = vmatprep.subr.bf16.mxu0 %v1837
          %2467 = vmatpush1.bf16.msra.mxu0 %v1836
          %2468 = vmatprep.subr.bf16.mxu0 %v1843
          %2469 = vmatpush1.bf16.msra.mxu0 %v1842
          %2470 = vmatprep.subr.bf16.mxu0 %v1849
          %2471 = vmatpush1.bf16.msra.mxu0 %v1848
          %2472 = vmatprep.subr.bf16.mxu0 %v1855
          %2473 = vmatpush1.bf16.msra.mxu0 %v1854
          %2474 = vmatprep.subr.bf16.mxu0 %v1861
          %2475 = vmatpush1.bf16.msra.mxu0 %v1860
          %2476 = vmatprep.subr.bf16.mxu0 %v1867
          %2477 = vmatpush1.bf16.msra.mxu0 %v1866
          %2478 = vmatprep.subr.bf16.mxu0 %v1873
          %2479 = vmatpush1.bf16.msra.mxu0 %v1872
          %2480 = vmatprep.subr.bf16.mxu0 %v1879
          %2481 = vmatpush1.bf16.msra.mxu0 %v1878
          %2482 = vmatprep.subr.bf16.mxu0 %v1885
          %2483 = vmatpush1.bf16.msra.mxu0 %v1884
          %2484 = vmatprep.subr.bf16.mxu0 %v1891
          %2485 = vmatpush1.bf16.msra.mxu0 %v1890
          %2486 = vmatprep.subr.bf16.mxu0 %v1897
          %2487 = vmatpush1.bf16.msra.mxu0 %v1896
          %2488 = vmatprep.subr.bf16.mxu0 %v1903
          %2489 = vmatpush1.bf16.msra.mxu0 %v1902
          %2490 = vmatprep.subr.bf16.mxu0 %v1909
          %2491 = vmatpush1.bf16.msra.mxu0 %v1908
          %2492 = vmatprep.mubr.bf16.mxu0 %v533
          %2493 = vmatmul.mubr.bf16.gmra.mrb[0].mxu0 %v532
          %v2494 = vpop.f32.mrb[0].mxu0
          %v2495 = vadd.f32 %v2454, %v2494
          %v2496 = vpop.f32.mrb[0].mxu0
          %v2497 = vadd.f32 %v2456, %v2496
          %v2498 = vpop.f32.mrb[0].mxu0
          %v2499 = vpop.f32.mrb[0].mxu0
          %2500 = vdwg.mxu0
          %2501 = vmatprep.subr.bf16.mxu0 %v1915
          %2502 = vmatpush1.bf16.msra.mxu0 %v1914
          %2503 = vmatprep.subr.bf16.mxu0 %v1921
          %2504 = vmatpush1.bf16.msra.mxu0 %v1920
          %2505 = vmatprep.subr.bf16.mxu0 %v1927
          %2506 = vmatpush1.bf16.msra.mxu0 %v1926
          %2507 = vmatprep.subr.bf16.mxu0 %v1933
          %2508 = vmatpush1.bf16.msra.mxu0 %v1932
          %2509 = vmatprep.subr.bf16.mxu0 %v1939
          %2510 = vmatpush1.bf16.msra.mxu0 %v1938
          %2511 = vmatprep.subr.bf16.mxu0 %v1945
          %2512 = vmatpush1.bf16.msra.mxu0 %v1944
          %2513 = vmatprep.subr.bf16.mxu0 %v1951
          %2514 = vmatpush1.bf16.msra.mxu0 %v1950
          %2515 = vmatprep.subr.bf16.mxu0 %v1957
          %2516 = vmatpush1.bf16.msra.mxu0 %v1956
          %2517 = vmatprep.subr.bf16.mxu0 %v1963
          %2518 = vmatpush1.bf16.msra.mxu0 %v1962
          %2519 = vmatprep.subr.bf16.mxu0 %v1969
          %2520 = vmatpush1.bf16.msra.mxu0 %v1968
          %2521 = vmatprep.subr.bf16.mxu0 %v1975
          %2522 = vmatpush1.bf16.msra.mxu0 %v1974
          %2523 = vmatprep.subr.bf16.mxu0 %v1981
          %2524 = vmatpush1.bf16.msra.mxu0 %v1980
          %2525 = vmatprep.subr.bf16.mxu0 %v1987
          %2526 = vmatpush1.bf16.msra.mxu0 %v1986
          %2527 = vmatprep.subr.bf16.mxu0 %v1993
          %2528 = vmatpush1.bf16.msra.mxu0 %v1992
          %2529 = vmatprep.subr.bf16.mxu0 %v1999
          %2530 = vmatpush1.bf16.msra.mxu0 %v1998
          %2531 = vmatprep.subr.bf16.mxu0 %v2005
          %2532 = vmatpush1.bf16.msra.mxu0 %v2004
          %2533 = vmatprep.mubr.bf16.mxu0 %v535
          %2534 = vmatmul.mubr.bf16.gmra.mrb[0].mxu0 %v534
          %v2535 = vpop.f32.mrb[0].mxu0
          %v2536 = vadd.f32 %v2495, %v2535
          %v2537 = vpop.f32.mrb[0].mxu0
          %v2538 = vadd.f32 %v2497, %v2537
          %v2539 = vpop.f32.mrb[0].mxu0
          %v2540 = vpop.f32.mrb[0].mxu0
          %2541 = vdwg.mxu0
          %2542 = vmatprep.subr.bf16.mxu0 %v1725
          %2543 = vmatpush1.bf16.msra.mxu0 %v1724
          %2544 = vmatprep.subr.bf16.mxu0 %v1731
          %2545 = vmatpush1.bf16.msra.mxu0 %v1730
          %2546 = vmatprep.subr.bf16.mxu0 %v1737
          %2547 = vmatpush1.bf16.msra.mxu0 %v1736
          %2548 = vmatprep.subr.bf16.mxu0 %v1743
          %2549 = vmatpush1.bf16.msra.mxu0 %v1742
          %2550 = vmatprep.subr.bf16.mxu0 %v1749
          %2551 = vmatpush1.bf16.msra.mxu0 %v1748
          %2552 = vmatprep.subr.bf16.mxu0 %v1755
          %2553 = vmatpush1.bf16.msra.mxu0 %v1754
          %2554 = vmatprep.subr.bf16.mxu0 %v1761
          %2555 = vmatpush1.bf16.msra.mxu0 %v1760
          %2556 = vmatprep.subr.bf16.mxu0 %v1767
          %2557 = vmatpush1.bf16.msra.mxu0 %v1766
          %2558 = vmatprep.subr.bf16.mxu0 %v1773
          %2559 = vmatpush1.bf16.msra.mxu0 %v1772
          %2560 = vmatprep.subr.bf16.mxu0 %v1779
          %2561 = vmatpush1.bf16.msra.mxu0 %v1778
          %2562 = vmatprep.subr.bf16.mxu0 %v1785
          %2563 = vmatpush1.bf16.msra.mxu0 %v1784
          %2564 = vmatprep.subr.bf16.mxu0 %v1791
          %2565 = vmatpush1.bf16.msra.mxu0 %v1790
          %2566 = vmatprep.subr.bf16.mxu0 %v1797
          %2567 = vmatpush1.bf16.msra.mxu0 %v1796
          %2568 = vmatprep.subr.bf16.mxu0 %v1803
          %2569 = vmatpush1.bf16.msra.mxu0 %v1802
          %2570 = vmatprep.subr.bf16.mxu0 %v1809
          %2571 = vmatpush1.bf16.msra.mxu0 %v1808
          %2572 = vmatprep.subr.bf16.mxu0 %v1815
          %2573 = vmatpush1.bf16.msra.mxu0 %v1814
          %2574 = vmatprep.mubr.bf16.mxu0 %v531
          %2575 = vmatmul.mubr.bf16.gmra.mrb[0].mxu0 %v530
          %v2576 = vpop.f32.mrb[0].mxu0
          %v2577 = vadd.f32 %v845, %v2576
          %v2578 = vpop.f32.mrb[0].mxu0
          %v2579 = vadd.f32 %v849, %v2578
          %v2580 = vpop.f32.mrb[0].mxu0
          %v2581 = vpop.f32.mrb[0].mxu0
          %2582 = vdwg.mxu0
          %2583 = vmatprep.subr.bf16.mxu0 %v1821
          %2584 = vmatpush1.bf16.msra.mxu0 %v1820
          %2585 = vmatprep.subr.bf16.mxu0 %v1827
          %2586 = vmatpush1.bf16.msra.mxu0 %v1826
          %2587 = vmatprep.subr.bf16.mxu0 %v1833
          %2588 = vmatpush1.bf16.msra.mxu0 %v1832
          %2589 = vmatprep.subr.bf16.mxu0 %v1839
          %2590 = vmatpush1.bf16.msra.mxu0 %v1838
          %2591 = vmatprep.subr.bf16.mxu0 %v1845
          %2592 = vmatpush1.bf16.msra.mxu0 %v1844
          %2593 = vmatprep.subr.bf16.mxu0 %v1851
          %2594 = vmatpush1.bf16.msra.mxu0 %v1850
          %2595 = vmatprep.subr.bf16.mxu0 %v1857
          %2596 = vmatpush1.bf16.msra.mxu0 %v1856
          %2597 = vmatprep.subr.bf16.mxu0 %v1863
          %2598 = vmatpush1.bf16.msra.mxu0 %v1862
          %2599 = vmatprep.subr.bf16.mxu0 %v1869
          %2600 = vmatpush1.bf16.msra.mxu0 %v1868
          %2601 = vmatprep.subr.bf16.mxu0 %v1875
          %2602 = vmatpush1.bf16.msra.mxu0 %v1874
          %2603 = vmatprep.subr.bf16.mxu0 %v1881
          %2604 = vmatpush1.bf16.msra.mxu0 %v1880
          %2605 = vmatprep.subr.bf16.mxu0 %v1887
          %2606 = vmatpush1.bf16.msra.mxu0 %v1886
          %2607 = vmatprep.subr.bf16.mxu0 %v1893
          %2608 = vmatpush1.bf16.msra.mxu0 %v1892
          %2609 = vmatprep.subr.bf16.mxu0 %v1899
          %2610 = vmatpush1.bf16.msra.mxu0 %v1898
          %2611 = vmatprep.subr.bf16.mxu0 %v1905
          %2612 = vmatpush1.bf16.msra.mxu0 %v1904
          %2613 = vmatprep.subr.bf16.mxu0 %v1911
          %2614 = vmatpush1.bf16.msra.mxu0 %v1910
          %2615 = vmatprep.mubr.bf16.mxu0 %v533
          %2616 = vmatmul.mubr.bf16.gmra.mrb[0].mxu0 %v532
          %v2617 = vpop.f32.mrb[0].mxu0
          %v2618 = vadd.f32 %v2577, %v2617
          %v2619 = vpop.f32.mrb[0].mxu0
          %v2620 = vadd.f32 %v2579, %v2619
          %v2621 = vpop.f32.mrb[0].mxu0
          %v2622 = vpop.f32.mrb[0].mxu0
          %2623 = vdwg.mxu0
          %2624 = vmatprep.subr.bf16.mxu0 %v1917
          %2625 = vmatpush1.bf16.msra.mxu0 %v1916
          %2626 = vmatprep.subr.bf16.mxu0 %v1923
          %2627 = vmatpush1.bf16.msra.mxu0 %v1922
          %2628 = vmatprep.subr.bf16.mxu0 %v1929
          %2629 = vmatpush1.bf16.msra.mxu0 %v1928
          %2630 = vmatprep.subr.bf16.mxu0 %v1935
          %2631 = vmatpush1.bf16.msra.mxu0 %v1934
          %2632 = vmatprep.subr.bf16.mxu0 %v1941
          %2633 = vmatpush1.bf16.msra.mxu0 %v1940
          %2634 = vmatprep.subr.bf16.mxu0 %v1947
          %2635 = vmatpush1.bf16.msra.mxu0 %v1946
          %2636 = vmatprep.subr.bf16.mxu0 %v1953
          %2637 = vmatpush1.bf16.msra.mxu0 %v1952
          %2638 = vmatprep.subr.bf16.mxu0 %v1959
          %2639 = vmatpush1.bf16.msra.mxu0 %v1958
          %2640 = vmatprep.subr.bf16.mxu0 %v1965
          %2641 = vmatpush1.bf16.msra.mxu0 %v1964
          %2642 = vmatprep.subr.bf16.mxu0 %v1971
          %2643 = vmatpush1.bf16.msra.mxu0 %v1970
          %2644 = vmatprep.subr.bf16.mxu0 %v1977
          %2645 = vmatpush1.bf16.msra.mxu0 %v1976
          %2646 = vmatprep.subr.bf16.mxu0 %v1983
          %2647 = vmatpush1.bf16.msra.mxu0 %v1982
          %2648 = vmatprep.subr.bf16.mxu0 %v1989
          %2649 = vmatpush1.bf16.msra.mxu0 %v1988
          %2650 = vmatprep.subr.bf16.mxu0 %v1995
          %2651 = vmatpush1.bf16.msra.mxu0 %v1994
          %2652 = vmatprep.subr.bf16.mxu0 %v2001
          %2653 = vmatpush1.bf16.msra.mxu0 %v2000
          %2654 = vmatprep.subr.bf16.mxu0 %v2007
          %2655 = vmatpush1.bf16.msra.mxu0 %v2006
          %2656 = vmatprep.mubr.bf16.mxu0 %v535
          %2657 = vmatmul.mubr.bf16.gmra.mrb[0].mxu0 %v534
          %v2658 = vpop.f32.mrb[0].mxu0
          %v2659 = vadd.f32 %v2618, %v2658
          %v2660 = vpop.f32.mrb[0].mxu0
          %v2661 = vadd.f32 %v2620, %v2660
          %v2662 = vpop.f32.mrb[0].mxu0
          %v2663 = vpop.f32.mrb[0].mxu0
          %2664 = vdwg.mxu0
          %v2665 = vpack.c.bf16 %v2413, %v2413
          %v2666 = vpack.c.bf16 %v2415, %v2415
          %v2667 = vpack.c.bf16 %v2536, %v2536
          %v2668 = vpack.c.bf16 %v2538, %v2538
          %v2669 = vpack.c.bf16 %v2659, %v2659
          %v2670 = vpack.c.bf16 %v2661, %v2661
          %v2671 = vld [vmem:[#allocation15] sm:$0xff]
          %v2672 = vld [vmem:[#allocation15 + $0x8] sm:$0xff]
          %v2673 = vld [vmem:[#allocation15 + $0x10] sm:$0xff]
          %v2674 = vld [vmem:[#allocation15 + $0x18] sm:$0xff]
          %v2675 = vld [vmem:[#allocation15 + $0x20] sm:$0xff]
          %v2676 = vld [vmem:[#allocation15 + $0x28] sm:$0xff]
          %v2677 = vld [vmem:[#allocation15 + $0x30] sm:$0xff]
          %v2678 = vld [vmem:[#allocation15 + $0x38] sm:$0xff]
          %v2679 = vld [vmem:[#allocation15 + $0x40] sm:$0xff]
          %v2680 = vld [vmem:[#allocation15 + $0x48] sm:$0xff]
          %v2681 = vld [vmem:[#allocation15 + $0x50] sm:$0xff]
          %v2682 = vld [vmem:[#allocation15 + $0x58] sm:$0xff]
          %v2683 = vld [vmem:[#allocation15 + $0x60] sm:$0xff]
          %v2684 = vld [vmem:[#allocation15 + $0x68] sm:$0xff]
          %v2685 = vld [vmem:[#allocation15 + $0x70] sm:$0xff]
          %v2686 = vld [vmem:[#allocation15 + $0x78] sm:$0xff]
          %v2687 = vld [vmem:[#allocation15 + $0x80] sm:$0xff]
          %v2688 = vld [vmem:[#allocation15 + $0x88] sm:$0xff]
          %v2689 = vld [vmem:[#allocation15 + $0x90] sm:$0xff]
          %v2690 = vld [vmem:[#allocation15 + $0x98] sm:$0xff]
          %v2691 = vld [vmem:[#allocation15 + $0xa0] sm:$0xff]
          %v2692 = vld [vmem:[#allocation15 + $0xa8] sm:$0xff]
          %v2693 = vld [vmem:[#allocation15 + $0xb0] sm:$0xff]
          %v2694 = vld [vmem:[#allocation15 + $0xb8] sm:$0xff]
          %v2695 = vld [vmem:[#allocation15 + $0xc0] sm:$0xff]
          %v2696 = vld [vmem:[#allocation15 + $0xc8] sm:$0xff]
          %v2697 = vld [vmem:[#allocation15 + $0xd0] sm:$0xff]
          %v2698 = vld [vmem:[#allocation15 + $0xd8] sm:$0xff]
          %v2699 = vld [vmem:[#allocation15 + $0xe0] sm:$0xff]
          %v2700 = vld [vmem:[#allocation15 + $0xe8] sm:$0xff]
          %v2701 = vld [vmem:[#allocation15 + $0xf0] sm:$0xff]
          %v2702 = vld [vmem:[#allocation15 + $0xf8] sm:$0xff]
          %v2703 = vld [vmem:[#allocation15 + $0x100] sm:$0xff]
          %v2704 = vld [vmem:[#allocation15 + $0x108] sm:$0xff]
          %v2705 = vld [vmem:[#allocation15 + $0x110] sm:$0xff]
          %v2706 = vld [vmem:[#allocation15 + $0x118] sm:$0xff]
          %v2707 = vld [vmem:[#allocation15 + $0x120] sm:$0xff]
          %v2708 = vld [vmem:[#allocation15 + $0x128] sm:$0xff]
          %v2709 = vld [vmem:[#allocation15 + $0x130] sm:$0xff]
          %v2710 = vld [vmem:[#allocation15 + $0x138] sm:$0xff]
          %v2711 = vld [vmem:[#allocation15 + $0x140] sm:$0xff]
          %v2712 = vld [vmem:[#allocation15 + $0x148] sm:$0xff]
          %v2713 = vld [vmem:[#allocation15 + $0x150] sm:$0xff]
          %v2714 = vld [vmem:[#allocation15 + $0x158] sm:$0xff]
          %v2715 = vld [vmem:[#allocation15 + $0x160] sm:$0xff]
          %v2716 = vld [vmem:[#allocation15 + $0x168] sm:$0xff]
          %v2717 = vld [vmem:[#allocation15 + $0x170] sm:$0xff]
          %v2718 = vld [vmem:[#allocation15 + $0x178] sm:$0xff]
          %v2719 = vld [vmem:[#allocation15 + $0x180] sm:$0xff]
          %v2720 = vld [vmem:[#allocation15 + $0x188] sm:$0xff]
          %v2721 = vld [vmem:[#allocation15 + $0x190] sm:$0xff]
          %v2722 = vld [vmem:[#allocation15 + $0x198] sm:$0xff]
          %v2723 = vld [vmem:[#allocation15 + $0x1a0] sm:$0xff]
          %v2724 = vld [vmem:[#allocation15 + $0x1a8] sm:$0xff]
          %v2725 = vld [vmem:[#allocation15 + $0x1b0] sm:$0xff]
          %v2726 = vld [vmem:[#allocation15 + $0x1b8] sm:$0xff]
          %v2727 = vld [vmem:[#allocation15 + $0x1c0] sm:$0xff]
          %v2728 = vld [vmem:[#allocation15 + $0x1c8] sm:$0xff]
          %v2729 = vld [vmem:[#allocation15 + $0x1d0] sm:$0xff]
          %v2730 = vld [vmem:[#allocation15 + $0x1d8] sm:$0xff]
          %v2731 = vld [vmem:[#allocation15 + $0x1e0] sm:$0xff]
          %v2732 = vld [vmem:[#allocation15 + $0x1e8] sm:$0xff]
          %v2733 = vld [vmem:[#allocation15 + $0x1f0] sm:$0xff]
          %v2734 = vld [vmem:[#allocation15 + $0x1f8] sm:$0xff]
          %v2735 = vld [vmem:[#allocation15 + $0x200] sm:$0xff]
          %v2736 = vld [vmem:[#allocation15 + $0x208] sm:$0xff]
          %v2737 = vld [vmem:[#allocation15 + $0x210] sm:$0xff]
          %v2738 = vld [vmem:[#allocation15 + $0x218] sm:$0xff]
          %v2739 = vld [vmem:[#allocation15 + $0x220] sm:$0xff]
          %v2740 = vld [vmem:[#allocation15 + $0x228] sm:$0xff]
          %v2741 = vld [vmem:[#allocation15 + $0x230] sm:$0xff]
          %v2742 = vld [vmem:[#allocation15 + $0x238] sm:$0xff]
          %v2743 = vld [vmem:[#allocation15 + $0x240] sm:$0xff]
          %v2744 = vld [vmem:[#allocation15 + $0x248] sm:$0xff]
          %v2745 = vld [vmem:[#allocation15 + $0x250] sm:$0xff]
          %v2746 = vld [vmem:[#allocation15 + $0x258] sm:$0xff]
          %v2747 = vld [vmem:[#allocation15 + $0x260] sm:$0xff]
          %v2748 = vld [vmem:[#allocation15 + $0x268] sm:$0xff]
          %v2749 = vld [vmem:[#allocation15 + $0x270] sm:$0xff]
          %v2750 = vld [vmem:[#allocation15 + $0x278] sm:$0xff]
          %v2751 = vld [vmem:[#allocation15 + $0x280] sm:$0xff]
          %v2752 = vld [vmem:[#allocation15 + $0x288] sm:$0xff]
          %v2753 = vld [vmem:[#allocation15 + $0x290] sm:$0xff]
          %v2754 = vld [vmem:[#allocation15 + $0x298] sm:$0xff]
          %v2755 = vld [vmem:[#allocation15 + $0x2a0] sm:$0xff]
          %v2756 = vld [vmem:[#allocation15 + $0x2a8] sm:$0xff]
          %v2757 = vld [vmem:[#allocation15 + $0x2b0] sm:$0xff]
          %v2758 = vld [vmem:[#allocation15 + $0x2b8] sm:$0xff]
          %v2759 = vld [vmem:[#allocation15 + $0x2c0] sm:$0xff]
          %v2760 = vld [vmem:[#allocation15 + $0x2c8] sm:$0xff]
          %v2761 = vld [vmem:[#allocation15 + $0x2d0] sm:$0xff]
          %v2762 = vld [vmem:[#allocation15 + $0x2d8] sm:$0xff]
          %v2763 = vld [vmem:[#allocation15 + $0x2e0] sm:$0xff]
          %v2764 = vld [vmem:[#allocation15 + $0x2e8] sm:$0xff]
          %v2765 = vld [vmem:[#allocation15 + $0x2f0] sm:$0xff]
          %v2766 = vld [vmem:[#allocation15 + $0x2f8] sm:$0xff]
          %v2767 = vld [vmem:[#allocation15 + $0x300] sm:$0xff]
          %v2768 = vld [vmem:[#allocation15 + $0x308] sm:$0xff]
          %v2769 = vld [vmem:[#allocation15 + $0x310] sm:$0xff]
          %v2770 = vld [vmem:[#allocation15 + $0x318] sm:$0xff]
          %v2771 = vld [vmem:[#allocation15 + $0x320] sm:$0xff]
          %v2772 = vld [vmem:[#allocation15 + $0x328] sm:$0xff]
          %v2773 = vld [vmem:[#allocation15 + $0x330] sm:$0xff]
          %v2774 = vld [vmem:[#allocation15 + $0x338] sm:$0xff]
          %v2775 = vld [vmem:[#allocation15 + $0x340] sm:$0xff]
          %v2776 = vld [vmem:[#allocation15 + $0x348] sm:$0xff]
          %v2777 = vld [vmem:[#allocation15 + $0x350] sm:$0xff]
          %v2778 = vld [vmem:[#allocation15 + $0x358] sm:$0xff]
          %v2779 = vld [vmem:[#allocation15 + $0x360] sm:$0xff]
          %v2780 = vld [vmem:[#allocation15 + $0x368] sm:$0xff]
          %v2781 = vld [vmem:[#allocation15 + $0x370] sm:$0xff]
          %v2782 = vld [vmem:[#allocation15 + $0x378] sm:$0xff]
          %v2783 = vld [vmem:[#allocation15 + $0x380] sm:$0xff]
          %v2784 = vld [vmem:[#allocation15 + $0x388] sm:$0xff]
          %v2785 = vld [vmem:[#allocation15 + $0x390] sm:$0xff]
          %v2786 = vld [vmem:[#allocation15 + $0x398] sm:$0xff]
          %v2787 = vld [vmem:[#allocation15 + $0x3a0] sm:$0xff]
          %v2788 = vld [vmem:[#allocation15 + $0x3a8] sm:$0xff]
          %v2789 = vld [vmem:[#allocation15 + $0x3b0] sm:$0xff]
          %v2790 = vld [vmem:[#allocation15 + $0x3b8] sm:$0xff]
          %v2791 = vld [vmem:[#allocation15 + $0x3c0] sm:$0xff]
          %v2792 = vld [vmem:[#allocation15 + $0x3c8] sm:$0xff]
          %v2793 = vld [vmem:[#allocation15 + $0x3d0] sm:$0xff]
          %v2794 = vld [vmem:[#allocation15 + $0x3d8] sm:$0xff]
          %v2795 = vld [vmem:[#allocation15 + $0x3e0] sm:$0xff]
          %v2796 = vld [vmem:[#allocation15 + $0x3e8] sm:$0xff]
          %v2797 = vld [vmem:[#allocation15 + $0x3f0] sm:$0xff]
          %v2798 = vld [vmem:[#allocation15 + $0x3f8] sm:$0xff]
          %v2799 = vld [vmem:[#allocation15 + $0x400] sm:$0xff]
          %v2800 = vld [vmem:[#allocation15 + $0x408] sm:$0xff]
          %v2801 = vld [vmem:[#allocation15 + $0x410] sm:$0xff]
          %v2802 = vld [vmem:[#allocation15 + $0x418] sm:$0xff]
          %v2803 = vld [vmem:[#allocation15 + $0x420] sm:$0xff]
          %v2804 = vld [vmem:[#allocation15 + $0x428] sm:$0xff]
          %v2805 = vld [vmem:[#allocation15 + $0x430] sm:$0xff]
          %v2806 = vld [vmem:[#allocation15 + $0x438] sm:$0xff]
          %v2807 = vld [vmem:[#allocation15 + $0x440] sm:$0xff]
          %v2808 = vld [vmem:[#allocation15 + $0x448] sm:$0xff]
          %v2809 = vld [vmem:[#allocation15 + $0x450] sm:$0xff]
          %v2810 = vld [vmem:[#allocation15 + $0x458] sm:$0xff]
          %v2811 = vld [vmem:[#allocation15 + $0x460] sm:$0xff]
          %v2812 = vld [vmem:[#allocation15 + $0x468] sm:$0xff]
          %v2813 = vld [vmem:[#allocation15 + $0x470] sm:$0xff]
          %v2814 = vld [vmem:[#allocation15 + $0x478] sm:$0xff]
          %v2815 = vld [vmem:[#allocation15 + $0x480] sm:$0xff]
          %v2816 = vld [vmem:[#allocation15 + $0x488] sm:$0xff]
          %v2817 = vld [vmem:[#allocation15 + $0x490] sm:$0xff]
          %v2818 = vld [vmem:[#allocation15 + $0x498] sm:$0xff]
          %v2819 = vld [vmem:[#allocation15 + $0x4a0] sm:$0xff]
          %v2820 = vld [vmem:[#allocation15 + $0x4a8] sm:$0xff]
          %v2821 = vld [vmem:[#allocation15 + $0x4b0] sm:$0xff]
          %v2822 = vld [vmem:[#allocation15 + $0x4b8] sm:$0xff]
          %v2823 = vld [vmem:[#allocation15 + $0x4c0] sm:$0xff]
          %v2824 = vld [vmem:[#allocation15 + $0x4c8] sm:$0xff]
          %v2825 = vld [vmem:[#allocation15 + $0x4d0] sm:$0xff]
          %v2826 = vld [vmem:[#allocation15 + $0x4d8] sm:$0xff]
          %v2827 = vld [vmem:[#allocation15 + $0x4e0] sm:$0xff]
          %v2828 = vld [vmem:[#allocation15 + $0x4e8] sm:$0xff]
          %v2829 = vld [vmem:[#allocation15 + $0x4f0] sm:$0xff]
          %v2830 = vld [vmem:[#allocation15 + $0x4f8] sm:$0xff]
          %v2831 = vld [vmem:[#allocation15 + $0x500] sm:$0xff]
          %v2832 = vld [vmem:[#allocation15 + $0x508] sm:$0xff]
          %v2833 = vld [vmem:[#allocation15 + $0x510] sm:$0xff]
          %v2834 = vld [vmem:[#allocation15 + $0x518] sm:$0xff]
          %v2835 = vld [vmem:[#allocation15 + $0x520] sm:$0xff]
          %v2836 = vld [vmem:[#allocation15 + $0x528] sm:$0xff]
          %v2837 = vld [vmem:[#allocation15 + $0x530] sm:$0xff]
          %v2838 = vld [vmem:[#allocation15 + $0x538] sm:$0xff]
          %v2839 = vld [vmem:[#allocation15 + $0x540] sm:$0xff]
          %v2840 = vld [vmem:[#allocation15 + $0x548] sm:$0xff]
          %v2841 = vld [vmem:[#allocation15 + $0x550] sm:$0xff]
          %v2842 = vld [vmem:[#allocation15 + $0x558] sm:$0xff]
          %v2843 = vld [vmem:[#allocation15 + $0x560] sm:$0xff]
          %v2844 = vld [vmem:[#allocation15 + $0x568] sm:$0xff]
          %v2845 = vld [vmem:[#allocation15 + $0x570] sm:$0xff]
          %v2846 = vld [vmem:[#allocation15 + $0x578] sm:$0xff]
          %v2847 = vld [vmem:[#allocation15 + $0x580] sm:$0xff]
          %v2848 = vld [vmem:[#allocation15 + $0x588] sm:$0xff]
          %v2849 = vld [vmem:[#allocation15 + $0x590] sm:$0xff]
          %v2850 = vld [vmem:[#allocation15 + $0x598] sm:$0xff]
          %v2851 = vld [vmem:[#allocation15 + $0x5a0] sm:$0xff]
          %v2852 = vld [vmem:[#allocation15 + $0x5a8] sm:$0xff]
          %v2853 = vld [vmem:[#allocation15 + $0x5b0] sm:$0xff]
          %v2854 = vld [vmem:[#allocation15 + $0x5b8] sm:$0xff]
          %v2855 = vld [vmem:[#allocation15 + $0x5c0] sm:$0xff]
          %v2856 = vld [vmem:[#allocation15 + $0x5c8] sm:$0xff]
          %v2857 = vld [vmem:[#allocation15 + $0x5d0] sm:$0xff]
          %v2858 = vld [vmem:[#allocation15 + $0x5d8] sm:$0xff]
          %v2859 = vld [vmem:[#allocation15 + $0x5e0] sm:$0xff]
          %v2860 = vld [vmem:[#allocation15 + $0x5e8] sm:$0xff]
          %v2861 = vld [vmem:[#allocation15 + $0x5f0] sm:$0xff]
          %v2862 = vld [vmem:[#allocation15 + $0x5f8] sm:$0xff]
          %v2863 = vld [vmem:[#allocation15 + $0x600] sm:$0xff]
          %v2864 = vld [vmem:[#allocation15 + $0x608] sm:$0xff]
          %v2865 = vld [vmem:[#allocation15 + $0x610] sm:$0xff]
          %v2866 = vld [vmem:[#allocation15 + $0x618] sm:$0xff]
          %v2867 = vld [vmem:[#allocation15 + $0x620] sm:$0xff]
          %v2868 = vld [vmem:[#allocation15 + $0x628] sm:$0xff]
          %v2869 = vld [vmem:[#allocation15 + $0x630] sm:$0xff]
          %v2870 = vld [vmem:[#allocation15 + $0x638] sm:$0xff]
          %v2871 = vld [vmem:[#allocation15 + $0x640] sm:$0xff]
          %v2872 = vld [vmem:[#allocation15 + $0x648] sm:$0xff]
          %v2873 = vld [vmem:[#allocation15 + $0x650] sm:$0xff]
          %v2874 = vld [vmem:[#allocation15 + $0x658] sm:$0xff]
          %v2875 = vld [vmem:[#allocation15 + $0x660] sm:$0xff]
          %v2876 = vld [vmem:[#allocation15 + $0x668] sm:$0xff]
          %v2877 = vld [vmem:[#allocation15 + $0x670] sm:$0xff]
          %v2878 = vld [vmem:[#allocation15 + $0x678] sm:$0xff]
          %v2879 = vld [vmem:[#allocation15 + $0x680] sm:$0xff]
          %v2880 = vld [vmem:[#allocation15 + $0x688] sm:$0xff]
          %v2881 = vld [vmem:[#allocation15 + $0x690] sm:$0xff]
          %v2882 = vld [vmem:[#allocation15 + $0x698] sm:$0xff]
          %v2883 = vld [vmem:[#allocation15 + $0x6a0] sm:$0xff]
          %v2884 = vld [vmem:[#allocation15 + $0x6a8] sm:$0xff]
          %v2885 = vld [vmem:[#allocation15 + $0x6b0] sm:$0xff]
          %v2886 = vld [vmem:[#allocation15 + $0x6b8] sm:$0xff]
          %v2887 = vld [vmem:[#allocation15 + $0x6c0] sm:$0xff]
          %v2888 = vld [vmem:[#allocation15 + $0x6c8] sm:$0xff]
          %v2889 = vld [vmem:[#allocation15 + $0x6d0] sm:$0xff]
          %v2890 = vld [vmem:[#allocation15 + $0x6d8] sm:$0xff]
          %v2891 = vld [vmem:[#allocation15 + $0x6e0] sm:$0xff]
          %v2892 = vld [vmem:[#allocation15 + $0x6e8] sm:$0xff]
          %v2893 = vld [vmem:[#allocation15 + $0x6f0] sm:$0xff]
          %v2894 = vld [vmem:[#allocation15 + $0x6f8] sm:$0xff]
          %v2895 = vld [vmem:[#allocation15 + $0x700] sm:$0xff]
          %v2896 = vld [vmem:[#allocation15 + $0x708] sm:$0xff]
          %v2897 = vld [vmem:[#allocation15 + $0x710] sm:$0xff]
          %v2898 = vld [vmem:[#allocation15 + $0x718] sm:$0xff]
          %v2899 = vld [vmem:[#allocation15 + $0x720] sm:$0xff]
          %v2900 = vld [vmem:[#allocation15 + $0x728] sm:$0xff]
          %v2901 = vld [vmem:[#allocation15 + $0x730] sm:$0xff]
          %v2902 = vld [vmem:[#allocation15 + $0x738] sm:$0xff]
          %v2903 = vld [vmem:[#allocation15 + $0x740] sm:$0xff]
          %v2904 = vld [vmem:[#allocation15 + $0x748] sm:$0xff]
          %v2905 = vld [vmem:[#allocation15 + $0x750] sm:$0xff]
          %v2906 = vld [vmem:[#allocation15 + $0x758] sm:$0xff]
          %v2907 = vld [vmem:[#allocation15 + $0x760] sm:$0xff]
          %v2908 = vld [vmem:[#allocation15 + $0x768] sm:$0xff]
          %v2909 = vld [vmem:[#allocation15 + $0x770] sm:$0xff]
          %v2910 = vld [vmem:[#allocation15 + $0x778] sm:$0xff]
          %v2911 = vld [vmem:[#allocation15 + $0x780] sm:$0xff]
          %v2912 = vld [vmem:[#allocation15 + $0x788] sm:$0xff]
          %v2913 = vld [vmem:[#allocation15 + $0x790] sm:$0xff]
          %v2914 = vld [vmem:[#allocation15 + $0x798] sm:$0xff]
          %v2915 = vld [vmem:[#allocation15 + $0x7a0] sm:$0xff]
          %v2916 = vld [vmem:[#allocation15 + $0x7a8] sm:$0xff]
          %v2917 = vld [vmem:[#allocation15 + $0x7b0] sm:$0xff]
          %v2918 = vld [vmem:[#allocation15 + $0x7b8] sm:$0xff]
          %v2919 = vld [vmem:[#allocation15 + $0x7c0] sm:$0xff]
          %v2920 = vld [vmem:[#allocation15 + $0x7c8] sm:$0xff]
          %v2921 = vld [vmem:[#allocation15 + $0x7d0] sm:$0xff]
          %v2922 = vld [vmem:[#allocation15 + $0x7d8] sm:$0xff]
          %v2923 = vld [vmem:[#allocation15 + $0x7e0] sm:$0xff]
          %v2924 = vld [vmem:[#allocation15 + $0x7e8] sm:$0xff]
          %v2925 = vld [vmem:[#allocation15 + $0x7f0] sm:$0xff]
          %v2926 = vld [vmem:[#allocation15 + $0x7f8] sm:$0xff]
          %v2927 = vld [vmem:[#allocation15 + $0x800] sm:$0xff]
          %v2928 = vld [vmem:[#allocation15 + $0x808] sm:$0xff]
          %v2929 = vld [vmem:[#allocation15 + $0x810] sm:$0xff]
          %v2930 = vld [vmem:[#allocation15 + $0x818] sm:$0xff]
          %v2931 = vld [vmem:[#allocation15 + $0x820] sm:$0xff]
          %v2932 = vld [vmem:[#allocation15 + $0x828] sm:$0xff]
          %v2933 = vld [vmem:[#allocation15 + $0x830] sm:$0xff]
          %v2934 = vld [vmem:[#allocation15 + $0x838] sm:$0xff]
          %v2935 = vld [vmem:[#allocation15 + $0x840] sm:$0xff]
          %v2936 = vld [vmem:[#allocation15 + $0x848] sm:$0xff]
          %v2937 = vld [vmem:[#allocation15 + $0x850] sm:$0xff]
          %v2938 = vld [vmem:[#allocation15 + $0x858] sm:$0xff]
          %v2939 = vld [vmem:[#allocation15 + $0x860] sm:$0xff]
          %v2940 = vld [vmem:[#allocation15 + $0x868] sm:$0xff]
          %v2941 = vld [vmem:[#allocation15 + $0x870] sm:$0xff]
          %v2942 = vld [vmem:[#allocation15 + $0x878] sm:$0xff]
          %v2943 = vld [vmem:[#allocation15 + $0x880] sm:$0xff]
          %v2944 = vld [vmem:[#allocation15 + $0x888] sm:$0xff]
          %v2945 = vld [vmem:[#allocation15 + $0x890] sm:$0xff]
          %v2946 = vld [vmem:[#allocation15 + $0x898] sm:$0xff]
          %v2947 = vld [vmem:[#allocation15 + $0x8a0] sm:$0xff]
          %v2948 = vld [vmem:[#allocation15 + $0x8a8] sm:$0xff]
          %v2949 = vld [vmem:[#allocation15 + $0x8b0] sm:$0xff]
          %v2950 = vld [vmem:[#allocation15 + $0x8b8] sm:$0xff]
          %v2951 = vld [vmem:[#allocation15 + $0x8c0] sm:$0xff]
          %v2952 = vld [vmem:[#allocation15 + $0x8c8] sm:$0xff]
          %v2953 = vld [vmem:[#allocation15 + $0x8d0] sm:$0xff]
          %v2954 = vld [vmem:[#allocation15 + $0x8d8] sm:$0xff]
          %v2955 = vld [vmem:[#allocation15 + $0x8e0] sm:$0xff]
          %v2956 = vld [vmem:[#allocation15 + $0x8e8] sm:$0xff]
          %v2957 = vld [vmem:[#allocation15 + $0x8f0] sm:$0xff]
          %v2958 = vld [vmem:[#allocation15 + $0x8f8] sm:$0xff]
          %v2959 = vld [vmem:[#allocation16] sm:$0x3f]
          %v2961 = vlaneseq
          %v2962 = vshrl.u32 %v2961, 7
          %v2963 = vsub.s32 0, %v2962
          %v2964 = vrot.slane %v2959, %v2963
          %v2965 = vlaneseq
          %v2966 = vshrl.u32 %v2965, 7
          %v2967 = vsub.s32 1, %v2966
          %v2968 = vrot.slane %v2959, %v2967
          %v2969 = vlaneseq
          %v2970 = vshrl.u32 %v2969, 7
          %v2971 = vsub.s32 2, %v2970
          %v2972 = vrot.slane %v2959, %v2971
          %v2973 = vlaneseq
          %v2974 = vshrl.u32 %v2973, 7
          %v2975 = vsub.s32 3, %v2974
          %v2976 = vrot.slane %v2959, %v2975
          %v2977 = vlaneseq
          %v2978 = vshrl.u32 %v2977, 7
          %v2979 = vsub.s32 4, %v2978
          %v2980 = vrot.slane %v2959, %v2979
          %v2981 = vlaneseq
          %v2982 = vshrl.u32 %v2981, 7
          %v2983 = vsub.s32 5, %v2982
          %v2984 = vrot.slane %v2959, %v2983
          %v3279 = vunpack.c.l.b16 %v2671
          %v3280 = vunpack.c.h.b16 %v2671
          %v3281 = vunpack.c.l.b16 %v2672
          %v3282 = vunpack.c.h.b16 %v2672
          %v3283 = vunpack.c.l.b16 %v2673
          %v3284 = vunpack.c.h.b16 %v2673
          %v3285 = vunpack.c.l.b16 %v2674
          %v3286 = vunpack.c.h.b16 %v2674
          %v3287 = vunpack.c.l.b16 %v2675
          %v3288 = vunpack.c.h.b16 %v2675
          %v3289 = vunpack.c.l.b16 %v2676
          %v3290 = vunpack.c.h.b16 %v2676
          %v3291 = vunpack.c.l.b16 %v2677
          %v3292 = vunpack.c.h.b16 %v2677
          %v3293 = vunpack.c.l.b16 %v2678
          %v3294 = vunpack.c.h.b16 %v2678
          %v3295 = vunpack.c.l.b16 %v2679
          %v3296 = vunpack.c.h.b16 %v2679
          %v3297 = vunpack.c.l.b16 %v2680
          %v3298 = vunpack.c.h.b16 %v2680
          %v3299 = vunpack.c.l.b16 %v2681
          %v3300 = vunpack.c.h.b16 %v2681
          %v3301 = vunpack.c.l.b16 %v2682
          %v3302 = vunpack.c.h.b16 %v2682
          %v3303 = vunpack.c.l.b16 %v2683
          %v3304 = vunpack.c.h.b16 %v2683
          %v3305 = vunpack.c.l.b16 %v2684
          %v3306 = vunpack.c.h.b16 %v2684
          %v3307 = vunpack.c.l.b16 %v2685
          %v3308 = vunpack.c.h.b16 %v2685
          %v3309 = vunpack.c.l.b16 %v2686
          %v3310 = vunpack.c.h.b16 %v2686
          %v3311 = vunpack.c.l.b16 %v2687
          %v3312 = vunpack.c.h.b16 %v2687
          %v3313 = vunpack.c.l.b16 %v2688
          %v3314 = vunpack.c.h.b16 %v2688
          %v3315 = vunpack.c.l.b16 %v2689
          %v3316 = vunpack.c.h.b16 %v2689
          %v3317 = vunpack.c.l.b16 %v2690
          %v3318 = vunpack.c.h.b16 %v2690
          %v3319 = vunpack.c.l.b16 %v2691
          %v3320 = vunpack.c.h.b16 %v2691
          %v3321 = vunpack.c.l.b16 %v2692
          %v3322 = vunpack.c.h.b16 %v2692
          %v3323 = vunpack.c.l.b16 %v2693
          %v3324 = vunpack.c.h.b16 %v2693
          %v3325 = vunpack.c.l.b16 %v2694
          %v3326 = vunpack.c.h.b16 %v2694
          %v3327 = vunpack.c.l.b16 %v2695
          %v3328 = vunpack.c.h.b16 %v2695
          %v3329 = vunpack.c.l.b16 %v2696
          %v3330 = vunpack.c.h.b16 %v2696
          %v3331 = vunpack.c.l.b16 %v2697
          %v3332 = vunpack.c.h.b16 %v2697
          %v3333 = vunpack.c.l.b16 %v2698
          %v3334 = vunpack.c.h.b16 %v2698
          %v3335 = vunpack.c.l.b16 %v2699
          %v3336 = vunpack.c.h.b16 %v2699
          %v3337 = vunpack.c.l.b16 %v2700
          %v3338 = vunpack.c.h.b16 %v2700
          %v3339 = vunpack.c.l.b16 %v2701
          %v3340 = vunpack.c.h.b16 %v2701
          %v3341 = vunpack.c.l.b16 %v2702
          %v3342 = vunpack.c.h.b16 %v2702
          %v3343 = vunpack.c.l.b16 %v2703
          %v3344 = vunpack.c.h.b16 %v2703
          %v3345 = vunpack.c.l.b16 %v2704
          %v3346 = vunpack.c.h.b16 %v2704
          %v3347 = vunpack.c.l.b16 %v2705
          %v3348 = vunpack.c.h.b16 %v2705
          %v3349 = vunpack.c.l.b16 %v2706
          %v3350 = vunpack.c.h.b16 %v2706
          %v3351 = vunpack.c.l.b16 %v2707
          %v3352 = vunpack.c.h.b16 %v2707
          %v3353 = vunpack.c.l.b16 %v2708
          %v3354 = vunpack.c.h.b16 %v2708
          %v3355 = vunpack.c.l.b16 %v2709
          %v3356 = vunpack.c.h.b16 %v2709
          %v3357 = vunpack.c.l.b16 %v2710
          %v3358 = vunpack.c.h.b16 %v2710
          %v3359 = vunpack.c.l.b16 %v2711
          %v3360 = vunpack.c.h.b16 %v2711
          %v3361 = vunpack.c.l.b16 %v2712
          %v3362 = vunpack.c.h.b16 %v2712
          %v3363 = vunpack.c.l.b16 %v2713
          %v3364 = vunpack.c.h.b16 %v2713
          %v3365 = vunpack.c.l.b16 %v2714
          %v3366 = vunpack.c.h.b16 %v2714
          %v3367 = vunpack.c.l.b16 %v2715
          %v3368 = vunpack.c.h.b16 %v2715
          %v3369 = vunpack.c.l.b16 %v2716
          %v3370 = vunpack.c.h.b16 %v2716
          %v3371 = vunpack.c.l.b16 %v2717
          %v3372 = vunpack.c.h.b16 %v2717
          %v3373 = vunpack.c.l.b16 %v2718
          %v3374 = vunpack.c.h.b16 %v2718
          %v3375 = vunpack.c.l.b16 %v2719
          %v3376 = vunpack.c.h.b16 %v2719
          %v3377 = vunpack.c.l.b16 %v2720
          %v3378 = vunpack.c.h.b16 %v2720
          %v3379 = vunpack.c.l.b16 %v2721
          %v3380 = vunpack.c.h.b16 %v2721
          %v3381 = vunpack.c.l.b16 %v2722
          %v3382 = vunpack.c.h.b16 %v2722
          %v3383 = vunpack.c.l.b16 %v2723
          %v3384 = vunpack.c.h.b16 %v2723
          %v3385 = vunpack.c.l.b16 %v2724
          %v3386 = vunpack.c.h.b16 %v2724
          %v3387 = vunpack.c.l.b16 %v2725
          %v3388 = vunpack.c.h.b16 %v2725
          %v3389 = vunpack.c.l.b16 %v2726
          %v3390 = vunpack.c.h.b16 %v2726
          %v3391 = vunpack.c.l.b16 %v2727
          %v3392 = vunpack.c.h.b16 %v2727
          %v3393 = vunpack.c.l.b16 %v2728
          %v3394 = vunpack.c.h.b16 %v2728
          %v3395 = vunpack.c.l.b16 %v2729
          %v3396 = vunpack.c.h.b16 %v2729
          %v3397 = vunpack.c.l.b16 %v2730
          %v3398 = vunpack.c.h.b16 %v2730
          %v3399 = vunpack.c.l.b16 %v2731
          %v3400 = vunpack.c.h.b16 %v2731
          %v3401 = vunpack.c.l.b16 %v2732
          %v3402 = vunpack.c.h.b16 %v2732
          %v3403 = vunpack.c.l.b16 %v2733
          %v3404 = vunpack.c.h.b16 %v2733
          %v3405 = vunpack.c.l.b16 %v2734
          %v3406 = vunpack.c.h.b16 %v2734
          %v3407 = vunpack.c.l.b16 %v2735
          %v3408 = vunpack.c.h.b16 %v2735
          %v3409 = vunpack.c.l.b16 %v2736
          %v3410 = vunpack.c.h.b16 %v2736
          %v3411 = vunpack.c.l.b16 %v2737
          %v3412 = vunpack.c.h.b16 %v2737
          %v3413 = vunpack.c.l.b16 %v2738
          %v3414 = vunpack.c.h.b16 %v2738
          %v3415 = vunpack.c.l.b16 %v2739
          %v3416 = vunpack.c.h.b16 %v2739
          %v3417 = vunpack.c.l.b16 %v2740
          %v3418 = vunpack.c.h.b16 %v2740
          %v3419 = vunpack.c.l.b16 %v2741
          %v3420 = vunpack.c.h.b16 %v2741
          %v3421 = vunpack.c.l.b16 %v2742
          %v3422 = vunpack.c.h.b16 %v2742
          %v3423 = vunpack.c.l.b16 %v2743
          %v3424 = vunpack.c.h.b16 %v2743
          %v3425 = vunpack.c.l.b16 %v2744
          %v3426 = vunpack.c.h.b16 %v2744
          %v3427 = vunpack.c.l.b16 %v2745
          %v3428 = vunpack.c.h.b16 %v2745
          %v3429 = vunpack.c.l.b16 %v2746
          %v3430 = vunpack.c.h.b16 %v2746
          %v3431 = vunpack.c.l.b16 %v2747
          %v3432 = vunpack.c.h.b16 %v2747
          %v3433 = vunpack.c.l.b16 %v2748
          %v3434 = vunpack.c.h.b16 %v2748
          %v3435 = vunpack.c.l.b16 %v2749
          %v3436 = vunpack.c.h.b16 %v2749
          %v3437 = vunpack.c.l.b16 %v2750
          %v3438 = vunpack.c.h.b16 %v2750
          %v3439 = vunpack.c.l.b16 %v2751
          %v3440 = vunpack.c.h.b16 %v2751
          %v3441 = vunpack.c.l.b16 %v2752
          %v3442 = vunpack.c.h.b16 %v2752
          %v3443 = vunpack.c.l.b16 %v2753
          %v3444 = vunpack.c.h.b16 %v2753
          %v3445 = vunpack.c.l.b16 %v2754
          %v3446 = vunpack.c.h.b16 %v2754
          %v3447 = vunpack.c.l.b16 %v2755
          %v3448 = vunpack.c.h.b16 %v2755
          %v3449 = vunpack.c.l.b16 %v2756
          %v3450 = vunpack.c.h.b16 %v2756
          %v3451 = vunpack.c.l.b16 %v2757
          %v3452 = vunpack.c.h.b16 %v2757
          %v3453 = vunpack.c.l.b16 %v2758
          %v3454 = vunpack.c.h.b16 %v2758
          %v3455 = vunpack.c.l.b16 %v2759
          %v3456 = vunpack.c.h.b16 %v2759
          %v3457 = vunpack.c.l.b16 %v2760
          %v3458 = vunpack.c.h.b16 %v2760
          %v3459 = vunpack.c.l.b16 %v2761
          %v3460 = vunpack.c.h.b16 %v2761
          %v3461 = vunpack.c.l.b16 %v2762
          %v3462 = vunpack.c.h.b16 %v2762
          %v3463 = vunpack.c.l.b16 %v2763
          %v3464 = vunpack.c.h.b16 %v2763
          %v3465 = vunpack.c.l.b16 %v2764
          %v3466 = vunpack.c.h.b16 %v2764
          %v3467 = vunpack.c.l.b16 %v2765
          %v3468 = vunpack.c.h.b16 %v2765
          %v3469 = vunpack.c.l.b16 %v2766
          %v3470 = vunpack.c.h.b16 %v2766
          %v3471 = vunpack.c.l.b16 %v2767
          %v3472 = vunpack.c.h.b16 %v2767
          %v3473 = vunpack.c.l.b16 %v2768
          %v3474 = vunpack.c.h.b16 %v2768
          %v3475 = vunpack.c.l.b16 %v2769
          %v3476 = vunpack.c.h.b16 %v2769
          %v3477 = vunpack.c.l.b16 %v2770
          %v3478 = vunpack.c.h.b16 %v2770
          %v3479 = vunpack.c.l.b16 %v2771
          %v3480 = vunpack.c.h.b16 %v2771
          %v3481 = vunpack.c.l.b16 %v2772
          %v3482 = vunpack.c.h.b16 %v2772
          %v3483 = vunpack.c.l.b16 %v2773
          %v3484 = vunpack.c.h.b16 %v2773
          %v3485 = vunpack.c.l.b16 %v2774
          %v3486 = vunpack.c.h.b16 %v2774
          %v3487 = vunpack.c.l.b16 %v2775
          %v3488 = vunpack.c.h.b16 %v2775
          %v3489 = vunpack.c.l.b16 %v2776
          %v3490 = vunpack.c.h.b16 %v2776
          %v3491 = vunpack.c.l.b16 %v2777
          %v3492 = vunpack.c.h.b16 %v2777
          %v3493 = vunpack.c.l.b16 %v2778
          %v3494 = vunpack.c.h.b16 %v2778
          %v3495 = vunpack.c.l.b16 %v2779
          %v3496 = vunpack.c.h.b16 %v2779
          %v3497 = vunpack.c.l.b16 %v2780
          %v3498 = vunpack.c.h.b16 %v2780
          %v3499 = vunpack.c.l.b16 %v2781
          %v3500 = vunpack.c.h.b16 %v2781
          %v3501 = vunpack.c.l.b16 %v2782
          %v3502 = vunpack.c.h.b16 %v2782
          %v3503 = vunpack.c.l.b16 %v2783
          %v3504 = vunpack.c.h.b16 %v2783
          %v3505 = vunpack.c.l.b16 %v2784
          %v3506 = vunpack.c.h.b16 %v2784
          %v3507 = vunpack.c.l.b16 %v2785
          %v3508 = vunpack.c.h.b16 %v2785
          %v3509 = vunpack.c.l.b16 %v2786
          %v3510 = vunpack.c.h.b16 %v2786
          %v3511 = vunpack.c.l.b16 %v2787
          %v3512 = vunpack.c.h.b16 %v2787
          %v3513 = vunpack.c.l.b16 %v2788
          %v3514 = vunpack.c.h.b16 %v2788
          %v3515 = vunpack.c.l.b16 %v2789
          %v3516 = vunpack.c.h.b16 %v2789
          %v3517 = vunpack.c.l.b16 %v2790
          %v3518 = vunpack.c.h.b16 %v2790
          %v3519 = vunpack.c.l.b16 %v2791
          %v3520 = vunpack.c.h.b16 %v2791
          %v3521 = vunpack.c.l.b16 %v2792
          %v3522 = vunpack.c.h.b16 %v2792
          %v3523 = vunpack.c.l.b16 %v2793
          %v3524 = vunpack.c.h.b16 %v2793
          %v3525 = vunpack.c.l.b16 %v2794
          %v3526 = vunpack.c.h.b16 %v2794
          %v3527 = vunpack.c.l.b16 %v2795
          %v3528 = vunpack.c.h.b16 %v2795
          %v3529 = vunpack.c.l.b16 %v2796
          %v3530 = vunpack.c.h.b16 %v2796
          %v3531 = vunpack.c.l.b16 %v2797
          %v3532 = vunpack.c.h.b16 %v2797
          %v3533 = vunpack.c.l.b16 %v2798
          %v3534 = vunpack.c.h.b16 %v2798
          %v3535 = vunpack.c.l.b16 %v2799
          %v3536 = vunpack.c.h.b16 %v2799
          %v3537 = vunpack.c.l.b16 %v2800
          %v3538 = vunpack.c.h.b16 %v2800
          %v3539 = vunpack.c.l.b16 %v2801
          %v3540 = vunpack.c.h.b16 %v2801
          %v3541 = vunpack.c.l.b16 %v2802
          %v3542 = vunpack.c.h.b16 %v2802
          %v3543 = vunpack.c.l.b16 %v2803
          %v3544 = vunpack.c.h.b16 %v2803
          %v3545 = vunpack.c.l.b16 %v2804
          %v3546 = vunpack.c.h.b16 %v2804
          %v3547 = vunpack.c.l.b16 %v2805
          %v3548 = vunpack.c.h.b16 %v2805
          %v3549 = vunpack.c.l.b16 %v2806
          %v3550 = vunpack.c.h.b16 %v2806
          %v3551 = vunpack.c.l.b16 %v2807
          %v3552 = vunpack.c.h.b16 %v2807
          %v3553 = vunpack.c.l.b16 %v2808
          %v3554 = vunpack.c.h.b16 %v2808
          %v3555 = vunpack.c.l.b16 %v2809
          %v3556 = vunpack.c.h.b16 %v2809
          %v3557 = vunpack.c.l.b16 %v2810
          %v3558 = vunpack.c.h.b16 %v2810
          %v3559 = vunpack.c.l.b16 %v2811
          %v3560 = vunpack.c.h.b16 %v2811
          %v3561 = vunpack.c.l.b16 %v2812
          %v3562 = vunpack.c.h.b16 %v2812
          %v3563 = vunpack.c.l.b16 %v2813
          %v3564 = vunpack.c.h.b16 %v2813
          %v3565 = vunpack.c.l.b16 %v2814
          %v3566 = vunpack.c.h.b16 %v2814
          %v3567 = vunpack.c.l.b16 %v2815
          %v3568 = vunpack.c.h.b16 %v2815
          %v3569 = vunpack.c.l.b16 %v2816
          %v3570 = vunpack.c.h.b16 %v2816
          %v3571 = vunpack.c.l.b16 %v2817
          %v3572 = vunpack.c.h.b16 %v2817
          %v3573 = vunpack.c.l.b16 %v2818
          %v3574 = vunpack.c.h.b16 %v2818
          %v3575 = vunpack.c.l.b16 %v2819
          %v3576 = vunpack.c.h.b16 %v2819
          %v3577 = vunpack.c.l.b16 %v2820
          %v3578 = vunpack.c.h.b16 %v2820
          %v3579 = vunpack.c.l.b16 %v2821
          %v3580 = vunpack.c.h.b16 %v2821
          %v3581 = vunpack.c.l.b16 %v2822
          %v3582 = vunpack.c.h.b16 %v2822
          %v3583 = vunpack.c.l.b16 %v2823
          %v3584 = vunpack.c.h.b16 %v2823
          %v3585 = vunpack.c.l.b16 %v2824
          %v3586 = vunpack.c.h.b16 %v2824
          %v3587 = vunpack.c.l.b16 %v2825
          %v3588 = vunpack.c.h.b16 %v2825
          %v3589 = vunpack.c.l.b16 %v2826
          %v3590 = vunpack.c.h.b16 %v2826
          %v3591 = vunpack.c.l.b16 %v2827
          %v3592 = vunpack.c.h.b16 %v2827
          %v3593 = vunpack.c.l.b16 %v2828
          %v3594 = vunpack.c.h.b16 %v2828
          %v3595 = vunpack.c.l.b16 %v2829
          %v3596 = vunpack.c.h.b16 %v2829
          %v3597 = vunpack.c.l.b16 %v2830
          %v3598 = vunpack.c.h.b16 %v2830
          %v3599 = vunpack.c.l.b16 %v2831
          %v3600 = vunpack.c.h.b16 %v2831
          %v3601 = vunpack.c.l.b16 %v2832
          %v3602 = vunpack.c.h.b16 %v2832
          %v3603 = vunpack.c.l.b16 %v2833
          %v3604 = vunpack.c.h.b16 %v2833
          %v3605 = vunpack.c.l.b16 %v2834
          %v3606 = vunpack.c.h.b16 %v2834
          %v3607 = vunpack.c.l.b16 %v2835
          %v3608 = vunpack.c.h.b16 %v2835
          %v3609 = vunpack.c.l.b16 %v2836
          %v3610 = vunpack.c.h.b16 %v2836
          %v3611 = vunpack.c.l.b16 %v2837
          %v3612 = vunpack.c.h.b16 %v2837
          %v3613 = vunpack.c.l.b16 %v2838
          %v3614 = vunpack.c.h.b16 %v2838
          %v3615 = vunpack.c.l.b16 %v2839
          %v3616 = vunpack.c.h.b16 %v2839
          %v3617 = vunpack.c.l.b16 %v2840
          %v3618 = vunpack.c.h.b16 %v2840
          %v3619 = vunpack.c.l.b16 %v2841
          %v3620 = vunpack.c.h.b16 %v2841
          %v3621 = vunpack.c.l.b16 %v2842
          %v3622 = vunpack.c.h.b16 %v2842
          %v3623 = vunpack.c.l.b16 %v2843
          %v3624 = vunpack.c.h.b16 %v2843
          %v3625 = vunpack.c.l.b16 %v2844
          %v3626 = vunpack.c.h.b16 %v2844
          %v3627 = vunpack.c.l.b16 %v2845
          %v3628 = vunpack.c.h.b16 %v2845
          %v3629 = vunpack.c.l.b16 %v2846
          %v3630 = vunpack.c.h.b16 %v2846
          %v3631 = vunpack.c.l.b16 %v2847
          %v3632 = vunpack.c.h.b16 %v2847
          %v3633 = vunpack.c.l.b16 %v2848
          %v3634 = vunpack.c.h.b16 %v2848
          %v3635 = vunpack.c.l.b16 %v2849
          %v3636 = vunpack.c.h.b16 %v2849
          %v3637 = vunpack.c.l.b16 %v2850
          %v3638 = vunpack.c.h.b16 %v2850
          %v3639 = vunpack.c.l.b16 %v2851
          %v3640 = vunpack.c.h.b16 %v2851
          %v3641 = vunpack.c.l.b16 %v2852
          %v3642 = vunpack.c.h.b16 %v2852
          %v3643 = vunpack.c.l.b16 %v2853
          %v3644 = vunpack.c.h.b16 %v2853
          %v3645 = vunpack.c.l.b16 %v2854
          %v3646 = vunpack.c.h.b16 %v2854
          %v3647 = vunpack.c.l.b16 %v2855
          %v3648 = vunpack.c.h.b16 %v2855
          %v3649 = vunpack.c.l.b16 %v2856
          %v3650 = vunpack.c.h.b16 %v2856
          %v3651 = vunpack.c.l.b16 %v2857
          %v3652 = vunpack.c.h.b16 %v2857
          %v3653 = vunpack.c.l.b16 %v2858
          %v3654 = vunpack.c.h.b16 %v2858
          %v3655 = vunpack.c.l.b16 %v2859
          %v3656 = vunpack.c.h.b16 %v2859
          %v3657 = vunpack.c.l.b16 %v2860
          %v3658 = vunpack.c.h.b16 %v2860
          %v3659 = vunpack.c.l.b16 %v2861
          %v3660 = vunpack.c.h.b16 %v2861
          %v3661 = vunpack.c.l.b16 %v2862
          %v3662 = vunpack.c.h.b16 %v2862
          %v3663 = vunpack.c.l.b16 %v2863
          %v3664 = vunpack.c.h.b16 %v2863
          %v3665 = vunpack.c.l.b16 %v2864
          %v3666 = vunpack.c.h.b16 %v2864
          %v3667 = vunpack.c.l.b16 %v2865
          %v3668 = vunpack.c.h.b16 %v2865
          %v3669 = vunpack.c.l.b16 %v2866
          %v3670 = vunpack.c.h.b16 %v2866
          %v3671 = vunpack.c.l.b16 %v2867
          %v3672 = vunpack.c.h.b16 %v2867
          %v3673 = vunpack.c.l.b16 %v2868
          %v3674 = vunpack.c.h.b16 %v2868
          %v3675 = vunpack.c.l.b16 %v2869
          %v3676 = vunpack.c.h.b16 %v2869
          %v3677 = vunpack.c.l.b16 %v2870
          %v3678 = vunpack.c.h.b16 %v2870
          %v3679 = vunpack.c.l.b16 %v2871
          %v3680 = vunpack.c.h.b16 %v2871
          %v3681 = vunpack.c.l.b16 %v2872
          %v3682 = vunpack.c.h.b16 %v2872
          %v3683 = vunpack.c.l.b16 %v2873
          %v3684 = vunpack.c.h.b16 %v2873
          %v3685 = vunpack.c.l.b16 %v2874
          %v3686 = vunpack.c.h.b16 %v2874
          %v3687 = vunpack.c.l.b16 %v2875
          %v3688 = vunpack.c.h.b16 %v2875
          %v3689 = vunpack.c.l.b16 %v2876
          %v3690 = vunpack.c.h.b16 %v2876
          %v3691 = vunpack.c.l.b16 %v2877
          %v3692 = vunpack.c.h.b16 %v2877
          %v3693 = vunpack.c.l.b16 %v2878
          %v3694 = vunpack.c.h.b16 %v2878
          %v3695 = vunpack.c.l.b16 %v2879
          %v3696 = vunpack.c.h.b16 %v2879
          %v3697 = vunpack.c.l.b16 %v2880
          %v3698 = vunpack.c.h.b16 %v2880
          %v3699 = vunpack.c.l.b16 %v2881
          %v3700 = vunpack.c.h.b16 %v2881
          %v3701 = vunpack.c.l.b16 %v2882
          %v3702 = vunpack.c.h.b16 %v2882
          %v3703 = vunpack.c.l.b16 %v2883
          %v3704 = vunpack.c.h.b16 %v2883
          %v3705 = vunpack.c.l.b16 %v2884
          %v3706 = vunpack.c.h.b16 %v2884
          %v3707 = vunpack.c.l.b16 %v2885
          %v3708 = vunpack.c.h.b16 %v2885
          %v3709 = vunpack.c.l.b16 %v2886
          %v3710 = vunpack.c.h.b16 %v2886
          %v3711 = vunpack.c.l.b16 %v2887
          %v3712 = vunpack.c.h.b16 %v2887
          %v3713 = vunpack.c.l.b16 %v2888
          %v3714 = vunpack.c.h.b16 %v2888
          %v3715 = vunpack.c.l.b16 %v2889
          %v3716 = vunpack.c.h.b16 %v2889
          %v3717 = vunpack.c.l.b16 %v2890
          %v3718 = vunpack.c.h.b16 %v2890
          %v3719 = vunpack.c.l.b16 %v2891
          %v3720 = vunpack.c.h.b16 %v2891
          %v3721 = vunpack.c.l.b16 %v2892
          %v3722 = vunpack.c.h.b16 %v2892
          %v3723 = vunpack.c.l.b16 %v2893
          %v3724 = vunpack.c.h.b16 %v2893
          %v3725 = vunpack.c.l.b16 %v2894
          %v3726 = vunpack.c.h.b16 %v2894
          %v3727 = vunpack.c.l.b16 %v2895
          %v3728 = vunpack.c.h.b16 %v2895
          %v3729 = vunpack.c.l.b16 %v2896
          %v3730 = vunpack.c.h.b16 %v2896
          %v3731 = vunpack.c.l.b16 %v2897
          %v3732 = vunpack.c.h.b16 %v2897
          %v3733 = vunpack.c.l.b16 %v2898
          %v3734 = vunpack.c.h.b16 %v2898
          %v3735 = vunpack.c.l.b16 %v2899
          %v3736 = vunpack.c.h.b16 %v2899
          %v3737 = vunpack.c.l.b16 %v2900
          %v3738 = vunpack.c.h.b16 %v2900
          %v3739 = vunpack.c.l.b16 %v2901
          %v3740 = vunpack.c.h.b16 %v2901
          %v3741 = vunpack.c.l.b16 %v2902
          %v3742 = vunpack.c.h.b16 %v2902
          %v3743 = vunpack.c.l.b16 %v2903
          %v3744 = vunpack.c.h.b16 %v2903
          %v3745 = vunpack.c.l.b16 %v2904
          %v3746 = vunpack.c.h.b16 %v2904
          %v3747 = vunpack.c.l.b16 %v2905
          %v3748 = vunpack.c.h.b16 %v2905
          %v3749 = vunpack.c.l.b16 %v2906
          %v3750 = vunpack.c.h.b16 %v2906
          %v3751 = vunpack.c.l.b16 %v2907
          %v3752 = vunpack.c.h.b16 %v2907
          %v3753 = vunpack.c.l.b16 %v2908
          %v3754 = vunpack.c.h.b16 %v2908
          %v3755 = vunpack.c.l.b16 %v2909
          %v3756 = vunpack.c.h.b16 %v2909
          %v3757 = vunpack.c.l.b16 %v2910
          %v3758 = vunpack.c.h.b16 %v2910
          %v3759 = vunpack.c.l.b16 %v2911
          %v3760 = vunpack.c.h.b16 %v2911
          %v3761 = vunpack.c.l.b16 %v2912
          %v3762 = vunpack.c.h.b16 %v2912
          %v3763 = vunpack.c.l.b16 %v2913
          %v3764 = vunpack.c.h.b16 %v2913
          %v3765 = vunpack.c.l.b16 %v2914
          %v3766 = vunpack.c.h.b16 %v2914
          %v3767 = vunpack.c.l.b16 %v2915
          %v3768 = vunpack.c.h.b16 %v2915
          %v3769 = vunpack.c.l.b16 %v2916
          %v3770 = vunpack.c.h.b16 %v2916
          %v3771 = vunpack.c.l.b16 %v2917
          %v3772 = vunpack.c.h.b16 %v2917
          %v3773 = vunpack.c.l.b16 %v2918
          %v3774 = vunpack.c.h.b16 %v2918
          %v3775 = vunpack.c.l.b16 %v2919
          %v3776 = vunpack.c.h.b16 %v2919
          %v3777 = vunpack.c.l.b16 %v2920
          %v3778 = vunpack.c.h.b16 %v2920
          %v3779 = vunpack.c.l.b16 %v2921
          %v3780 = vunpack.c.h.b16 %v2921
          %v3781 = vunpack.c.l.b16 %v2922
          %v3782 = vunpack.c.h.b16 %v2922
          %v3783 = vunpack.c.l.b16 %v2923
          %v3784 = vunpack.c.h.b16 %v2923
          %v3785 = vunpack.c.l.b16 %v2924
          %v3786 = vunpack.c.h.b16 %v2924
          %v3787 = vunpack.c.l.b16 %v2925
          %v3788 = vunpack.c.h.b16 %v2925
          %v3789 = vunpack.c.l.b16 %v2926
          %v3790 = vunpack.c.h.b16 %v2926
          %v3791 = vunpack.c.l.b16 %v2927
          %v3792 = vunpack.c.h.b16 %v2927
          %v3793 = vunpack.c.l.b16 %v2928
          %v3794 = vunpack.c.h.b16 %v2928
          %v3795 = vunpack.c.l.b16 %v2929
          %v3796 = vunpack.c.h.b16 %v2929
          %v3797 = vunpack.c.l.b16 %v2930
          %v3798 = vunpack.c.h.b16 %v2930
          %v3799 = vunpack.c.l.b16 %v2931
          %v3800 = vunpack.c.h.b16 %v2931
          %v3801 = vunpack.c.l.b16 %v2932
          %v3802 = vunpack.c.h.b16 %v2932
          %v3803 = vunpack.c.l.b16 %v2933
          %v3804 = vunpack.c.h.b16 %v2933
          %v3805 = vunpack.c.l.b16 %v2934
          %v3806 = vunpack.c.h.b16 %v2934
          %v3807 = vunpack.c.l.b16 %v2935
          %v3808 = vunpack.c.h.b16 %v2935
          %v3809 = vunpack.c.l.b16 %v2936
          %v3810 = vunpack.c.h.b16 %v2936
          %v3811 = vunpack.c.l.b16 %v2937
          %v3812 = vunpack.c.h.b16 %v2937
          %v3813 = vunpack.c.l.b16 %v2938
          %v3814 = vunpack.c.h.b16 %v2938
          %v3815 = vunpack.c.l.b16 %v2939
          %v3816 = vunpack.c.h.b16 %v2939
          %v3817 = vunpack.c.l.b16 %v2940
          %v3818 = vunpack.c.h.b16 %v2940
          %v3819 = vunpack.c.l.b16 %v2941
          %v3820 = vunpack.c.h.b16 %v2941
          %v3821 = vunpack.c.l.b16 %v2942
          %v3822 = vunpack.c.h.b16 %v2942
          %v3823 = vunpack.c.l.b16 %v2943
          %v3824 = vunpack.c.h.b16 %v2943
          %v3825 = vunpack.c.l.b16 %v2944
          %v3826 = vunpack.c.h.b16 %v2944
          %v3827 = vunpack.c.l.b16 %v2945
          %v3828 = vunpack.c.h.b16 %v2945
          %v3829 = vunpack.c.l.b16 %v2946
          %v3830 = vunpack.c.h.b16 %v2946
          %v3831 = vunpack.c.l.b16 %v2947
          %v3832 = vunpack.c.h.b16 %v2947
          %v3833 = vunpack.c.l.b16 %v2948
          %v3834 = vunpack.c.h.b16 %v2948
          %v3835 = vunpack.c.l.b16 %v2949
          %v3836 = vunpack.c.h.b16 %v2949
          %v3837 = vunpack.c.l.b16 %v2950
          %v3838 = vunpack.c.h.b16 %v2950
          %v3839 = vunpack.c.l.b16 %v2951
          %v3840 = vunpack.c.h.b16 %v2951
          %v3841 = vunpack.c.l.b16 %v2952
          %v3842 = vunpack.c.h.b16 %v2952
          %v3843 = vunpack.c.l.b16 %v2953
          %v3844 = vunpack.c.h.b16 %v2953
          %v3845 = vunpack.c.l.b16 %v2954
          %v3846 = vunpack.c.h.b16 %v2954
          %v3847 = vunpack.c.l.b16 %v2955
          %v3848 = vunpack.c.h.b16 %v2955
          %v3849 = vunpack.c.l.b16 %v2956
          %v3850 = vunpack.c.h.b16 %v2956
          %v3851 = vunpack.c.l.b16 %v2957
          %v3852 = vunpack.c.h.b16 %v2957
          %v3853 = vunpack.c.l.b16 %v2958
          %v3854 = vunpack.c.h.b16 %v2958
          %v3855 = vpack.c.b16 %v3285, %v3279
          %v3856 = vpack.c.b16 %v3286, %v3280
          %v3857 = vpack.c.b16 %v3287, %v3281
          %v3858 = vpack.c.b16 %v3288, %v3282
          %v3859 = vpack.c.b16 %v3289, %v3283
          %v3860 = vpack.c.b16 %v3290, %v3284
          %v3861 = vpack.c.b16 %v3297, %v3291
          %v3862 = vpack.c.b16 %v3298, %v3292
          %v3863 = vpack.c.b16 %v3299, %v3293
          %v3864 = vpack.c.b16 %v3300, %v3294
          %v3865 = vpack.c.b16 %v3301, %v3295
          %v3866 = vpack.c.b16 %v3302, %v3296
          %v3867 = vpack.c.b16 %v3309, %v3303
          %v3868 = vpack.c.b16 %v3310, %v3304
          %v3869 = vpack.c.b16 %v3311, %v3305
          %v3870 = vpack.c.b16 %v3312, %v3306
          %v3871 = vpack.c.b16 %v3313, %v3307
          %v3872 = vpack.c.b16 %v3314, %v3308
          %v3873 = vpack.c.b16 %v3321, %v3315
          %v3874 = vpack.c.b16 %v3322, %v3316
          %v3875 = vpack.c.b16 %v3323, %v3317
          %v3876 = vpack.c.b16 %v3324, %v3318
          %v3877 = vpack.c.b16 %v3325, %v3319
          %v3878 = vpack.c.b16 %v3326, %v3320
          %v3879 = vpack.c.b16 %v3333, %v3327
          %v3880 = vpack.c.b16 %v3334, %v3328
          %v3881 = vpack.c.b16 %v3335, %v3329
          %v3882 = vpack.c.b16 %v3336, %v3330
          %v3883 = vpack.c.b16 %v3337, %v3331
          %v3884 = vpack.c.b16 %v3338, %v3332
          %v3885 = vpack.c.b16 %v3345, %v3339
          %v3886 = vpack.c.b16 %v3346, %v3340
          %v3887 = vpack.c.b16 %v3347, %v3341
          %v3888 = vpack.c.b16 %v3348, %v3342
          %v3889 = vpack.c.b16 %v3349, %v3343
          %v3890 = vpack.c.b16 %v3350, %v3344
          %v3891 = vpack.c.b16 %v3357, %v3351
          %v3892 = vpack.c.b16 %v3358, %v3352
          %v3893 = vpack.c.b16 %v3359, %v3353
          %v3894 = vpack.c.b16 %v3360, %v3354
          %v3895 = vpack.c.b16 %v3361, %v3355
          %v3896 = vpack.c.b16 %v3362, %v3356
          %v3897 = vpack.c.b16 %v3369, %v3363
          %v3898 = vpack.c.b16 %v3370, %v3364
          %v3899 = vpack.c.b16 %v3371, %v3365
          %v3900 = vpack.c.b16 %v3372, %v3366
          %v3901 = vpack.c.b16 %v3373, %v3367
          %v3902 = vpack.c.b16 %v3374, %v3368
          %v3903 = vpack.c.b16 %v3381, %v3375
          %v3904 = vpack.c.b16 %v3382, %v3376
          %v3905 = vpack.c.b16 %v3383, %v3377
          %v3906 = vpack.c.b16 %v3384, %v3378
          %v3907 = vpack.c.b16 %v3385, %v3379
          %v3908 = vpack.c.b16 %v3386, %v3380
          %v3909 = vpack.c.b16 %v3393, %v3387
          %v3910 = vpack.c.b16 %v3394, %v3388
          %v3911 = vpack.c.b16 %v3395, %v3389
          %v3912 = vpack.c.b16 %v3396, %v3390
          %v3913 = vpack.c.b16 %v3397, %v3391
          %v3914 = vpack.c.b16 %v3398, %v3392
          %v3915 = vpack.c.b16 %v3405, %v3399
          %v3916 = vpack.c.b16 %v3406, %v3400
          %v3917 = vpack.c.b16 %v3407, %v3401
          %v3918 = vpack.c.b16 %v3408, %v3402
          %v3919 = vpack.c.b16 %v3409, %v3403
          %v3920 = vpack.c.b16 %v3410, %v3404
          %v3921 = vpack.c.b16 %v3417, %v3411
          %v3922 = vpack.c.b16 %v3418, %v3412
          %v3923 = vpack.c.b16 %v3419, %v3413
          %v3924 = vpack.c.b16 %v3420, %v3414
          %v3925 = vpack.c.b16 %v3421, %v3415
          %v3926 = vpack.c.b16 %v3422, %v3416
          %v3927 = vpack.c.b16 %v3429, %v3423
          %v3928 = vpack.c.b16 %v3430, %v3424
          %v3929 = vpack.c.b16 %v3431, %v3425
          %v3930 = vpack.c.b16 %v3432, %v3426
          %v3931 = vpack.c.b16 %v3433, %v3427
          %v3932 = vpack.c.b16 %v3434, %v3428
          %v3933 = vpack.c.b16 %v3441, %v3435
          %v3934 = vpack.c.b16 %v3442, %v3436
          %v3935 = vpack.c.b16 %v3443, %v3437
          %v3936 = vpack.c.b16 %v3444, %v3438
          %v3937 = vpack.c.b16 %v3445, %v3439
          %v3938 = vpack.c.b16 %v3446, %v3440
          %v3939 = vpack.c.b16 %v3453, %v3447
          %v3940 = vpack.c.b16 %v3454, %v3448
          %v3941 = vpack.c.b16 %v3455, %v3449
          %v3942 = vpack.c.b16 %v3456, %v3450
          %v3943 = vpack.c.b16 %v3457, %v3451
          %v3944 = vpack.c.b16 %v3458, %v3452
          %v3945 = vpack.c.b16 %v3465, %v3459
          %v3946 = vpack.c.b16 %v3466, %v3460
          %v3947 = vpack.c.b16 %v3467, %v3461
          %v3948 = vpack.c.b16 %v3468, %v3462
          %v3949 = vpack.c.b16 %v3469, %v3463
          %v3950 = vpack.c.b16 %v3470, %v3464
          %v3951 = vpack.c.b16 %v3477, %v3471
          %v3952 = vpack.c.b16 %v3478, %v3472
          %v3953 = vpack.c.b16 %v3479, %v3473
          %v3954 = vpack.c.b16 %v3480, %v3474
          %v3955 = vpack.c.b16 %v3481, %v3475
          %v3956 = vpack.c.b16 %v3482, %v3476
          %v3957 = vpack.c.b16 %v3489, %v3483
          %v3958 = vpack.c.b16 %v3490, %v3484
          %v3959 = vpack.c.b16 %v3491, %v3485
          %v3960 = vpack.c.b16 %v3492, %v3486
          %v3961 = vpack.c.b16 %v3493, %v3487
          %v3962 = vpack.c.b16 %v3494, %v3488
          %v3963 = vpack.c.b16 %v3501, %v3495
          %v3964 = vpack.c.b16 %v3502, %v3496
          %v3965 = vpack.c.b16 %v3503, %v3497
          %v3966 = vpack.c.b16 %v3504, %v3498
          %v3967 = vpack.c.b16 %v3505, %v3499
          %v3968 = vpack.c.b16 %v3506, %v3500
          %v3969 = vpack.c.b16 %v3513, %v3507
          %v3970 = vpack.c.b16 %v3514, %v3508
          %v3971 = vpack.c.b16 %v3515, %v3509
          %v3972 = vpack.c.b16 %v3516, %v3510
          %v3973 = vpack.c.b16 %v3517, %v3511
          %v3974 = vpack.c.b16 %v3518, %v3512
          %v3975 = vpack.c.b16 %v3525, %v3519
          %v3976 = vpack.c.b16 %v3526, %v3520
          %v3977 = vpack.c.b16 %v3527, %v3521
          %v3978 = vpack.c.b16 %v3528, %v3522
          %v3979 = vpack.c.b16 %v3529, %v3523
          %v3980 = vpack.c.b16 %v3530, %v3524
          %v3981 = vpack.c.b16 %v3537, %v3531
          %v3982 = vpack.c.b16 %v3538, %v3532
          %v3983 = vpack.c.b16 %v3539, %v3533
          %v3984 = vpack.c.b16 %v3540, %v3534
          %v3985 = vpack.c.b16 %v3541, %v3535
          %v3986 = vpack.c.b16 %v3542, %v3536
          %v3987 = vpack.c.b16 %v3549, %v3543
          %v3988 = vpack.c.b16 %v3550, %v3544
          %v3989 = vpack.c.b16 %v3551, %v3545
          %v3990 = vpack.c.b16 %v3552, %v3546
          %v3991 = vpack.c.b16 %v3553, %v3547
          %v3992 = vpack.c.b16 %v3554, %v3548
          %v3993 = vpack.c.b16 %v3561, %v3555
          %v3994 = vpack.c.b16 %v3562, %v3556
          %v3995 = vpack.c.b16 %v3563, %v3557
          %v3996 = vpack.c.b16 %v3564, %v3558
          %v3997 = vpack.c.b16 %v3565, %v3559
          %v3998 = vpack.c.b16 %v3566, %v3560
          %v3999 = vpack.c.b16 %v3573, %v3567
          %v4000 = vpack.c.b16 %v3574, %v3568
          %v4001 = vpack.c.b16 %v3575, %v3569
          %v4002 = vpack.c.b16 %v3576, %v3570
          %v4003 = vpack.c.b16 %v3577, %v3571
          %v4004 = vpack.c.b16 %v3578, %v3572
          %v4005 = vpack.c.b16 %v3585, %v3579
          %v4006 = vpack.c.b16 %v3586, %v3580
          %v4007 = vpack.c.b16 %v3587, %v3581
          %v4008 = vpack.c.b16 %v3588, %v3582
          %v4009 = vpack.c.b16 %v3589, %v3583
          %v4010 = vpack.c.b16 %v3590, %v3584
          %v4011 = vpack.c.b16 %v3597, %v3591
          %v4012 = vpack.c.b16 %v3598, %v3592
          %v4013 = vpack.c.b16 %v3599, %v3593
          %v4014 = vpack.c.b16 %v3600, %v3594
          %v4015 = vpack.c.b16 %v3601, %v3595
          %v4016 = vpack.c.b16 %v3602, %v3596
          %v4017 = vpack.c.b16 %v3609, %v3603
          %v4018 = vpack.c.b16 %v3610, %v3604
          %v4019 = vpack.c.b16 %v3611, %v3605
          %v4020 = vpack.c.b16 %v3612, %v3606
          %v4021 = vpack.c.b16 %v3613, %v3607
          %v4022 = vpack.c.b16 %v3614, %v3608
          %v4023 = vpack.c.b16 %v3621, %v3615
          %v4024 = vpack.c.b16 %v3622, %v3616
          %v4025 = vpack.c.b16 %v3623, %v3617
          %v4026 = vpack.c.b16 %v3624, %v3618
          %v4027 = vpack.c.b16 %v3625, %v3619
          %v4028 = vpack.c.b16 %v3626, %v3620
          %v4029 = vpack.c.b16 %v3633, %v3627
          %v4030 = vpack.c.b16 %v3634, %v3628
          %v4031 = vpack.c.b16 %v3635, %v3629
          %v4032 = vpack.c.b16 %v3636, %v3630
          %v4033 = vpack.c.b16 %v3637, %v3631
          %v4034 = vpack.c.b16 %v3638, %v3632
          %v4035 = vpack.c.b16 %v3645, %v3639
          %v4036 = vpack.c.b16 %v3646, %v3640
          %v4037 = vpack.c.b16 %v3647, %v3641
          %v4038 = vpack.c.b16 %v3648, %v3642
          %v4039 = vpack.c.b16 %v3649, %v3643
          %v4040 = vpack.c.b16 %v3650, %v3644
          %v4041 = vpack.c.b16 %v3657, %v3651
          %v4042 = vpack.c.b16 %v3658, %v3652
          %v4043 = vpack.c.b16 %v3659, %v3653
          %v4044 = vpack.c.b16 %v3660, %v3654
          %v4045 = vpack.c.b16 %v3661, %v3655
          %v4046 = vpack.c.b16 %v3662, %v3656
          %v4047 = vpack.c.b16 %v3669, %v3663
          %v4048 = vpack.c.b16 %v3670, %v3664
          %v4049 = vpack.c.b16 %v3671, %v3665
          %v4050 = vpack.c.b16 %v3672, %v3666
          %v4051 = vpack.c.b16 %v3673, %v3667
          %v4052 = vpack.c.b16 %v3674, %v3668
          %v4053 = vpack.c.b16 %v3681, %v3675
          %v4054 = vpack.c.b16 %v3682, %v3676
          %v4055 = vpack.c.b16 %v3683, %v3677
          %v4056 = vpack.c.b16 %v3684, %v3678
          %v4057 = vpack.c.b16 %v3685, %v3679
          %v4058 = vpack.c.b16 %v3686, %v3680
          %v4059 = vpack.c.b16 %v3693, %v3687
          %v4060 = vpack.c.b16 %v3694, %v3688
          %v4061 = vpack.c.b16 %v3695, %v3689
          %v4062 = vpack.c.b16 %v3696, %v3690
          %v4063 = vpack.c.b16 %v3697, %v3691
          %v4064 = vpack.c.b16 %v3698, %v3692
          %v4065 = vpack.c.b16 %v3705, %v3699
          %v4066 = vpack.c.b16 %v3706, %v3700
          %v4067 = vpack.c.b16 %v3707, %v3701
          %v4068 = vpack.c.b16 %v3708, %v3702
          %v4069 = vpack.c.b16 %v3709, %v3703
          %v4070 = vpack.c.b16 %v3710, %v3704
          %v4071 = vpack.c.b16 %v3717, %v3711
          %v4072 = vpack.c.b16 %v3718, %v3712
          %v4073 = vpack.c.b16 %v3719, %v3713
          %v4074 = vpack.c.b16 %v3720, %v3714
          %v4075 = vpack.c.b16 %v3721, %v3715
          %v4076 = vpack.c.b16 %v3722, %v3716
          %v4077 = vpack.c.b16 %v3729, %v3723
          %v4078 = vpack.c.b16 %v3730, %v3724
          %v4079 = vpack.c.b16 %v3731, %v3725
          %v4080 = vpack.c.b16 %v3732, %v3726
          %v4081 = vpack.c.b16 %v3733, %v3727
          %v4082 = vpack.c.b16 %v3734, %v3728
          %v4083 = vpack.c.b16 %v3741, %v3735
          %v4084 = vpack.c.b16 %v3742, %v3736
          %v4085 = vpack.c.b16 %v3743, %v3737
          %v4086 = vpack.c.b16 %v3744, %v3738
          %v4087 = vpack.c.b16 %v3745, %v3739
          %v4088 = vpack.c.b16 %v3746, %v3740
          %v4089 = vpack.c.b16 %v3753, %v3747
          %v4090 = vpack.c.b16 %v3754, %v3748
          %v4091 = vpack.c.b16 %v3755, %v3749
          %v4092 = vpack.c.b16 %v3756, %v3750
          %v4093 = vpack.c.b16 %v3757, %v3751
          %v4094 = vpack.c.b16 %v3758, %v3752
          %v4095 = vpack.c.b16 %v3765, %v3759
          %v4096 = vpack.c.b16 %v3766, %v3760
          %v4097 = vpack.c.b16 %v3767, %v3761
          %v4098 = vpack.c.b16 %v3768, %v3762
          %v4099 = vpack.c.b16 %v3769, %v3763
          %v4100 = vpack.c.b16 %v3770, %v3764
          %v4101 = vpack.c.b16 %v3777, %v3771
          %v4102 = vpack.c.b16 %v3778, %v3772
          %v4103 = vpack.c.b16 %v3779, %v3773
          %v4104 = vpack.c.b16 %v3780, %v3774
          %v4105 = vpack.c.b16 %v3781, %v3775
          %v4106 = vpack.c.b16 %v3782, %v3776
          %v4107 = vpack.c.b16 %v3789, %v3783
          %v4108 = vpack.c.b16 %v3790, %v3784
          %v4109 = vpack.c.b16 %v3791, %v3785
          %v4110 = vpack.c.b16 %v3792, %v3786
          %v4111 = vpack.c.b16 %v3793, %v3787
          %v4112 = vpack.c.b16 %v3794, %v3788
          %v4113 = vpack.c.b16 %v3801, %v3795
          %v4114 = vpack.c.b16 %v3802, %v3796
          %v4115 = vpack.c.b16 %v3803, %v3797
          %v4116 = vpack.c.b16 %v3804, %v3798
          %v4117 = vpack.c.b16 %v3805, %v3799
          %v4118 = vpack.c.b16 %v3806, %v3800
          %v4119 = vpack.c.b16 %v3813, %v3807
          %v4120 = vpack.c.b16 %v3814, %v3808
          %v4121 = vpack.c.b16 %v3815, %v3809
          %v4122 = vpack.c.b16 %v3816, %v3810
          %v4123 = vpack.c.b16 %v3817, %v3811
          %v4124 = vpack.c.b16 %v3818, %v3812
          %v4125 = vpack.c.b16 %v3825, %v3819
          %v4126 = vpack.c.b16 %v3826, %v3820
          %v4127 = vpack.c.b16 %v3827, %v3821
          %v4128 = vpack.c.b16 %v3828, %v3822
          %v4129 = vpack.c.b16 %v3829, %v3823
          %v4130 = vpack.c.b16 %v3830, %v3824
          %v4131 = vpack.c.b16 %v3837, %v3831
          %v4132 = vpack.c.b16 %v3838, %v3832
          %v4133 = vpack.c.b16 %v3839, %v3833
          %v4134 = vpack.c.b16 %v3840, %v3834
          %v4135 = vpack.c.b16 %v3841, %v3835
          %v4136 = vpack.c.b16 %v3842, %v3836
          %v4137 = vpack.c.b16 %v3849, %v3843
          %v4138 = vpack.c.b16 %v3850, %v3844
          %v4139 = vpack.c.b16 %v3851, %v3845
          %v4140 = vpack.c.b16 %v3852, %v3846
          %v4141 = vpack.c.b16 %v3853, %v3847
          %v4142 = vpack.c.b16 %v3854, %v3848
          %4431 = vmatprep.subr.bf16.mxu0 %v3856
          %4432 = vmatpush1.bf16.msra.mxu0 %v3855
          %4433 = vmatprep.subr.bf16.mxu0 %v3862
          %4434 = vmatpush1.bf16.msra.mxu0 %v3861
          %4435 = vmatprep.subr.bf16.mxu0 %v3868
          %4436 = vmatpush1.bf16.msra.mxu0 %v3867
          %4437 = vmatprep.subr.bf16.mxu0 %v3874
          %4438 = vmatpush1.bf16.msra.mxu0 %v3873
          %4439 = vmatprep.subr.bf16.mxu0 %v3880
          %4440 = vmatpush1.bf16.msra.mxu0 %v3879
          %4441 = vmatprep.subr.bf16.mxu0 %v3886
          %4442 = vmatpush1.bf16.msra.mxu0 %v3885
          %4443 = vmatprep.subr.bf16.mxu0 %v3892
          %4444 = vmatpush1.bf16.msra.mxu0 %v3891
          %4445 = vmatprep.subr.bf16.mxu0 %v3898
          %4446 = vmatpush1.bf16.msra.mxu0 %v3897
          %4447 = vmatprep.subr.bf16.mxu0 %v3904
          %4448 = vmatpush1.bf16.msra.mxu0 %v3903
          %4449 = vmatprep.subr.bf16.mxu0 %v3910
          %4450 = vmatpush1.bf16.msra.mxu0 %v3909
          %4451 = vmatprep.subr.bf16.mxu0 %v3916
          %4452 = vmatpush1.bf16.msra.mxu0 %v3915
          %4453 = vmatprep.subr.bf16.mxu0 %v3922
          %4454 = vmatpush1.bf16.msra.mxu0 %v3921
          %4455 = vmatprep.subr.bf16.mxu0 %v3928
          %4456 = vmatpush1.bf16.msra.mxu0 %v3927
          %4457 = vmatprep.subr.bf16.mxu0 %v3934
          %4458 = vmatpush1.bf16.msra.mxu0 %v3933
          %4459 = vmatprep.subr.bf16.mxu0 %v3940
          %4460 = vmatpush1.bf16.msra.mxu0 %v3939
          %4461 = vmatprep.subr.bf16.mxu0 %v3946
          %4462 = vmatpush1.bf16.msra.mxu0 %v3945
          %4463 = vmatprep.mubr.bf16.mxu0 %v531
          %4464 = vmatmul.mubr.bf16.gmra.mrb[0].mxu0 %v530
          %v4465 = vpop.f32.mrb[0].mxu0
          %v4466 = vadd.f32 %v2964, %v4465
          %v4467 = vpop.f32.mrb[0].mxu0
          %v4468 = vadd.f32 %v2968, %v4467
          %v4469 = vpop.f32.mrb[0].mxu0
          %v4470 = vpop.f32.mrb[0].mxu0
          %4471 = vdwg.mxu0
          %4472 = vmatprep.subr.bf16.mxu0 %v3952
          %4473 = vmatpush1.bf16.msra.mxu0 %v3951
          %4474 = vmatprep.subr.bf16.mxu0 %v3958
          %4475 = vmatpush1.bf16.msra.mxu0 %v3957
          %4476 = vmatprep.subr.bf16.mxu0 %v3964
          %4477 = vmatpush1.bf16.msra.mxu0 %v3963
          %4478 = vmatprep.subr.bf16.mxu0 %v3970
          %4479 = vmatpush1.bf16.msra.mxu0 %v3969
          %4480 = vmatprep.subr.bf16.mxu0 %v3976
          %4481 = vmatpush1.bf16.msra.mxu0 %v3975
          %4482 = vmatprep.subr.bf16.mxu0 %v3982
          %4483 = vmatpush1.bf16.msra.mxu0 %v3981
          %4484 = vmatprep.subr.bf16.mxu0 %v3988
          %4485 = vmatpush1.bf16.msra.mxu0 %v3987
          %4486 = vmatprep.subr.bf16.mxu0 %v3994
          %4487 = vmatpush1.bf16.msra.mxu0 %v3993
          %4488 = vmatprep.subr.bf16.mxu0 %v4000
          %4489 = vmatpush1.bf16.msra.mxu0 %v3999
          %4490 = vmatprep.subr.bf16.mxu0 %v4006
          %4491 = vmatpush1.bf16.msra.mxu0 %v4005
          %4492 = vmatprep.subr.bf16.mxu0 %v4012
          %4493 = vmatpush1.bf16.msra.mxu0 %v4011
          %4494 = vmatprep.subr.bf16.mxu0 %v4018
          %4495 = vmatpush1.bf16.msra.mxu0 %v4017
          %4496 = vmatprep.subr.bf16.mxu0 %v4024
          %4497 = vmatpush1.bf16.msra.mxu0 %v4023
          %4498 = vmatprep.subr.bf16.mxu0 %v4030
          %4499 = vmatpush1.bf16.msra.mxu0 %v4029
          %4500 = vmatprep.subr.bf16.mxu0 %v4036
          %4501 = vmatpush1.bf16.msra.mxu0 %v4035
          %4502 = vmatprep.subr.bf16.mxu0 %v4042
          %4503 = vmatpush1.bf16.msra.mxu0 %v4041
          %4504 = vmatprep.mubr.bf16.mxu0 %v533
          %4505 = vmatmul.mubr.bf16.gmra.mrb[0].mxu0 %v532
          %v4506 = vpop.f32.mrb[0].mxu0
          %v4507 = vadd.f32 %v4466, %v4506
          %v4508 = vpop.f32.mrb[0].mxu0
          %v4509 = vadd.f32 %v4468, %v4508
          %v4510 = vpop.f32.mrb[0].mxu0
          %v4511 = vpop.f32.mrb[0].mxu0
          %4512 = vdwg.mxu0
          %4513 = vmatprep.subr.bf16.mxu0 %v4048
          %4514 = vmatpush1.bf16.msra.mxu0 %v4047
          %4515 = vmatprep.subr.bf16.mxu0 %v4054
          %4516 = vmatpush1.bf16.msra.mxu0 %v4053
          %4517 = vmatprep.subr.bf16.mxu0 %v4060
          %4518 = vmatpush1.bf16.msra.mxu0 %v4059
          %4519 = vmatprep.subr.bf16.mxu0 %v4066
          %4520 = vmatpush1.bf16.msra.mxu0 %v4065
          %4521 = vmatprep.subr.bf16.mxu0 %v4072
          %4522 = vmatpush1.bf16.msra.mxu0 %v4071
          %4523 = vmatprep.subr.bf16.mxu0 %v4078
          %4524 = vmatpush1.bf16.msra.mxu0 %v4077
          %4525 = vmatprep.subr.bf16.mxu0 %v4084
          %4526 = vmatpush1.bf16.msra.mxu0 %v4083
          %4527 = vmatprep.subr.bf16.mxu0 %v4090
          %4528 = vmatpush1.bf16.msra.mxu0 %v4089
          %4529 = vmatprep.subr.bf16.mxu0 %v4096
          %4530 = vmatpush1.bf16.msra.mxu0 %v4095
          %4531 = vmatprep.subr.bf16.mxu0 %v4102
          %4532 = vmatpush1.bf16.msra.mxu0 %v4101
          %4533 = vmatprep.subr.bf16.mxu0 %v4108
          %4534 = vmatpush1.bf16.msra.mxu0 %v4107
          %4535 = vmatprep.subr.bf16.mxu0 %v4114
          %4536 = vmatpush1.bf16.msra.mxu0 %v4113
          %4537 = vmatprep.subr.bf16.mxu0 %v4120
          %4538 = vmatpush1.bf16.msra.mxu0 %v4119
          %4539 = vmatprep.subr.bf16.mxu0 %v4126
          %4540 = vmatpush1.bf16.msra.mxu0 %v4125
          %4541 = vmatprep.subr.bf16.mxu0 %v4132
          %4542 = vmatpush1.bf16.msra.mxu0 %v4131
          %4543 = vmatprep.subr.bf16.mxu0 %v4138
          %4544 = vmatpush1.bf16.msra.mxu0 %v4137
          %4545 = vmatprep.mubr.bf16.mxu0 %v535
          %4546 = vmatmul.mubr.bf16.gmra.mrb[0].mxu0 %v534
          %v4547 = vpop.f32.mrb[0].mxu0
          %v4548 = vadd.f32 %v4507, %v4547
          %v4549 = vpop.f32.mrb[0].mxu0
          %v4550 = vadd.f32 %v4509, %v4549
          %v4551 = vpop.f32.mrb[0].mxu0
          %v4552 = vpop.f32.mrb[0].mxu0
          %4553 = vdwg.mxu0
          %4554 = vmatprep.subr.bf16.mxu0 %v3858
          %4555 = vmatpush1.bf16.msra.mxu0 %v3857
          %4556 = vmatprep.subr.bf16.mxu0 %v3864
          %4557 = vmatpush1.bf16.msra.mxu0 %v3863
          %4558 = vmatprep.subr.bf16.mxu0 %v3870
          %4559 = vmatpush1.bf16.msra.mxu0 %v3869
          %4560 = vmatprep.subr.bf16.mxu0 %v3876
          %4561 = vmatpush1.bf16.msra.mxu0 %v3875
          %4562 = vmatprep.subr.bf16.mxu0 %v3882
          %4563 = vmatpush1.bf16.msra.mxu0 %v3881
          %4564 = vmatprep.subr.bf16.mxu0 %v3888
          %4565 = vmatpush1.bf16.msra.mxu0 %v3887
          %4566 = vmatprep.subr.bf16.mxu0 %v3894
          %4567 = vmatpush1.bf16.msra.mxu0 %v3893
          %4568 = vmatprep.subr.bf16.mxu0 %v3900
          %4569 = vmatpush1.bf16.msra.mxu0 %v3899
          %4570 = vmatprep.subr.bf16.mxu0 %v3906
          %4571 = vmatpush1.bf16.msra.mxu0 %v3905
          %4572 = vmatprep.subr.bf16.mxu0 %v3912
          %4573 = vmatpush1.bf16.msra.mxu0 %v3911
          %4574 = vmatprep.subr.bf16.mxu0 %v3918
          %4575 = vmatpush1.bf16.msra.mxu0 %v3917
          %4576 = vmatprep.subr.bf16.mxu0 %v3924
          %4577 = vmatpush1.bf16.msra.mxu0 %v3923
          %4578 = vmatprep.subr.bf16.mxu0 %v3930
          %4579 = vmatpush1.bf16.msra.mxu0 %v3929
          %4580 = vmatprep.subr.bf16.mxu0 %v3936
          %4581 = vmatpush1.bf16.msra.mxu0 %v3935
          %4582 = vmatprep.subr.bf16.mxu0 %v3942
          %4583 = vmatpush1.bf16.msra.mxu0 %v3941
          %4584 = vmatprep.subr.bf16.mxu0 %v3948
          %4585 = vmatpush1.bf16.msra.mxu0 %v3947
          %4586 = vmatprep.mubr.bf16.mxu0 %v531
          %4587 = vmatmul.mubr.bf16.gmra.mrb[0].mxu0 %v530
          %v4588 = vpop.f32.mrb[0].mxu0
          %v4589 = vadd.f32 %v2972, %v4588
          %v4590 = vpop.f32.mrb[0].mxu0
          %v4591 = vadd.f32 %v2976, %v4590
          %v4592 = vpop.f32.mrb[0].mxu0
          %v4593 = vpop.f32.mrb[0].mxu0
          %4594 = vdwg.mxu0
          %4595 = vmatprep.subr.bf16.mxu0 %v3954
          %4596 = vmatpush1.bf16.msra.mxu0 %v3953
          %4597 = vmatprep.subr.bf16.mxu0 %v3960
          %4598 = vmatpush1.bf16.msra.mxu0 %v3959
          %4599 = vmatprep.subr.bf16.mxu0 %v3966
          %4600 = vmatpush1.bf16.msra.mxu0 %v3965
          %4601 = vmatprep.subr.bf16.mxu0 %v3972
          %4602 = vmatpush1.bf16.msra.mxu0 %v3971
          %4603 = vmatprep.subr.bf16.mxu0 %v3978
          %4604 = vmatpush1.bf16.msra.mxu0 %v3977
          %4605 = vmatprep.subr.bf16.mxu0 %v3984
          %4606 = vmatpush1.bf16.msra.mxu0 %v3983
          %4607 = vmatprep.subr.bf16.mxu0 %v3990
          %4608 = vmatpush1.bf16.msra.mxu0 %v3989
          %4609 = vmatprep.subr.bf16.mxu0 %v3996
          %4610 = vmatpush1.bf16.msra.mxu0 %v3995
          %4611 = vmatprep.subr.bf16.mxu0 %v4002
          %4612 = vmatpush1.bf16.msra.mxu0 %v4001
          %4613 = vmatprep.subr.bf16.mxu0 %v4008
          %4614 = vmatpush1.bf16.msra.mxu0 %v4007
          %4615 = vmatprep.subr.bf16.mxu0 %v4014
          %4616 = vmatpush1.bf16.msra.mxu0 %v4013
          %4617 = vmatprep.subr.bf16.mxu0 %v4020
          %4618 = vmatpush1.bf16.msra.mxu0 %v4019
          %4619 = vmatprep.subr.bf16.mxu0 %v4026
          %4620 = vmatpush1.bf16.msra.mxu0 %v4025
          %4621 = vmatprep.subr.bf16.mxu0 %v4032
          %4622 = vmatpush1.bf16.msra.mxu0 %v4031
          %4623 = vmatprep.subr.bf16.mxu0 %v4038
          %4624 = vmatpush1.bf16.msra.mxu0 %v4037
          %4625 = vmatprep.subr.bf16.mxu0 %v4044
          %4626 = vmatpush1.bf16.msra.mxu0 %v4043
          %4627 = vmatprep.mubr.bf16.mxu0 %v533
          %4628 = vmatmul.mubr.bf16.gmra.mrb[0].mxu0 %v532
          %v4629 = vpop.f32.mrb[0].mxu0
          %v4630 = vadd.f32 %v4589, %v4629
          %v4631 = vpop.f32.mrb[0].mxu0
          %v4632 = vadd.f32 %v4591, %v4631
          %v4633 = vpop.f32.mrb[0].mxu0
          %v4634 = vpop.f32.mrb[0].mxu0
          %4635 = vdwg.mxu0
          %4636 = vmatprep.subr.bf16.mxu0 %v4050
          %4637 = vmatpush1.bf16.msra.mxu0 %v4049
          %4638 = vmatprep.subr.bf16.mxu0 %v4056
          %4639 = vmatpush1.bf16.msra.mxu0 %v4055
          %4640 = vmatprep.subr.bf16.mxu0 %v4062
          %4641 = vmatpush1.bf16.msra.mxu0 %v4061
          %4642 = vmatprep.subr.bf16.mxu0 %v4068
          %4643 = vmatpush1.bf16.msra.mxu0 %v4067
          %4644 = vmatprep.subr.bf16.mxu0 %v4074
          %4645 = vmatpush1.bf16.msra.mxu0 %v4073
          %4646 = vmatprep.subr.bf16.mxu0 %v4080
          %4647 = vmatpush1.bf16.msra.mxu0 %v4079
          %4648 = vmatprep.subr.bf16.mxu0 %v4086
          %4649 = vmatpush1.bf16.msra.mxu0 %v4085
          %4650 = vmatprep.subr.bf16.mxu0 %v4092
          %4651 = vmatpush1.bf16.msra.mxu0 %v4091
          %4652 = vmatprep.subr.bf16.mxu0 %v4098
          %4653 = vmatpush1.bf16.msra.mxu0 %v4097
          %4654 = vmatprep.subr.bf16.mxu0 %v4104
          %4655 = vmatpush1.bf16.msra.mxu0 %v4103
          %4656 = vmatprep.subr.bf16.mxu0 %v4110
          %4657 = vmatpush1.bf16.msra.mxu0 %v4109
          %4658 = vmatprep.subr.bf16.mxu0 %v4116
          %4659 = vmatpush1.bf16.msra.mxu0 %v4115
          %4660 = vmatprep.subr.bf16.mxu0 %v4122
          %4661 = vmatpush1.bf16.msra.mxu0 %v4121
          %4662 = vmatprep.subr.bf16.mxu0 %v4128
          %4663 = vmatpush1.bf16.msra.mxu0 %v4127
          %4664 = vmatprep.subr.bf16.mxu0 %v4134
          %4665 = vmatpush1.bf16.msra.mxu0 %v4133
          %4666 = vmatprep.subr.bf16.mxu0 %v4140
          %4667 = vmatpush1.bf16.msra.mxu0 %v4139
          %4668 = vmatprep.mubr.bf16.mxu0 %v535
          %4669 = vmatmul.mubr.bf16.gmra.mrb[0].mxu0 %v534
          %v4670 = vpop.f32.mrb[0].mxu0
          %v4671 = vadd.f32 %v4630, %v4670
          %v4672 = vpop.f32.mrb[0].mxu0
          %v4673 = vadd.f32 %v4632, %v4672
          %v4674 = vpop.f32.mrb[0].mxu0
          %v4675 = vpop.f32.mrb[0].mxu0
          %4676 = vdwg.mxu0
          %4677 = vmatprep.subr.bf16.mxu0 %v3860
          %4678 = vmatpush1.bf16.msra.mxu0 %v3859
          %4679 = vmatprep.subr.bf16.mxu0 %v3866
          %4680 = vmatpush1.bf16.msra.mxu0 %v3865
          %4681 = vmatprep.subr.bf16.mxu0 %v3872
          %4682 = vmatpush1.bf16.msra.mxu0 %v3871
          %4683 = vmatprep.subr.bf16.mxu0 %v3878
          %4684 = vmatpush1.bf16.msra.mxu0 %v3877
          %4685 = vmatprep.subr.bf16.mxu0 %v3884
          %4686 = vmatpush1.bf16.msra.mxu0 %v3883
          %4687 = vmatprep.subr.bf16.mxu0 %v3890
          %4688 = vmatpush1.bf16.msra.mxu0 %v3889
          %4689 = vmatprep.subr.bf16.mxu0 %v3896
          %4690 = vmatpush1.bf16.msra.mxu0 %v3895
          %4691 = vmatprep.subr.bf16.mxu0 %v3902
          %4692 = vmatpush1.bf16.msra.mxu0 %v3901
          %4693 = vmatprep.subr.bf16.mxu0 %v3908
          %4694 = vmatpush1.bf16.msra.mxu0 %v3907
          %4695 = vmatprep.subr.bf16.mxu0 %v3914
          %4696 = vmatpush1.bf16.msra.mxu0 %v3913
          %4697 = vmatprep.subr.bf16.mxu0 %v3920
          %4698 = vmatpush1.bf16.msra.mxu0 %v3919
          %4699 = vmatprep.subr.bf16.mxu0 %v3926
          %4700 = vmatpush1.bf16.msra.mxu0 %v3925
          %4701 = vmatprep.subr.bf16.mxu0 %v3932
          %4702 = vmatpush1.bf16.msra.mxu0 %v3931
          %4703 = vmatprep.subr.bf16.mxu0 %v3938
          %4704 = vmatpush1.bf16.msra.mxu0 %v3937
          %4705 = vmatprep.subr.bf16.mxu0 %v3944
          %4706 = vmatpush1.bf16.msra.mxu0 %v3943
          %4707 = vmatprep.subr.bf16.mxu0 %v3950
          %4708 = vmatpush1.bf16.msra.mxu0 %v3949
          %4709 = vmatprep.mubr.bf16.mxu0 %v531
          %4710 = vmatmul.mubr.bf16.gmra.mrb[0].mxu0 %v530
          %v4711 = vpop.f32.mrb[0].mxu0
          %v4712 = vadd.f32 %v2980, %v4711
          %v4713 = vpop.f32.mrb[0].mxu0
          %v4714 = vadd.f32 %v2984, %v4713
          %v4715 = vpop.f32.mrb[0].mxu0
          %v4716 = vpop.f32.mrb[0].mxu0
          %4717 = vdwg.mxu0
          %4718 = vmatprep.subr.bf16.mxu0 %v3956
          %4719 = vmatpush1.bf16.msra.mxu0 %v3955
          %4720 = vmatprep.subr.bf16.mxu0 %v3962
          %4721 = vmatpush1.bf16.msra.mxu0 %v3961
          %4722 = vmatprep.subr.bf16.mxu0 %v3968
          %4723 = vmatpush1.bf16.msra.mxu0 %v3967
          %4724 = vmatprep.subr.bf16.mxu0 %v3974
          %4725 = vmatpush1.bf16.msra.mxu0 %v3973
          %4726 = vmatprep.subr.bf16.mxu0 %v3980
          %4727 = vmatpush1.bf16.msra.mxu0 %v3979
          %4728 = vmatprep.subr.bf16.mxu0 %v3986
          %4729 = vmatpush1.bf16.msra.mxu0 %v3985
          %4730 = vmatprep.subr.bf16.mxu0 %v3992
          %4731 = vmatpush1.bf16.msra.mxu0 %v3991
          %4732 = vmatprep.subr.bf16.mxu0 %v3998
          %4733 = vmatpush1.bf16.msra.mxu0 %v3997
          %4734 = vmatprep.subr.bf16.mxu0 %v4004
          %4735 = vmatpush1.bf16.msra.mxu0 %v4003
          %4736 = vmatprep.subr.bf16.mxu0 %v4010
          %4737 = vmatpush1.bf16.msra.mxu0 %v4009
          %4738 = vmatprep.subr.bf16.mxu0 %v4016
          %4739 = vmatpush1.bf16.msra.mxu0 %v4015
          %4740 = vmatprep.subr.bf16.mxu0 %v4022
          %4741 = vmatpush1.bf16.msra.mxu0 %v4021
          %4742 = vmatprep.subr.bf16.mxu0 %v4028
          %4743 = vmatpush1.bf16.msra.mxu0 %v4027
          %4744 = vmatprep.subr.bf16.mxu0 %v4034
          %4745 = vmatpush1.bf16.msra.mxu0 %v4033
          %4746 = vmatprep.subr.bf16.mxu0 %v4040
          %4747 = vmatpush1.bf16.msra.mxu0 %v4039
          %4748 = vmatprep.subr.bf16.mxu0 %v4046
          %4749 = vmatpush1.bf16.msra.mxu0 %v4045
          %4750 = vmatprep.mubr.bf16.mxu0 %v533
          %4751 = vmatmul.mubr.bf16.gmra.mrb[0].mxu0 %v532
          %v4752 = vpop.f32.mrb[0].mxu0
          %v4753 = vadd.f32 %v4712, %v4752
          %v4754 = vpop.f32.mrb[0].mxu0
          %v4755 = vadd.f32 %v4714, %v4754
          %v4756 = vpop.f32.mrb[0].mxu0
          %v4757 = vpop.f32.mrb[0].mxu0
          %4758 = vdwg.mxu0
          %4759 = vmatprep.subr.bf16.mxu0 %v4052
          %4760 = vmatpush1.bf16.msra.mxu0 %v4051
          %4761 = vmatprep.subr.bf16.mxu0 %v4058
          %4762 = vmatpush1.bf16.msra.mxu0 %v4057
          %4763 = vmatprep.subr.bf16.mxu0 %v4064
          %4764 = vmatpush1.bf16.msra.mxu0 %v4063
          %4765 = vmatprep.subr.bf16.mxu0 %v4070
          %4766 = vmatpush1.bf16.msra.mxu0 %v4069
          %4767 = vmatprep.subr.bf16.mxu0 %v4076
          %4768 = vmatpush1.bf16.msra.mxu0 %v4075
          %4769 = vmatprep.subr.bf16.mxu0 %v4082
          %4770 = vmatpush1.bf16.msra.mxu0 %v4081
          %4771 = vmatprep.subr.bf16.mxu0 %v4088
          %4772 = vmatpush1.bf16.msra.mxu0 %v4087
          %4773 = vmatprep.subr.bf16.mxu0 %v4094
          %4774 = vmatpush1.bf16.msra.mxu0 %v4093
          %4775 = vmatprep.subr.bf16.mxu0 %v4100
          %4776 = vmatpush1.bf16.msra.mxu0 %v4099
          %4777 = vmatprep.subr.bf16.mxu0 %v4106
          %4778 = vmatpush1.bf16.msra.mxu0 %v4105
          %4779 = vmatprep.subr.bf16.mxu0 %v4112
          %4780 = vmatpush1.bf16.msra.mxu0 %v4111
          %4781 = vmatprep.subr.bf16.mxu0 %v4118
          %4782 = vmatpush1.bf16.msra.mxu0 %v4117
          %4783 = vmatprep.subr.bf16.mxu0 %v4124
          %4784 = vmatpush1.bf16.msra.mxu0 %v4123
          %4785 = vmatprep.subr.bf16.mxu0 %v4130
          %4786 = vmatpush1.bf16.msra.mxu0 %v4129
          %4787 = vmatprep.subr.bf16.mxu0 %v4136
          %4788 = vmatpush1.bf16.msra.mxu0 %v4135
          %4789 = vmatprep.subr.bf16.mxu0 %v4142
          %4790 = vmatpush1.bf16.msra.mxu0 %v4141
          %4791 = vmatprep.mubr.bf16.mxu0 %v535
          %4792 = vmatmul.mubr.bf16.gmra.mrb[0].mxu0 %v534
          %v4793 = vpop.f32.mrb[0].mxu0
          %v4794 = vadd.f32 %v4753, %v4793
          %v4795 = vpop.f32.mrb[0].mxu0
          %v4796 = vadd.f32 %v4755, %v4795
          %v4797 = vpop.f32.mrb[0].mxu0
          %v4798 = vpop.f32.mrb[0].mxu0
          %4799 = vdwg.mxu0
          %v4800 = vpack.c.bf16 %v4548, %v4548
          %v4801 = vpack.c.bf16 %v4550, %v4550
          %v4802 = vpack.c.bf16 %v4671, %v4671
          %v4803 = vpack.c.bf16 %v4673, %v4673
          %v4804 = vpack.c.bf16 %v4794, %v4794
          %v4805 = vpack.c.bf16 %v4796, %v4796
          %4806 = vst [vmem:[#allocation2] sm:$0xf] %v2665
          %4807 = vst [vmem:[#allocation3] sm:$0xf] %v4800
          %s4808 = scalar_lea.vmem [#allocation2], 4
          %4809 = vst [vmem:[%s4808] sm:$0xf] %v2666
          %s4810 = scalar_lea.vmem [#allocation3], 4
          %4811 = vst [vmem:[%s4810] sm:$0xf] %v4801
          %s4812 = scalar_lea.vmem [#allocation2], 8
          %4813 = vst [vmem:[%s4812] sm:$0xf] %v2667
          %s4814 = scalar_lea.vmem [#allocation3], 8
          %4815 = vst [vmem:[%s4814] sm:$0xf] %v4802
          %s4816 = scalar_lea.vmem [#allocation2], 12
          %4817 = vst [vmem:[%s4816] sm:$0xf] %v2668
          %s4818 = scalar_lea.vmem [#allocation3], 12
          %4819 = vst [vmem:[%s4818] sm:$0xf] %v4803
          %s4820 = scalar_lea.vmem [#allocation2], 16
          %4821 = vst [vmem:[%s4820] sm:$0xf] %v2669
          %s4822 = scalar_lea.vmem [#allocation3], 16
          %4823 = vst [vmem:[%s4822] sm:$0xf] %v4804
          %s4824 = scalar_lea.vmem [#allocation2], 20
          %4825 = vst [vmem:[%s4824] sm:$0xf] %v2670
          %s4826 = scalar_lea.vmem [#allocation3], 20
          %4827 = vst [vmem:[%s4826] sm:$0xf] %v4805
        $region92: #{tpu_custom_call.1} parent=55 // pred_fallthru
          _
        %v4828 = vld [vmem:[%s428] sm:$0xff]
        %v4829 = vld [vmem:[%s428 + $0x8] sm:$0xff]
        %v4830 = vld [vmem:[%s428 + $0x10] sm:$0xff]
        %v4831 = vld [vmem:[%s428 + $0x18] sm:$0xff]
        %v4832 = vld [vmem:[%s428 + $0x20] sm:$0xff]
        %v4833 = vld [vmem:[%s428 + $0x28] sm:$0xff]
        %v4834 = vpack.c.bf16 %v4828, %v4828
        %v4835 = vpack.c.bf16 %v4829, %v4829
        %v4836 = vpack.c.bf16 %v4830, %v4830
        %v4837 = vpack.c.bf16 %v4831, %v4831
        %v4838 = vpack.c.bf16 %v4832, %v4832
        %v4839 = vpack.c.bf16 %v4833, %v4833
        %v4840 = vld [vmem:[#allocation9] sm:$0xff]
        %v4841 = vld [vmem:[#allocation9 + $0x8] sm:$0xff]
        %v4842 = vld [vmem:[#allocation9 + $0x10] sm:$0xff]
        %v4843 = vld [vmem:[#allocation9 + $0x18] sm:$0xff]
        %v4844 = vld [vmem:[#allocation9 + $0x20] sm:$0xff]
        %v4845 = vld [vmem:[#allocation9 + $0x28] sm:$0xff]
        %v4846 = vld [vmem:[#allocation9 + $0x30] sm:$0xff]
        %v4847 = vld [vmem:[#allocation9 + $0x38] sm:$0xff]
        %v4848 = vld [vmem:[#allocation9 + $0x40] sm:$0xff]
        %v4849 = vld [vmem:[#allocation9 + $0x48] sm:$0xff]
        %v4850 = vld [vmem:[#allocation9 + $0x50] sm:$0xff]
        %v4851 = vld [vmem:[#allocation9 + $0x58] sm:$0xff]
        %v4852 = vld [vmem:[#allocation9 + $0x60] sm:$0xff]
        %v4853 = vld [vmem:[#allocation9 + $0x68] sm:$0xff]
        %v4854 = vld [vmem:[#allocation9 + $0x70] sm:$0xff]
        %v4855 = vld [vmem:[#allocation9 + $0x78] sm:$0xff]
        %v4856 = vld [vmem:[#allocation9 + $0x80] sm:$0xff]
        %v4857 = vld [vmem:[#allocation9 + $0x88] sm:$0xff]
        %v4858 = vld [vmem:[#allocation9 + $0x90] sm:$0xff]
        %v4859 = vld [vmem:[#allocation9 + $0x98] sm:$0xff]
        %v4860 = vld [vmem:[#allocation9 + $0xa0] sm:$0xff]
        %v4861 = vld [vmem:[#allocation9 + $0xa8] sm:$0xff]
        %v4862 = vld [vmem:[#allocation9 + $0xb0] sm:$0xff]
        %v4863 = vld [vmem:[#allocation9 + $0xb8] sm:$0xff]
        %v4864 = vld [vmem:[#allocation9 + $0xc0] sm:$0xff]
        %v4865 = vld [vmem:[#allocation9 + $0xc8] sm:$0xff]
        %v4866 = vld [vmem:[#allocation9 + $0xd0] sm:$0xff]
        %v4867 = vld [vmem:[#allocation9 + $0xd8] sm:$0xff]
        %v4868 = vld [vmem:[#allocation9 + $0xe0] sm:$0xff]
        %v4869 = vld [vmem:[#allocation9 + $0xe8] sm:$0xff]
        %v4870 = vld [vmem:[#allocation9 + $0xf0] sm:$0xff]
        %v4871 = vld [vmem:[#allocation9 + $0xf8] sm:$0xff]
        %v4872 = vld [vmem:[#allocation9 + $0x100] sm:$0xff]
        %v4873 = vld [vmem:[#allocation9 + $0x108] sm:$0xff]
        %v4874 = vld [vmem:[#allocation9 + $0x110] sm:$0xff]
        %v4875 = vld [vmem:[#allocation9 + $0x118] sm:$0xff]
        %v4876 = vld [vmem:[#allocation9 + $0x120] sm:$0xff]
        %v4877 = vld [vmem:[#allocation9 + $0x128] sm:$0xff]
        %v4878 = vld [vmem:[#allocation9 + $0x130] sm:$0xff]
        %v4879 = vld [vmem:[#allocation9 + $0x138] sm:$0xff]
        %v4880 = vld [vmem:[#allocation9 + $0x140] sm:$0xff]
        %v4881 = vld [vmem:[#allocation9 + $0x148] sm:$0xff]
        %v4882 = vld [vmem:[#allocation9 + $0x150] sm:$0xff]
        %v4883 = vld [vmem:[#allocation9 + $0x158] sm:$0xff]
        %v4884 = vld [vmem:[#allocation9 + $0x160] sm:$0xff]
        %v4885 = vld [vmem:[#allocation9 + $0x168] sm:$0xff]
        %v4886 = vld [vmem:[#allocation9 + $0x170] sm:$0xff]
        %v4887 = vld [vmem:[#allocation9 + $0x178] sm:$0xff]
        %v4888 = vld [vmem:[#allocation9 + $0x180] sm:$0xff]
        %v4889 = vld [vmem:[#allocation9 + $0x188] sm:$0xff]
        %v4890 = vld [vmem:[#allocation9 + $0x190] sm:$0xff]
        %v4891 = vld [vmem:[#allocation9 + $0x198] sm:$0xff]
        %v4892 = vld [vmem:[#allocation9 + $0x1a0] sm:$0xff]
        %v4893 = vld [vmem:[#allocation9 + $0x1a8] sm:$0xff]
        %v4894 = vld [vmem:[#allocation9 + $0x1b0] sm:$0xff]
        %v4895 = vld [vmem:[#allocation9 + $0x1b8] sm:$0xff]
        %v4896 = vld [vmem:[#allocation9 + $0x1c0] sm:$0xff]
        %v4897 = vld [vmem:[#allocation9 + $0x1c8] sm:$0xff]
        %v4898 = vld [vmem:[#allocation9 + $0x1d0] sm:$0xff]
        %v4899 = vld [vmem:[#allocation9 + $0x1d8] sm:$0xff]
        %v4900 = vld [vmem:[#allocation9 + $0x1e0] sm:$0xff]
        %v4901 = vld [vmem:[#allocation9 + $0x1e8] sm:$0xff]
        %v4902 = vld [vmem:[#allocation9 + $0x1f0] sm:$0xff]
        %v4903 = vld [vmem:[#allocation9 + $0x1f8] sm:$0xff]
        %v4904 = vld [vmem:[#allocation9 + $0x200] sm:$0xff]
        %v4905 = vld [vmem:[#allocation9 + $0x208] sm:$0xff]
        %v4906 = vld [vmem:[#allocation9 + $0x210] sm:$0xff]
        %v4907 = vld [vmem:[#allocation9 + $0x218] sm:$0xff]
        %v4908 = vld [vmem:[#allocation9 + $0x220] sm:$0xff]
        %v4909 = vld [vmem:[#allocation9 + $0x228] sm:$0xff]
        %v4910 = vld [vmem:[#allocation9 + $0x230] sm:$0xff]
        %v4911 = vld [vmem:[#allocation9 + $0x238] sm:$0xff]
        %v4912 = vld [vmem:[#allocation9 + $0x240] sm:$0xff]
        %v4913 = vld [vmem:[#allocation9 + $0x248] sm:$0xff]
        %v4914 = vld [vmem:[#allocation9 + $0x250] sm:$0xff]
        %v4915 = vld [vmem:[#allocation9 + $0x258] sm:$0xff]
        %v4916 = vld [vmem:[#allocation9 + $0x260] sm:$0xff]
        %v4917 = vld [vmem:[#allocation9 + $0x268] sm:$0xff]
        %v4918 = vld [vmem:[#allocation9 + $0x270] sm:$0xff]
        %v4919 = vld [vmem:[#allocation9 + $0x278] sm:$0xff]
        %v4920 = vld [vmem:[#allocation9 + $0x280] sm:$0xff]
        %v4921 = vld [vmem:[#allocation9 + $0x288] sm:$0xff]
        %v4922 = vld [vmem:[#allocation9 + $0x290] sm:$0xff]
        %v4923 = vld [vmem:[#allocation9 + $0x298] sm:$0xff]
        %v4924 = vld [vmem:[#allocation9 + $0x2a0] sm:$0xff]
        %v4925 = vld [vmem:[#allocation9 + $0x2a8] sm:$0xff]
        %v4926 = vld [vmem:[#allocation9 + $0x2b0] sm:$0xff]
        %v4927 = vld [vmem:[#allocation9 + $0x2b8] sm:$0xff]
        %v4928 = vld [vmem:[#allocation9 + $0x2c0] sm:$0xff]
        %v4929 = vld [vmem:[#allocation9 + $0x2c8] sm:$0xff]
        %v4930 = vld [vmem:[#allocation9 + $0x2d0] sm:$0xff]
        %v4931 = vld [vmem:[#allocation9 + $0x2d8] sm:$0xff]
        %v4932 = vld [vmem:[#allocation9 + $0x2e0] sm:$0xff]
        %v4933 = vld [vmem:[#allocation9 + $0x2e8] sm:$0xff]
        %v4934 = vld [vmem:[#allocation9 + $0x2f0] sm:$0xff]
        %v4935 = vld [vmem:[#allocation9 + $0x2f8] sm:$0xff]
        %v4936 = vld [vmem:[#allocation9 + $0x300] sm:$0xff]
        %v4937 = vld [vmem:[#allocation9 + $0x308] sm:$0xff]
        %v4938 = vld [vmem:[#allocation9 + $0x310] sm:$0xff]
        %v4939 = vld [vmem:[#allocation9 + $0x318] sm:$0xff]
        %v4940 = vld [vmem:[#allocation9 + $0x320] sm:$0xff]
        %v4941 = vld [vmem:[#allocation9 + $0x328] sm:$0xff]
        %v4942 = vld [vmem:[#allocation9 + $0x330] sm:$0xff]
        %v4943 = vld [vmem:[#allocation9 + $0x338] sm:$0xff]
        %v4944 = vld [vmem:[#allocation9 + $0x340] sm:$0xff]
        %v4945 = vld [vmem:[#allocation9 + $0x348] sm:$0xff]
        %v4946 = vld [vmem:[#allocation9 + $0x350] sm:$0xff]
        %v4947 = vld [vmem:[#allocation9 + $0x358] sm:$0xff]
        %v4948 = vld [vmem:[#allocation9 + $0x360] sm:$0xff]
        %v4949 = vld [vmem:[#allocation9 + $0x368] sm:$0xff]
        %v4950 = vld [vmem:[#allocation9 + $0x370] sm:$0xff]
        %v4951 = vld [vmem:[#allocation9 + $0x378] sm:$0xff]
        %v4952 = vld [vmem:[#allocation9 + $0x380] sm:$0xff]
        %v4953 = vld [vmem:[#allocation9 + $0x388] sm:$0xff]
        %v4954 = vld [vmem:[#allocation9 + $0x390] sm:$0xff]
        %v4955 = vld [vmem:[#allocation9 + $0x398] sm:$0xff]
        %v4956 = vld [vmem:[#allocation9 + $0x3a0] sm:$0xff]
        %v4957 = vld [vmem:[#allocation9 + $0x3a8] sm:$0xff]
        %v4958 = vld [vmem:[#allocation9 + $0x3b0] sm:$0xff]
        %v4959 = vld [vmem:[#allocation9 + $0x3b8] sm:$0xff]
        %v4960 = vld [vmem:[#allocation9 + $0x3c0] sm:$0xff]
        %v4961 = vld [vmem:[#allocation9 + $0x3c8] sm:$0xff]
        %v4962 = vld [vmem:[#allocation9 + $0x3d0] sm:$0xff]
        %v4963 = vld [vmem:[#allocation9 + $0x3d8] sm:$0xff]
        %v4964 = vld [vmem:[#allocation9 + $0x3e0] sm:$0xff]
        %v4965 = vld [vmem:[#allocation9 + $0x3e8] sm:$0xff]
        %v4966 = vld [vmem:[#allocation9 + $0x3f0] sm:$0xff]
        %v4967 = vld [vmem:[#allocation9 + $0x3f8] sm:$0xff]
        %v4968 = vld [vmem:[#allocation9 + $0x400] sm:$0xff]
        %v4969 = vld [vmem:[#allocation9 + $0x408] sm:$0xff]
        %v4970 = vld [vmem:[#allocation9 + $0x410] sm:$0xff]
        %v4971 = vld [vmem:[#allocation9 + $0x418] sm:$0xff]
        %v4972 = vld [vmem:[#allocation9 + $0x420] sm:$0xff]
        %v4973 = vld [vmem:[#allocation9 + $0x428] sm:$0xff]
        %v4974 = vld [vmem:[#allocation9 + $0x430] sm:$0xff]
        %v4975 = vld [vmem:[#allocation9 + $0x438] sm:$0xff]
        %v4976 = vld [vmem:[#allocation9 + $0x440] sm:$0xff]
        %v4977 = vld [vmem:[#allocation9 + $0x448] sm:$0xff]
        %v4978 = vld [vmem:[#allocation9 + $0x450] sm:$0xff]
        %v4979 = vld [vmem:[#allocation9 + $0x458] sm:$0xff]
        %v4980 = vld [vmem:[#allocation9 + $0x460] sm:$0xff]
        %v4981 = vld [vmem:[#allocation9 + $0x468] sm:$0xff]
        %v4982 = vld [vmem:[#allocation9 + $0x470] sm:$0xff]
        %v4983 = vld [vmem:[#allocation9 + $0x478] sm:$0xff]
        %v4984 = vld [vmem:[#allocation9 + $0x480] sm:$0xff]
        %v4985 = vld [vmem:[#allocation9 + $0x488] sm:$0xff]
        %v4986 = vld [vmem:[#allocation9 + $0x490] sm:$0xff]
        %v4987 = vld [vmem:[#allocation9 + $0x498] sm:$0xff]
        %v4988 = vld [vmem:[#allocation9 + $0x4a0] sm:$0xff]
        %v4989 = vld [vmem:[#allocation9 + $0x4a8] sm:$0xff]
        %v4990 = vld [vmem:[#allocation9 + $0x4b0] sm:$0xff]
        %v4991 = vld [vmem:[#allocation9 + $0x4b8] sm:$0xff]
        %v4992 = vld [vmem:[#allocation9 + $0x4c0] sm:$0xff]
        %v4993 = vld [vmem:[#allocation9 + $0x4c8] sm:$0xff]
        %v4994 = vld [vmem:[#allocation9 + $0x4d0] sm:$0xff]
        %v4995 = vld [vmem:[#allocation9 + $0x4d8] sm:$0xff]
        %v4996 = vld [vmem:[#allocation9 + $0x4e0] sm:$0xff]
        %v4997 = vld [vmem:[#allocation9 + $0x4e8] sm:$0xff]
        %v4998 = vld [vmem:[#allocation9 + $0x4f0] sm:$0xff]
        %v4999 = vld [vmem:[#allocation9 + $0x4f8] sm:$0xff]
        %v5000 = vld [vmem:[#allocation9 + $0x500] sm:$0xff]
        %v5001 = vld [vmem:[#allocation9 + $0x508] sm:$0xff]
        %v5002 = vld [vmem:[#allocation9 + $0x510] sm:$0xff]
        %v5003 = vld [vmem:[#allocation9 + $0x518] sm:$0xff]
        %v5004 = vld [vmem:[#allocation9 + $0x520] sm:$0xff]
        %v5005 = vld [vmem:[#allocation9 + $0x528] sm:$0xff]
        %v5006 = vld [vmem:[#allocation9 + $0x530] sm:$0xff]
        %v5007 = vld [vmem:[#allocation9 + $0x538] sm:$0xff]
        %v5008 = vld [vmem:[#allocation9 + $0x540] sm:$0xff]
        %v5009 = vld [vmem:[#allocation9 + $0x548] sm:$0xff]
        %v5010 = vld [vmem:[#allocation9 + $0x550] sm:$0xff]
        %v5011 = vld [vmem:[#allocation9 + $0x558] sm:$0xff]
        %v5012 = vld [vmem:[#allocation9 + $0x560] sm:$0xff]
        %v5013 = vld [vmem:[#allocation9 + $0x568] sm:$0xff]
        %v5014 = vld [vmem:[#allocation9 + $0x570] sm:$0xff]
        %v5015 = vld [vmem:[#allocation9 + $0x578] sm:$0xff]
        %v5016 = vld [vmem:[#allocation9 + $0x580] sm:$0xff]
        %v5017 = vld [vmem:[#allocation9 + $0x588] sm:$0xff]
        %v5018 = vld [vmem:[#allocation9 + $0x590] sm:$0xff]
        %v5019 = vld [vmem:[#allocation9 + $0x598] sm:$0xff]
        %v5020 = vld [vmem:[#allocation9 + $0x5a0] sm:$0xff]
        %v5021 = vld [vmem:[#allocation9 + $0x5a8] sm:$0xff]
        %v5022 = vld [vmem:[#allocation9 + $0x5b0] sm:$0xff]
        %v5023 = vld [vmem:[#allocation9 + $0x5b8] sm:$0xff]
        %v5024 = vld [vmem:[#allocation9 + $0x5c0] sm:$0xff]
        %v5025 = vld [vmem:[#allocation9 + $0x5c8] sm:$0xff]
        %v5026 = vld [vmem:[#allocation9 + $0x5d0] sm:$0xff]
        %v5027 = vld [vmem:[#allocation9 + $0x5d8] sm:$0xff]
        %v5028 = vld [vmem:[#allocation9 + $0x5e0] sm:$0xff]
        %v5029 = vld [vmem:[#allocation9 + $0x5e8] sm:$0xff]
        %v5030 = vld [vmem:[#allocation9 + $0x5f0] sm:$0xff]
        %v5031 = vld [vmem:[#allocation9 + $0x5f8] sm:$0xff]
        %v5032 = vld [vmem:[#allocation9 + $0x600] sm:$0xff]
        %v5033 = vld [vmem:[#allocation9 + $0x608] sm:$0xff]
        %v5034 = vld [vmem:[#allocation9 + $0x610] sm:$0xff]
        %v5035 = vld [vmem:[#allocation9 + $0x618] sm:$0xff]
        %v5036 = vld [vmem:[#allocation9 + $0x620] sm:$0xff]
        %v5037 = vld [vmem:[#allocation9 + $0x628] sm:$0xff]
        %v5038 = vld [vmem:[#allocation9 + $0x630] sm:$0xff]
        %v5039 = vld [vmem:[#allocation9 + $0x638] sm:$0xff]
        %v5040 = vld [vmem:[#allocation9 + $0x640] sm:$0xff]
        %v5041 = vld [vmem:[#allocation9 + $0x648] sm:$0xff]
        %v5042 = vld [vmem:[#allocation9 + $0x650] sm:$0xff]
        %v5043 = vld [vmem:[#allocation9 + $0x658] sm:$0xff]
        %v5044 = vld [vmem:[#allocation9 + $0x660] sm:$0xff]
        %v5045 = vld [vmem:[#allocation9 + $0x668] sm:$0xff]
        %v5046 = vld [vmem:[#allocation9 + $0x670] sm:$0xff]
        %v5047 = vld [vmem:[#allocation9 + $0x678] sm:$0xff]
        %v5048 = vld [vmem:[#allocation9 + $0x680] sm:$0xff]
        %v5049 = vld [vmem:[#allocation9 + $0x688] sm:$0xff]
        %v5050 = vld [vmem:[#allocation9 + $0x690] sm:$0xff]
        %v5051 = vld [vmem:[#allocation9 + $0x698] sm:$0xff]
        %v5052 = vld [vmem:[#allocation9 + $0x6a0] sm:$0xff]
        %v5053 = vld [vmem:[#allocation9 + $0x6a8] sm:$0xff]
        %v5054 = vld [vmem:[#allocation9 + $0x6b0] sm:$0xff]
        %v5055 = vld [vmem:[#allocation9 + $0x6b8] sm:$0xff]
        %v5056 = vld [vmem:[#allocation9 + $0x6c0] sm:$0xff]
        %v5057 = vld [vmem:[#allocation9 + $0x6c8] sm:$0xff]
        %v5058 = vld [vmem:[#allocation9 + $0x6d0] sm:$0xff]
        %v5059 = vld [vmem:[#allocation9 + $0x6d8] sm:$0xff]
        %v5060 = vld [vmem:[#allocation9 + $0x6e0] sm:$0xff]
        %v5061 = vld [vmem:[#allocation9 + $0x6e8] sm:$0xff]
        %v5062 = vld [vmem:[#allocation9 + $0x6f0] sm:$0xff]
        %v5063 = vld [vmem:[#allocation9 + $0x6f8] sm:$0xff]
        %v5064 = vld [vmem:[#allocation9 + $0x700] sm:$0xff]
        %v5065 = vld [vmem:[#allocation9 + $0x708] sm:$0xff]
        %v5066 = vld [vmem:[#allocation9 + $0x710] sm:$0xff]
        %v5067 = vld [vmem:[#allocation9 + $0x718] sm:$0xff]
        %v5068 = vld [vmem:[#allocation9 + $0x720] sm:$0xff]
        %v5069 = vld [vmem:[#allocation9 + $0x728] sm:$0xff]
        %v5070 = vld [vmem:[#allocation9 + $0x730] sm:$0xff]
        %v5071 = vld [vmem:[#allocation9 + $0x738] sm:$0xff]
        %v5072 = vld [vmem:[#allocation9 + $0x740] sm:$0xff]
        %v5073 = vld [vmem:[#allocation9 + $0x748] sm:$0xff]
        %v5074 = vld [vmem:[#allocation9 + $0x750] sm:$0xff]
        %v5075 = vld [vmem:[#allocation9 + $0x758] sm:$0xff]
        %v5076 = vld [vmem:[#allocation9 + $0x760] sm:$0xff]
        %v5077 = vld [vmem:[#allocation9 + $0x768] sm:$0xff]
        %v5078 = vld [vmem:[#allocation9 + $0x770] sm:$0xff]
        %v5079 = vld [vmem:[#allocation9 + $0x778] sm:$0xff]
        %v5080 = vld [vmem:[#allocation9 + $0x780] sm:$0xff]
        %v5081 = vld [vmem:[#allocation9 + $0x788] sm:$0xff]
        %v5082 = vld [vmem:[#allocation9 + $0x790] sm:$0xff]
        %v5083 = vld [vmem:[#allocation9 + $0x798] sm:$0xff]
        %v5084 = vld [vmem:[#allocation9 + $0x7a0] sm:$0xff]
        %v5085 = vld [vmem:[#allocation9 + $0x7a8] sm:$0xff]
        %v5086 = vld [vmem:[#allocation9 + $0x7b0] sm:$0xff]
        %v5087 = vld [vmem:[#allocation9 + $0x7b8] sm:$0xff]
        %v5088 = vld [vmem:[#allocation9 + $0x7c0] sm:$0xff]
        %v5089 = vld [vmem:[#allocation9 + $0x7c8] sm:$0xff]
        %v5090 = vld [vmem:[#allocation9 + $0x7d0] sm:$0xff]
        %v5091 = vld [vmem:[#allocation9 + $0x7d8] sm:$0xff]
        %v5092 = vld [vmem:[#allocation9 + $0x7e0] sm:$0xff]
        %v5093 = vld [vmem:[#allocation9 + $0x7e8] sm:$0xff]
        %v5094 = vld [vmem:[#allocation9 + $0x7f0] sm:$0xff]
        %v5095 = vld [vmem:[#allocation9 + $0x7f8] sm:$0xff]
        %v5096 = vld [vmem:[#allocation9 + $0x800] sm:$0xff]
        %v5097 = vld [vmem:[#allocation9 + $0x808] sm:$0xff]
        %v5098 = vld [vmem:[#allocation9 + $0x810] sm:$0xff]
        %v5099 = vld [vmem:[#allocation9 + $0x818] sm:$0xff]
        %v5100 = vld [vmem:[#allocation9 + $0x820] sm:$0xff]
        %v5101 = vld [vmem:[#allocation9 + $0x828] sm:$0xff]
        %v5102 = vld [vmem:[#allocation9 + $0x830] sm:$0xff]
        %v5103 = vld [vmem:[#allocation9 + $0x838] sm:$0xff]
        %v5104 = vld [vmem:[#allocation9 + $0x840] sm:$0xff]
        %v5105 = vld [vmem:[#allocation9 + $0x848] sm:$0xff]
        %v5106 = vld [vmem:[#allocation9 + $0x850] sm:$0xff]
        %v5107 = vld [vmem:[#allocation9 + $0x858] sm:$0xff]
        %v5108 = vld [vmem:[#allocation9 + $0x860] sm:$0xff]
        %v5109 = vld [vmem:[#allocation9 + $0x868] sm:$0xff]
        %v5110 = vld [vmem:[#allocation9 + $0x870] sm:$0xff]
        %v5111 = vld [vmem:[#allocation9 + $0x878] sm:$0xff]
        %v5112 = vld [vmem:[#allocation9 + $0x880] sm:$0xff]
        %v5113 = vld [vmem:[#allocation9 + $0x888] sm:$0xff]
        %v5114 = vld [vmem:[#allocation9 + $0x890] sm:$0xff]
        %v5115 = vld [vmem:[#allocation9 + $0x898] sm:$0xff]
        %v5116 = vld [vmem:[#allocation9 + $0x8a0] sm:$0xff]
        %v5117 = vld [vmem:[#allocation9 + $0x8a8] sm:$0xff]
        %v5118 = vld [vmem:[#allocation9 + $0x8b0] sm:$0xff]
        %v5119 = vld [vmem:[#allocation9 + $0x8b8] sm:$0xff]
        %v5120 = vld [vmem:[#allocation9 + $0x8c0] sm:$0xff]
        %v5121 = vld [vmem:[#allocation9 + $0x8c8] sm:$0xff]
        %v5122 = vld [vmem:[#allocation9 + $0x8d0] sm:$0xff]
        %v5123 = vld [vmem:[#allocation9 + $0x8d8] sm:$0xff]
        %v5124 = vld [vmem:[#allocation9 + $0x8e0] sm:$0xff]
        %v5125 = vld [vmem:[#allocation9 + $0x8e8] sm:$0xff]
        %v5126 = vld [vmem:[#allocation9 + $0x8f0] sm:$0xff]
        %v5127 = vld [vmem:[#allocation9 + $0x8f8] sm:$0xff]
        %v5128 = vld [vmem:[#allocation10] sm:$0x3f]
        %v5130 = vlaneseq
        %v5131 = vshrl.u32 %v5130, 7
        %v5132 = vsub.s32 0, %v5131
        %v5133 = vrot.slane %v5128, %v5132
        %v5134 = vlaneseq
        %v5135 = vshrl.u32 %v5134, 7
        %v5136 = vsub.s32 1, %v5135
        %v5137 = vrot.slane %v5128, %v5136
        %v5138 = vlaneseq
        %v5139 = vshrl.u32 %v5138, 7
        %v5140 = vsub.s32 2, %v5139
        %v5141 = vrot.slane %v5128, %v5140
        %v5142 = vlaneseq
        %v5143 = vshrl.u32 %v5142, 7
        %v5144 = vsub.s32 3, %v5143
        %v5145 = vrot.slane %v5128, %v5144
        %v5146 = vlaneseq
        %v5147 = vshrl.u32 %v5146, 7
        %v5148 = vsub.s32 4, %v5147
        %v5149 = vrot.slane %v5128, %v5148
        %v5150 = vlaneseq
        %v5151 = vshrl.u32 %v5150, 7
        %v5152 = vsub.s32 5, %v5151
        %v5153 = vrot.slane %v5128, %v5152
        %v5448 = vunpack.c.l.b16 %v4840
        %v5449 = vunpack.c.h.b16 %v4840
        %v5450 = vunpack.c.l.b16 %v4841
        %v5451 = vunpack.c.h.b16 %v4841
        %v5452 = vunpack.c.l.b16 %v4842
        %v5453 = vunpack.c.h.b16 %v4842
        %v5454 = vunpack.c.l.b16 %v4843
        %v5455 = vunpack.c.h.b16 %v4843
        %v5456 = vunpack.c.l.b16 %v4844
        %v5457 = vunpack.c.h.b16 %v4844
        %v5458 = vunpack.c.l.b16 %v4845
        %v5459 = vunpack.c.h.b16 %v4845
        %v5460 = vunpack.c.l.b16 %v4846
        %v5461 = vunpack.c.h.b16 %v4846
        %v5462 = vunpack.c.l.b16 %v4847
        %v5463 = vunpack.c.h.b16 %v4847
        %v5464 = vunpack.c.l.b16 %v4848
        %v5465 = vunpack.c.h.b16 %v4848
        %v5466 = vunpack.c.l.b16 %v4849
        %v5467 = vunpack.c.h.b16 %v4849
        %v5468 = vunpack.c.l.b16 %v4850
        %v5469 = vunpack.c.h.b16 %v4850
        %v5470 = vunpack.c.l.b16 %v4851
        %v5471 = vunpack.c.h.b16 %v4851
        %v5472 = vunpack.c.l.b16 %v4852
        %v5473 = vunpack.c.h.b16 %v4852
        %v5474 = vunpack.c.l.b16 %v4853
        %v5475 = vunpack.c.h.b16 %v4853
        %v5476 = vunpack.c.l.b16 %v4854
        %v5477 = vunpack.c.h.b16 %v4854
        %v5478 = vunpack.c.l.b16 %v4855
        %v5479 = vunpack.c.h.b16 %v4855
        %v5480 = vunpack.c.l.b16 %v4856
        %v5481 = vunpack.c.h.b16 %v4856
        %v5482 = vunpack.c.l.b16 %v4857
        %v5483 = vunpack.c.h.b16 %v4857
        %v5484 = vunpack.c.l.b16 %v4858
        %v5485 = vunpack.c.h.b16 %v4858
        %v5486 = vunpack.c.l.b16 %v4859
        %v5487 = vunpack.c.h.b16 %v4859
        %v5488 = vunpack.c.l.b16 %v4860
        %v5489 = vunpack.c.h.b16 %v4860
        %v5490 = vunpack.c.l.b16 %v4861
        %v5491 = vunpack.c.h.b16 %v4861
        %v5492 = vunpack.c.l.b16 %v4862
        %v5493 = vunpack.c.h.b16 %v4862
        %v5494 = vunpack.c.l.b16 %v4863
        %v5495 = vunpack.c.h.b16 %v4863
        %v5496 = vunpack.c.l.b16 %v4864
        %v5497 = vunpack.c.h.b16 %v4864
        %v5498 = vunpack.c.l.b16 %v4865
        %v5499 = vunpack.c.h.b16 %v4865
        %v5500 = vunpack.c.l.b16 %v4866
        %v5501 = vunpack.c.h.b16 %v4866
        %v5502 = vunpack.c.l.b16 %v4867
        %v5503 = vunpack.c.h.b16 %v4867
        %v5504 = vunpack.c.l.b16 %v4868
        %v5505 = vunpack.c.h.b16 %v4868
        %v5506 = vunpack.c.l.b16 %v4869
        %v5507 = vunpack.c.h.b16 %v4869
        %v5508 = vunpack.c.l.b16 %v4870
        %v5509 = vunpack.c.h.b16 %v4870
        %v5510 = vunpack.c.l.b16 %v4871
        %v5511 = vunpack.c.h.b16 %v4871
        %v5512 = vunpack.c.l.b16 %v4872
        %v5513 = vunpack.c.h.b16 %v4872
        %v5514 = vunpack.c.l.b16 %v4873
        %v5515 = vunpack.c.h.b16 %v4873
        %v5516 = vunpack.c.l.b16 %v4874
        %v5517 = vunpack.c.h.b16 %v4874
        %v5518 = vunpack.c.l.b16 %v4875
        %v5519 = vunpack.c.h.b16 %v4875
        %v5520 = vunpack.c.l.b16 %v4876
        %v5521 = vunpack.c.h.b16 %v4876
        %v5522 = vunpack.c.l.b16 %v4877
        %v5523 = vunpack.c.h.b16 %v4877
        %v5524 = vunpack.c.l.b16 %v4878
        %v5525 = vunpack.c.h.b16 %v4878
        %v5526 = vunpack.c.l.b16 %v4879
        %v5527 = vunpack.c.h.b16 %v4879
        %v5528 = vunpack.c.l.b16 %v4880
        %v5529 = vunpack.c.h.b16 %v4880
        %v5530 = vunpack.c.l.b16 %v4881
        %v5531 = vunpack.c.h.b16 %v4881
        %v5532 = vunpack.c.l.b16 %v4882
        %v5533 = vunpack.c.h.b16 %v4882
        %v5534 = vunpack.c.l.b16 %v4883
        %v5535 = vunpack.c.h.b16 %v4883
        %v5536 = vunpack.c.l.b16 %v4884
        %v5537 = vunpack.c.h.b16 %v4884
        %v5538 = vunpack.c.l.b16 %v4885
        %v5539 = vunpack.c.h.b16 %v4885
        %v5540 = vunpack.c.l.b16 %v4886
        %v5541 = vunpack.c.h.b16 %v4886
        %v5542 = vunpack.c.l.b16 %v4887
        %v5543 = vunpack.c.h.b16 %v4887
        %v5544 = vunpack.c.l.b16 %v4888
        %v5545 = vunpack.c.h.b16 %v4888
        %v5546 = vunpack.c.l.b16 %v4889
        %v5547 = vunpack.c.h.b16 %v4889
        %v5548 = vunpack.c.l.b16 %v4890
        %v5549 = vunpack.c.h.b16 %v4890
        %v5550 = vunpack.c.l.b16 %v4891
        %v5551 = vunpack.c.h.b16 %v4891
        %v5552 = vunpack.c.l.b16 %v4892
        %v5553 = vunpack.c.h.b16 %v4892
        %v5554 = vunpack.c.l.b16 %v4893
        %v5555 = vunpack.c.h.b16 %v4893
        %v5556 = vunpack.c.l.b16 %v4894
        %v5557 = vunpack.c.h.b16 %v4894
        %v5558 = vunpack.c.l.b16 %v4895
        %v5559 = vunpack.c.h.b16 %v4895
        %v5560 = vunpack.c.l.b16 %v4896
        %v5561 = vunpack.c.h.b16 %v4896
        %v5562 = vunpack.c.l.b16 %v4897
        %v5563 = vunpack.c.h.b16 %v4897
        %v5564 = vunpack.c.l.b16 %v4898
        %v5565 = vunpack.c.h.b16 %v4898
        %v5566 = vunpack.c.l.b16 %v4899
        %v5567 = vunpack.c.h.b16 %v4899
        %v5568 = vunpack.c.l.b16 %v4900
        %v5569 = vunpack.c.h.b16 %v4900
        %v5570 = vunpack.c.l.b16 %v4901
        %v5571 = vunpack.c.h.b16 %v4901
        %v5572 = vunpack.c.l.b16 %v4902
        %v5573 = vunpack.c.h.b16 %v4902
        %v5574 = vunpack.c.l.b16 %v4903
        %v5575 = vunpack.c.h.b16 %v4903
        %v5576 = vunpack.c.l.b16 %v4904
        %v5577 = vunpack.c.h.b16 %v4904
        %v5578 = vunpack.c.l.b16 %v4905
        %v5579 = vunpack.c.h.b16 %v4905
        %v5580 = vunpack.c.l.b16 %v4906
        %v5581 = vunpack.c.h.b16 %v4906
        %v5582 = vunpack.c.l.b16 %v4907
        %v5583 = vunpack.c.h.b16 %v4907
        %v5584 = vunpack.c.l.b16 %v4908
        %v5585 = vunpack.c.h.b16 %v4908
        %v5586 = vunpack.c.l.b16 %v4909
        %v5587 = vunpack.c.h.b16 %v4909
        %v5588 = vunpack.c.l.b16 %v4910
        %v5589 = vunpack.c.h.b16 %v4910
        %v5590 = vunpack.c.l.b16 %v4911
        %v5591 = vunpack.c.h.b16 %v4911
        %v5592 = vunpack.c.l.b16 %v4912
        %v5593 = vunpack.c.h.b16 %v4912
        %v5594 = vunpack.c.l.b16 %v4913
        %v5595 = vunpack.c.h.b16 %v4913
        %v5596 = vunpack.c.l.b16 %v4914
        %v5597 = vunpack.c.h.b16 %v4914
        %v5598 = vunpack.c.l.b16 %v4915
        %v5599 = vunpack.c.h.b16 %v4915
        %v5600 = vunpack.c.l.b16 %v4916
        %v5601 = vunpack.c.h.b16 %v4916
        %v5602 = vunpack.c.l.b16 %v4917
        %v5603 = vunpack.c.h.b16 %v4917
        %v5604 = vunpack.c.l.b16 %v4918
        %v5605 = vunpack.c.h.b16 %v4918
        %v5606 = vunpack.c.l.b16 %v4919
        %v5607 = vunpack.c.h.b16 %v4919
        %v5608 = vunpack.c.l.b16 %v4920
        %v5609 = vunpack.c.h.b16 %v4920
        %v5610 = vunpack.c.l.b16 %v4921
        %v5611 = vunpack.c.h.b16 %v4921
        %v5612 = vunpack.c.l.b16 %v4922
        %v5613 = vunpack.c.h.b16 %v4922
        %v5614 = vunpack.c.l.b16 %v4923
        %v5615 = vunpack.c.h.b16 %v4923
        %v5616 = vunpack.c.l.b16 %v4924
        %v5617 = vunpack.c.h.b16 %v4924
        %v5618 = vunpack.c.l.b16 %v4925
        %v5619 = vunpack.c.h.b16 %v4925
        %v5620 = vunpack.c.l.b16 %v4926
        %v5621 = vunpack.c.h.b16 %v4926
        %v5622 = vunpack.c.l.b16 %v4927
        %v5623 = vunpack.c.h.b16 %v4927
        %v5624 = vunpack.c.l.b16 %v4928
        %v5625 = vunpack.c.h.b16 %v4928
        %v5626 = vunpack.c.l.b16 %v4929
        %v5627 = vunpack.c.h.b16 %v4929
        %v5628 = vunpack.c.l.b16 %v4930
        %v5629 = vunpack.c.h.b16 %v4930
        %v5630 = vunpack.c.l.b16 %v4931
        %v5631 = vunpack.c.h.b16 %v4931
        %v5632 = vunpack.c.l.b16 %v4932
        %v5633 = vunpack.c.h.b16 %v4932
        %v5634 = vunpack.c.l.b16 %v4933
        %v5635 = vunpack.c.h.b16 %v4933
        %v5636 = vunpack.c.l.b16 %v4934
        %v5637 = vunpack.c.h.b16 %v4934
        %v5638 = vunpack.c.l.b16 %v4935
        %v5639 = vunpack.c.h.b16 %v4935
        %v5640 = vunpack.c.l.b16 %v4936
        %v5641 = vunpack.c.h.b16 %v4936
        %v5642 = vunpack.c.l.b16 %v4937
        %v5643 = vunpack.c.h.b16 %v4937
        %v5644 = vunpack.c.l.b16 %v4938
        %v5645 = vunpack.c.h.b16 %v4938
        %v5646 = vunpack.c.l.b16 %v4939
        %v5647 = vunpack.c.h.b16 %v4939
        %v5648 = vunpack.c.l.b16 %v4940
        %v5649 = vunpack.c.h.b16 %v4940
        %v5650 = vunpack.c.l.b16 %v4941
        %v5651 = vunpack.c.h.b16 %v4941
        %v5652 = vunpack.c.l.b16 %v4942
        %v5653 = vunpack.c.h.b16 %v4942
        %v5654 = vunpack.c.l.b16 %v4943
        %v5655 = vunpack.c.h.b16 %v4943
        %v5656 = vunpack.c.l.b16 %v4944
        %v5657 = vunpack.c.h.b16 %v4944
        %v5658 = vunpack.c.l.b16 %v4945
        %v5659 = vunpack.c.h.b16 %v4945
        %v5660 = vunpack.c.l.b16 %v4946
        %v5661 = vunpack.c.h.b16 %v4946
        %v5662 = vunpack.c.l.b16 %v4947
        %v5663 = vunpack.c.h.b16 %v4947
        %v5664 = vunpack.c.l.b16 %v4948
        %v5665 = vunpack.c.h.b16 %v4948
        %v5666 = vunpack.c.l.b16 %v4949
        %v5667 = vunpack.c.h.b16 %v4949
        %v5668 = vunpack.c.l.b16 %v4950
        %v5669 = vunpack.c.h.b16 %v4950
        %v5670 = vunpack.c.l.b16 %v4951
        %v5671 = vunpack.c.h.b16 %v4951
        %v5672 = vunpack.c.l.b16 %v4952
        %v5673 = vunpack.c.h.b16 %v4952
        %v5674 = vunpack.c.l.b16 %v4953
        %v5675 = vunpack.c.h.b16 %v4953
        %v5676 = vunpack.c.l.b16 %v4954
        %v5677 = vunpack.c.h.b16 %v4954
        %v5678 = vunpack.c.l.b16 %v4955
        %v5679 = vunpack.c.h.b16 %v4955
        %v5680 = vunpack.c.l.b16 %v4956
        %v5681 = vunpack.c.h.b16 %v4956
        %v5682 = vunpack.c.l.b16 %v4957
        %v5683 = vunpack.c.h.b16 %v4957
        %v5684 = vunpack.c.l.b16 %v4958
        %v5685 = vunpack.c.h.b16 %v4958
        %v5686 = vunpack.c.l.b16 %v4959
        %v5687 = vunpack.c.h.b16 %v4959
        %v5688 = vunpack.c.l.b16 %v4960
        %v5689 = vunpack.c.h.b16 %v4960
        %v5690 = vunpack.c.l.b16 %v4961
        %v5691 = vunpack.c.h.b16 %v4961
        %v5692 = vunpack.c.l.b16 %v4962
        %v5693 = vunpack.c.h.b16 %v4962
        %v5694 = vunpack.c.l.b16 %v4963
        %v5695 = vunpack.c.h.b16 %v4963
        %v5696 = vunpack.c.l.b16 %v4964
        %v5697 = vunpack.c.h.b16 %v4964
        %v5698 = vunpack.c.l.b16 %v4965
        %v5699 = vunpack.c.h.b16 %v4965
        %v5700 = vunpack.c.l.b16 %v4966
        %v5701 = vunpack.c.h.b16 %v4966
        %v5702 = vunpack.c.l.b16 %v4967
        %v5703 = vunpack.c.h.b16 %v4967
        %v5704 = vunpack.c.l.b16 %v4968
        %v5705 = vunpack.c.h.b16 %v4968
        %v5706 = vunpack.c.l.b16 %v4969
        %v5707 = vunpack.c.h.b16 %v4969
        %v5708 = vunpack.c.l.b16 %v4970
        %v5709 = vunpack.c.h.b16 %v4970
        %v5710 = vunpack.c.l.b16 %v4971
        %v5711 = vunpack.c.h.b16 %v4971
        %v5712 = vunpack.c.l.b16 %v4972
        %v5713 = vunpack.c.h.b16 %v4972
        %v5714 = vunpack.c.l.b16 %v4973
        %v5715 = vunpack.c.h.b16 %v4973
        %v5716 = vunpack.c.l.b16 %v4974
        %v5717 = vunpack.c.h.b16 %v4974
        %v5718 = vunpack.c.l.b16 %v4975
        %v5719 = vunpack.c.h.b16 %v4975
        %v5720 = vunpack.c.l.b16 %v4976
        %v5721 = vunpack.c.h.b16 %v4976
        %v5722 = vunpack.c.l.b16 %v4977
        %v5723 = vunpack.c.h.b16 %v4977
        %v5724 = vunpack.c.l.b16 %v4978
        %v5725 = vunpack.c.h.b16 %v4978
        %v5726 = vunpack.c.l.b16 %v4979
        %v5727 = vunpack.c.h.b16 %v4979
        %v5728 = vunpack.c.l.b16 %v4980
        %v5729 = vunpack.c.h.b16 %v4980
        %v5730 = vunpack.c.l.b16 %v4981
        %v5731 = vunpack.c.h.b16 %v4981
        %v5732 = vunpack.c.l.b16 %v4982
        %v5733 = vunpack.c.h.b16 %v4982
        %v5734 = vunpack.c.l.b16 %v4983
        %v5735 = vunpack.c.h.b16 %v4983
        %v5736 = vunpack.c.l.b16 %v4984
        %v5737 = vunpack.c.h.b16 %v4984
        %v5738 = vunpack.c.l.b16 %v4985
        %v5739 = vunpack.c.h.b16 %v4985
        %v5740 = vunpack.c.l.b16 %v4986
        %v5741 = vunpack.c.h.b16 %v4986
        %v5742 = vunpack.c.l.b16 %v4987
        %v5743 = vunpack.c.h.b16 %v4987
        %v5744 = vunpack.c.l.b16 %v4988
        %v5745 = vunpack.c.h.b16 %v4988
        %v5746 = vunpack.c.l.b16 %v4989
        %v5747 = vunpack.c.h.b16 %v4989
        %v5748 = vunpack.c.l.b16 %v4990
        %v5749 = vunpack.c.h.b16 %v4990
        %v5750 = vunpack.c.l.b16 %v4991
        %v5751 = vunpack.c.h.b16 %v4991
        %v5752 = vunpack.c.l.b16 %v4992
        %v5753 = vunpack.c.h.b16 %v4992
        %v5754 = vunpack.c.l.b16 %v4993
        %v5755 = vunpack.c.h.b16 %v4993
        %v5756 = vunpack.c.l.b16 %v4994
        %v5757 = vunpack.c.h.b16 %v4994
        %v5758 = vunpack.c.l.b16 %v4995
        %v5759 = vunpack.c.h.b16 %v4995
        %v5760 = vunpack.c.l.b16 %v4996
        %v5761 = vunpack.c.h.b16 %v4996
        %v5762 = vunpack.c.l.b16 %v4997
        %v5763 = vunpack.c.h.b16 %v4997
        %v5764 = vunpack.c.l.b16 %v4998
        %v5765 = vunpack.c.h.b16 %v4998
        %v5766 = vunpack.c.l.b16 %v4999
        %v5767 = vunpack.c.h.b16 %v4999
        %v5768 = vunpack.c.l.b16 %v5000
        %v5769 = vunpack.c.h.b16 %v5000
        %v5770 = vunpack.c.l.b16 %v5001
        %v5771 = vunpack.c.h.b16 %v5001
        %v5772 = vunpack.c.l.b16 %v5002
        %v5773 = vunpack.c.h.b16 %v5002
        %v5774 = vunpack.c.l.b16 %v5003
        %v5775 = vunpack.c.h.b16 %v5003
        %v5776 = vunpack.c.l.b16 %v5004
        %v5777 = vunpack.c.h.b16 %v5004
        %v5778 = vunpack.c.l.b16 %v5005
        %v5779 = vunpack.c.h.b16 %v5005
        %v5780 = vunpack.c.l.b16 %v5006
        %v5781 = vunpack.c.h.b16 %v5006
        %v5782 = vunpack.c.l.b16 %v5007
        %v5783 = vunpack.c.h.b16 %v5007
        %v5784 = vunpack.c.l.b16 %v5008
        %v5785 = vunpack.c.h.b16 %v5008
        %v5786 = vunpack.c.l.b16 %v5009
        %v5787 = vunpack.c.h.b16 %v5009
        %v5788 = vunpack.c.l.b16 %v5010
        %v5789 = vunpack.c.h.b16 %v5010
        %v5790 = vunpack.c.l.b16 %v5011
        %v5791 = vunpack.c.h.b16 %v5011
        %v5792 = vunpack.c.l.b16 %v5012
        %v5793 = vunpack.c.h.b16 %v5012
        %v5794 = vunpack.c.l.b16 %v5013
        %v5795 = vunpack.c.h.b16 %v5013
        %v5796 = vunpack.c.l.b16 %v5014
        %v5797 = vunpack.c.h.b16 %v5014
        %v5798 = vunpack.c.l.b16 %v5015
        %v5799 = vunpack.c.h.b16 %v5015
        %v5800 = vunpack.c.l.b16 %v5016
        %v5801 = vunpack.c.h.b16 %v5016
        %v5802 = vunpack.c.l.b16 %v5017
        %v5803 = vunpack.c.h.b16 %v5017
        %v5804 = vunpack.c.l.b16 %v5018
        %v5805 = vunpack.c.h.b16 %v5018
        %v5806 = vunpack.c.l.b16 %v5019
        %v5807 = vunpack.c.h.b16 %v5019
        %v5808 = vunpack.c.l.b16 %v5020
        %v5809 = vunpack.c.h.b16 %v5020
        %v5810 = vunpack.c.l.b16 %v5021
        %v5811 = vunpack.c.h.b16 %v5021
        %v5812 = vunpack.c.l.b16 %v5022
        %v5813 = vunpack.c.h.b16 %v5022
        %v5814 = vunpack.c.l.b16 %v5023
        %v5815 = vunpack.c.h.b16 %v5023
        %v5816 = vunpack.c.l.b16 %v5024
        %v5817 = vunpack.c.h.b16 %v5024
        %v5818 = vunpack.c.l.b16 %v5025
        %v5819 = vunpack.c.h.b16 %v5025
        %v5820 = vunpack.c.l.b16 %v5026
        %v5821 = vunpack.c.h.b16 %v5026
        %v5822 = vunpack.c.l.b16 %v5027
        %v5823 = vunpack.c.h.b16 %v5027
        %v5824 = vunpack.c.l.b16 %v5028
        %v5825 = vunpack.c.h.b16 %v5028
        %v5826 = vunpack.c.l.b16 %v5029
        %v5827 = vunpack.c.h.b16 %v5029
        %v5828 = vunpack.c.l.b16 %v5030
        %v5829 = vunpack.c.h.b16 %v5030
        %v5830 = vunpack.c.l.b16 %v5031
        %v5831 = vunpack.c.h.b16 %v5031
        %v5832 = vunpack.c.l.b16 %v5032
        %v5833 = vunpack.c.h.b16 %v5032
        %v5834 = vunpack.c.l.b16 %v5033
        %v5835 = vunpack.c.h.b16 %v5033
        %v5836 = vunpack.c.l.b16 %v5034
        %v5837 = vunpack.c.h.b16 %v5034
        %v5838 = vunpack.c.l.b16 %v5035
        %v5839 = vunpack.c.h.b16 %v5035
        %v5840 = vunpack.c.l.b16 %v5036
        %v5841 = vunpack.c.h.b16 %v5036
        %v5842 = vunpack.c.l.b16 %v5037
        %v5843 = vunpack.c.h.b16 %v5037
        %v5844 = vunpack.c.l.b16 %v5038
        %v5845 = vunpack.c.h.b16 %v5038
        %v5846 = vunpack.c.l.b16 %v5039
        %v5847 = vunpack.c.h.b16 %v5039
        %v5848 = vunpack.c.l.b16 %v5040
        %v5849 = vunpack.c.h.b16 %v5040
        %v5850 = vunpack.c.l.b16 %v5041
        %v5851 = vunpack.c.h.b16 %v5041
        %v5852 = vunpack.c.l.b16 %v5042
        %v5853 = vunpack.c.h.b16 %v5042
        %v5854 = vunpack.c.l.b16 %v5043
        %v5855 = vunpack.c.h.b16 %v5043
        %v5856 = vunpack.c.l.b16 %v5044
        %v5857 = vunpack.c.h.b16 %v5044
        %v5858 = vunpack.c.l.b16 %v5045
        %v5859 = vunpack.c.h.b16 %v5045
        %v5860 = vunpack.c.l.b16 %v5046
        %v5861 = vunpack.c.h.b16 %v5046
        %v5862 = vunpack.c.l.b16 %v5047
        %v5863 = vunpack.c.h.b16 %v5047
        %v5864 = vunpack.c.l.b16 %v5048
        %v5865 = vunpack.c.h.b16 %v5048
        %v5866 = vunpack.c.l.b16 %v5049
        %v5867 = vunpack.c.h.b16 %v5049
        %v5868 = vunpack.c.l.b16 %v5050
        %v5869 = vunpack.c.h.b16 %v5050
        %v5870 = vunpack.c.l.b16 %v5051
        %v5871 = vunpack.c.h.b16 %v5051
        %v5872 = vunpack.c.l.b16 %v5052
        %v5873 = vunpack.c.h.b16 %v5052
        %v5874 = vunpack.c.l.b16 %v5053
        %v5875 = vunpack.c.h.b16 %v5053
        %v5876 = vunpack.c.l.b16 %v5054
        %v5877 = vunpack.c.h.b16 %v5054
        %v5878 = vunpack.c.l.b16 %v5055
        %v5879 = vunpack.c.h.b16 %v5055
        %v5880 = vunpack.c.l.b16 %v5056
        %v5881 = vunpack.c.h.b16 %v5056
        %v5882 = vunpack.c.l.b16 %v5057
        %v5883 = vunpack.c.h.b16 %v5057
        %v5884 = vunpack.c.l.b16 %v5058
        %v5885 = vunpack.c.h.b16 %v5058
        %v5886 = vunpack.c.l.b16 %v5059
        %v5887 = vunpack.c.h.b16 %v5059
        %v5888 = vunpack.c.l.b16 %v5060
        %v5889 = vunpack.c.h.b16 %v5060
        %v5890 = vunpack.c.l.b16 %v5061
        %v5891 = vunpack.c.h.b16 %v5061
        %v5892 = vunpack.c.l.b16 %v5062
        %v5893 = vunpack.c.h.b16 %v5062
        %v5894 = vunpack.c.l.b16 %v5063
        %v5895 = vunpack.c.h.b16 %v5063
        %v5896 = vunpack.c.l.b16 %v5064
        %v5897 = vunpack.c.h.b16 %v5064
        %v5898 = vunpack.c.l.b16 %v5065
        %v5899 = vunpack.c.h.b16 %v5065
        %v5900 = vunpack.c.l.b16 %v5066
        %v5901 = vunpack.c.h.b16 %v5066
        %v5902 = vunpack.c.l.b16 %v5067
        %v5903 = vunpack.c.h.b16 %v5067
        %v5904 = vunpack.c.l.b16 %v5068
        %v5905 = vunpack.c.h.b16 %v5068
        %v5906 = vunpack.c.l.b16 %v5069
        %v5907 = vunpack.c.h.b16 %v5069
        %v5908 = vunpack.c.l.b16 %v5070
        %v5909 = vunpack.c.h.b16 %v5070
        %v5910 = vunpack.c.l.b16 %v5071
        %v5911 = vunpack.c.h.b16 %v5071
        %v5912 = vunpack.c.l.b16 %v5072
        %v5913 = vunpack.c.h.b16 %v5072
        %v5914 = vunpack.c.l.b16 %v5073
        %v5915 = vunpack.c.h.b16 %v5073
        %v5916 = vunpack.c.l.b16 %v5074
        %v5917 = vunpack.c.h.b16 %v5074
        %v5918 = vunpack.c.l.b16 %v5075
        %v5919 = vunpack.c.h.b16 %v5075
        %v5920 = vunpack.c.l.b16 %v5076
        %v5921 = vunpack.c.h.b16 %v5076
        %v5922 = vunpack.c.l.b16 %v5077
        %v5923 = vunpack.c.h.b16 %v5077
        %v5924 = vunpack.c.l.b16 %v5078
        %v5925 = vunpack.c.h.b16 %v5078
        %v5926 = vunpack.c.l.b16 %v5079
        %v5927 = vunpack.c.h.b16 %v5079
        %v5928 = vunpack.c.l.b16 %v5080
        %v5929 = vunpack.c.h.b16 %v5080
        %v5930 = vunpack.c.l.b16 %v5081
        %v5931 = vunpack.c.h.b16 %v5081
        %v5932 = vunpack.c.l.b16 %v5082
        %v5933 = vunpack.c.h.b16 %v5082
        %v5934 = vunpack.c.l.b16 %v5083
        %v5935 = vunpack.c.h.b16 %v5083
        %v5936 = vunpack.c.l.b16 %v5084
        %v5937 = vunpack.c.h.b16 %v5084
        %v5938 = vunpack.c.l.b16 %v5085
        %v5939 = vunpack.c.h.b16 %v5085
        %v5940 = vunpack.c.l.b16 %v5086
        %v5941 = vunpack.c.h.b16 %v5086
        %v5942 = vunpack.c.l.b16 %v5087
        %v5943 = vunpack.c.h.b16 %v5087
        %v5944 = vunpack.c.l.b16 %v5088
        %v5945 = vunpack.c.h.b16 %v5088
        %v5946 = vunpack.c.l.b16 %v5089
        %v5947 = vunpack.c.h.b16 %v5089
        %v5948 = vunpack.c.l.b16 %v5090
        %v5949 = vunpack.c.h.b16 %v5090
        %v5950 = vunpack.c.l.b16 %v5091
        %v5951 = vunpack.c.h.b16 %v5091
        %v5952 = vunpack.c.l.b16 %v5092
        %v5953 = vunpack.c.h.b16 %v5092
        %v5954 = vunpack.c.l.b16 %v5093
        %v5955 = vunpack.c.h.b16 %v5093
        %v5956 = vunpack.c.l.b16 %v5094
        %v5957 = vunpack.c.h.b16 %v5094
        %v5958 = vunpack.c.l.b16 %v5095
        %v5959 = vunpack.c.h.b16 %v5095
        %v5960 = vunpack.c.l.b16 %v5096
        %v5961 = vunpack.c.h.b16 %v5096
        %v5962 = vunpack.c.l.b16 %v5097
        %v5963 = vunpack.c.h.b16 %v5097
        %v5964 = vunpack.c.l.b16 %v5098
        %v5965 = vunpack.c.h.b16 %v5098
        %v5966 = vunpack.c.l.b16 %v5099
        %v5967 = vunpack.c.h.b16 %v5099
        %v5968 = vunpack.c.l.b16 %v5100
        %v5969 = vunpack.c.h.b16 %v5100
        %v5970 = vunpack.c.l.b16 %v5101
        %v5971 = vunpack.c.h.b16 %v5101
        %v5972 = vunpack.c.l.b16 %v5102
        %v5973 = vunpack.c.h.b16 %v5102
        %v5974 = vunpack.c.l.b16 %v5103
        %v5975 = vunpack.c.h.b16 %v5103
        %v5976 = vunpack.c.l.b16 %v5104
        %v5977 = vunpack.c.h.b16 %v5104
        %v5978 = vunpack.c.l.b16 %v5105
        %v5979 = vunpack.c.h.b16 %v5105
        %v5980 = vunpack.c.l.b16 %v5106
        %v5981 = vunpack.c.h.b16 %v5106
        %v5982 = vunpack.c.l.b16 %v5107
        %v5983 = vunpack.c.h.b16 %v5107
        %v5984 = vunpack.c.l.b16 %v5108
        %v5985 = vunpack.c.h.b16 %v5108
        %v5986 = vunpack.c.l.b16 %v5109
        %v5987 = vunpack.c.h.b16 %v5109
        %v5988 = vunpack.c.l.b16 %v5110
        %v5989 = vunpack.c.h.b16 %v5110
        %v5990 = vunpack.c.l.b16 %v5111
        %v5991 = vunpack.c.h.b16 %v5111
        %v5992 = vunpack.c.l.b16 %v5112
        %v5993 = vunpack.c.h.b16 %v5112
        %v5994 = vunpack.c.l.b16 %v5113
        %v5995 = vunpack.c.h.b16 %v5113
        %v5996 = vunpack.c.l.b16 %v5114
        %v5997 = vunpack.c.h.b16 %v5114
        %v5998 = vunpack.c.l.b16 %v5115
        %v5999 = vunpack.c.h.b16 %v5115
        %v6000 = vunpack.c.l.b16 %v5116
        %v6001 = vunpack.c.h.b16 %v5116
        %v6002 = vunpack.c.l.b16 %v5117
        %v6003 = vunpack.c.h.b16 %v5117
        %v6004 = vunpack.c.l.b16 %v5118
        %v6005 = vunpack.c.h.b16 %v5118
        %v6006 = vunpack.c.l.b16 %v5119
        %v6007 = vunpack.c.h.b16 %v5119
        %v6008 = vunpack.c.l.b16 %v5120
        %v6009 = vunpack.c.h.b16 %v5120
        %v6010 = vunpack.c.l.b16 %v5121
        %v6011 = vunpack.c.h.b16 %v5121
        %v6012 = vunpack.c.l.b16 %v5122
        %v6013 = vunpack.c.h.b16 %v5122
        %v6014 = vunpack.c.l.b16 %v5123
        %v6015 = vunpack.c.h.b16 %v5123
        %v6016 = vunpack.c.l.b16 %v5124
        %v6017 = vunpack.c.h.b16 %v5124
        %v6018 = vunpack.c.l.b16 %v5125
        %v6019 = vunpack.c.h.b16 %v5125
        %v6020 = vunpack.c.l.b16 %v5126
        %v6021 = vunpack.c.h.b16 %v5126
        %v6022 = vunpack.c.l.b16 %v5127
        %v6023 = vunpack.c.h.b16 %v5127
        %v6024 = vpack.c.b16 %v5454, %v5448
        %v6025 = vpack.c.b16 %v5455, %v5449
        %v6026 = vpack.c.b16 %v5456, %v5450
        %v6027 = vpack.c.b16 %v5457, %v5451
        %v6028 = vpack.c.b16 %v5458, %v5452
        %v6029 = vpack.c.b16 %v5459, %v5453
        %v6030 = vpack.c.b16 %v5466, %v5460
        %v6031 = vpack.c.b16 %v5467, %v5461
        %v6032 = vpack.c.b16 %v5468, %v5462
        %v6033 = vpack.c.b16 %v5469, %v5463
        %v6034 = vpack.c.b16 %v5470, %v5464
        %v6035 = vpack.c.b16 %v5471, %v5465
        %v6036 = vpack.c.b16 %v5478, %v5472
        %v6037 = vpack.c.b16 %v5479, %v5473
        %v6038 = vpack.c.b16 %v5480, %v5474
        %v6039 = vpack.c.b16 %v5481, %v5475
        %v6040 = vpack.c.b16 %v5482, %v5476
        %v6041 = vpack.c.b16 %v5483, %v5477
        %v6042 = vpack.c.b16 %v5490, %v5484
        %v6043 = vpack.c.b16 %v5491, %v5485
        %v6044 = vpack.c.b16 %v5492, %v5486
        %v6045 = vpack.c.b16 %v5493, %v5487
        %v6046 = vpack.c.b16 %v5494, %v5488
        %v6047 = vpack.c.b16 %v5495, %v5489
        %v6048 = vpack.c.b16 %v5502, %v5496
        %v6049 = vpack.c.b16 %v5503, %v5497
        %v6050 = vpack.c.b16 %v5504, %v5498
        %v6051 = vpack.c.b16 %v5505, %v5499
        %v6052 = vpack.c.b16 %v5506, %v5500
        %v6053 = vpack.c.b16 %v5507, %v5501
        %v6054 = vpack.c.b16 %v5514, %v5508
        %v6055 = vpack.c.b16 %v5515, %v5509
        %v6056 = vpack.c.b16 %v5516, %v5510
        %v6057 = vpack.c.b16 %v5517, %v5511
        %v6058 = vpack.c.b16 %v5518, %v5512
        %v6059 = vpack.c.b16 %v5519, %v5513
        %v6060 = vpack.c.b16 %v5526, %v5520
        %v6061 = vpack.c.b16 %v5527, %v5521
        %v6062 = vpack.c.b16 %v5528, %v5522
        %v6063 = vpack.c.b16 %v5529, %v5523
        %v6064 = vpack.c.b16 %v5530, %v5524
        %v6065 = vpack.c.b16 %v5531, %v5525
        %v6066 = vpack.c.b16 %v5538, %v5532
        %v6067 = vpack.c.b16 %v5539, %v5533
        %v6068 = vpack.c.b16 %v5540, %v5534
        %v6069 = vpack.c.b16 %v5541, %v5535
        %v6070 = vpack.c.b16 %v5542, %v5536
        %v6071 = vpack.c.b16 %v5543, %v5537
        %v6072 = vpack.c.b16 %v5550, %v5544
        %v6073 = vpack.c.b16 %v5551, %v5545
        %v6074 = vpack.c.b16 %v5552, %v5546
        %v6075 = vpack.c.b16 %v5553, %v5547
        %v6076 = vpack.c.b16 %v5554, %v5548
        %v6077 = vpack.c.b16 %v5555, %v5549
        %v6078 = vpack.c.b16 %v5562, %v5556
        %v6079 = vpack.c.b16 %v5563, %v5557
        %v6080 = vpack.c.b16 %v5564, %v5558
        %v6081 = vpack.c.b16 %v5565, %v5559
        %v6082 = vpack.c.b16 %v5566, %v5560
        %v6083 = vpack.c.b16 %v5567, %v5561
        %v6084 = vpack.c.b16 %v5574, %v5568
        %v6085 = vpack.c.b16 %v5575, %v5569
        %v6086 = vpack.c.b16 %v5576, %v5570
        %v6087 = vpack.c.b16 %v5577, %v5571
        %v6088 = vpack.c.b16 %v5578, %v5572
        %v6089 = vpack.c.b16 %v5579, %v5573
        %v6090 = vpack.c.b16 %v5586, %v5580
        %v6091 = vpack.c.b16 %v5587, %v5581
        %v6092 = vpack.c.b16 %v5588, %v5582
        %v6093 = vpack.c.b16 %v5589, %v5583
        %v6094 = vpack.c.b16 %v5590, %v5584
        %v6095 = vpack.c.b16 %v5591, %v5585
        %v6096 = vpack.c.b16 %v5598, %v5592
        %v6097 = vpack.c.b16 %v5599, %v5593
        %v6098 = vpack.c.b16 %v5600, %v5594
        %v6099 = vpack.c.b16 %v5601, %v5595
        %v6100 = vpack.c.b16 %v5602, %v5596
        %v6101 = vpack.c.b16 %v5603, %v5597
        %v6102 = vpack.c.b16 %v5610, %v5604
        %v6103 = vpack.c.b16 %v5611, %v5605
        %v6104 = vpack.c.b16 %v5612, %v5606
        %v6105 = vpack.c.b16 %v5613, %v5607
        %v6106 = vpack.c.b16 %v5614, %v5608
        %v6107 = vpack.c.b16 %v5615, %v5609
        %v6108 = vpack.c.b16 %v5622, %v5616
        %v6109 = vpack.c.b16 %v5623, %v5617
        %v6110 = vpack.c.b16 %v5624, %v5618
        %v6111 = vpack.c.b16 %v5625, %v5619
        %v6112 = vpack.c.b16 %v5626, %v5620
        %v6113 = vpack.c.b16 %v5627, %v5621
        %v6114 = vpack.c.b16 %v5634, %v5628
        %v6115 = vpack.c.b16 %v5635, %v5629
        %v6116 = vpack.c.b16 %v5636, %v5630
        %v6117 = vpack.c.b16 %v5637, %v5631
        %v6118 = vpack.c.b16 %v5638, %v5632
        %v6119 = vpack.c.b16 %v5639, %v5633
        %v6120 = vpack.c.b16 %v5646, %v5640
        %v6121 = vpack.c.b16 %v5647, %v5641
        %v6122 = vpack.c.b16 %v5648, %v5642
        %v6123 = vpack.c.b16 %v5649, %v5643
        %v6124 = vpack.c.b16 %v5650, %v5644
        %v6125 = vpack.c.b16 %v5651, %v5645
        %v6126 = vpack.c.b16 %v5658, %v5652
        %v6127 = vpack.c.b16 %v5659, %v5653
        %v6128 = vpack.c.b16 %v5660, %v5654
        %v6129 = vpack.c.b16 %v5661, %v5655
        %v6130 = vpack.c.b16 %v5662, %v5656
        %v6131 = vpack.c.b16 %v5663, %v5657
        %v6132 = vpack.c.b16 %v5670, %v5664
        %v6133 = vpack.c.b16 %v5671, %v5665
        %v6134 = vpack.c.b16 %v5672, %v5666
        %v6135 = vpack.c.b16 %v5673, %v5667
        %v6136 = vpack.c.b16 %v5674, %v5668
        %v6137 = vpack.c.b16 %v5675, %v5669
        %v6138 = vpack.c.b16 %v5682, %v5676
        %v6139 = vpack.c.b16 %v5683, %v5677
        %v6140 = vpack.c.b16 %v5684, %v5678
        %v6141 = vpack.c.b16 %v5685, %v5679
        %v6142 = vpack.c.b16 %v5686, %v5680
        %v6143 = vpack.c.b16 %v5687, %v5681
        %v6144 = vpack.c.b16 %v5694, %v5688
        %v6145 = vpack.c.b16 %v5695, %v5689
        %v6146 = vpack.c.b16 %v5696, %v5690
        %v6147 = vpack.c.b16 %v5697, %v5691
        %v6148 = vpack.c.b16 %v5698, %v5692
        %v6149 = vpack.c.b16 %v5699, %v5693
        %v6150 = vpack.c.b16 %v5706, %v5700
        %v6151 = vpack.c.b16 %v5707, %v5701
        %v6152 = vpack.c.b16 %v5708, %v5702
        %v6153 = vpack.c.b16 %v5709, %v5703
        %v6154 = vpack.c.b16 %v5710, %v5704
        %v6155 = vpack.c.b16 %v5711, %v5705
        %v6156 = vpack.c.b16 %v5718, %v5712
        %v6157 = vpack.c.b16 %v5719, %v5713
        %v6158 = vpack.c.b16 %v5720, %v5714
        %v6159 = vpack.c.b16 %v5721, %v5715
        %v6160 = vpack.c.b16 %v5722, %v5716
        %v6161 = vpack.c.b16 %v5723, %v5717
        %v6162 = vpack.c.b16 %v5730, %v5724
        %v6163 = vpack.c.b16 %v5731, %v5725
        %v6164 = vpack.c.b16 %v5732, %v5726
        %v6165 = vpack.c.b16 %v5733, %v5727
        %v6166 = vpack.c.b16 %v5734, %v5728
        %v6167 = vpack.c.b16 %v5735, %v5729
        %v6168 = vpack.c.b16 %v5742, %v5736
        %v6169 = vpack.c.b16 %v5743, %v5737
        %v6170 = vpack.c.b16 %v5744, %v5738
        %v6171 = vpack.c.b16 %v5745, %v5739
        %v6172 = vpack.c.b16 %v5746, %v5740
        %v6173 = vpack.c.b16 %v5747, %v5741
        %v6174 = vpack.c.b16 %v5754, %v5748
        %v6175 = vpack.c.b16 %v5755, %v5749
        %v6176 = vpack.c.b16 %v5756, %v5750
        %v6177 = vpack.c.b16 %v5757, %v5751
        %v6178 = vpack.c.b16 %v5758, %v5752
        %v6179 = vpack.c.b16 %v5759, %v5753
        %v6180 = vpack.c.b16 %v5766, %v5760
        %v6181 = vpack.c.b16 %v5767, %v5761
        %v6182 = vpack.c.b16 %v5768, %v5762
        %v6183 = vpack.c.b16 %v5769, %v5763
        %v6184 = vpack.c.b16 %v5770, %v5764
        %v6185 = vpack.c.b16 %v5771, %v5765
        %v6186 = vpack.c.b16 %v5778, %v5772
        %v6187 = vpack.c.b16 %v5779, %v5773
        %v6188 = vpack.c.b16 %v5780, %v5774
        %v6189 = vpack.c.b16 %v5781, %v5775
        %v6190 = vpack.c.b16 %v5782, %v5776
        %v6191 = vpack.c.b16 %v5783, %v5777
        %v6192 = vpack.c.b16 %v5790, %v5784
        %v6193 = vpack.c.b16 %v5791, %v5785
        %v6194 = vpack.c.b16 %v5792, %v5786
        %v6195 = vpack.c.b16 %v5793, %v5787
        %v6196 = vpack.c.b16 %v5794, %v5788
        %v6197 = vpack.c.b16 %v5795, %v5789
        %v6198 = vpack.c.b16 %v5802, %v5796
        %v6199 = vpack.c.b16 %v5803, %v5797
        %v6200 = vpack.c.b16 %v5804, %v5798
        %v6201 = vpack.c.b16 %v5805, %v5799
        %v6202 = vpack.c.b16 %v5806, %v5800
        %v6203 = vpack.c.b16 %v5807, %v5801
        %v6204 = vpack.c.b16 %v5814, %v5808
        %v6205 = vpack.c.b16 %v5815, %v5809
        %v6206 = vpack.c.b16 %v5816, %v5810
        %v6207 = vpack.c.b16 %v5817, %v5811
        %v6208 = vpack.c.b16 %v5818, %v5812
        %v6209 = vpack.c.b16 %v5819, %v5813
        %v6210 = vpack.c.b16 %v5826, %v5820
        %v6211 = vpack.c.b16 %v5827, %v5821
        %v6212 = vpack.c.b16 %v5828, %v5822
        %v6213 = vpack.c.b16 %v5829, %v5823
        %v6214 = vpack.c.b16 %v5830, %v5824
        %v6215 = vpack.c.b16 %v5831, %v5825
        %v6216 = vpack.c.b16 %v5838, %v5832
        %v6217 = vpack.c.b16 %v5839, %v5833
        %v6218 = vpack.c.b16 %v5840, %v5834
        %v6219 = vpack.c.b16 %v5841, %v5835
        %v6220 = vpack.c.b16 %v5842, %v5836
        %v6221 = vpack.c.b16 %v5843, %v5837
        %v6222 = vpack.c.b16 %v5850, %v5844
        %v6223 = vpack.c.b16 %v5851, %v5845
        %v6224 = vpack.c.b16 %v5852, %v5846
        %v6225 = vpack.c.b16 %v5853, %v5847
        %v6226 = vpack.c.b16 %v5854, %v5848
        %v6227 = vpack.c.b16 %v5855, %v5849
        %v6228 = vpack.c.b16 %v5862, %v5856
        %v6229 = vpack.c.b16 %v5863, %v5857
        %v6230 = vpack.c.b16 %v5864, %v5858
        %v6231 = vpack.c.b16 %v5865, %v5859
        %v6232 = vpack.c.b16 %v5866, %v5860
        %v6233 = vpack.c.b16 %v5867, %v5861
        %v6234 = vpack.c.b16 %v5874, %v5868
        %v6235 = vpack.c.b16 %v5875, %v5869
        %v6236 = vpack.c.b16 %v5876, %v5870
        %v6237 = vpack.c.b16 %v5877, %v5871
        %v6238 = vpack.c.b16 %v5878, %v5872
        %v6239 = vpack.c.b16 %v5879, %v5873
        %v6240 = vpack.c.b16 %v5886, %v5880
        %v6241 = vpack.c.b16 %v5887, %v5881
        %v6242 = vpack.c.b16 %v5888, %v5882
        %v6243 = vpack.c.b16 %v5889, %v5883
        %v6244 = vpack.c.b16 %v5890, %v5884
        %v6245 = vpack.c.b16 %v5891, %v5885
        %v6246 = vpack.c.b16 %v5898, %v5892
        %v6247 = vpack.c.b16 %v5899, %v5893
        %v6248 = vpack.c.b16 %v5900, %v5894
        %v6249 = vpack.c.b16 %v5901, %v5895
        %v6250 = vpack.c.b16 %v5902, %v5896
        %v6251 = vpack.c.b16 %v5903, %v5897
        %v6252 = vpack.c.b16 %v5910, %v5904
        %v6253 = vpack.c.b16 %v5911, %v5905
        %v6254 = vpack.c.b16 %v5912, %v5906
        %v6255 = vpack.c.b16 %v5913, %v5907
        %v6256 = vpack.c.b16 %v5914, %v5908
        %v6257 = vpack.c.b16 %v5915, %v5909
        %v6258 = vpack.c.b16 %v5922, %v5916
        %v6259 = vpack.c.b16 %v5923, %v5917
        %v6260 = vpack.c.b16 %v5924, %v5918
        %v6261 = vpack.c.b16 %v5925, %v5919
        %v6262 = vpack.c.b16 %v5926, %v5920
        %v6263 = vpack.c.b16 %v5927, %v5921
        %v6264 = vpack.c.b16 %v5934, %v5928
        %v6265 = vpack.c.b16 %v5935, %v5929
        %v6266 = vpack.c.b16 %v5936, %v5930
        %v6267 = vpack.c.b16 %v5937, %v5931
        %v6268 = vpack.c.b16 %v5938, %v5932
        %v6269 = vpack.c.b16 %v5939, %v5933
        %v6270 = vpack.c.b16 %v5946, %v5940
        %v6271 = vpack.c.b16 %v5947, %v5941
        %v6272 = vpack.c.b16 %v5948, %v5942
        %v6273 = vpack.c.b16 %v5949, %v5943
        %v6274 = vpack.c.b16 %v5950, %v5944
        %v6275 = vpack.c.b16 %v5951, %v5945
        %v6276 = vpack.c.b16 %v5958, %v5952
        %v6277 = vpack.c.b16 %v5959, %v5953
        %v6278 = vpack.c.b16 %v5960, %v5954
        %v6279 = vpack.c.b16 %v5961, %v5955
        %v6280 = vpack.c.b16 %v5962, %v5956
        %v6281 = vpack.c.b16 %v5963, %v5957
        %v6282 = vpack.c.b16 %v5970, %v5964
        %v6283 = vpack.c.b16 %v5971, %v5965
        %v6284 = vpack.c.b16 %v5972, %v5966
        %v6285 = vpack.c.b16 %v5973, %v5967
        %v6286 = vpack.c.b16 %v5974, %v5968
        %v6287 = vpack.c.b16 %v5975, %v5969
        %v6288 = vpack.c.b16 %v5982, %v5976
        %v6289 = vpack.c.b16 %v5983, %v5977
        %v6290 = vpack.c.b16 %v5984, %v5978
        %v6291 = vpack.c.b16 %v5985, %v5979
        %v6292 = vpack.c.b16 %v5986, %v5980
        %v6293 = vpack.c.b16 %v5987, %v5981
        %v6294 = vpack.c.b16 %v5994, %v5988
        %v6295 = vpack.c.b16 %v5995, %v5989
        %v6296 = vpack.c.b16 %v5996, %v5990
        %v6297 = vpack.c.b16 %v5997, %v5991
        %v6298 = vpack.c.b16 %v5998, %v5992
        %v6299 = vpack.c.b16 %v5999, %v5993
        %v6300 = vpack.c.b16 %v6006, %v6000
        %v6301 = vpack.c.b16 %v6007, %v6001
        %v6302 = vpack.c.b16 %v6008, %v6002
        %v6303 = vpack.c.b16 %v6009, %v6003
        %v6304 = vpack.c.b16 %v6010, %v6004
        %v6305 = vpack.c.b16 %v6011, %v6005
        %v6306 = vpack.c.b16 %v6018, %v6012
        %v6307 = vpack.c.b16 %v6019, %v6013
        %v6308 = vpack.c.b16 %v6020, %v6014
        %v6309 = vpack.c.b16 %v6021, %v6015
        %v6310 = vpack.c.b16 %v6022, %v6016
        %v6311 = vpack.c.b16 %v6023, %v6017
        %6600 = vmatprep.subr.bf16.mxu0 %v6025
        %6601 = vmatpush1.bf16.msra.mxu0 %v6024
        %6602 = vmatprep.subr.bf16.mxu0 %v6031
        %6603 = vmatpush1.bf16.msra.mxu0 %v6030
        %6604 = vmatprep.subr.bf16.mxu0 %v6037
        %6605 = vmatpush1.bf16.msra.mxu0 %v6036
        %6606 = vmatprep.subr.bf16.mxu0 %v6043
        %6607 = vmatpush1.bf16.msra.mxu0 %v6042
        %6608 = vmatprep.subr.bf16.mxu0 %v6049
        %6609 = vmatpush1.bf16.msra.mxu0 %v6048
        %6610 = vmatprep.subr.bf16.mxu0 %v6055
        %6611 = vmatpush1.bf16.msra.mxu0 %v6054
        %6612 = vmatprep.subr.bf16.mxu0 %v6061
        %6613 = vmatpush1.bf16.msra.mxu0 %v6060
        %6614 = vmatprep.subr.bf16.mxu0 %v6067
        %6615 = vmatpush1.bf16.msra.mxu0 %v6066
        %6616 = vmatprep.subr.bf16.mxu0 %v6073
        %6617 = vmatpush1.bf16.msra.mxu0 %v6072
        %6618 = vmatprep.subr.bf16.mxu0 %v6079
        %6619 = vmatpush1.bf16.msra.mxu0 %v6078
        %6620 = vmatprep.subr.bf16.mxu0 %v6085
        %6621 = vmatpush1.bf16.msra.mxu0 %v6084
        %6622 = vmatprep.subr.bf16.mxu0 %v6091
        %6623 = vmatpush1.bf16.msra.mxu0 %v6090
        %6624 = vmatprep.subr.bf16.mxu0 %v6097
        %6625 = vmatpush1.bf16.msra.mxu0 %v6096
        %6626 = vmatprep.subr.bf16.mxu0 %v6103
        %6627 = vmatpush1.bf16.msra.mxu0 %v6102
        %6628 = vmatprep.subr.bf16.mxu0 %v6109
        %6629 = vmatpush1.bf16.msra.mxu0 %v6108
        %6630 = vmatprep.subr.bf16.mxu0 %v6115
        %6631 = vmatpush1.bf16.msra.mxu0 %v6114
        %6632 = vmatprep.mubr.bf16.mxu0 %v4835
        %6633 = vmatmul.mubr.bf16.gmra.mrb[0].mxu0 %v4834
        %v6634 = vpop.f32.mrb[0].mxu0
        %v6635 = vadd.f32 %v5133, %v6634
        %v6636 = vpop.f32.mrb[0].mxu0
        %v6637 = vadd.f32 %v5137, %v6636
        %v6638 = vpop.f32.mrb[0].mxu0
        %v6639 = vpop.f32.mrb[0].mxu0
        %6640 = vdwg.mxu0
        %6641 = vmatprep.subr.bf16.mxu0 %v6121
        %6642 = vmatpush1.bf16.msra.mxu0 %v6120
        %6643 = vmatprep.subr.bf16.mxu0 %v6127
        %6644 = vmatpush1.bf16.msra.mxu0 %v6126
        %6645 = vmatprep.subr.bf16.mxu0 %v6133
        %6646 = vmatpush1.bf16.msra.mxu0 %v6132
        %6647 = vmatprep.subr.bf16.mxu0 %v6139
        %6648 = vmatpush1.bf16.msra.mxu0 %v6138
        %6649 = vmatprep.subr.bf16.mxu0 %v6145
        %6650 = vmatpush1.bf16.msra.mxu0 %v6144
        %6651 = vmatprep.subr.bf16.mxu0 %v6151
        %6652 = vmatpush1.bf16.msra.mxu0 %v6150
        %6653 = vmatprep.subr.bf16.mxu0 %v6157
        %6654 = vmatpush1.bf16.msra.mxu0 %v6156
        %6655 = vmatprep.subr.bf16.mxu0 %v6163
        %6656 = vmatpush1.bf16.msra.mxu0 %v6162
        %6657 = vmatprep.subr.bf16.mxu0 %v6169
        %6658 = vmatpush1.bf16.msra.mxu0 %v6168
        %6659 = vmatprep.subr.bf16.mxu0 %v6175
        %6660 = vmatpush1.bf16.msra.mxu0 %v6174
        %6661 = vmatprep.subr.bf16.mxu0 %v6181
        %6662 = vmatpush1.bf16.msra.mxu0 %v6180
        %6663 = vmatprep.subr.bf16.mxu0 %v6187
        %6664 = vmatpush1.bf16.msra.mxu0 %v6186
        %6665 = vmatprep.subr.bf16.mxu0 %v6193
        %6666 = vmatpush1.bf16.msra.mxu0 %v6192
        %6667 = vmatprep.subr.bf16.mxu0 %v6199
        %6668 = vmatpush1.bf16.msra.mxu0 %v6198
        %6669 = vmatprep.subr.bf16.mxu0 %v6205
        %6670 = vmatpush1.bf16.msra.mxu0 %v6204
        %6671 = vmatprep.subr.bf16.mxu0 %v6211
        %6672 = vmatpush1.bf16.msra.mxu0 %v6210
        %6673 = vmatprep.mubr.bf16.mxu0 %v4837
        %6674 = vmatmul.mubr.bf16.gmra.mrb[0].mxu0 %v4836
        %v6675 = vpop.f32.mrb[0].mxu0
        %v6676 = vadd.f32 %v6635, %v6675
        %v6677 = vpop.f32.mrb[0].mxu0
        %v6678 = vadd.f32 %v6637, %v6677
        %v6679 = vpop.f32.mrb[0].mxu0
        %v6680 = vpop.f32.mrb[0].mxu0
        %6681 = vdwg.mxu0
        %6682 = vmatprep.subr.bf16.mxu0 %v6217
        %6683 = vmatpush1.bf16.msra.mxu0 %v6216
        %6684 = vmatprep.subr.bf16.mxu0 %v6223
        %6685 = vmatpush1.bf16.msra.mxu0 %v6222
        %6686 = vmatprep.subr.bf16.mxu0 %v6229
        %6687 = vmatpush1.bf16.msra.mxu0 %v6228
        %6688 = vmatprep.subr.bf16.mxu0 %v6235
        %6689 = vmatpush1.bf16.msra.mxu0 %v6234
        %6690 = vmatprep.subr.bf16.mxu0 %v6241
        %6691 = vmatpush1.bf16.msra.mxu0 %v6240
        %6692 = vmatprep.subr.bf16.mxu0 %v6247
        %6693 = vmatpush1.bf16.msra.mxu0 %v6246
        %6694 = vmatprep.subr.bf16.mxu0 %v6253
        %6695 = vmatpush1.bf16.msra.mxu0 %v6252
        %6696 = vmatprep.subr.bf16.mxu0 %v6259
        %6697 = vmatpush1.bf16.msra.mxu0 %v6258
        %6698 = vmatprep.subr.bf16.mxu0 %v6265
        %6699 = vmatpush1.bf16.msra.mxu0 %v6264
        %6700 = vmatprep.subr.bf16.mxu0 %v6271
        %6701 = vmatpush1.bf16.msra.mxu0 %v6270
        %6702 = vmatprep.subr.bf16.mxu0 %v6277
        %6703 = vmatpush1.bf16.msra.mxu0 %v6276
        %6704 = vmatprep.subr.bf16.mxu0 %v6283
        %6705 = vmatpush1.bf16.msra.mxu0 %v6282
        %6706 = vmatprep.subr.bf16.mxu0 %v6289
        %6707 = vmatpush1.bf16.msra.mxu0 %v6288
        %6708 = vmatprep.subr.bf16.mxu0 %v6295
        %6709 = vmatpush1.bf16.msra.mxu0 %v6294
        %6710 = vmatprep.subr.bf16.mxu0 %v6301
        %6711 = vmatpush1.bf16.msra.mxu0 %v6300
        %6712 = vmatprep.subr.bf16.mxu0 %v6307
        %6713 = vmatpush1.bf16.msra.mxu0 %v6306
        %6714 = vmatprep.mubr.bf16.mxu0 %v4839
        %6715 = vmatmul.mubr.bf16.gmra.mrb[0].mxu0 %v4838
        %v6716 = vpop.f32.mrb[0].mxu0
        %v6717 = vadd.f32 %v6676, %v6716
        %v6718 = vpop.f32.mrb[0].mxu0
        %v6719 = vadd.f32 %v6678, %v6718
        %v6720 = vpop.f32.mrb[0].mxu0
        %v6721 = vpop.f32.mrb[0].mxu0
        %6722 = vdwg.mxu0
        %6723 = vmatprep.subr.bf16.mxu0 %v6027
        %6724 = vmatpush1.bf16.msra.mxu0 %v6026
        %6725 = vmatprep.subr.bf16.mxu0 %v6033
        %6726 = vmatpush1.bf16.msra.mxu0 %v6032
        %6727 = vmatprep.subr.bf16.mxu0 %v6039
        %6728 = vmatpush1.bf16.msra.mxu0 %v6038
        %6729 = vmatprep.subr.bf16.mxu0 %v6045
        %6730 = vmatpush1.bf16.msra.mxu0 %v6044
        %6731 = vmatprep.subr.bf16.mxu0 %v6051
        %6732 = vmatpush1.bf16.msra.mxu0 %v6050
        %6733 = vmatprep.subr.bf16.mxu0 %v6057
        %6734 = vmatpush1.bf16.msra.mxu0 %v6056
        %6735 = vmatprep.subr.bf16.mxu0 %v6063
        %6736 = vmatpush1.bf16.msra.mxu0 %v6062
        %6737 = vmatprep.subr.bf16.mxu0 %v6069
        %6738 = vmatpush1.bf16.msra.mxu0 %v6068
        %6739 = vmatprep.subr.bf16.mxu0 %v6075
        %6740 = vmatpush1.bf16.msra.mxu0 %v6074
        %6741 = vmatprep.subr.bf16.mxu0 %v6081
        %6742 = vmatpush1.bf16.msra.mxu0 %v6080
        %6743 = vmatprep.subr.bf16.mxu0 %v6087
        %6744 = vmatpush1.bf16.msra.mxu0 %v6086
        %6745 = vmatprep.subr.bf16.mxu0 %v6093
        %6746 = vmatpush1.bf16.msra.mxu0 %v6092
        %6747 = vmatprep.subr.bf16.mxu0 %v6099
        %6748 = vmatpush1.bf16.msra.mxu0 %v6098
        %6749 = vmatprep.subr.bf16.mxu0 %v6105
        %6750 = vmatpush1.bf16.msra.mxu0 %v6104
        %6751 = vmatprep.subr.bf16.mxu0 %v6111
        %6752 = vmatpush1.bf16.msra.mxu0 %v6110
        %6753 = vmatprep.subr.bf16.mxu0 %v6117
        %6754 = vmatpush1.bf16.msra.mxu0 %v6116
        %6755 = vmatprep.mubr.bf16.mxu0 %v4835
        %6756 = vmatmul.mubr.bf16.gmra.mrb[0].mxu0 %v4834
        %v6757 = vpop.f32.mrb[0].mxu0
        %v6758 = vadd.f32 %v5141, %v6757
        %v6759 = vpop.f32.mrb[0].mxu0
        %v6760 = vadd.f32 %v5145, %v6759
        %v6761 = vpop.f32.mrb[0].mxu0
        %v6762 = vpop.f32.mrb[0].mxu0
        %6763 = vdwg.mxu0
        %6764 = vmatprep.subr.bf16.mxu0 %v6123
        %6765 = vmatpush1.bf16.msra.mxu0 %v6122
        %6766 = vmatprep.subr.bf16.mxu0 %v6129
        %6767 = vmatpush1.bf16.msra.mxu0 %v6128
        %6768 = vmatprep.subr.bf16.mxu0 %v6135
        %6769 = vmatpush1.bf16.msra.mxu0 %v6134
        %6770 = vmatprep.subr.bf16.mxu0 %v6141
        %6771 = vmatpush1.bf16.msra.mxu0 %v6140
        %6772 = vmatprep.subr.bf16.mxu0 %v6147
        %6773 = vmatpush1.bf16.msra.mxu0 %v6146
        %6774 = vmatprep.subr.bf16.mxu0 %v6153
        %6775 = vmatpush1.bf16.msra.mxu0 %v6152
        %6776 = vmatprep.subr.bf16.mxu0 %v6159
        %6777 = vmatpush1.bf16.msra.mxu0 %v6158
        %6778 = vmatprep.subr.bf16.mxu0 %v6165
        %6779 = vmatpush1.bf16.msra.mxu0 %v6164
        %6780 = vmatprep.subr.bf16.mxu0 %v6171
        %6781 = vmatpush1.bf16.msra.mxu0 %v6170
        %6782 = vmatprep.subr.bf16.mxu0 %v6177
        %6783 = vmatpush1.bf16.msra.mxu0 %v6176
        %6784 = vmatprep.subr.bf16.mxu0 %v6183
        %6785 = vmatpush1.bf16.msra.mxu0 %v6182
        %6786 = vmatprep.subr.bf16.mxu0 %v6189
        %6787 = vmatpush1.bf16.msra.mxu0 %v6188
        %6788 = vmatprep.subr.bf16.mxu0 %v6195
        %6789 = vmatpush1.bf16.msra.mxu0 %v6194
        %6790 = vmatprep.subr.bf16.mxu0 %v6201
        %6791 = vmatpush1.bf16.msra.mxu0 %v6200
        %6792 = vmatprep.subr.bf16.mxu0 %v6207
        %6793 = vmatpush1.bf16.msra.mxu0 %v6206
        %6794 = vmatprep.subr.bf16.mxu0 %v6213
        %6795 = vmatpush1.bf16.msra.mxu0 %v6212
        %6796 = vmatprep.mubr.bf16.mxu0 %v4837
        %6797 = vmatmul.mubr.bf16.gmra.mrb[0].mxu0 %v4836
        %v6798 = vpop.f32.mrb[0].mxu0
        %v6799 = vadd.f32 %v6758, %v6798
        %v6800 = vpop.f32.mrb[0].mxu0
        %v6801 = vadd.f32 %v6760, %v6800
        %v6802 = vpop.f32.mrb[0].mxu0
        %v6803 = vpop.f32.mrb[0].mxu0
        %6804 = vdwg.mxu0
        %6805 = vmatprep.subr.bf16.mxu0 %v6219
        %6806 = vmatpush1.bf16.msra.mxu0 %v6218
        %6807 = vmatprep.subr.bf16.mxu0 %v6225
        %6808 = vmatpush1.bf16.msra.mxu0 %v6224
        %6809 = vmatprep.subr.bf16.mxu0 %v6231
        %6810 = vmatpush1.bf16.msra.mxu0 %v6230
        %6811 = vmatprep.subr.bf16.mxu0 %v6237
        %6812 = vmatpush1.bf16.msra.mxu0 %v6236
        %6813 = vmatprep.subr.bf16.mxu0 %v6243
        %6814 = vmatpush1.bf16.msra.mxu0 %v6242
        %6815 = vmatprep.subr.bf16.mxu0 %v6249
        %6816 = vmatpush1.bf16.msra.mxu0 %v6248
        %6817 = vmatprep.subr.bf16.mxu0 %v6255
        %6818 = vmatpush1.bf16.msra.mxu0 %v6254
        %6819 = vmatprep.subr.bf16.mxu0 %v6261
        %6820 = vmatpush1.bf16.msra.mxu0 %v6260
        %6821 = vmatprep.subr.bf16.mxu0 %v6267
        %6822 = vmatpush1.bf16.msra.mxu0 %v6266
        %6823 = vmatprep.subr.bf16.mxu0 %v6273
        %6824 = vmatpush1.bf16.msra.mxu0 %v6272
        %6825 = vmatprep.subr.bf16.mxu0 %v6279
        %6826 = vmatpush1.bf16.msra.mxu0 %v6278
        %6827 = vmatprep.subr.bf16.mxu0 %v6285
        %6828 = vmatpush1.bf16.msra.mxu0 %v6284
        %6829 = vmatprep.subr.bf16.mxu0 %v6291
        %6830 = vmatpush1.bf16.msra.mxu0 %v6290
        %6831 = vmatprep.subr.bf16.mxu0 %v6297
        %6832 = vmatpush1.bf16.msra.mxu0 %v6296
        %6833 = vmatprep.subr.bf16.mxu0 %v6303
        %6834 = vmatpush1.bf16.msra.mxu0 %v6302
        %6835 = vmatprep.subr.bf16.mxu0 %v6309
        %6836 = vmatpush1.bf16.msra.mxu0 %v6308
        %6837 = vmatprep.mubr.bf16.mxu0 %v4839
        %6838 = vmatmul.mubr.bf16.gmra.mrb[0].mxu0 %v4838
        %v6839 = vpop.f32.mrb[0].mxu0
        %v6840 = vadd.f32 %v6799, %v6839
        %v6841 = vpop.f32.mrb[0].mxu0
        %v6842 = vadd.f32 %v6801, %v6841
        %v6843 = vpop.f32.mrb[0].mxu0
        %v6844 = vpop.f32.mrb[0].mxu0
        %6845 = vdwg.mxu0
        %6846 = vmatprep.subr.bf16.mxu0 %v6029
        %6847 = vmatpush1.bf16.msra.mxu0 %v6028
        %6848 = vmatprep.subr.bf16.mxu0 %v6035
        %6849 = vmatpush1.bf16.msra.mxu0 %v6034
        %6850 = vmatprep.subr.bf16.mxu0 %v6041
        %6851 = vmatpush1.bf16.msra.mxu0 %v6040
        %6852 = vmatprep.subr.bf16.mxu0 %v6047
        %6853 = vmatpush1.bf16.msra.mxu0 %v6046
        %6854 = vmatprep.subr.bf16.mxu0 %v6053
        %6855 = vmatpush1.bf16.msra.mxu0 %v6052
        %6856 = vmatprep.subr.bf16.mxu0 %v6059
        %6857 = vmatpush1.bf16.msra.mxu0 %v6058
        %6858 = vmatprep.subr.bf16.mxu0 %v6065
        %6859 = vmatpush1.bf16.msra.mxu0 %v6064
        %6860 = vmatprep.subr.bf16.mxu0 %v6071
        %6861 = vmatpush1.bf16.msra.mxu0 %v6070
        %6862 = vmatprep.subr.bf16.mxu0 %v6077
        %6863 = vmatpush1.bf16.msra.mxu0 %v6076
        %6864 = vmatprep.subr.bf16.mxu0 %v6083
        %6865 = vmatpush1.bf16.msra.mxu0 %v6082
        %6866 = vmatprep.subr.bf16.mxu0 %v6089
        %6867 = vmatpush1.bf16.msra.mxu0 %v6088
        %6868 = vmatprep.subr.bf16.mxu0 %v6095
        %6869 = vmatpush1.bf16.msra.mxu0 %v6094
        %6870 = vmatprep.subr.bf16.mxu0 %v6101
        %6871 = vmatpush1.bf16.msra.mxu0 %v6100
        %6872 = vmatprep.subr.bf16.mxu0 %v6107
        %6873 = vmatpush1.bf16.msra.mxu0 %v6106
        %6874 = vmatprep.subr.bf16.mxu0 %v6113
        %6875 = vmatpush1.bf16.msra.mxu0 %v6112
        %6876 = vmatprep.subr.bf16.mxu0 %v6119
        %6877 = vmatpush1.bf16.msra.mxu0 %v6118
        %6878 = vmatprep.mubr.bf16.mxu0 %v4835
        %6879 = vmatmul.mubr.bf16.gmra.mrb[0].mxu0 %v4834
        %v6880 = vpop.f32.mrb[0].mxu0
        %v6881 = vadd.f32 %v5149, %v6880
        %v6882 = vpop.f32.mrb[0].mxu0
        %v6883 = vadd.f32 %v5153, %v6882
        %v6884 = vpop.f32.mrb[0].mxu0
        %v6885 = vpop.f32.mrb[0].mxu0
        %6886 = vdwg.mxu0
        %6887 = vmatprep.subr.bf16.mxu0 %v6125
        %6888 = vmatpush1.bf16.msra.mxu0 %v6124
        %6889 = vmatprep.subr.bf16.mxu0 %v6131
        %6890 = vmatpush1.bf16.msra.mxu0 %v6130
        %6891 = vmatprep.subr.bf16.mxu0 %v6137
        %6892 = vmatpush1.bf16.msra.mxu0 %v6136
        %6893 = vmatprep.subr.bf16.mxu0 %v6143
        %6894 = vmatpush1.bf16.msra.mxu0 %v6142
        %6895 = vmatprep.subr.bf16.mxu0 %v6149
        %6896 = vmatpush1.bf16.msra.mxu0 %v6148
        %6897 = vmatprep.subr.bf16.mxu0 %v6155
        %6898 = vmatpush1.bf16.msra.mxu0 %v6154
        %6899 = vmatprep.subr.bf16.mxu0 %v6161
        %6900 = vmatpush1.bf16.msra.mxu0 %v6160
        %6901 = vmatprep.subr.bf16.mxu0 %v6167
        %6902 = vmatpush1.bf16.msra.mxu0 %v6166
        %6903 = vmatprep.subr.bf16.mxu0 %v6173
        %6904 = vmatpush1.bf16.msra.mxu0 %v6172
        %6905 = vmatprep.subr.bf16.mxu0 %v6179
        %6906 = vmatpush1.bf16.msra.mxu0 %v6178
        %6907 = vmatprep.subr.bf16.mxu0 %v6185
        %6908 = vmatpush1.bf16.msra.mxu0 %v6184
        %6909 = vmatprep.subr.bf16.mxu0 %v6191
        %6910 = vmatpush1.bf16.msra.mxu0 %v6190
        %6911 = vmatprep.subr.bf16.mxu0 %v6197
        %6912 = vmatpush1.bf16.msra.mxu0 %v6196
        %6913 = vmatprep.subr.bf16.mxu0 %v6203
        %6914 = vmatpush1.bf16.msra.mxu0 %v6202
        %6915 = vmatprep.subr.bf16.mxu0 %v6209
        %6916 = vmatpush1.bf16.msra.mxu0 %v6208
        %6917 = vmatprep.subr.bf16.mxu0 %v6215
        %6918 = vmatpush1.bf16.msra.mxu0 %v6214
        %6919 = vmatprep.mubr.bf16.mxu0 %v4837
        %6920 = vmatmul.mubr.bf16.gmra.mrb[0].mxu0 %v4836
        %v6921 = vpop.f32.mrb[0].mxu0
        %v6922 = vadd.f32 %v6881, %v6921
        %v6923 = vpop.f32.mrb[0].mxu0
        %v6924 = vadd.f32 %v6883, %v6923
        %v6925 = vpop.f32.mrb[0].mxu0
        %v6926 = vpop.f32.mrb[0].mxu0
        %6927 = vdwg.mxu0
        %6928 = vmatprep.subr.bf16.mxu0 %v6221
        %6929 = vmatpush1.bf16.msra.mxu0 %v6220
        %6930 = vmatprep.subr.bf16.mxu0 %v6227
        %6931 = vmatpush1.bf16.msra.mxu0 %v6226
        %6932 = vmatprep.subr.bf16.mxu0 %v6233
        %6933 = vmatpush1.bf16.msra.mxu0 %v6232
        %6934 = vmatprep.subr.bf16.mxu0 %v6239
        %6935 = vmatpush1.bf16.msra.mxu0 %v6238
        %6936 = vmatprep.subr.bf16.mxu0 %v6245
        %6937 = vmatpush1.bf16.msra.mxu0 %v6244
        %6938 = vmatprep.subr.bf16.mxu0 %v6251
        %6939 = vmatpush1.bf16.msra.mxu0 %v6250
        %6940 = vmatprep.subr.bf16.mxu0 %v6257
        %6941 = vmatpush1.bf16.msra.mxu0 %v6256
        %6942 = vmatprep.subr.bf16.mxu0 %v6263
        %6943 = vmatpush1.bf16.msra.mxu0 %v6262
        %6944 = vmatprep.subr.bf16.mxu0 %v6269
        %6945 = vmatpush1.bf16.msra.mxu0 %v6268
        %6946 = vmatprep.subr.bf16.mxu0 %v6275
        %6947 = vmatpush1.bf16.msra.mxu0 %v6274
        %6948 = vmatprep.subr.bf16.mxu0 %v6281
        %6949 = vmatpush1.bf16.msra.mxu0 %v6280
        %6950 = vmatprep.subr.bf16.mxu0 %v6287
        %6951 = vmatpush1.bf16.msra.mxu0 %v6286
        %6952 = vmatprep.subr.bf16.mxu0 %v6293
        %6953 = vmatpush1.bf16.msra.mxu0 %v6292
        %6954 = vmatprep.subr.bf16.mxu0 %v6299
        %6955 = vmatpush1.bf16.msra.mxu0 %v6298
        %6956 = vmatprep.subr.bf16.mxu0 %v6305
        %6957 = vmatpush1.bf16.msra.mxu0 %v6304
        %6958 = vmatprep.subr.bf16.mxu0 %v6311
        %6959 = vmatpush1.bf16.msra.mxu0 %v6310
        %6960 = vmatprep.mubr.bf16.mxu0 %v4839
        %6961 = vmatmul.mubr.bf16.gmra.mrb[0].mxu0 %v4838
        %v6962 = vpop.f32.mrb[0].mxu0
        %v6963 = vadd.f32 %v6922, %v6962
        %v6964 = vpop.f32.mrb[0].mxu0
        %v6965 = vadd.f32 %v6924, %v6964
        %v6966 = vpop.f32.mrb[0].mxu0
        %v6967 = vpop.f32.mrb[0].mxu0
        %6968 = vdwg.mxu0
        %v6969 = vpack.c.bf16 %v6717, %v6717
        %v6970 = vpack.c.bf16 %v6719, %v6719
        %v6971 = vpack.c.bf16 %v6840, %v6840
        %v6972 = vpack.c.bf16 %v6842, %v6842
        %v6973 = vpack.c.bf16 %v6963, %v6963
        %v6974 = vpack.c.bf16 %v6965, %v6965
        %v6975 = vld [vmem:[#allocation2] sm:$0xf]
        %v6976 = vld [vmem:[#allocation2 + $0x4] sm:$0xf]
        %v6977 = vld [vmem:[#allocation2 + $0x8] sm:$0xf]
        %v6978 = vld [vmem:[#allocation2 + $0xc] sm:$0xf]
        %v6979 = vld [vmem:[#allocation2 + $0x10] sm:$0xf]
        %v6980 = vld [vmem:[#allocation2 + $0x14] sm:$0xf]
        %v6981 = vld [vmem:[#allocation3] sm:$0xf]
        %v6982 = vld [vmem:[#allocation3 + $0x4] sm:$0xf]
        %v6983 = vld [vmem:[#allocation3 + $0x8] sm:$0xf]
        %v6984 = vld [vmem:[#allocation3 + $0xc] sm:$0xf]
        %v6985 = vld [vmem:[#allocation3 + $0x10] sm:$0xf]
        %v6986 = vld [vmem:[#allocation3 + $0x14] sm:$0xf]
        %6987 = vmatprep.subr.bf16.mxu0 0
        %6988 = vmatpush1.bf16.xpose.msra.mxu0 %v6975
        %6989 = vmatprep.subr.bf16.mxu0 0
        %6990 = vmatpush1.bf16.xpose.msra.mxu0 0
        %6991 = vmatprep.subr.bf16.mxu0 0
        %6992 = vmatpush1.bf16.xpose.msra.mxu0 0
        %6993 = vmatprep.subr.bf16.mxu0 0
        %6994 = vmatpush1.bf16.xpose.msra.mxu0 0
        %6995 = vmatprep.subr.bf16.mxu0 0
        %6996 = vmatpush1.bf16.xpose.msra.mxu0 0
        %6997 = vmatprep.subr.bf16.mxu0 0
        %6998 = vmatpush1.bf16.xpose.msra.mxu0 0
        %6999 = vmatprep.subr.bf16.mxu0 0
        %7000 = vmatpush1.bf16.xpose.msra.mxu0 0
        %7001 = vmatprep.subr.bf16.mxu0 0
        %7002 = vmatpush1.bf16.xpose.msra.mxu0 0
        %7003 = vmatprep.subr.bf16.mxu0 0
        %7004 = vmatpush1.bf16.xpose.msra.mxu0 0
        %7005 = vmatprep.subr.bf16.mxu0 0
        %7006 = vmatpush1.bf16.xpose.msra.mxu0 0
        %7007 = vmatprep.subr.bf16.mxu0 0
        %7008 = vmatpush1.bf16.xpose.msra.mxu0 0
        %7009 = vmatprep.subr.bf16.mxu0 0
        %7010 = vmatpush1.bf16.xpose.msra.mxu0 0
        %7011 = vmatprep.subr.bf16.mxu0 0
        %7012 = vmatpush1.bf16.xpose.msra.mxu0 0
        %7013 = vmatprep.subr.bf16.mxu0 0
        %7014 = vmatpush1.bf16.xpose.msra.mxu0 0
        %7015 = vmatprep.subr.bf16.mxu0 0
        %7016 = vmatpush1.bf16.xpose.msra.mxu0 0
        %7017 = vmatprep.subr.bf16.mxu0 0
        %7018 = vmatpush1.bf16.xpose.msra.mxu0 0
        %7019 = vmatprep.mubr.bf16.mxu0 0
        %7020 = vmatmul.mubr.bf16.gmra.mrb[0].mxu0 %v6969
        %v7021 = vpop.f32.mrb[0].mxu0
        %v7022 = vadd.f32 0.0, %v7021
        %v7023 = vpop.f32.mrb[0].mxu0
        %v7024 = vpop.f32.mrb[0].mxu0
        %v7025 = vpop.f32.mrb[0].mxu0
        %7026 = vdwg.mxu0
        %7027 = vmatprep.subr.bf16.mxu0 0
        %7028 = vmatpush1.bf16.xpose.msra.mxu0 %v6976
        %7029 = vmatprep.subr.bf16.mxu0 0
        %7030 = vmatpush1.bf16.xpose.msra.mxu0 0
        %7031 = vmatprep.subr.bf16.mxu0 0
        %7032 = vmatpush1.bf16.xpose.msra.mxu0 0
        %7033 = vmatprep.subr.bf16.mxu0 0
        %7034 = vmatpush1.bf16.xpose.msra.mxu0 0
        %7035 = vmatprep.subr.bf16.mxu0 0
        %7036 = vmatpush1.bf16.xpose.msra.mxu0 0
        %7037 = vmatprep.subr.bf16.mxu0 0
        %7038 = vmatpush1.bf16.xpose.msra.mxu0 0
        %7039 = vmatprep.subr.bf16.mxu0 0
        %7040 = vmatpush1.bf16.xpose.msra.mxu0 0
        %7041 = vmatprep.subr.bf16.mxu0 0
        %7042 = vmatpush1.bf16.xpose.msra.mxu0 0
        %7043 = vmatprep.subr.bf16.mxu0 0
        %7044 = vmatpush1.bf16.xpose.msra.mxu0 0
        %7045 = vmatprep.subr.bf16.mxu0 0
        %7046 = vmatpush1.bf16.xpose.msra.mxu0 0
        %7047 = vmatprep.subr.bf16.mxu0 0
        %7048 = vmatpush1.bf16.xpose.msra.mxu0 0
        %7049 = vmatprep.subr.bf16.mxu0 0
        %7050 = vmatpush1.bf16.xpose.msra.mxu0 0
        %7051 = vmatprep.subr.bf16.mxu0 0
        %7052 = vmatpush1.bf16.xpose.msra.mxu0 0
        %7053 = vmatprep.subr.bf16.mxu0 0
        %7054 = vmatpush1.bf16.xpose.msra.mxu0 0
        %7055 = vmatprep.subr.bf16.mxu0 0
        %7056 = vmatpush1.bf16.xpose.msra.mxu0 0
        %7057 = vmatprep.subr.bf16.mxu0 0
        %7058 = vmatpush1.bf16.xpose.msra.mxu0 0
        %7059 = vmatprep.mubr.bf16.mxu0 0
        %7060 = vmatmul.mubr.bf16.gmra.mrb[0].mxu0 %v6970
        %v7061 = vpop.f32.mrb[0].mxu0
        %v7062 = vadd.f32 0.0, %v7061
        %v7063 = vpop.f32.mrb[0].mxu0
        %v7064 = vpop.f32.mrb[0].mxu0
        %v7065 = vpop.f32.mrb[0].mxu0
        %7066 = vdwg.mxu0
        %7067 = vmatprep.subr.bf16.mxu0 0
        %7068 = vmatpush1.bf16.xpose.msra.mxu0 %v6977
        %7069 = vmatprep.subr.bf16.mxu0 0
        %7070 = vmatpush1.bf16.xpose.msra.mxu0 0
        %7071 = vmatprep.subr.bf16.mxu0 0
        %7072 = vmatpush1.bf16.xpose.msra.mxu0 0
        %7073 = vmatprep.subr.bf16.mxu0 0
        %7074 = vmatpush1.bf16.xpose.msra.mxu0 0
        %7075 = vmatprep.subr.bf16.mxu0 0
        %7076 = vmatpush1.bf16.xpose.msra.mxu0 0
        %7077 = vmatprep.subr.bf16.mxu0 0
        %7078 = vmatpush1.bf16.xpose.msra.mxu0 0
        %7079 = vmatprep.subr.bf16.mxu0 0
        %7080 = vmatpush1.bf16.xpose.msra.mxu0 0
        %7081 = vmatprep.subr.bf16.mxu0 0
        %7082 = vmatpush1.bf16.xpose.msra.mxu0 0
        %7083 = vmatprep.subr.bf16.mxu0 0
        %7084 = vmatpush1.bf16.xpose.msra.mxu0 0
        %7085 = vmatprep.subr.bf16.mxu0 0
        %7086 = vmatpush1.bf16.xpose.msra.mxu0 0
        %7087 = vmatprep.subr.bf16.mxu0 0
        %7088 = vmatpush1.bf16.xpose.msra.mxu0 0
        %7089 = vmatprep.subr.bf16.mxu0 0
        %7090 = vmatpush1.bf16.xpose.msra.mxu0 0
        %7091 = vmatprep.subr.bf16.mxu0 0
        %7092 = vmatpush1.bf16.xpose.msra.mxu0 0
        %7093 = vmatprep.subr.bf16.mxu0 0
        %7094 = vmatpush1.bf16.xpose.msra.mxu0 0
        %7095 = vmatprep.subr.bf16.mxu0 0
        %7096 = vmatpush1.bf16.xpose.msra.mxu0 0
        %7097 = vmatprep.subr.bf16.mxu0 0
        %7098 = vmatpush1.bf16.xpose.msra.mxu0 0
        %7099 = vmatprep.mubr.bf16.mxu0 0
        %7100 = vmatmul.mubr.bf16.gmra.mrb[0].mxu0 %v6971
        %v7101 = vpop.f32.mrb[0].mxu0
        %v7102 = vadd.f32 0.0, %v7101
        %v7103 = vpop.f32.mrb[0].mxu0
        %v7104 = vpop.f32.mrb[0].mxu0
        %v7105 = vpop.f32.mrb[0].mxu0
        %7106 = vdwg.mxu0
        %7107 = vmatprep.subr.bf16.mxu0 0
        %7108 = vmatpush1.bf16.xpose.msra.mxu0 %v6978
        %7109 = vmatprep.subr.bf16.mxu0 0
        %7110 = vmatpush1.bf16.xpose.msra.mxu0 0
        %7111 = vmatprep.subr.bf16.mxu0 0
        %7112 = vmatpush1.bf16.xpose.msra.mxu0 0
        %7113 = vmatprep.subr.bf16.mxu0 0
        %7114 = vmatpush1.bf16.xpose.msra.mxu0 0
        %7115 = vmatprep.subr.bf16.mxu0 0
        %7116 = vmatpush1.bf16.xpose.msra.mxu0 0
        %7117 = vmatprep.subr.bf16.mxu0 0
        %7118 = vmatpush1.bf16.xpose.msra.mxu0 0
        %7119 = vmatprep.subr.bf16.mxu0 0
        %7120 = vmatpush1.bf16.xpose.msra.mxu0 0
        %7121 = vmatprep.subr.bf16.mxu0 0
        %7122 = vmatpush1.bf16.xpose.msra.mxu0 0
        %7123 = vmatprep.subr.bf16.mxu0 0
        %7124 = vmatpush1.bf16.xpose.msra.mxu0 0
        %7125 = vmatprep.subr.bf16.mxu0 0
        %7126 = vmatpush1.bf16.xpose.msra.mxu0 0
        %7127 = vmatprep.subr.bf16.mxu0 0
        %7128 = vmatpush1.bf16.xpose.msra.mxu0 0
        %7129 = vmatprep.subr.bf16.mxu0 0
        %7130 = vmatpush1.bf16.xpose.msra.mxu0 0
        %7131 = vmatprep.subr.bf16.mxu0 0
        %7132 = vmatpush1.bf16.xpose.msra.mxu0 0
        %7133 = vmatprep.subr.bf16.mxu0 0
        %7134 = vmatpush1.bf16.xpose.msra.mxu0 0
        %7135 = vmatprep.subr.bf16.mxu0 0
        %7136 = vmatpush1.bf16.xpose.msra.mxu0 0
        %7137 = vmatprep.subr.bf16.mxu0 0
        %7138 = vmatpush1.bf16.xpose.msra.mxu0 0
        %7139 = vmatprep.mubr.bf16.mxu0 0
        %7140 = vmatmul.mubr.bf16.gmra.mrb[0].mxu0 %v6972
        %v7141 = vpop.f32.mrb[0].mxu0
        %v7142 = vadd.f32 0.0, %v7141
        %v7143 = vpop.f32.mrb[0].mxu0
        %v7144 = vpop.f32.mrb[0].mxu0
        %v7145 = vpop.f32.mrb[0].mxu0
        %7146 = vdwg.mxu0
        %7147 = vmatprep.subr.bf16.mxu0 0
        %7148 = vmatpush1.bf16.xpose.msra.mxu0 %v6979
        %7149 = vmatprep.subr.bf16.mxu0 0
        %7150 = vmatpush1.bf16.xpose.msra.mxu0 0
        %7151 = vmatprep.subr.bf16.mxu0 0
        %7152 = vmatpush1.bf16.xpose.msra.mxu0 0
        %7153 = vmatprep.subr.bf16.mxu0 0
        %7154 = vmatpush1.bf16.xpose.msra.mxu0 0
        %7155 = vmatprep.subr.bf16.mxu0 0
        %7156 = vmatpush1.bf16.xpose.msra.mxu0 0
        %7157 = vmatprep.subr.bf16.mxu0 0
        %7158 = vmatpush1.bf16.xpose.msra.mxu0 0
        %7159 = vmatprep.subr.bf16.mxu0 0
        %7160 = vmatpush1.bf16.xpose.msra.mxu0 0
        %7161 = vmatprep.subr.bf16.mxu0 0
        %7162 = vmatpush1.bf16.xpose.msra.mxu0 0
        %7163 = vmatprep.subr.bf16.mxu0 0
        %7164 = vmatpush1.bf16.xpose.msra.mxu0 0
        %7165 = vmatprep.subr.bf16.mxu0 0
        %7166 = vmatpush1.bf16.xpose.msra.mxu0 0
        %7167 = vmatprep.subr.bf16.mxu0 0
        %7168 = vmatpush1.bf16.xpose.msra.mxu0 0
        %7169 = vmatprep.subr.bf16.mxu0 0
        %7170 = vmatpush1.bf16.xpose.msra.mxu0 0
        %7171 = vmatprep.subr.bf16.mxu0 0
        %7172 = vmatpush1.bf16.xpose.msra.mxu0 0
        %7173 = vmatprep.subr.bf16.mxu0 0
        %7174 = vmatpush1.bf16.xpose.msra.mxu0 0
        %7175 = vmatprep.subr.bf16.mxu0 0
        %7176 = vmatpush1.bf16.xpose.msra.mxu0 0
        %7177 = vmatprep.subr.bf16.mxu0 0
        %7178 = vmatpush1.bf16.xpose.msra.mxu0 0
        %7179 = vmatprep.mubr.bf16.mxu0 0
        %7180 = vmatmul.mubr.bf16.gmra.mrb[0].mxu0 %v6973
        %v7181 = vpop.f32.mrb[0].mxu0
        %v7182 = vadd.f32 0.0, %v7181
        %v7183 = vpop.f32.mrb[0].mxu0
        %v7184 = vpop.f32.mrb[0].mxu0
        %v7185 = vpop.f32.mrb[0].mxu0
        %7186 = vdwg.mxu0
        %7187 = vmatprep.subr.bf16.mxu0 0
        %7188 = vmatpush1.bf16.xpose.msra.mxu0 %v6980
        %7189 = vmatprep.subr.bf16.mxu0 0
        %7190 = vmatpush1.bf16.xpose.msra.mxu0 0
        %7191 = vmatprep.subr.bf16.mxu0 0
        %7192 = vmatpush1.bf16.xpose.msra.mxu0 0
        %7193 = vmatprep.subr.bf16.mxu0 0
        %7194 = vmatpush1.bf16.xpose.msra.mxu0 0
        %7195 = vmatprep.subr.bf16.mxu0 0
        %7196 = vmatpush1.bf16.xpose.msra.mxu0 0
        %7197 = vmatprep.subr.bf16.mxu0 0
        %7198 = vmatpush1.bf16.xpose.msra.mxu0 0
        %7199 = vmatprep.subr.bf16.mxu0 0
        %7200 = vmatpush1.bf16.xpose.msra.mxu0 0
        %7201 = vmatprep.subr.bf16.mxu0 0
        %7202 = vmatpush1.bf16.xpose.msra.mxu0 0
        %7203 = vmatprep.subr.bf16.mxu0 0
        %7204 = vmatpush1.bf16.xpose.msra.mxu0 0
        %7205 = vmatprep.subr.bf16.mxu0 0
        %7206 = vmatpush1.bf16.xpose.msra.mxu0 0
        %7207 = vmatprep.subr.bf16.mxu0 0
        %7208 = vmatpush1.bf16.xpose.msra.mxu0 0
        %7209 = vmatprep.subr.bf16.mxu0 0
        %7210 = vmatpush1.bf16.xpose.msra.mxu0 0
        %7211 = vmatprep.subr.bf16.mxu0 0
        %7212 = vmatpush1.bf16.xpose.msra.mxu0 0
        %7213 = vmatprep.subr.bf16.mxu0 0
        %7214 = vmatpush1.bf16.xpose.msra.mxu0 0
        %7215 = vmatprep.subr.bf16.mxu0 0
        %7216 = vmatpush1.bf16.xpose.msra.mxu0 0
        %7217 = vmatprep.subr.bf16.mxu0 0
        %7218 = vmatpush1.bf16.xpose.msra.mxu0 0
        %7219 = vmatprep.mubr.bf16.mxu0 0
        %7220 = vmatmul.mubr.bf16.gmra.mrb[0].mxu0 %v6974
        %v7221 = vpop.f32.mrb[0].mxu0
        %v7222 = vadd.f32 0.0, %v7221
        %v7223 = vpop.f32.mrb[0].mxu0
        %v7224 = vpop.f32.mrb[0].mxu0
        %v7225 = vpop.f32.mrb[0].mxu0
        %7226 = vdwg.mxu0
        %v7227 = vmul.f32 %v7022, 0.088388346
        %v7228 = vmul.f32 %v7062, 0.088388346
        %v7229 = vmul.f32 %v7102, 0.088388346
        %v7230 = vmul.f32 %v7142, 0.088388346
        %v7231 = vmul.f32 %v7182, 0.088388346
        %v7232 = vmul.f32 %v7222, 0.088388346
        %v7233 = vld [vmem:[%s516] sm:$0xf]
        %vm7234 = vcmp.gt.bf16.partialorder %v7233, 0
        %v7235 = vsel %vm7234, 65537, 0
        %v7236 = vunpack.c.l.b16 %v7235
        %vm7237 = vcmp.ne.s32.totalorder %v7236, 0
        %v7238 = vsel %vm7237, 1, 0
        %vm7239 = vcmp.eq.s32.totalorder %v7238, 1
        %v7240 = vsel %vm7239, -1e+18, %v7227
        %v7241 = vsel %vm7239, -1e+18, %v7228
        %v7242 = vsel %vm7239, -1e+18, %v7229
        %v7243 = vsel %vm7239, -1e+18, %v7230
        %v7244 = vsel %vm7239, -1e+18, %v7231
        %v7245 = vsel %vm7239, -1e+18, %v7232
        %vm7246 = vcmask 64512
        %v7247 = vsel %vm7246, %v7240, -inf
        %7248 = vmax.xlane.f32.xlu0 %v7247
        %v7249 = vpop.xlane.xlu0 %7248
        %v7250 = vsel %vm7246, %v7241, -inf
        %7251 = vmax.xlane.f32.xlu0 %v7250
        %v7252 = vpop.xlane.xlu0 %7251
        %v7253 = vsel %vm7246, %v7242, -inf
        %7254 = vmax.xlane.f32.xlu0 %v7253
        %v7255 = vpop.xlane.xlu0 %7254
        %v7256 = vsel %vm7246, %v7243, -inf
        %7257 = vmax.xlane.f32.xlu0 %v7256
        %v7258 = vpop.xlane.xlu0 %7257
        %v7259 = vsel %vm7246, %v7244, -inf
        %7260 = vmax.xlane.f32.xlu0 %v7259
        %v7261 = vpop.xlane.xlu0 %7260
        %v7262 = vsel %vm7246, %v7245, -inf
        %7263 = vmax.xlane.f32.xlu0 %v7262
        %v7264 = vpop.xlane.xlu0 %7263
        %v7265 = vsub.f32 %v7240, %v7249
        %v7266 = vsub.f32 %v7241, %v7252
        %v7267 = vsub.f32 %v7242, %v7255
        %v7268 = vsub.f32 %v7243, %v7258
        %v7269 = vsub.f32 %v7244, %v7261
        %v7270 = vsub.f32 %v7245, %v7264
        %v7271 = vmul.f32 %v7265, 1.442695
        %v7272 = vpow.pop %v7271
        %v7273 = vmul.f32 %v7266, 1.442695
        %v7274 = vpow.pop %v7273
        %v7275 = vmul.f32 %v7267, 1.442695
        %v7276 = vpow.pop %v7275
        %v7277 = vmul.f32 %v7268, 1.442695
        %v7278 = vpow.pop %v7277
        %v7279 = vmul.f32 %v7269, 1.442695
        %v7280 = vpow.pop %v7279
        %v7281 = vmul.f32 %v7270, 1.442695
        %v7282 = vpow.pop %v7281
        %v7283 = vsel %vm7246, %v7272, 0.0
        %7284 = vadd.xlane.f32.xlu0 %v7283
        %v7285 = vpop.xlane.xlu0 %7284
        %v7286 = vsel %vm7246, %v7274, 0.0
        %7287 = vadd.xlane.f32.xlu0 %v7286
        %v7288 = vpop.xlane.xlu0 %7287
        %v7289 = vsel %vm7246, %v7276, 0.0
        %7290 = vadd.xlane.f32.xlu0 %v7289
        %v7291 = vpop.xlane.xlu0 %7290
        %v7292 = vsel %vm7246, %v7278, 0.0
        %7293 = vadd.xlane.f32.xlu0 %v7292
        %v7294 = vpop.xlane.xlu0 %7293
        %v7295 = vsel %vm7246, %v7280, 0.0
        %7296 = vadd.xlane.f32.xlu0 %v7295
        %v7297 = vpop.xlane.xlu0 %7296
        %v7298 = vsel %vm7246, %v7282, 0.0
        %7299 = vadd.xlane.f32.xlu0 %v7298
        %v7300 = vpop.xlane.xlu0 %7299
        %v7301 = vrcp.pop %v7285
        %v7302 = vrcp.pop %v7288
        %v7303 = vrcp.pop %v7291
        %v7304 = vrcp.pop %v7294
        %v7305 = vrcp.pop %v7297
        %v7306 = vrcp.pop %v7300
        %v7307 = vmul.f32 %v7272, %v7301
        %v7308 = vmul.f32 %v7274, %v7302
        %v7309 = vmul.f32 %v7276, %v7303
        %v7310 = vmul.f32 %v7278, %v7304
        %v7311 = vmul.f32 %v7280, %v7305
        %v7312 = vmul.f32 %v7282, %v7306
        %v7313 = vpack.c.bf16 %v7307, %v7307
        %v7314 = vpack.c.bf16 %v7308, %v7308
        %v7315 = vpack.c.bf16 %v7309, %v7309
        %v7316 = vpack.c.bf16 %v7310, %v7310
        %v7317 = vpack.c.bf16 %v7311, %v7311
        %v7318 = vpack.c.bf16 %v7312, %v7312
        %v7320 = vsel %vm7246, %v7313, 0
        %vm7322 = vcmask 1043456
        %v7324 = vsel %vm7322, %v6981, 0
        %7326 = vmatprep.subr.bf16.mxu0 0
        %7327 = vmatpush1.bf16.msra.mxu0 %v7324
        %7328 = vmatprep.subr.bf16.mxu0 0
        %7329 = vmatpush1.bf16.msra.mxu0 0
        %7330 = vmatprep.subr.bf16.mxu0 0
        %7331 = vmatpush1.bf16.msra.mxu0 0
        %7332 = vmatprep.subr.bf16.mxu0 0
        %7333 = vmatpush1.bf16.msra.mxu0 0
        %7334 = vmatprep.subr.bf16.mxu0 0
        %7335 = vmatpush1.bf16.msra.mxu0 0
        %7336 = vmatprep.subr.bf16.mxu0 0
        %7337 = vmatpush1.bf16.msra.mxu0 0
        %7338 = vmatprep.subr.bf16.mxu0 0
        %7339 = vmatpush1.bf16.msra.mxu0 0
        %7340 = vmatprep.subr.bf16.mxu0 0
        %7341 = vmatpush1.bf16.msra.mxu0 0
        %7342 = vmatprep.subr.bf16.mxu0 0
        %7343 = vmatpush1.bf16.msra.mxu0 0
        %7344 = vmatprep.subr.bf16.mxu0 0
        %7345 = vmatpush1.bf16.msra.mxu0 0
        %7346 = vmatprep.subr.bf16.mxu0 0
        %7347 = vmatpush1.bf16.msra.mxu0 0
        %7348 = vmatprep.subr.bf16.mxu0 0
        %7349 = vmatpush1.bf16.msra.mxu0 0
        %7350 = vmatprep.subr.bf16.mxu0 0
        %7351 = vmatpush1.bf16.msra.mxu0 0
        %7352 = vmatprep.subr.bf16.mxu0 0
        %7353 = vmatpush1.bf16.msra.mxu0 0
        %7354 = vmatprep.subr.bf16.mxu0 0
        %7355 = vmatpush1.bf16.msra.mxu0 0
        %7356 = vmatprep.subr.bf16.mxu0 0
        %7357 = vmatpush1.bf16.msra.mxu0 0
        %7358 = vmatprep.mubr.bf16.mxu0 0
        %7359 = vmatmul.mubr.bf16.gmra.mrb[0].mxu0 %v7320
        %v7360 = vpop.f32.mrb[0].mxu0
        %v7361 = vadd.f32 0.0, %v7360
        %v7362 = vpop.f32.mrb[0].mxu0
        %v7363 = vpop.f32.mrb[0].mxu0
        %v7364 = vpop.f32.mrb[0].mxu0
        %7365 = vdwg.mxu0
        %v7367 = vsel %vm7246, %v7314, 0
        %v7370 = vsel %vm7322, %v6982, 0
        %7372 = vmatprep.subr.bf16.mxu0 0
        %7373 = vmatpush1.bf16.msra.mxu0 %v7370
        %7374 = vmatprep.subr.bf16.mxu0 0
        %7375 = vmatpush1.bf16.msra.mxu0 0
        %7376 = vmatprep.subr.bf16.mxu0 0
        %7377 = vmatpush1.bf16.msra.mxu0 0
        %7378 = vmatprep.subr.bf16.mxu0 0
        %7379 = vmatpush1.bf16.msra.mxu0 0
        %7380 = vmatprep.subr.bf16.mxu0 0
        %7381 = vmatpush1.bf16.msra.mxu0 0
        %7382 = vmatprep.subr.bf16.mxu0 0
        %7383 = vmatpush1.bf16.msra.mxu0 0
        %7384 = vmatprep.subr.bf16.mxu0 0
        %7385 = vmatpush1.bf16.msra.mxu0 0
        %7386 = vmatprep.subr.bf16.mxu0 0
        %7387 = vmatpush1.bf16.msra.mxu0 0
        %7388 = vmatprep.subr.bf16.mxu0 0
        %7389 = vmatpush1.bf16.msra.mxu0 0
        %7390 = vmatprep.subr.bf16.mxu0 0
        %7391 = vmatpush1.bf16.msra.mxu0 0
        %7392 = vmatprep.subr.bf16.mxu0 0
        %7393 = vmatpush1.bf16.msra.mxu0 0
        %7394 = vmatprep.subr.bf16.mxu0 0
        %7395 = vmatpush1.bf16.msra.mxu0 0
        %7396 = vmatprep.subr.bf16.mxu0 0
        %7397 = vmatpush1.bf16.msra.mxu0 0
        %7398 = vmatprep.subr.bf16.mxu0 0
        %7399 = vmatpush1.bf16.msra.mxu0 0
        %7400 = vmatprep.subr.bf16.mxu0 0
        %7401 = vmatpush1.bf16.msra.mxu0 0
        %7402 = vmatprep.subr.bf16.mxu0 0
        %7403 = vmatpush1.bf16.msra.mxu0 0
        %7404 = vmatprep.mubr.bf16.mxu0 0
        %7405 = vmatmul.mubr.bf16.gmra.mrb[0].mxu0 %v7367
        %v7406 = vpop.f32.mrb[0].mxu0
        %v7407 = vadd.f32 0.0, %v7406
        %v7408 = vpop.f32.mrb[0].mxu0
        %v7409 = vpop.f32.mrb[0].mxu0
        %v7410 = vpop.f32.mrb[0].mxu0
        %7411 = vdwg.mxu0
        %v7413 = vsel %vm7246, %v7315, 0
        %v7416 = vsel %vm7322, %v6983, 0
        %7418 = vmatprep.subr.bf16.mxu0 0
        %7419 = vmatpush1.bf16.msra.mxu0 %v7416
        %7420 = vmatprep.subr.bf16.mxu0 0
        %7421 = vmatpush1.bf16.msra.mxu0 0
        %7422 = vmatprep.subr.bf16.mxu0 0
        %7423 = vmatpush1.bf16.msra.mxu0 0
        %7424 = vmatprep.subr.bf16.mxu0 0
        %7425 = vmatpush1.bf16.msra.mxu0 0
        %7426 = vmatprep.subr.bf16.mxu0 0
        %7427 = vmatpush1.bf16.msra.mxu0 0
        %7428 = vmatprep.subr.bf16.mxu0 0
        %7429 = vmatpush1.bf16.msra.mxu0 0
        %7430 = vmatprep.subr.bf16.mxu0 0
        %7431 = vmatpush1.bf16.msra.mxu0 0
        %7432 = vmatprep.subr.bf16.mxu0 0
        %7433 = vmatpush1.bf16.msra.mxu0 0
        %7434 = vmatprep.subr.bf16.mxu0 0
        %7435 = vmatpush1.bf16.msra.mxu0 0
        %7436 = vmatprep.subr.bf16.mxu0 0
        %7437 = vmatpush1.bf16.msra.mxu0 0
        %7438 = vmatprep.subr.bf16.mxu0 0
        %7439 = vmatpush1.bf16.msra.mxu0 0
        %7440 = vmatprep.subr.bf16.mxu0 0
        %7441 = vmatpush1.bf16.msra.mxu0 0
        %7442 = vmatprep.subr.bf16.mxu0 0
        %7443 = vmatpush1.bf16.msra.mxu0 0
        %7444 = vmatprep.subr.bf16.mxu0 0
        %7445 = vmatpush1.bf16.msra.mxu0 0
        %7446 = vmatprep.subr.bf16.mxu0 0
        %7447 = vmatpush1.bf16.msra.mxu0 0
        %7448 = vmatprep.subr.bf16.mxu0 0
        %7449 = vmatpush1.bf16.msra.mxu0 0
        %7450 = vmatprep.mubr.bf16.mxu0 0
        %7451 = vmatmul.mubr.bf16.gmra.mrb[0].mxu0 %v7413
        %v7452 = vpop.f32.mrb[0].mxu0
        %v7453 = vadd.f32 0.0, %v7452
        %v7454 = vpop.f32.mrb[0].mxu0
        %v7455 = vpop.f32.mrb[0].mxu0
        %v7456 = vpop.f32.mrb[0].mxu0
        %7457 = vdwg.mxu0
        %v7459 = vsel %vm7246, %v7316, 0
        %v7462 = vsel %vm7322, %v6984, 0
        %7464 = vmatprep.subr.bf16.mxu0 0
        %7465 = vmatpush1.bf16.msra.mxu0 %v7462
        %7466 = vmatprep.subr.bf16.mxu0 0
        %7467 = vmatpush1.bf16.msra.mxu0 0
        %7468 = vmatprep.subr.bf16.mxu0 0
        %7469 = vmatpush1.bf16.msra.mxu0 0
        %7470 = vmatprep.subr.bf16.mxu0 0
        %7471 = vmatpush1.bf16.msra.mxu0 0
        %7472 = vmatprep.subr.bf16.mxu0 0
        %7473 = vmatpush1.bf16.msra.mxu0 0
        %7474 = vmatprep.subr.bf16.mxu0 0
        %7475 = vmatpush1.bf16.msra.mxu0 0
        %7476 = vmatprep.subr.bf16.mxu0 0
        %7477 = vmatpush1.bf16.msra.mxu0 0
        %7478 = vmatprep.subr.bf16.mxu0 0
        %7479 = vmatpush1.bf16.msra.mxu0 0
        %7480 = vmatprep.subr.bf16.mxu0 0
        %7481 = vmatpush1.bf16.msra.mxu0 0
        %7482 = vmatprep.subr.bf16.mxu0 0
        %7483 = vmatpush1.bf16.msra.mxu0 0
        %7484 = vmatprep.subr.bf16.mxu0 0
        %7485 = vmatpush1.bf16.msra.mxu0 0
        %7486 = vmatprep.subr.bf16.mxu0 0
        %7487 = vmatpush1.bf16.msra.mxu0 0
        %7488 = vmatprep.subr.bf16.mxu0 0
        %7489 = vmatpush1.bf16.msra.mxu0 0
        %7490 = vmatprep.subr.bf16.mxu0 0
        %7491 = vmatpush1.bf16.msra.mxu0 0
        %7492 = vmatprep.subr.bf16.mxu0 0
        %7493 = vmatpush1.bf16.msra.mxu0 0
        %7494 = vmatprep.subr.bf16.mxu0 0
        %7495 = vmatpush1.bf16.msra.mxu0 0
        %7496 = vmatprep.mubr.bf16.mxu0 0
        %7497 = vmatmul.mubr.bf16.gmra.mrb[0].mxu0 %v7459
        %v7498 = vpop.f32.mrb[0].mxu0
        %v7499 = vadd.f32 0.0, %v7498
        %v7500 = vpop.f32.mrb[0].mxu0
        %v7501 = vpop.f32.mrb[0].mxu0
        %v7502 = vpop.f32.mrb[0].mxu0
        %7503 = vdwg.mxu0
        %v7505 = vsel %vm7246, %v7317, 0
        %v7508 = vsel %vm7322, %v6985, 0
        %7510 = vmatprep.subr.bf16.mxu0 0
        %7511 = vmatpush1.bf16.msra.mxu0 %v7508
        %7512 = vmatprep.subr.bf16.mxu0 0
        %7513 = vmatpush1.bf16.msra.mxu0 0
        %7514 = vmatprep.subr.bf16.mxu0 0
        %7515 = vmatpush1.bf16.msra.mxu0 0
        %7516 = vmatprep.subr.bf16.mxu0 0
        %7517 = vmatpush1.bf16.msra.mxu0 0
        %7518 = vmatprep.subr.bf16.mxu0 0
        %7519 = vmatpush1.bf16.msra.mxu0 0
        %7520 = vmatprep.subr.bf16.mxu0 0
        %7521 = vmatpush1.bf16.msra.mxu0 0
        %7522 = vmatprep.subr.bf16.mxu0 0
        %7523 = vmatpush1.bf16.msra.mxu0 0
        %7524 = vmatprep.subr.bf16.mxu0 0
        %7525 = vmatpush1.bf16.msra.mxu0 0
        %7526 = vmatprep.subr.bf16.mxu0 0
        %7527 = vmatpush1.bf16.msra.mxu0 0
        %7528 = vmatprep.subr.bf16.mxu0 0
        %7529 = vmatpush1.bf16.msra.mxu0 0
        %7530 = vmatprep.subr.bf16.mxu0 0
        %7531 = vmatpush1.bf16.msra.mxu0 0
        %7532 = vmatprep.subr.bf16.mxu0 0
        %7533 = vmatpush1.bf16.msra.mxu0 0
        %7534 = vmatprep.subr.bf16.mxu0 0
        %7535 = vmatpush1.bf16.msra.mxu0 0
        %7536 = vmatprep.subr.bf16.mxu0 0
        %7537 = vmatpush1.bf16.msra.mxu0 0
        %7538 = vmatprep.subr.bf16.mxu0 0
        %7539 = vmatpush1.bf16.msra.mxu0 0
        %7540 = vmatprep.subr.bf16.mxu0 0
        %7541 = vmatpush1.bf16.msra.mxu0 0
        %7542 = vmatprep.mubr.bf16.mxu0 0
        %7543 = vmatmul.mubr.bf16.gmra.mrb[0].mxu0 %v7505
        %v7544 = vpop.f32.mrb[0].mxu0
        %v7545 = vadd.f32 0.0, %v7544
        %v7546 = vpop.f32.mrb[0].mxu0
        %v7547 = vpop.f32.mrb[0].mxu0
        %v7548 = vpop.f32.mrb[0].mxu0
        %7549 = vdwg.mxu0
        %v7551 = vsel %vm7246, %v7318, 0
        %v7554 = vsel %vm7322, %v6986, 0
        %7556 = vmatprep.subr.bf16.mxu0 0
        %7557 = vmatpush1.bf16.msra.mxu0 %v7554
        %7558 = vmatprep.subr.bf16.mxu0 0
        %7559 = vmatpush1.bf16.msra.mxu0 0
        %7560 = vmatprep.subr.bf16.mxu0 0
        %7561 = vmatpush1.bf16.msra.mxu0 0
        %7562 = vmatprep.subr.bf16.mxu0 0
        %7563 = vmatpush1.bf16.msra.mxu0 0
        %7564 = vmatprep.subr.bf16.mxu0 0
        %7565 = vmatpush1.bf16.msra.mxu0 0
        %7566 = vmatprep.subr.bf16.mxu0 0
        %7567 = vmatpush1.bf16.msra.mxu0 0
        %7568 = vmatprep.subr.bf16.mxu0 0
        %7569 = vmatpush1.bf16.msra.mxu0 0
        %7570 = vmatprep.subr.bf16.mxu0 0
        %7571 = vmatpush1.bf16.msra.mxu0 0
        %7572 = vmatprep.subr.bf16.mxu0 0
        %7573 = vmatpush1.bf16.msra.mxu0 0
        %7574 = vmatprep.subr.bf16.mxu0 0
        %7575 = vmatpush1.bf16.msra.mxu0 0
        %7576 = vmatprep.subr.bf16.mxu0 0
        %7577 = vmatpush1.bf16.msra.mxu0 0
        %7578 = vmatprep.subr.bf16.mxu0 0
        %7579 = vmatpush1.bf16.msra.mxu0 0
        %7580 = vmatprep.subr.bf16.mxu0 0
        %7581 = vmatpush1.bf16.msra.mxu0 0
        %7582 = vmatprep.subr.bf16.mxu0 0
        %7583 = vmatpush1.bf16.msra.mxu0 0
        %7584 = vmatprep.subr.bf16.mxu0 0
        %7585 = vmatpush1.bf16.msra.mxu0 0
        %7586 = vmatprep.subr.bf16.mxu0 0
        %7587 = vmatpush1.bf16.msra.mxu0 0
        %7588 = vmatprep.mubr.bf16.mxu0 0
        %7589 = vmatmul.mubr.bf16.gmra.mrb[0].mxu0 %v7551
        %v7590 = vpop.f32.mrb[0].mxu0
        %v7591 = vadd.f32 0.0, %v7590
        %v7592 = vpop.f32.mrb[0].mxu0
        %v7593 = vpop.f32.mrb[0].mxu0
        %v7594 = vpop.f32.mrb[0].mxu0
        %7595 = vdwg.mxu0
        %v7596 = vpack.c.bf16 %v7361, %v7361
        %7597 = vst [vmem:[%s508] sm:$0xf] %v7596
        %v7598 = vpack.c.bf16 %v7407, %v7407
        %7599 = vst [vmem:[%s508 + $0x4] sm:$0xf] %v7598
        %v7600 = vpack.c.bf16 %v7453, %v7453
        %7601 = vst [vmem:[%s508 + $0x8] sm:$0xf] %v7600
        %v7602 = vpack.c.bf16 %v7499, %v7499
        %7603 = vst [vmem:[%s508 + $0xc] sm:$0xf] %v7602
        %v7604 = vpack.c.bf16 %v7545, %v7545
        %7605 = vst [vmem:[%s508 + $0x10] sm:$0xf] %v7604
        %v7606 = vpack.c.bf16 %v7591, %v7591
        %7607 = vst [vmem:[%s508 + $0x14] sm:$0xf] %v7606
        %s7608 = sand.u32 %s262, 1
        %s7609 = scalar_lea.sflag [#allocation6], %s7608
        %s7610 = sand.u32 %s262, 1
        %s7611 = smul.addr %s7610, 24
        %s7612 = scalar_lea.vmem [#allocation18], %s7611
        // Predicated region
        $region93: #{tpu_custom_call.1} parent=55 // pred_check
          %p7613 = pneg %p272
        $region94: #{tpu_custom_call.1} parent=55 // pred_check_branch
          %7615 = sbr.rel (%p7613) target = $region96
        $region95: #{tpu_custom_call.1} parent=55 // pred_region
          %s7617 = ssub.s32 384, 384
          %7618 = vsyncadd %s7609, %s7617
          %s7619 = smul.addr %s37, 6
          %s7620 = smul.addr %s36, 12
          %s7621 = sadd.s32 %s7619, %s7620
          %s7622 = smul.addr %s7621, 64
          %s7623 = scalar_lea.hbm %s9, %s7622
          %s7625 = sshll.u32 %s7612, 4
          %s7626 = int_to_ptr.vmem [resolvable:$true] %s7625
          %7628 = dma.vmem_to_hbm [thread:$0]  %s7626, 384, %s7623, %s7609
        $region96: #{tpu_custom_call.1} parent=55 // pred_fallthru
          _
      $region56: #{tpu_custom_call.1} parent=5 // pred_fallthru
        _
      %p7629 = scmp.le.s32.totalorder 2, %s27
      // Predicated region
      $region97: #{tpu_custom_call.1} parent=5 // pred_check
        %p7630 = pneg %p7629
      $region98: #{tpu_custom_call.1} parent=5 // pred_check_branch
        %7632 = sbr.rel (%p7630) target = $region100
      $region99: #{tpu_custom_call.1} parent=5 // pred_region
        %s7633 = ssub.s32 %s27, 2
        // Predicated region
        $region101: #{tpu_custom_call.1} parent=99 // pred_check
          %p7634 = pneg %p278
        $region102: #{tpu_custom_call.1} parent=99 // pred_check_branch
          %7636 = sbr.rel (%p7634) target = $region104
        $region103: #{tpu_custom_call.1} parent=99 // pred_region
          %s7637 = sand.u32 %s263, 1
          %s7638 = scalar_lea.sflag [#allocation6], %s7637
          %s7639 = sand.u32 %s263, 1
          %s7640 = smul.addr %s7639, 24
          %s7641 = scalar_lea.vmem [#allocation18], %s7640
          %7642 = dma.done %s7638, 384
        $region104: #{tpu_custom_call.1} parent=99 // pred_fallthru
          _
      $region100: #{tpu_custom_call.1} parent=5 // pred_fallthru
        _
    $region6: #{tpu_custom_call.1} parent=1 // loop_footer
      %s31 = sadd.s32 1, %s27
    $region7: #{tpu_custom_call.1} parent=1 // loop_footer_branch
      %26 = sbr.rel target = $region3
    $region8: #{tpu_custom_call.1} parent=1 // loop_exit
      _
    %7643 = vsyncpa [#allocation5], 1
    %s7644 = scalar_lea.sflag [#allocation5], 1
    %7645 = vsyncpa %s7644, 1
    %7646 = vsyncpa [#allocation8], 1
    %s7647 = scalar_lea.sflag [#allocation8], 1
    %7648 = vsyncpa %s7647, 1
    %7649 = vsyncpa [#allocation11], 1
    %7650 = vsyncpa [#allocation14], 1
    %7651 = vsyncpa [#allocation17], 1
    %7652 = vsyncpa [#allocation6], 1
    %s7653 = scalar_lea.sflag [#allocation6], 1
    %7654 = vsyncpa %s7653, 1

</llo_original>
